<compile_context>
chip_gen: v6e
topology: v6e:2x2x1
jax: 0.10.0
libtpu: 0.0.40
codegen_flags: <defaults>
</compile_context>

<pallas_src>
import jax
import jax.numpy as jnp
from jax import lax
from jax.experimental import pallas as pl
from jax.experimental.pallas import tpu as pltpu

EPS = 1e-5


def block_kernel(x_ref,
                 dw1_ref, pw1_ref, g1_ref, b1_ref,
                 dw2_ref, pw2_ref, g2_ref, b2_ref,
                 dw3_ref, pw3_ref, g3_ref, b3_ref,
                 o_ref):
    N, H, W, C = x_ref.shape
    Hp = H + 2                      # H plus a 1-row halo on each side
    Mp = N * Hp * W                 # rows of the halo-padded, W-major flattening
    M = N * H * W                   # number of pixels (BN reduction length)
    inv_m = 1.0 / M

    # w-coordinate edge masks (computed once, reused by all three blocks).
    wcol = lax.broadcasted_iota(jnp.int32, (W, C), 0)
    not_first_col = wcol != 0            # broadcasts against (N, Hp, W, C)
    not_last_col = wcol != (W - 1)

    def sep_conv_block(x4, dw_ref, pw_ref, g_ref, b_ref):
        # ---- ReLU ----
        r = jnp.maximum(x4, 0.0)

        # ---- depthwise 3x3, stride 1, pad 1 (cross-correlation, like torch) ----
        # H halo: one zero row above/below (concat along a non-tiled dim).
        zrow = jnp.zeros((N, 1, W, C), jnp.float32)
        rp = jnp.concatenate([zrow, r, zrow], axis=1)          # (N, Hp, W, C)

        # W shifts: sublane rotation on the flattened (Mp, C) view (XLU) with
        # edge masking; row wrap-around lands exactly on the masked columns.
        rp2 = rp.reshape(Mp, C)
        left = jnp.where(not_first_col,                        # value at w-1
                         pltpu.roll(rp2, 1, 0).reshape(N, Hp, W, C), 0.0)
        right = jnp.where(not_last_col,                        # value at w+1
                          pltpu.roll(rp2, Mp - 1, 0).reshape(N, Hp, W, C), 0.0)
        shifted = (left, rp, right)                            # dx = 0, 1, 2

        dw = dw_ref[...]                                       # (9, C): one load
        acc = shifted[0][:, 0:H] * dw[0]                       # tap (dy=0, dx=0)
        for idx in range(1, 9):
            dy, dx = idx // 3, idx % 3
            acc = acc + shifted[dx][:, dy:dy + H] * dw[idx]

        # ---- pointwise 1x1 conv: bf16 MXU matmul, f32 accumulation ----
        d2 = acc.reshape(M, C).astype(jnp.bfloat16)
        y2 = jnp.dot(d2, pw_ref[...].astype(jnp.bfloat16),
                     preferred_element_type=jnp.float32)       # (M, C) f32

        # ---- BatchNorm2d, training mode (one-pass sum / sum-of-squares) ----
        s1 = jnp.sum(y2, axis=0, keepdims=True)                # (1, C)
        s2 = jnp.sum(y2 * y2, axis=0, keepdims=True)           # (1, C)
        mean = s1 * inv_m
        var = s2 * inv_m - mean * mean                         # biased variance
        scale = g_ref[...] * lax.rsqrt(var + EPS)              # (1, C)
        bias = b_ref[...] - mean * scale                       # (1, C)
        return (y2 * scale + bias).reshape(N, H, W, C)

    x = x_ref[...]
    h = sep_conv_block(x, dw1_ref, pw1_ref, g1_ref, b1_ref)
    h = sep_conv_block(h, dw2_ref, pw2_ref, g2_ref, b2_ref)
    h = sep_conv_block(h, dw3_ref, pw3_ref, g3_ref, b3_ref)
    o_ref[...] = h + x                                         # residual add


def xception_block(x, params):
    """x: (N, H, W, C) f32; params: 3 tuples (dw (9,C), pw (C,C), gamma (1,C), beta (1,C))."""
    N, H, W, C = x.shape
    flat = []
    for p in params:
        flat.extend(p)
    n_in = 1 + len(flat)
    return pl.pallas_call(
        block_kernel,
        out_shape=jax.ShapeDtypeStruct((N, H, W, C), jnp.float32),
        in_specs=[pl.BlockSpec(memory_space=pltpu.MemorySpace.VMEM)] * n_in,
        out_specs=pl.BlockSpec(memory_space=pltpu.MemorySpace.VMEM),
        input_output_aliases={0: 0},       # output reuses x's HBM buffer
    )(x, *flat)


# ---------------- pure-JAX references (for correctness check) ----------------
def ref_block(x, params, matmul_dtype=jnp.float32):
    N, H, W, C = x.shape

    def sep_block(h, dw, pw, gamma, beta):
        r = jnp.maximum(h, 0.0)
        k = dw.reshape(3, 3, 1, C)  # HWIO, I=1 (depthwise)
        d = lax.conv_general_dilated(
            r, k, window_strides=(1, 1), padding=((1, 1), (1, 1)),
            dimension_numbers=("NHWC", "HWIO", "NHWC"),
            feature_group_count=C, precision=lax.Precision.HIGHEST)
        y = jnp.einsum("nhwc,cd->nhwd",
                       d.astype(matmul_dtype), pw.astype(matmul_dtype),
                       preferred_element_type=jnp.float32)
        mean = jnp.mean(y, axis=(0, 1, 2), keepdims=True)
        var = jnp.mean((y - mean) ** 2, axis=(0, 1, 2), keepdims=True)
        return (y - mean) * lax.rsqrt(var + EPS) * gamma.reshape(1, 1, 1, C) \
               + beta.reshape(1, 1, 1, C)

    h = x
    for (dw, pw, g, b) in params:
        h = sep_block(h, dw, pw, g, b)
    return h + x


if __name__ == "__main__":
    N, H, W, C = 2, 16, 16, 8  # small NHWC shapes; Block(channel=C) in NCHW terms

    key = jax.random.PRNGKey(0)
    params = []
    for _ in range(3):
        key, k1, k2, k3, k4 = jax.random.split(key, 5)
        dw = jax.random.normal(k1, (9, C), jnp.float32) * 0.2      # depthwise 3x3 taps
        pw = jax.random.normal(k2, (C, C), jnp.float32) * 0.2      # pointwise (cin, cout)
        gamma = 1.0 + 0.1 * jax.random.normal(k3, (1, C), jnp.float32)
        beta = 0.1 * jax.random.normal(k4, (1, C), jnp.float32)
        params.append((dw, pw, gamma, beta))

    key, kx = jax.random.split(key)
    x = jax.random.normal(kx, (N, H, W, C), jnp.float32)

    # References first (kernel output aliases x's buffer).
    ref_bf16 = jax.block_until_ready(ref_block(x, params, jnp.bfloat16))  # same bf16 matmul strategy
    ref_f32 = jax.block_until_ready(ref_block(x, params, jnp.float32))    # exact f32 module math

    out = jax.block_until_ready(xception_block(x, params))

    assert out.shape == (N, H, W, C)
    assert jnp.allclose(out, ref_bf16, rtol=1e-2, atol=1e-2), \
        f"max abs err vs bf16-matmul ref {jnp.max(jnp.abs(out - ref_bf16))}"
    assert jnp.allclose(out, ref_f32, rtol=6e-2, atol=6e-2), \
        f"max abs err vs f32 ref {jnp.max(jnp.abs(out - ref_f32))}"

    print("KERNEL_OK")
</pallas_src>

<mosaic_0001>
module attributes {stable_mosaic.version = 11 : i64} {
  func.func @block_kernel(%arg0: memref<2x16x16x8xf32, #tpu.memory_space<vmem>>, %arg1: memref<9x8xf32, #tpu.memory_space<vmem>>, %arg2: memref<8x8xf32, #tpu.memory_space<vmem>>, %arg3: memref<1x8xf32, #tpu.memory_space<vmem>>, %arg4: memref<1x8xf32, #tpu.memory_space<vmem>>, %arg5: memref<9x8xf32, #tpu.memory_space<vmem>>, %arg6: memref<8x8xf32, #tpu.memory_space<vmem>>, %arg7: memref<1x8xf32, #tpu.memory_space<vmem>>, %arg8: memref<1x8xf32, #tpu.memory_space<vmem>>, %arg9: memref<9x8xf32, #tpu.memory_space<vmem>>, %arg10: memref<8x8xf32, #tpu.memory_space<vmem>>, %arg11: memref<1x8xf32, #tpu.memory_space<vmem>>, %arg12: memref<1x8xf32, #tpu.memory_space<vmem>>, %arg13: memref<2x16x16x8xf32, #tpu.memory_space<vmem>>) attributes {dimension_semantics = [], scalar_prefetch = 0 : i64, scratch_operands = 0 : i64, tpu.core_type = #tpu.core_type<tc>} {
    %0 = tpu.iota {dimensions = array<i32: 0>} : vector<16x8xi32>
    %c0_i32 = arith.constant 0 : i32
    %1 = vector.broadcast %c0_i32 : i32 to vector<16x8xi32>
    %2 = arith.cmpi ne, %0, %1 : vector<16x8xi32>
    %c15_i32 = arith.constant 15 : i32
    %3 = vector.broadcast %c15_i32 : i32 to vector<16x8xi32>
    %4 = arith.cmpi ne, %0, %3 : vector<16x8xi32>
    %c0 = arith.constant 0 : index
    %c0_0 = arith.constant 0 : index
    %c0_1 = arith.constant 0 : index
    %c0_2 = arith.constant 0 : index
    %5 = vector.load %arg0[%c0, %c0_0, %c0_1, %c0_2] : memref<2x16x16x8xf32, #tpu.memory_space<vmem>>, vector<2x16x16x8xf32>
    %cst = arith.constant 0.000000e+00 : f32
    %6 = vector.broadcast %cst : f32 to vector<2x16x16x8xf32>
    %7 = arith.maximumf %5, %6 : vector<2x16x16x8xf32>
    %cst_3 = arith.constant 0.000000e+00 : f32
    %8 = vector.broadcast %cst_3 : f32 to vector<2x1x16x8xf32>
    %9 = tpu.concatenate %8, %7, %8 in 1 : vector<2x1x16x8xf32>, vector<2x16x16x8xf32>, vector<2x1x16x8xf32> -> vector<2x18x16x8xf32>
    %10 = vector.shape_cast %9 : vector<2x18x16x8xf32> to vector<576x8xf32>
    %c1_i32 = arith.constant 1 : i32
    %11 = tpu.dynamic_rotate %10 by %c1_i32 dim 0 : vector<576x8xf32>, i32 -> vector<576x8xf32>
    %12 = vector.shape_cast %11 : vector<576x8xf32> to vector<2x18x16x8xf32>
    %cst_4 = arith.constant 0.000000e+00 : f32
    %13 = vector.shape_cast %2 : vector<16x8xi1> to vector<1x1x16x8xi1>
    %14 = vector.broadcast %13 : vector<1x1x16x8xi1> to vector<2x18x16x8xi1>
    %15 = vector.broadcast %cst_4 : f32 to vector<2x18x16x8xf32>
    %16 = arith.select %14, %12, %15 : vector<2x18x16x8xi1>, vector<2x18x16x8xf32>
    %c575_i32 = arith.constant 575 : i32
    %17 = tpu.dynamic_rotate %10 by %c575_i32 dim 0 : vector<576x8xf32>, i32 -> vector<576x8xf32>
    %18 = vector.shape_cast %17 : vector<576x8xf32> to vector<2x18x16x8xf32>
    %cst_5 = arith.constant 0.000000e+00 : f32
    %19 = vector.shape_cast %4 : vector<16x8xi1> to vector<1x1x16x8xi1>
    %20 = vector.broadcast %19 : vector<1x1x16x8xi1> to vector<2x18x16x8xi1>
    %21 = vector.broadcast %cst_5 : f32 to vector<2x18x16x8xf32>
    %22 = arith.select %20, %18, %21 : vector<2x18x16x8xi1>, vector<2x18x16x8xf32>
    %c0_6 = arith.constant 0 : index
    %c0_7 = arith.constant 0 : index
    %23 = vector.load %arg1[%c0_6, %c0_7] : memref<9x8xf32, #tpu.memory_space<vmem>>, vector<9x8xf32>
    %24 = vector.extract_strided_slice %16 {offsets = [0, 0, 0, 0], sizes = [2, 16, 16, 8], strides = [1, 1, 1, 1]} : vector<2x18x16x8xf32> to vector<2x16x16x8xf32>
    %25 = vector.extract_strided_slice %23 {offsets = [0, 0], sizes = [1, 8], strides = [1, 1]} : vector<9x8xf32> to vector<1x8xf32>
    %26 = vector.shape_cast %25 : vector<1x8xf32> to vector<8xf32>
    %27 = vector.shape_cast %26 : vector<8xf32> to vector<1x1x1x8xf32>
    %28 = vector.broadcast %27 : vector<1x1x1x8xf32> to vector<2x16x16x8xf32>
    %29 = arith.mulf %24, %28 : vector<2x16x16x8xf32>
    %30 = vector.extract_strided_slice %9 {offsets = [0, 0, 0, 0], sizes = [2, 16, 16, 8], strides = [1, 1, 1, 1]} : vector<2x18x16x8xf32> to vector<2x16x16x8xf32>
    %31 = vector.extract_strided_slice %23 {offsets = [1, 0], sizes = [1, 8], strides = [1, 1]} : vector<9x8xf32> to vector<1x8xf32>
    %32 = vector.shape_cast %31 : vector<1x8xf32> to vector<8xf32>
    %33 = vector.shape_cast %32 : vector<8xf32> to vector<1x1x1x8xf32>
    %34 = vector.broadcast %33 : vector<1x1x1x8xf32> to vector<2x16x16x8xf32>
    %35 = arith.mulf %30, %34 : vector<2x16x16x8xf32>
    %36 = arith.addf %29, %35 : vector<2x16x16x8xf32>
    %37 = vector.extract_strided_slice %22 {offsets = [0, 0, 0, 0], sizes = [2, 16, 16, 8], strides = [1, 1, 1, 1]} : vector<2x18x16x8xf32> to vector<2x16x16x8xf32>
    %38 = vector.extract_strided_slice %23 {offsets = [2, 0], sizes = [1, 8], strides = [1, 1]} : vector<9x8xf32> to vector<1x8xf32>
    %39 = vector.shape_cast %38 : vector<1x8xf32> to vector<8xf32>
    %40 = vector.shape_cast %39 : vector<8xf32> to vector<1x1x1x8xf32>
    %41 = vector.broadcast %40 : vector<1x1x1x8xf32> to vector<2x16x16x8xf32>
    %42 = arith.mulf %37, %41 : vector<2x16x16x8xf32>
    %43 = arith.addf %36, %42 : vector<2x16x16x8xf32>
    %44 = vector.extract_strided_slice %16 {offsets = [0, 1, 0, 0], sizes = [2, 16, 16, 8], strides = [1, 1, 1, 1]} : vector<2x18x16x8xf32> to vector<2x16x16x8xf32>
    %45 = vector.extract_strided_slice %23 {offsets = [3, 0], sizes = [1, 8], strides = [1, 1]} : vector<9x8xf32> to vector<1x8xf32>
    %46 = vector.shape_cast %45 : vector<1x8xf32> to vector<8xf32>
    %47 = vector.shape_cast %46 : vector<8xf32> to vector<1x1x1x8xf32>
    %48 = vector.broadcast %47 : vector<1x1x1x8xf32> to vector<2x16x16x8xf32>
    %49 = arith.mulf %44, %48 : vector<2x16x16x8xf32>
    %50 = arith.addf %43, %49 : vector<2x16x16x8xf32>
    %51 = vector.extract_strided_slice %9 {offsets = [0, 1, 0, 0], sizes = [2, 16, 16, 8], strides = [1, 1, 1, 1]} : vector<2x18x16x8xf32> to vector<2x16x16x8xf32>
    %52 = vector.extract_strided_slice %23 {offsets = [4, 0], sizes = [1, 8], strides = [1, 1]} : vector<9x8xf32> to vector<1x8xf32>
    %53 = vector.shape_cast %52 : vector<1x8xf32> to vector<8xf32>
    %54 = vector.shape_cast %53 : vector<8xf32> to vector<1x1x1x8xf32>
    %55 = vector.broadcast %54 : vector<1x1x1x8xf32> to vector<2x16x16x8xf32>
    %56 = arith.mulf %51, %55 : vector<2x16x16x8xf32>
    %57 = arith.addf %50, %56 : vector<2x16x16x8xf32>
    %58 = vector.extract_strided_slice %22 {offsets = [0, 1, 0, 0], sizes = [2, 16, 16, 8], strides = [1, 1, 1, 1]} : vector<2x18x16x8xf32> to vector<2x16x16x8xf32>
    %59 = vector.extract_strided_slice %23 {offsets = [5, 0], sizes = [1, 8], strides = [1, 1]} : vector<9x8xf32> to vector<1x8xf32>
    %60 = vector.shape_cast %59 : vector<1x8xf32> to vector<8xf32>
    %61 = vector.shape_cast %60 : vector<8xf32> to vector<1x1x1x8xf32>
    %62 = vector.broadcast %61 : vector<1x1x1x8xf32> to vector<2x16x16x8xf32>
    %63 = arith.mulf %58, %62 : vector<2x16x16x8xf32>
    %64 = arith.addf %57, %63 : vector<2x16x16x8xf32>
    %65 = vector.extract_strided_slice %16 {offsets = [0, 2, 0, 0], sizes = [2, 16, 16, 8], strides = [1, 1, 1, 1]} : vector<2x18x16x8xf32> to vector<2x16x16x8xf32>
    %66 = vector.extract_strided_slice %23 {offsets = [6, 0], sizes = [1, 8], strides = [1, 1]} : vector<9x8xf32> to vector<1x8xf32>
    %67 = vector.shape_cast %66 : vector<1x8xf32> to vector<8xf32>
    %68 = vector.shape_cast %67 : vector<8xf32> to vector<1x1x1x8xf32>
    %69 = vector.broadcast %68 : vector<1x1x1x8xf32> to vector<2x16x16x8xf32>
    %70 = arith.mulf %65, %69 : vector<2x16x16x8xf32>
    %71 = arith.addf %64, %70 : vector<2x16x16x8xf32>
    %72 = vector.extract_strided_slice %9 {offsets = [0, 2, 0, 0], sizes = [2, 16, 16, 8], strides = [1, 1, 1, 1]} : vector<2x18x16x8xf32> to vector<2x16x16x8xf32>
    %73 = vector.extract_strided_slice %23 {offsets = [7, 0], sizes = [1, 8], strides = [1, 1]} : vector<9x8xf32> to vector<1x8xf32>
    %74 = vector.shape_cast %73 : vector<1x8xf32> to vector<8xf32>
    %75 = vector.shape_cast %74 : vector<8xf32> to vector<1x1x1x8xf32>
    %76 = vector.broadcast %75 : vector<1x1x1x8xf32> to vector<2x16x16x8xf32>
    %77 = arith.mulf %72, %76 : vector<2x16x16x8xf32>
    %78 = arith.addf %71, %77 : vector<2x16x16x8xf32>
    %79 = vector.extract_strided_slice %22 {offsets = [0, 2, 0, 0], sizes = [2, 16, 16, 8], strides = [1, 1, 1, 1]} : vector<2x18x16x8xf32> to vector<2x16x16x8xf32>
    %80 = vector.extract_strided_slice %23 {offsets = [8, 0], sizes = [1, 8], strides = [1, 1]} : vector<9x8xf32> to vector<1x8xf32>
    %81 = vector.shape_cast %80 : vector<1x8xf32> to vector<8xf32>
    %82 = vector.shape_cast %81 : vector<8xf32> to vector<1x1x1x8xf32>
    %83 = vector.broadcast %82 : vector<1x1x1x8xf32> to vector<2x16x16x8xf32>
    %84 = arith.mulf %79, %83 : vector<2x16x16x8xf32>
    %85 = arith.addf %78, %84 : vector<2x16x16x8xf32>
    %86 = vector.shape_cast %85 : vector<2x16x16x8xf32> to vector<512x8xf32>
    %87 = arith.truncf %86 : vector<512x8xf32> to vector<512x8xbf16>
    %c0_8 = arith.constant 0 : index
    %c0_9 = arith.constant 0 : index
    %88 = vector.load %arg2[%c0_8, %c0_9] : memref<8x8xf32, #tpu.memory_space<vmem>>, vector<8x8xf32>
    %89 = arith.truncf %88 : vector<8x8xf32> to vector<8x8xbf16>
    %cst_10 = arith.constant dense<0.000000e+00> : vector<512x8xf32>
    %90 = tpu.matmul %87, %89, %cst_10 {dimension_numbers = #tpu.dot_dimension_numbers<[1], [0], [0], [1], [0, 0, 1, 1], [], []>} : vector<512x8xbf16>, vector<8x8xbf16>, vector<512x8xf32> -> vector<512x8xf32>
    %cst_11 = arith.constant dense<0.000000e+00> : vector<8xf32>
    %91 = vector.multi_reduction <add>, %90, %cst_11 [0] : vector<512x8xf32> to vector<8xf32>
    %92 = vector.shape_cast %91 : vector<8xf32> to vector<1x8xf32>
    %93 = arith.mulf %90, %90 : vector<512x8xf32>
    %cst_12 = arith.constant dense<0.000000e+00> : vector<8xf32>
    %94 = vector.multi_reduction <add>, %93, %cst_12 [0] : vector<512x8xf32> to vector<8xf32>
    %95 = vector.shape_cast %94 : vector<8xf32> to vector<1x8xf32>
    %cst_13 = arith.constant 0.001953125 : f32
    %96 = vector.broadcast %cst_13 : f32 to vector<1x8xf32>
    %97 = arith.mulf %92, %96 : vector<1x8xf32>
    %cst_14 = arith.constant 0.001953125 : f32
    %98 = vector.broadcast %cst_14 : f32 to vector<1x8xf32>
    %99 = arith.mulf %95, %98 : vector<1x8xf32>
    %100 = arith.mulf %97, %97 : vector<1x8xf32>
    %101 = arith.subf %99, %100 : vector<1x8xf32>
    %c0_15 = arith.constant 0 : index
    %c0_16 = arith.constant 0 : index
    %102 = vector.load %arg3[%c0_15, %c0_16] : memref<1x8xf32, #tpu.memory_space<vmem>>, vector<1x8xf32>
    %cst_17 = arith.constant 9.99999974E-6 : f32
    %103 = vector.broadcast %cst_17 : f32 to vector<1x8xf32>
    %104 = arith.addf %101, %103 : vector<1x8xf32>
    %105 = math.rsqrt %104 : vector<1x8xf32>
    %106 = arith.mulf %102, %105 : vector<1x8xf32>
    %c0_18 = arith.constant 0 : index
    %c0_19 = arith.constant 0 : index
    %107 = vector.load %arg4[%c0_18, %c0_19] : memref<1x8xf32, #tpu.memory_space<vmem>>, vector<1x8xf32>
    %108 = arith.mulf %97, %106 : vector<1x8xf32>
    %109 = arith.subf %107, %108 : vector<1x8xf32>
    %110 = vector.broadcast %106 : vector<1x8xf32> to vector<512x8xf32>
    %111 = arith.mulf %90, %110 : vector<512x8xf32>
    %112 = vector.broadcast %109 : vector<1x8xf32> to vector<512x8xf32>
    %113 = arith.addf %111, %112 : vector<512x8xf32>
    %114 = vector.shape_cast %113 : vector<512x8xf32> to vector<2x16x16x8xf32>
    %cst_20 = arith.constant 0.000000e+00 : f32
    %115 = vector.broadcast %cst_20 : f32 to vector<2x16x16x8xf32>
    %116 = arith.maximumf %114, %115 : vector<2x16x16x8xf32>
    %cst_21 = arith.constant 0.000000e+00 : f32
    %117 = vector.broadcast %cst_21 : f32 to vector<2x1x16x8xf32>
    %118 = tpu.concatenate %117, %116, %117 in 1 : vector<2x1x16x8xf32>, vector<2x16x16x8xf32>, vector<2x1x16x8xf32> -> vector<2x18x16x8xf32>
    %119 = vector.shape_cast %118 : vector<2x18x16x8xf32> to vector<576x8xf32>
    %c1_i32_22 = arith.constant 1 : i32
    %120 = tpu.dynamic_rotate %119 by %c1_i32_22 dim 0 : vector<576x8xf32>, i32 -> vector<576x8xf32>
    %121 = vector.shape_cast %120 : vector<576x8xf32> to vector<2x18x16x8xf32>
    %cst_23 = arith.constant 0.000000e+00 : f32
    %122 = vector.shape_cast %2 : vector<16x8xi1> to vector<1x1x16x8xi1>
    %123 = vector.broadcast %122 : vector<1x1x16x8xi1> to vector<2x18x16x8xi1>
    %124 = vector.broadcast %cst_23 : f32 to vector<2x18x16x8xf32>
    %125 = arith.select %123, %121, %124 : vector<2x18x16x8xi1>, vector<2x18x16x8xf32>
    %c575_i32_24 = arith.constant 575 : i32
    %126 = tpu.dynamic_rotate %119 by %c575_i32_24 dim 0 : vector<576x8xf32>, i32 -> vector<576x8xf32>
    %127 = vector.shape_cast %126 : vector<576x8xf32> to vector<2x18x16x8xf32>
    %cst_25 = arith.constant 0.000000e+00 : f32
    %128 = vector.shape_cast %4 : vector<16x8xi1> to vector<1x1x16x8xi1>
    %129 = vector.broadcast %128 : vector<1x1x16x8xi1> to vector<2x18x16x8xi1>
    %130 = vector.broadcast %cst_25 : f32 to vector<2x18x16x8xf32>
    %131 = arith.select %129, %127, %130 : vector<2x18x16x8xi1>, vector<2x18x16x8xf32>
    %c0_26 = arith.constant 0 : index
    %c0_27 = arith.constant 0 : index
    %132 = vector.load %arg5[%c0_26, %c0_27] : memref<9x8xf32, #tpu.memory_space<vmem>>, vector<9x8xf32>
    %133 = vector.extract_strided_slice %125 {offsets = [0, 0, 0, 0], sizes = [2, 16, 16, 8], strides = [1, 1, 1, 1]} : vector<2x18x16x8xf32> to vector<2x16x16x8xf32>
    %134 = vector.extract_strided_slice %132 {offsets = [0, 0], sizes = [1, 8], strides = [1, 1]} : vector<9x8xf32> to vector<1x8xf32>
    %135 = vector.shape_cast %134 : vector<1x8xf32> to vector<8xf32>
    %136 = vector.shape_cast %135 : vector<8xf32> to vector<1x1x1x8xf32>
    %137 = vector.broadcast %136 : vector<1x1x1x8xf32> to vector<2x16x16x8xf32>
    %138 = arith.mulf %133, %137 : vector<2x16x16x8xf32>
    %139 = vector.extract_strided_slice %118 {offsets = [0, 0, 0, 0], sizes = [2, 16, 16, 8], strides = [1, 1, 1, 1]} : vector<2x18x16x8xf32> to vector<2x16x16x8xf32>
    %140 = vector.extract_strided_slice %132 {offsets = [1, 0], sizes = [1, 8], strides = [1, 1]} : vector<9x8xf32> to vector<1x8xf32>
    %141 = vector.shape_cast %140 : vector<1x8xf32> to vector<8xf32>
    %142 = vector.shape_cast %141 : vector<8xf32> to vector<1x1x1x8xf32>
    %143 = vector.broadcast %142 : vector<1x1x1x8xf32> to vector<2x16x16x8xf32>
    %144 = arith.mulf %139, %143 : vector<2x16x16x8xf32>
    %145 = arith.addf %138, %144 : vector<2x16x16x8xf32>
    %146 = vector.extract_strided_slice %131 {offsets = [0, 0, 0, 0], sizes = [2, 16, 16, 8], strides = [1, 1, 1, 1]} : vector<2x18x16x8xf32> to vector<2x16x16x8xf32>
    %147 = vector.extract_strided_slice %132 {offsets = [2, 0], sizes = [1, 8], strides = [1, 1]} : vector<9x8xf32> to vector<1x8xf32>
    %148 = vector.shape_cast %147 : vector<1x8xf32> to vector<8xf32>
    %149 = vector.shape_cast %148 : vector<8xf32> to vector<1x1x1x8xf32>
    %150 = vector.broadcast %149 : vector<1x1x1x8xf32> to vector<2x16x16x8xf32>
    %151 = arith.mulf %146, %150 : vector<2x16x16x8xf32>
    %152 = arith.addf %145, %151 : vector<2x16x16x8xf32>
    %153 = vector.extract_strided_slice %125 {offsets = [0, 1, 0, 0], sizes = [2, 16, 16, 8], strides = [1, 1, 1, 1]} : vector<2x18x16x8xf32> to vector<2x16x16x8xf32>
    %154 = vector.extract_strided_slice %132 {offsets = [3, 0], sizes = [1, 8], strides = [1, 1]} : vector<9x8xf32> to vector<1x8xf32>
    %155 = vector.shape_cast %154 : vector<1x8xf32> to vector<8xf32>
    %156 = vector.shape_cast %155 : vector<8xf32> to vector<1x1x1x8xf32>
    %157 = vector.broadcast %156 : vector<1x1x1x8xf32> to vector<2x16x16x8xf32>
    %158 = arith.mulf %153, %157 : vector<2x16x16x8xf32>
    %159 = arith.addf %152, %158 : vector<2x16x16x8xf32>
    %160 = vector.extract_strided_slice %118 {offsets = [0, 1, 0, 0], sizes = [2, 16, 16, 8], strides = [1, 1, 1, 1]} : vector<2x18x16x8xf32> to vector<2x16x16x8xf32>
    %161 = vector.extract_strided_slice %132 {offsets = [4, 0], sizes = [1, 8], strides = [1, 1]} : vector<9x8xf32> to vector<1x8xf32>
    %162 = vector.shape_cast %161 : vector<1x8xf32> to vector<8xf32>
    %163 = vector.shape_cast %162 : vector<8xf32> to vector<1x1x1x8xf32>
    %164 = vector.broadcast %163 : vector<1x1x1x8xf32> to vector<2x16x16x8xf32>
    %165 = arith.mulf %160, %164 : vector<2x16x16x8xf32>
    %166 = arith.addf %159, %165 : vector<2x16x16x8xf32>
    %167 = vector.extract_strided_slice %131 {offsets = [0, 1, 0, 0], sizes = [2, 16, 16, 8], strides = [1, 1, 1, 1]} : vector<2x18x16x8xf32> to vector<2x16x16x8xf32>
    %168 = vector.extract_strided_slice %132 {offsets = [5, 0], sizes = [1, 8], strides = [1, 1]} : vector<9x8xf32> to vector<1x8xf32>
    %169 = vector.shape_cast %168 : vector<1x8xf32> to vector<8xf32>
    %170 = vector.shape_cast %169 : vector<8xf32> to vector<1x1x1x8xf32>
    %171 = vector.broadcast %170 : vector<1x1x1x8xf32> to vector<2x16x16x8xf32>
    %172 = arith.mulf %167, %171 : vector<2x16x16x8xf32>
    %173 = arith.addf %166, %172 : vector<2x16x16x8xf32>
    %174 = vector.extract_strided_slice %125 {offsets = [0, 2, 0, 0], sizes = [2, 16, 16, 8], strides = [1, 1, 1, 1]} : vector<2x18x16x8xf32> to vector<2x16x16x8xf32>
    %175 = vector.extract_strided_slice %132 {offsets = [6, 0], sizes = [1, 8], strides = [1, 1]} : vector<9x8xf32> to vector<1x8xf32>
    %176 = vector.shape_cast %175 : vector<1x8xf32> to vector<8xf32>
    %177 = vector.shape_cast %176 : vector<8xf32> to vector<1x1x1x8xf32>
    %178 = vector.broadcast %177 : vector<1x1x1x8xf32> to vector<2x16x16x8xf32>
    %179 = arith.mulf %174, %178 : vector<2x16x16x8xf32>
    %180 = arith.addf %173, %179 : vector<2x16x16x8xf32>
    %181 = vector.extract_strided_slice %118 {offsets = [0, 2, 0, 0], sizes = [2, 16, 16, 8], strides = [1, 1, 1, 1]} : vector<2x18x16x8xf32> to vector<2x16x16x8xf32>
    %182 = vector.extract_strided_slice %132 {offsets = [7, 0], sizes = [1, 8], strides = [1, 1]} : vector<9x8xf32> to vector<1x8xf32>
    %183 = vector.shape_cast %182 : vector<1x8xf32> to vector<8xf32>
    %184 = vector.shape_cast %183 : vector<8xf32> to vector<1x1x1x8xf32>
    %185 = vector.broadcast %184 : vector<1x1x1x8xf32> to vector<2x16x16x8xf32>
    %186 = arith.mulf %181, %185 : vector<2x16x16x8xf32>
    %187 = arith.addf %180, %186 : vector<2x16x16x8xf32>
    %188 = vector.extract_strided_slice %131 {offsets = [0, 2, 0, 0], sizes = [2, 16, 16, 8], strides = [1, 1, 1, 1]} : vector<2x18x16x8xf32> to vector<2x16x16x8xf32>
    %189 = vector.extract_strided_slice %132 {offsets = [8, 0], sizes = [1, 8], strides = [1, 1]} : vector<9x8xf32> to vector<1x8xf32>
    %190 = vector.shape_cast %189 : vector<1x8xf32> to vector<8xf32>
    %191 = vector.shape_cast %190 : vector<8xf32> to vector<1x1x1x8xf32>
    %192 = vector.broadcast %191 : vector<1x1x1x8xf32> to vector<2x16x16x8xf32>
    %193 = arith.mulf %188, %192 : vector<2x16x16x8xf32>
    %194 = arith.addf %187, %193 : vector<2x16x16x8xf32>
    %195 = vector.shape_cast %194 : vector<2x16x16x8xf32> to vector<512x8xf32>
    %196 = arith.truncf %195 : vector<512x8xf32> to vector<512x8xbf16>
    %c0_28 = arith.constant 0 : index
    %c0_29 = arith.constant 0 : index
    %197 = vector.load %arg6[%c0_28, %c0_29] : memref<8x8xf32, #tpu.memory_space<vmem>>, vector<8x8xf32>
    %198 = arith.truncf %197 : vector<8x8xf32> to vector<8x8xbf16>
    %cst_30 = arith.constant dense<0.000000e+00> : vector<512x8xf32>
    %199 = tpu.matmul %196, %198, %cst_30 {dimension_numbers = #tpu.dot_dimension_numbers<[1], [0], [0], [1], [0, 0, 1, 1], [], []>} : vector<512x8xbf16>, vector<8x8xbf16>, vector<512x8xf32> -> vector<512x8xf32>
    %cst_31 = arith.constant dense<0.000000e+00> : vector<8xf32>
    %200 = vector.multi_reduction <add>, %199, %cst_31 [0] : vector<512x8xf32> to vector<8xf32>
    %201 = vector.shape_cast %200 : vector<8xf32> to vector<1x8xf32>
    %202 = arith.mulf %199, %199 : vector<512x8xf32>
    %cst_32 = arith.constant dense<0.000000e+00> : vector<8xf32>
    %203 = vector.multi_reduction <add>, %202, %cst_32 [0] : vector<512x8xf32> to vector<8xf32>
    %204 = vector.shape_cast %203 : vector<8xf32> to vector<1x8xf32>
    %cst_33 = arith.constant 0.001953125 : f32
    %205 = vector.broadcast %cst_33 : f32 to vector<1x8xf32>
    %206 = arith.mulf %201, %205 : vector<1x8xf32>
    %cst_34 = arith.constant 0.001953125 : f32
    %207 = vector.broadcast %cst_34 : f32 to vector<1x8xf32>
    %208 = arith.mulf %204, %207 : vector<1x8xf32>
    %209 = arith.mulf %206, %206 : vector<1x8xf32>
    %210 = arith.subf %208, %209 : vector<1x8xf32>
    %c0_35 = arith.constant 0 : index
    %c0_36 = arith.constant 0 : index
    %211 = vector.load %arg7[%c0_35, %c0_36] : memref<1x8xf32, #tpu.memory_space<vmem>>, vector<1x8xf32>
    %cst_37 = arith.constant 9.99999974E-6 : f32
    %212 = vector.broadcast %cst_37 : f32 to vector<1x8xf32>
    %213 = arith.addf %210, %212 : vector<1x8xf32>
    %214 = math.rsqrt %213 : vector<1x8xf32>
    %215 = arith.mulf %211, %214 : vector<1x8xf32>
    %c0_38 = arith.constant 0 : index
    %c0_39 = arith.constant 0 : index
    %216 = vector.load %arg8[%c0_38, %c0_39] : memref<1x8xf32, #tpu.memory_space<vmem>>, vector<1x8xf32>
    %217 = arith.mulf %206, %215 : vector<1x8xf32>
    %218 = arith.subf %216, %217 : vector<1x8xf32>
    %219 = vector.broadcast %215 : vector<1x8xf32> to vector<512x8xf32>
    %220 = arith.mulf %199, %219 : vector<512x8xf32>
    %221 = vector.broadcast %218 : vector<1x8xf32> to vector<512x8xf32>
    %222 = arith.addf %220, %221 : vector<512x8xf32>
    %223 = vector.shape_cast %222 : vector<512x8xf32> to vector<2x16x16x8xf32>
    %cst_40 = arith.constant 0.000000e+00 : f32
    %224 = vector.broadcast %cst_40 : f32 to vector<2x16x16x8xf32>
    %225 = arith.maximumf %223, %224 : vector<2x16x16x8xf32>
    %cst_41 = arith.constant 0.000000e+00 : f32
    %226 = vector.broadcast %cst_41 : f32 to vector<2x1x16x8xf32>
    %227 = tpu.concatenate %226, %225, %226 in 1 : vector<2x1x16x8xf32>, vector<2x16x16x8xf32>, vector<2x1x16x8xf32> -> vector<2x18x16x8xf32>
    %228 = vector.shape_cast %227 : vector<2x18x16x8xf32> to vector<576x8xf32>
    %c1_i32_42 = arith.constant 1 : i32
    %229 = tpu.dynamic_rotate %228 by %c1_i32_42 dim 0 : vector<576x8xf32>, i32 -> vector<576x8xf32>
    %230 = vector.shape_cast %229 : vector<576x8xf32> to vector<2x18x16x8xf32>
    %cst_43 = arith.constant 0.000000e+00 : f32
    %231 = vector.shape_cast %2 : vector<16x8xi1> to vector<1x1x16x8xi1>
    %232 = vector.broadcast %231 : vector<1x1x16x8xi1> to vector<2x18x16x8xi1>
    %233 = vector.broadcast %cst_43 : f32 to vector<2x18x16x8xf32>
    %234 = arith.select %232, %230, %233 : vector<2x18x16x8xi1>, vector<2x18x16x8xf32>
    %c575_i32_44 = arith.constant 575 : i32
    %235 = tpu.dynamic_rotate %228 by %c575_i32_44 dim 0 : vector<576x8xf32>, i32 -> vector<576x8xf32>
    %236 = vector.shape_cast %235 : vector<576x8xf32> to vector<2x18x16x8xf32>
    %cst_45 = arith.constant 0.000000e+00 : f32
    %237 = vector.shape_cast %4 : vector<16x8xi1> to vector<1x1x16x8xi1>
    %238 = vector.broadcast %237 : vector<1x1x16x8xi1> to vector<2x18x16x8xi1>
    %239 = vector.broadcast %cst_45 : f32 to vector<2x18x16x8xf32>
    %240 = arith.select %238, %236, %239 : vector<2x18x16x8xi1>, vector<2x18x16x8xf32>
    %c0_46 = arith.constant 0 : index
    %c0_47 = arith.constant 0 : index
    %241 = vector.load %arg9[%c0_46, %c0_47] : memref<9x8xf32, #tpu.memory_space<vmem>>, vector<9x8xf32>
    %242 = vector.extract_strided_slice %234 {offsets = [0, 0, 0, 0], sizes = [2, 16, 16, 8], strides = [1, 1, 1, 1]} : vector<2x18x16x8xf32> to vector<2x16x16x8xf32>
    %243 = vector.extract_strided_slice %241 {offsets = [0, 0], sizes = [1, 8], strides = [1, 1]} : vector<9x8xf32> to vector<1x8xf32>
    %244 = vector.shape_cast %243 : vector<1x8xf32> to vector<8xf32>
    %245 = vector.shape_cast %244 : vector<8xf32> to vector<1x1x1x8xf32>
    %246 = vector.broadcast %245 : vector<1x1x1x8xf32> to vector<2x16x16x8xf32>
    %247 = arith.mulf %242, %246 : vector<2x16x16x8xf32>
    %248 = vector.extract_strided_slice %227 {offsets = [0, 0, 0, 0], sizes = [2, 16, 16, 8], strides = [1, 1, 1, 1]} : vector<2x18x16x8xf32> to vector<2x16x16x8xf32>
    %249 = vector.extract_strided_slice %241 {offsets = [1, 0], sizes = [1, 8], strides = [1, 1]} : vector<9x8xf32> to vector<1x8xf32>
    %250 = vector.shape_cast %249 : vector<1x8xf32> to vector<8xf32>
    %251 = vector.shape_cast %250 : vector<8xf32> to vector<1x1x1x8xf32>
    %252 = vector.broadcast %251 : vector<1x1x1x8xf32> to vector<2x16x16x8xf32>
    %253 = arith.mulf %248, %252 : vector<2x16x16x8xf32>
    %254 = arith.addf %247, %253 : vector<2x16x16x8xf32>
    %255 = vector.extract_strided_slice %240 {offsets = [0, 0, 0, 0], sizes = [2, 16, 16, 8], strides = [1, 1, 1, 1]} : vector<2x18x16x8xf32> to vector<2x16x16x8xf32>
    %256 = vector.extract_strided_slice %241 {offsets = [2, 0], sizes = [1, 8], strides = [1, 1]} : vector<9x8xf32> to vector<1x8xf32>
    %257 = vector.shape_cast %256 : vector<1x8xf32> to vector<8xf32>
    %258 = vector.shape_cast %257 : vector<8xf32> to vector<1x1x1x8xf32>
    %259 = vector.broadcast %258 : vector<1x1x1x8xf32> to vector<2x16x16x8xf32>
    %260 = arith.mulf %255, %259 : vector<2x16x16x8xf32>
    %261 = arith.addf %254, %260 : vector<2x16x16x8xf32>
    %262 = vector.extract_strided_slice %234 {offsets = [0, 1, 0, 0], sizes = [2, 16, 16, 8], strides = [1, 1, 1, 1]} : vector<2x18x16x8xf32> to vector<2x16x16x8xf32>
    %263 = vector.extract_strided_slice %241 {offsets = [3, 0], sizes = [1, 8], strides = [1, 1]} : vector<9x8xf32> to vector<1x8xf32>
    %264 = vector.shape_cast %263 : vector<1x8xf32> to vector<8xf32>
    %265 = vector.shape_cast %264 : vector<8xf32> to vector<1x1x1x8xf32>
    %266 = vector.broadcast %265 : vector<1x1x1x8xf32> to vector<2x16x16x8xf32>
    %267 = arith.mulf %262, %266 : vector<2x16x16x8xf32>
    %268 = arith.addf %261, %267 : vector<2x16x16x8xf32>
    %269 = vector.extract_strided_slice %227 {offsets = [0, 1, 0, 0], sizes = [2, 16, 16, 8], strides = [1, 1, 1, 1]} : vector<2x18x16x8xf32> to vector<2x16x16x8xf32>
    %270 = vector.extract_strided_slice %241 {offsets = [4, 0], sizes = [1, 8], strides = [1, 1]} : vector<9x8xf32> to vector<1x8xf32>
    %271 = vector.shape_cast %270 : vector<1x8xf32> to vector<8xf32>
    %272 = vector.shape_cast %271 : vector<8xf32> to vector<1x1x1x8xf32>
    %273 = vector.broadcast %272 : vector<1x1x1x8xf32> to vector<2x16x16x8xf32>
    %274 = arith.mulf %269, %273 : vector<2x16x16x8xf32>
    %275 = arith.addf %268, %274 : vector<2x16x16x8xf32>
    %276 = vector.extract_strided_slice %240 {offsets = [0, 1, 0, 0], sizes = [2, 16, 16, 8], strides = [1, 1, 1, 1]} : vector<2x18x16x8xf32> to vector<2x16x16x8xf32>
    %277 = vector.extract_strided_slice %241 {offsets = [5, 0], sizes = [1, 8], strides = [1, 1]} : vector<9x8xf32> to vector<1x8xf32>
    %278 = vector.shape_cast %277 : vector<1x8xf32> to vector<8xf32>
    %279 = vector.shape_cast %278 : vector<8xf32> to vector<1x1x1x8xf32>
    %280 = vector.broadcast %279 : vector<1x1x1x8xf32> to vector<2x16x16x8xf32>
    %281 = arith.mulf %276, %280 : vector<2x16x16x8xf32>
    %282 = arith.addf %275, %281 : vector<2x16x16x8xf32>
    %283 = vector.extract_strided_slice %234 {offsets = [0, 2, 0, 0], sizes = [2, 16, 16, 8], strides = [1, 1, 1, 1]} : vector<2x18x16x8xf32> to vector<2x16x16x8xf32>
    %284 = vector.extract_strided_slice %241 {offsets = [6, 0], sizes = [1, 8], strides = [1, 1]} : vector<9x8xf32> to vector<1x8xf32>
    %285 = vector.shape_cast %284 : vector<1x8xf32> to vector<8xf32>
    %286 = vector.shape_cast %285 : vector<8xf32> to vector<1x1x1x8xf32>
    %287 = vector.broadcast %286 : vector<1x1x1x8xf32> to vector<2x16x16x8xf32>
    %288 = arith.mulf %283, %287 : vector<2x16x16x8xf32>
    %289 = arith.addf %282, %288 : vector<2x16x16x8xf32>
    %290 = vector.extract_strided_slice %227 {offsets = [0, 2, 0, 0], sizes = [2, 16, 16, 8], strides = [1, 1, 1, 1]} : vector<2x18x16x8xf32> to vector<2x16x16x8xf32>
    %291 = vector.extract_strided_slice %241 {offsets = [7, 0], sizes = [1, 8], strides = [1, 1]} : vector<9x8xf32> to vector<1x8xf32>
    %292 = vector.shape_cast %291 : vector<1x8xf32> to vector<8xf32>
    %293 = vector.shape_cast %292 : vector<8xf32> to vector<1x1x1x8xf32>
    %294 = vector.broadcast %293 : vector<1x1x1x8xf32> to vector<2x16x16x8xf32>
    %295 = arith.mulf %290, %294 : vector<2x16x16x8xf32>
    %296 = arith.addf %289, %295 : vector<2x16x16x8xf32>
    %297 = vector.extract_strided_slice %240 {offsets = [0, 2, 0, 0], sizes = [2, 16, 16, 8], strides = [1, 1, 1, 1]} : vector<2x18x16x8xf32> to vector<2x16x16x8xf32>
    %298 = vector.extract_strided_slice %241 {offsets = [8, 0], sizes = [1, 8], strides = [1, 1]} : vector<9x8xf32> to vector<1x8xf32>
    %299 = vector.shape_cast %298 : vector<1x8xf32> to vector<8xf32>
    %300 = vector.shape_cast %299 : vector<8xf32> to vector<1x1x1x8xf32>
    %301 = vector.broadcast %300 : vector<1x1x1x8xf32> to vector<2x16x16x8xf32>
    %302 = arith.mulf %297, %301 : vector<2x16x16x8xf32>
    %303 = arith.addf %296, %302 : vector<2x16x16x8xf32>
    %304 = vector.shape_cast %303 : vector<2x16x16x8xf32> to vector<512x8xf32>
    %305 = arith.truncf %304 : vector<512x8xf32> to vector<512x8xbf16>
    %c0_48 = arith.constant 0 : index
    %c0_49 = arith.constant 0 : index
    %306 = vector.load %arg10[%c0_48, %c0_49] : memref<8x8xf32, #tpu.memory_space<vmem>>, vector<8x8xf32>
    %307 = arith.truncf %306 : vector<8x8xf32> to vector<8x8xbf16>
    %cst_50 = arith.constant dense<0.000000e+00> : vector<512x8xf32>
    %308 = tpu.matmul %305, %307, %cst_50 {dimension_numbers = #tpu.dot_dimension_numbers<[1], [0], [0], [1], [0, 0, 1, 1], [], []>} : vector<512x8xbf16>, vector<8x8xbf16>, vector<512x8xf32> -> vector<512x8xf32>
    %cst_51 = arith.constant dense<0.000000e+00> : vector<8xf32>
    %309 = vector.multi_reduction <add>, %308, %cst_51 [0] : vector<512x8xf32> to vector<8xf32>
    %310 = vector.shape_cast %309 : vector<8xf32> to vector<1x8xf32>
    %311 = arith.mulf %308, %308 : vector<512x8xf32>
    %cst_52 = arith.constant dense<0.000000e+00> : vector<8xf32>
    %312 = vector.multi_reduction <add>, %311, %cst_52 [0] : vector<512x8xf32> to vector<8xf32>
    %313 = vector.shape_cast %312 : vector<8xf32> to vector<1x8xf32>
    %cst_53 = arith.constant 0.001953125 : f32
    %314 = vector.broadcast %cst_53 : f32 to vector<1x8xf32>
    %315 = arith.mulf %310, %314 : vector<1x8xf32>
    %cst_54 = arith.constant 0.001953125 : f32
    %316 = vector.broadcast %cst_54 : f32 to vector<1x8xf32>
    %317 = arith.mulf %313, %316 : vector<1x8xf32>
    %318 = arith.mulf %315, %315 : vector<1x8xf32>
    %319 = arith.subf %317, %318 : vector<1x8xf32>
    %c0_55 = arith.constant 0 : index
    %c0_56 = arith.constant 0 : index
    %320 = vector.load %arg11[%c0_55, %c0_56] : memref<1x8xf32, #tpu.memory_space<vmem>>, vector<1x8xf32>
    %cst_57 = arith.constant 9.99999974E-6 : f32
    %321 = vector.broadcast %cst_57 : f32 to vector<1x8xf32>
    %322 = arith.addf %319, %321 : vector<1x8xf32>
    %323 = math.rsqrt %322 : vector<1x8xf32>
    %324 = arith.mulf %320, %323 : vector<1x8xf32>
    %c0_58 = arith.constant 0 : index
    %c0_59 = arith.constant 0 : index
    %325 = vector.load %arg12[%c0_58, %c0_59] : memref<1x8xf32, #tpu.memory_space<vmem>>, vector<1x8xf32>
    %326 = arith.mulf %315, %324 : vector<1x8xf32>
    %327 = arith.subf %325, %326 : vector<1x8xf32>
    %328 = vector.broadcast %324 : vector<1x8xf32> to vector<512x8xf32>
    %329 = arith.mulf %308, %328 : vector<512x8xf32>
    %330 = vector.broadcast %327 : vector<1x8xf32> to vector<512x8xf32>
    %331 = arith.addf %329, %330 : vector<512x8xf32>
    %332 = vector.shape_cast %331 : vector<512x8xf32> to vector<2x16x16x8xf32>
    %333 = arith.addf %332, %5 : vector<2x16x16x8xf32>
    %c0_60 = arith.constant 0 : index
    %c0_61 = arith.constant 0 : index
    %c0_62 = arith.constant 0 : index
    %c0_63 = arith.constant 0 : index
    %334 = vector.load %arg13[%c0_60, %c0_61, %c0_62, %c0_63] : memref<2x16x16x8xf32, #tpu.memory_space<vmem>>, vector<2x16x16x8xf32>
    tpu.vector_store %arg13[%c0_60, %c0_61, %c0_62, %c0_63], %333 {strides = array<i32>} : memref<2x16x16x8xf32, #tpu.memory_space<vmem>>, vector<2x16x16x8xf32>,
    return
  }
}

</mosaic_0001>

<llo_original>
// kernel: tpu_custom_call.1
$region0: #{tpu_custom_call.1}
  #allocation0 [shape = 'u32[]', space=smem, size = 0x4, offset = 0x4, fixed_abs, tag = 'smem constant byte address 0x4 - core index']
  #allocation1 [shape = 'u32[144,128]{1,0:T(1,128)}', space=vmem, size = 0x12000, scoped, tag = 'internal scratch']
  %s0 = inlined_call_operand.vmem [shape: f32[2,16,16,8], index: 0, kind: input, shape index: {}, may-alias: {0,13}]
  %s1 = inlined_call_operand.vmem [shape: f32[9,8], index: 1, kind: input, shape index: {}]
  %s2 = inlined_call_operand.vmem [shape: f32[8,8], index: 2, kind: input, shape index: {}]
  %s3 = inlined_call_operand.vmem [shape: f32[1,8], index: 3, kind: input, shape index: {}]
  %s4 = inlined_call_operand.vmem [shape: f32[1,8], index: 4, kind: input, shape index: {}]
  %s5 = inlined_call_operand.vmem [shape: f32[9,8], index: 5, kind: input, shape index: {}]
  %s6 = inlined_call_operand.vmem [shape: f32[8,8], index: 6, kind: input, shape index: {}]
  %s7 = inlined_call_operand.vmem [shape: f32[1,8], index: 7, kind: input, shape index: {}]
  %s8 = inlined_call_operand.vmem [shape: f32[1,8], index: 8, kind: input, shape index: {}]
  %s9 = inlined_call_operand.vmem [shape: f32[9,8], index: 9, kind: input, shape index: {}]
  %s10 = inlined_call_operand.vmem [shape: f32[8,8], index: 10, kind: input, shape index: {}]
  %s11 = inlined_call_operand.vmem [shape: f32[1,8], index: 11, kind: input, shape index: {}]
  %s12 = inlined_call_operand.vmem [shape: f32[1,8], index: 12, kind: input, shape index: {}]
  %s13 = inlined_call_operand.vmem [shape: f32[2,16,16,8], index: 13, kind: output, shape index: {}, may-alias: {0,13}]
  %s14 = sld [smem:[#allocation0]]
  $region62: #{tpu_custom_call.1} parent=0
    _
  %s16 = ssub.s32 1, %s14
  %s17 = scalar_select 0, %s16, %s14
  // Predicated region
  $region2: #{tpu_custom_call.1} parent=0 // pred_check
    _
  $region3: #{tpu_custom_call.1} parent=0 // pred_check_branch
    %19 = sbr.rel (0) target = $region5
  $region4: #{tpu_custom_call.1} parent=0 // pred_region
    _
  $region5: #{tpu_custom_call.1} parent=0 // pred_fallthru
    _
  // Predicated region
  $region6: #{tpu_custom_call.1} parent=0 // pred_check
    _
  $region7: #{tpu_custom_call.1} parent=0 // pred_check_branch
    %21 = sbr.rel (0) target = $region9
  $region8: #{tpu_custom_call.1} parent=0 // pred_region
    _
  $region9: #{tpu_custom_call.1} parent=0 // pred_fallthru
    _
  // Predicated region
  $region10: #{tpu_custom_call.1} parent=0 // pred_check
    _
  $region11: #{tpu_custom_call.1} parent=0 // pred_check_branch
    %23 = sbr.rel (0) target = $region13
  $region12: #{tpu_custom_call.1} parent=0 // pred_region
    _
  $region13: #{tpu_custom_call.1} parent=0 // pred_fallthru
    _
  // Predicated region
  $region14: #{tpu_custom_call.1} parent=0 // pred_check
    _
  $region15: #{tpu_custom_call.1} parent=0 // pred_check_branch
    %25 = sbr.rel (0) target = $region17
  $region16: #{tpu_custom_call.1} parent=0 // pred_region
    _
  $region17: #{tpu_custom_call.1} parent=0 // pred_fallthru
    _
  // Predicated region
  $region18: #{tpu_custom_call.1} parent=0 // pred_check
    _
  $region19: #{tpu_custom_call.1} parent=0 // pred_check_branch
    %27 = sbr.rel (0) target = $region21
  $region20: #{tpu_custom_call.1} parent=0 // pred_region
    _
  $region21: #{tpu_custom_call.1} parent=0 // pred_fallthru
    _
  // Predicated region
  $region22: #{tpu_custom_call.1} parent=0 // pred_check
    _
  $region23: #{tpu_custom_call.1} parent=0 // pred_check_branch
    %29 = sbr.rel (0) target = $region25
  $region24: #{tpu_custom_call.1} parent=0 // pred_region
    _
  $region25: #{tpu_custom_call.1} parent=0 // pred_fallthru
    _
  // Predicated region
  $region26: #{tpu_custom_call.1} parent=0 // pred_check
    _
  $region27: #{tpu_custom_call.1} parent=0 // pred_check_branch
    %31 = sbr.rel (0) target = $region29
  $region28: #{tpu_custom_call.1} parent=0 // pred_region
    _
  $region29: #{tpu_custom_call.1} parent=0 // pred_fallthru
    _
  // Predicated region
  $region30: #{tpu_custom_call.1} parent=0 // pred_check
    _
  $region31: #{tpu_custom_call.1} parent=0 // pred_check_branch
    %33 = sbr.rel (0) target = $region33
  $region32: #{tpu_custom_call.1} parent=0 // pred_region
    _
  $region33: #{tpu_custom_call.1} parent=0 // pred_fallthru
    _
  // Predicated region
  $region34: #{tpu_custom_call.1} parent=0 // pred_check
    _
  $region35: #{tpu_custom_call.1} parent=0 // pred_check_branch
    %35 = sbr.rel (0) target = $region37
  $region36: #{tpu_custom_call.1} parent=0 // pred_region
    _
  $region37: #{tpu_custom_call.1} parent=0 // pred_fallthru
    _
  // Predicated region
  $region38: #{tpu_custom_call.1} parent=0 // pred_check
    _
  $region39: #{tpu_custom_call.1} parent=0 // pred_check_branch
    %37 = sbr.rel (0) target = $region41
  $region40: #{tpu_custom_call.1} parent=0 // pred_region
    _
  $region41: #{tpu_custom_call.1} parent=0 // pred_fallthru
    _
  // Predicated region
  $region42: #{tpu_custom_call.1} parent=0 // pred_check
    _
  $region43: #{tpu_custom_call.1} parent=0 // pred_check_branch
    %39 = sbr.rel (0) target = $region45
  $region44: #{tpu_custom_call.1} parent=0 // pred_region
    _
  $region45: #{tpu_custom_call.1} parent=0 // pred_fallthru
    _
  // Predicated region
  $region46: #{tpu_custom_call.1} parent=0 // pred_check
    _
  $region47: #{tpu_custom_call.1} parent=0 // pred_check_branch
    %41 = sbr.rel (0) target = $region49
  $region48: #{tpu_custom_call.1} parent=0 // pred_region
    _
  $region49: #{tpu_custom_call.1} parent=0 // pred_fallthru
    _
  // Predicated region
  $region50: #{tpu_custom_call.1} parent=0 // pred_check
    _
  $region51: #{tpu_custom_call.1} parent=0 // pred_check_branch
    %43 = sbr.rel (0) target = $region53
  $region52: #{tpu_custom_call.1} parent=0 // pred_region
    _
  $region53: #{tpu_custom_call.1} parent=0 // pred_fallthru
    _
  %v45 = vlaneseq
  %v46 = vshrl.u32 %v45, 7
  %v47 = vadd.s32 %v46, 8
  %vm48 = vcmp.ne.s32.totalorder %v46, 0
  %vm49 = vcmp.ne.s32.totalorder %v47, 0
  %vm50 = vcmp.ne.s32.totalorder %v46, 15
  %vm51 = vcmp.ne.s32.totalorder %v47, 15
  %v52 = vld [vmem:[%s0] sm:$0xff]
  %v53 = vld [vmem:[%s0 + $0x8] sm:$0xff]
  %v54 = vld [vmem:[%s0 + $0x10] sm:$0xff]
  %v55 = vld [vmem:[%s0 + $0x18] sm:$0xff]
  %v56 = vld [vmem:[%s0 + $0x20] sm:$0xff]
  %v57 = vld [vmem:[%s0 + $0x28] sm:$0xff]
  %v58 = vld [vmem:[%s0 + $0x30] sm:$0xff]
  %v59 = vld [vmem:[%s0 + $0x38] sm:$0xff]
  %v60 = vld [vmem:[%s0 + $0x40] sm:$0xff]
  %v61 = vld [vmem:[%s0 + $0x48] sm:$0xff]
  %v62 = vld [vmem:[%s0 + $0x50] sm:$0xff]
  %v63 = vld [vmem:[%s0 + $0x58] sm:$0xff]
  %v64 = vld [vmem:[%s0 + $0x60] sm:$0xff]
  %v65 = vld [vmem:[%s0 + $0x68] sm:$0xff]
  %v66 = vld [vmem:[%s0 + $0x70] sm:$0xff]
  %v67 = vld [vmem:[%s0 + $0x78] sm:$0xff]
  %v68 = vld [vmem:[%s0 + $0x80] sm:$0xff]
  %v69 = vld [vmem:[%s0 + $0x88] sm:$0xff]
  %v70 = vld [vmem:[%s0 + $0x90] sm:$0xff]
  %v71 = vld [vmem:[%s0 + $0x98] sm:$0xff]
  %v72 = vld [vmem:[%s0 + $0xa0] sm:$0xff]
  %v73 = vld [vmem:[%s0 + $0xa8] sm:$0xff]
  %v74 = vld [vmem:[%s0 + $0xb0] sm:$0xff]
  %v75 = vld [vmem:[%s0 + $0xb8] sm:$0xff]
  %v76 = vld [vmem:[%s0 + $0xc0] sm:$0xff]
  %v77 = vld [vmem:[%s0 + $0xc8] sm:$0xff]
  %v78 = vld [vmem:[%s0 + $0xd0] sm:$0xff]
  %v79 = vld [vmem:[%s0 + $0xd8] sm:$0xff]
  %v80 = vld [vmem:[%s0 + $0xe0] sm:$0xff]
  %v81 = vld [vmem:[%s0 + $0xe8] sm:$0xff]
  %v82 = vld [vmem:[%s0 + $0xf0] sm:$0xff]
  %v83 = vld [vmem:[%s0 + $0xf8] sm:$0xff]
  %v84 = vld [vmem:[%s0 + $0x100] sm:$0xff]
  %v85 = vld [vmem:[%s0 + $0x108] sm:$0xff]
  %v86 = vld [vmem:[%s0 + $0x110] sm:$0xff]
  %v87 = vld [vmem:[%s0 + $0x118] sm:$0xff]
  %v88 = vld [vmem:[%s0 + $0x120] sm:$0xff]
  %v89 = vld [vmem:[%s0 + $0x128] sm:$0xff]
  %v90 = vld [vmem:[%s0 + $0x130] sm:$0xff]
  %v91 = vld [vmem:[%s0 + $0x138] sm:$0xff]
  %v92 = vld [vmem:[%s0 + $0x140] sm:$0xff]
  %v93 = vld [vmem:[%s0 + $0x148] sm:$0xff]
  %v94 = vld [vmem:[%s0 + $0x150] sm:$0xff]
  %v95 = vld [vmem:[%s0 + $0x158] sm:$0xff]
  %v96 = vld [vmem:[%s0 + $0x160] sm:$0xff]
  %v97 = vld [vmem:[%s0 + $0x168] sm:$0xff]
  %v98 = vld [vmem:[%s0 + $0x170] sm:$0xff]
  %v99 = vld [vmem:[%s0 + $0x178] sm:$0xff]
  %v100 = vld [vmem:[%s0 + $0x180] sm:$0xff]
  %v101 = vld [vmem:[%s0 + $0x188] sm:$0xff]
  %v102 = vld [vmem:[%s0 + $0x190] sm:$0xff]
  %v103 = vld [vmem:[%s0 + $0x198] sm:$0xff]
  %v104 = vld [vmem:[%s0 + $0x1a0] sm:$0xff]
  %v105 = vld [vmem:[%s0 + $0x1a8] sm:$0xff]
  %v106 = vld [vmem:[%s0 + $0x1b0] sm:$0xff]
  %v107 = vld [vmem:[%s0 + $0x1b8] sm:$0xff]
  %v108 = vld [vmem:[%s0 + $0x1c0] sm:$0xff]
  %v109 = vld [vmem:[%s0 + $0x1c8] sm:$0xff]
  %v110 = vld [vmem:[%s0 + $0x1d0] sm:$0xff]
  %v111 = vld [vmem:[%s0 + $0x1d8] sm:$0xff]
  %v112 = vld [vmem:[%s0 + $0x1e0] sm:$0xff]
  %v113 = vld [vmem:[%s0 + $0x1e8] sm:$0xff]
  %v114 = vld [vmem:[%s0 + $0x1f0] sm:$0xff]
  %v115 = vld [vmem:[%s0 + $0x1f8] sm:$0xff]
  %v116 = vmax.f32 %v52, 0.0
  %v117 = vmax.f32 %v53, 0.0
  %v118 = vmax.f32 %v54, 0.0
  %v119 = vmax.f32 %v55, 0.0
  %v120 = vmax.f32 %v56, 0.0
  %v121 = vmax.f32 %v57, 0.0
  %v122 = vmax.f32 %v58, 0.0
  %v123 = vmax.f32 %v59, 0.0
  %v124 = vmax.f32 %v60, 0.0
  %v125 = vmax.f32 %v61, 0.0
  %v126 = vmax.f32 %v62, 0.0
  %v127 = vmax.f32 %v63, 0.0
  %v128 = vmax.f32 %v64, 0.0
  %v129 = vmax.f32 %v65, 0.0
  %v130 = vmax.f32 %v66, 0.0
  %v131 = vmax.f32 %v67, 0.0
  %v132 = vmax.f32 %v68, 0.0
  %v133 = vmax.f32 %v69, 0.0
  %v134 = vmax.f32 %v70, 0.0
  %v135 = vmax.f32 %v71, 0.0
  %v136 = vmax.f32 %v72, 0.0
  %v137 = vmax.f32 %v73, 0.0
  %v138 = vmax.f32 %v74, 0.0
  %v139 = vmax.f32 %v75, 0.0
  %v140 = vmax.f32 %v76, 0.0
  %v141 = vmax.f32 %v77, 0.0
  %v142 = vmax.f32 %v78, 0.0
  %v143 = vmax.f32 %v79, 0.0
  %v144 = vmax.f32 %v80, 0.0
  %v145 = vmax.f32 %v81, 0.0
  %v146 = vmax.f32 %v82, 0.0
  %v147 = vmax.f32 %v83, 0.0
  %v148 = vmax.f32 %v84, 0.0
  %v149 = vmax.f32 %v85, 0.0
  %v150 = vmax.f32 %v86, 0.0
  %v151 = vmax.f32 %v87, 0.0
  %v152 = vmax.f32 %v88, 0.0
  %v153 = vmax.f32 %v89, 0.0
  %v154 = vmax.f32 %v90, 0.0
  %v155 = vmax.f32 %v91, 0.0
  %v156 = vmax.f32 %v92, 0.0
  %v157 = vmax.f32 %v93, 0.0
  %v158 = vmax.f32 %v94, 0.0
  %v159 = vmax.f32 %v95, 0.0
  %v160 = vmax.f32 %v96, 0.0
  %v161 = vmax.f32 %v97, 0.0
  %v162 = vmax.f32 %v98, 0.0
  %v163 = vmax.f32 %v99, 0.0
  %v164 = vmax.f32 %v100, 0.0
  %v165 = vmax.f32 %v101, 0.0
  %v166 = vmax.f32 %v102, 0.0
  %v167 = vmax.f32 %v103, 0.0
  %v168 = vmax.f32 %v104, 0.0
  %v169 = vmax.f32 %v105, 0.0
  %v170 = vmax.f32 %v106, 0.0
  %v171 = vmax.f32 %v107, 0.0
  %v172 = vmax.f32 %v108, 0.0
  %v173 = vmax.f32 %v109, 0.0
  %v174 = vmax.f32 %v110, 0.0
  %v175 = vmax.f32 %v111, 0.0
  %v176 = vmax.f32 %v112, 0.0
  %v177 = vmax.f32 %v113, 0.0
  %v178 = vmax.f32 %v114, 0.0
  %v179 = vmax.f32 %v115, 0.0
  %v180 = vrot.slane %v116, 7
  %v181 = vrot.slane %v117, 7
  %v182 = vrot.slane %v118, 7
  %v183 = vrot.slane %v119, 7
  %v184 = vrot.slane %v120, 7
  %v185 = vrot.slane %v121, 7
  %v186 = vrot.slane %v122, 7
  %v187 = vrot.slane %v123, 7
  %v188 = vrot.slane %v124, 7
  %v189 = vrot.slane %v125, 7
  %v190 = vrot.slane %v126, 7
  %v191 = vrot.slane %v127, 7
  %v192 = vrot.slane %v128, 7
  %v193 = vrot.slane %v129, 7
  %v194 = vrot.slane %v130, 7
  %v195 = vrot.slane %v131, 7
  %v196 = vrot.slane %v132, 7
  %v197 = vrot.slane %v133, 7
  %v198 = vrot.slane %v134, 7
  %v199 = vrot.slane %v135, 7
  %v200 = vrot.slane %v136, 7
  %v201 = vrot.slane %v137, 7
  %v202 = vrot.slane %v138, 7
  %v203 = vrot.slane %v139, 7
  %v204 = vrot.slane %v140, 7
  %v205 = vrot.slane %v141, 7
  %v206 = vrot.slane %v142, 7
  %v207 = vrot.slane %v143, 7
  %v208 = vrot.slane %v144, 7
  %v209 = vrot.slane %v145, 7
  %v210 = vrot.slane %v146, 7
  %v211 = vrot.slane %v147, 7
  %v212 = vrot.slane %v148, 7
  %v213 = vrot.slane %v149, 7
  %v214 = vrot.slane %v150, 7
  %v215 = vrot.slane %v151, 7
  %v216 = vrot.slane %v152, 7
  %v217 = vrot.slane %v153, 7
  %v218 = vrot.slane %v154, 7
  %v219 = vrot.slane %v155, 7
  %v220 = vrot.slane %v156, 7
  %v221 = vrot.slane %v157, 7
  %v222 = vrot.slane %v158, 7
  %v223 = vrot.slane %v159, 7
  %v224 = vrot.slane %v160, 7
  %v225 = vrot.slane %v161, 7
  %v226 = vrot.slane %v162, 7
  %v227 = vrot.slane %v163, 7
  %v228 = vrot.slane %v164, 7
  %v229 = vrot.slane %v165, 7
  %v230 = vrot.slane %v166, 7
  %v231 = vrot.slane %v167, 7
  %v232 = vrot.slane %v168, 7
  %v233 = vrot.slane %v169, 7
  %v234 = vrot.slane %v170, 7
  %v235 = vrot.slane %v171, 7
  %v236 = vrot.slane %v172, 7
  %v237 = vrot.slane %v173, 7
  %v238 = vrot.slane %v174, 7
  %v239 = vrot.slane %v175, 7
  %v240 = vrot.slane %v176, 7
  %v241 = vrot.slane %v177, 7
  %v242 = vrot.slane %v178, 7
  %v243 = vrot.slane %v179, 7
  %vm244 = vcmp.lt.s32.totalorder %v46, 1
  %v245 = vsel %vm244, %v243, 0.0
  %v246 = vsel %vm244, %v242, %v243
  %v247 = vsel %vm244, %v241, %v242
  %v248 = vsel %vm244, %v240, %v241
  %v249 = vsel %vm244, %v239, %v240
  %v250 = vsel %vm244, %v238, %v239
  %v251 = vsel %vm244, %v237, %v238
  %v252 = vsel %vm244, %v236, %v237
  %v253 = vsel %vm244, %v235, %v236
  %v254 = vsel %vm244, %v234, %v235
  %v255 = vsel %vm244, %v233, %v234
  %v256 = vsel %vm244, %v232, %v233
  %v257 = vsel %vm244, %v231, %v232
  %v258 = vsel %vm244, %v230, %v231
  %v259 = vsel %vm244, %v229, %v230
  %v260 = vsel %vm244, %v228, %v229
  %v261 = vsel %vm244, %v227, %v228
  %v262 = vsel %vm244, %v226, %v227
  %v263 = vsel %vm244, %v225, %v226
  %v264 = vsel %vm244, %v224, %v225
  %v265 = vsel %vm244, %v223, %v224
  %v266 = vsel %vm244, %v222, %v223
  %v267 = vsel %vm244, %v221, %v222
  %v268 = vsel %vm244, %v220, %v221
  %v269 = vsel %vm244, %v219, %v220
  %v270 = vsel %vm244, %v218, %v219
  %v271 = vsel %vm244, %v217, %v218
  %v272 = vsel %vm244, %v216, %v217
  %v273 = vsel %vm244, %v215, %v216
  %v274 = vsel %vm244, %v214, %v215
  %v275 = vsel %vm244, %v213, %v214
  %v276 = vsel %vm244, %v212, %v213
  %v277 = vsel %vm244, 0.0, %v212
  %v278 = vsel %vm244, %v211, 0.0
  %v279 = vsel %vm244, %v210, %v211
  %v280 = vsel %vm244, %v209, %v210
  %v281 = vsel %vm244, %v208, %v209
  %v282 = vsel %vm244, %v207, %v208
  %v283 = vsel %vm244, %v206, %v207
  %v284 = vsel %vm244, %v205, %v206
  %v285 = vsel %vm244, %v204, %v205
  %v286 = vsel %vm244, %v203, %v204
  %v287 = vsel %vm244, %v202, %v203
  %v288 = vsel %vm244, %v201, %v202
  %v289 = vsel %vm244, %v200, %v201
  %v290 = vsel %vm244, %v199, %v200
  %v291 = vsel %vm244, %v198, %v199
  %v292 = vsel %vm244, %v197, %v198
  %v293 = vsel %vm244, %v196, %v197
  %v294 = vsel %vm244, %v195, %v196
  %v295 = vsel %vm244, %v194, %v195
  %v296 = vsel %vm244, %v193, %v194
  %v297 = vsel %vm244, %v192, %v193
  %v298 = vsel %vm244, %v191, %v192
  %v299 = vsel %vm244, %v190, %v191
  %v300 = vsel %vm244, %v189, %v190
  %v301 = vsel %vm244, %v188, %v189
  %v302 = vsel %vm244, %v187, %v188
  %v303 = vsel %vm244, %v186, %v187
  %v304 = vsel %vm244, %v185, %v186
  %v305 = vsel %vm244, %v184, %v185
  %v306 = vsel %vm244, %v183, %v184
  %v307 = vsel %vm244, %v182, %v183
  %v308 = vsel %vm244, %v181, %v182
  %v309 = vsel %vm244, %v180, %v181
  %v310 = vsel %vm244, 0.0, %v180
  %v311 = vsel %vm48, 1, 0
  %v312 = vsel %vm49, 1, 0
  %vm313 = vcmp.eq.s32.totalorder %v311, 1
  %vm314 = vcmp.eq.s32.totalorder %v312, 1
  %v315 = vsel %vm313, 0.0, 0.0
  %v316 = vsel %vm314, 0.0, 0.0
  %v317 = vsel %vm313, %v310, 0.0
  %v318 = vsel %vm314, %v309, 0.0
  %v319 = vsel %vm313, %v308, 0.0
  %v320 = vsel %vm314, %v307, 0.0
  %v321 = vsel %vm313, %v306, 0.0
  %v322 = vsel %vm314, %v305, 0.0
  %v323 = vsel %vm313, %v304, 0.0
  %v324 = vsel %vm314, %v303, 0.0
  %v325 = vsel %vm313, %v302, 0.0
  %v326 = vsel %vm314, %v301, 0.0
  %v327 = vsel %vm313, %v300, 0.0
  %v328 = vsel %vm314, %v299, 0.0
  %v329 = vsel %vm313, %v298, 0.0
  %v330 = vsel %vm314, %v297, 0.0
  %v331 = vsel %vm313, %v296, 0.0
  %v332 = vsel %vm314, %v295, 0.0
  %v333 = vsel %vm313, %v294, 0.0
  %v334 = vsel %vm314, %v293, 0.0
  %v335 = vsel %vm313, %v292, 0.0
  %v336 = vsel %vm314, %v291, 0.0
  %v337 = vsel %vm313, %v290, 0.0
  %v338 = vsel %vm314, %v289, 0.0
  %v339 = vsel %vm313, %v288, 0.0
  %v340 = vsel %vm314, %v287, 0.0
  %v341 = vsel %vm313, %v286, 0.0
  %v342 = vsel %vm314, %v285, 0.0
  %v343 = vsel %vm313, %v284, 0.0
  %v344 = vsel %vm314, %v283, 0.0
  %v345 = vsel %vm313, %v282, 0.0
  %v346 = vsel %vm314, %v281, 0.0
  %v347 = vsel %vm313, %v280, 0.0
  %v348 = vsel %vm314, %v279, 0.0
  %v349 = vsel %vm313, %v278, 0.0
  %v350 = vsel %vm313, %v277, 0.0
  %v351 = vsel %vm314, %v276, 0.0
  %v352 = vsel %vm313, %v275, 0.0
  %v353 = vsel %vm314, %v274, 0.0
  %v354 = vsel %vm313, %v273, 0.0
  %v355 = vsel %vm314, %v272, 0.0
  %v356 = vsel %vm313, %v271, 0.0
  %v357 = vsel %vm314, %v270, 0.0
  %v358 = vsel %vm313, %v269, 0.0
  %v359 = vsel %vm314, %v268, 0.0
  %v360 = vsel %vm313, %v267, 0.0
  %v361 = vsel %vm314, %v266, 0.0
  %v362 = vsel %vm313, %v265, 0.0
  %v363 = vsel %vm314, %v264, 0.0
  %v364 = vsel %vm313, %v263, 0.0
  %v365 = vsel %vm314, %v262, 0.0
  %v366 = vsel %vm313, %v261, 0.0
  %v367 = vsel %vm314, %v260, 0.0
  %v368 = vsel %vm313, %v259, 0.0
  %v369 = vsel %vm314, %v258, 0.0
  %v370 = vsel %vm313, %v257, 0.0
  %v371 = vsel %vm314, %v256, 0.0
  %v372 = vsel %vm313, %v255, 0.0
  %v373 = vsel %vm314, %v254, 0.0
  %v374 = vsel %vm313, %v253, 0.0
  %v375 = vsel %vm314, %v252, 0.0
  %v376 = vsel %vm313, %v251, 0.0
  %v377 = vsel %vm314, %v250, 0.0
  %v378 = vsel %vm313, %v249, 0.0
  %v379 = vsel %vm314, %v248, 0.0
  %v380 = vsel %vm313, %v247, 0.0
  %v381 = vsel %vm314, %v246, 0.0
  %v382 = vsel %vm313, %v245, 0.0
  %v383 = vrot.slane %v116, 1
  %v384 = vrot.slane %v117, 1
  %v385 = vrot.slane %v118, 1
  %v386 = vrot.slane %v119, 1
  %v387 = vrot.slane %v120, 1
  %v388 = vrot.slane %v121, 1
  %v389 = vrot.slane %v122, 1
  %v390 = vrot.slane %v123, 1
  %v391 = vrot.slane %v124, 1
  %v392 = vrot.slane %v125, 1
  %v393 = vrot.slane %v126, 1
  %v394 = vrot.slane %v127, 1
  %v395 = vrot.slane %v128, 1
  %v396 = vrot.slane %v129, 1
  %v397 = vrot.slane %v130, 1
  %v398 = vrot.slane %v131, 1
  %v399 = vrot.slane %v132, 1
  %v400 = vrot.slane %v133, 1
  %v401 = vrot.slane %v134, 1
  %v402 = vrot.slane %v135, 1
  %v403 = vrot.slane %v136, 1
  %v404 = vrot.slane %v137, 1
  %v405 = vrot.slane %v138, 1
  %v406 = vrot.slane %v139, 1
  %v407 = vrot.slane %v140, 1
  %v408 = vrot.slane %v141, 1
  %v409 = vrot.slane %v142, 1
  %v410 = vrot.slane %v143, 1
  %v411 = vrot.slane %v144, 1
  %v412 = vrot.slane %v145, 1
  %v413 = vrot.slane %v146, 1
  %v414 = vrot.slane %v147, 1
  %v415 = vrot.slane %v148, 1
  %v416 = vrot.slane %v149, 1
  %v417 = vrot.slane %v150, 1
  %v418 = vrot.slane %v151, 1
  %v419 = vrot.slane %v152, 1
  %v420 = vrot.slane %v153, 1
  %v421 = vrot.slane %v154, 1
  %v422 = vrot.slane %v155, 1
  %v423 = vrot.slane %v156, 1
  %v424 = vrot.slane %v157, 1
  %v425 = vrot.slane %v158, 1
  %v426 = vrot.slane %v159, 1
  %v427 = vrot.slane %v160, 1
  %v428 = vrot.slane %v161, 1
  %v429 = vrot.slane %v162, 1
  %v430 = vrot.slane %v163, 1
  %v431 = vrot.slane %v164, 1
  %v432 = vrot.slane %v165, 1
  %v433 = vrot.slane %v166, 1
  %v434 = vrot.slane %v167, 1
  %v435 = vrot.slane %v168, 1
  %v436 = vrot.slane %v169, 1
  %v437 = vrot.slane %v170, 1
  %v438 = vrot.slane %v171, 1
  %v439 = vrot.slane %v172, 1
  %v440 = vrot.slane %v173, 1
  %v441 = vrot.slane %v174, 1
  %v442 = vrot.slane %v175, 1
  %v443 = vrot.slane %v176, 1
  %v444 = vrot.slane %v177, 1
  %v445 = vrot.slane %v178, 1
  %v446 = vrot.slane %v179, 1
  %vm447 = vcmp.lt.s32.totalorder %v46, 7
  %v448 = vsel %vm447, %v446, 0.0
  %v449 = vsel %vm447, %v445, %v446
  %v450 = vsel %vm447, %v444, %v445
  %v451 = vsel %vm447, %v443, %v444
  %v452 = vsel %vm447, %v442, %v443
  %v453 = vsel %vm447, %v441, %v442
  %v454 = vsel %vm447, %v440, %v441
  %v455 = vsel %vm447, %v439, %v440
  %v456 = vsel %vm447, %v438, %v439
  %v457 = vsel %vm447, %v437, %v438
  %v458 = vsel %vm447, %v436, %v437
  %v459 = vsel %vm447, %v435, %v436
  %v460 = vsel %vm447, %v434, %v435
  %v461 = vsel %vm447, %v433, %v434
  %v462 = vsel %vm447, %v432, %v433
  %v463 = vsel %vm447, %v431, %v432
  %v464 = vsel %vm447, %v430, %v431
  %v465 = vsel %vm447, %v429, %v430
  %v466 = vsel %vm447, %v428, %v429
  %v467 = vsel %vm447, %v427, %v428
  %v468 = vsel %vm447, %v426, %v427
  %v469 = vsel %vm447, %v425, %v426
  %v470 = vsel %vm447, %v424, %v425
  %v471 = vsel %vm447, %v423, %v424
  %v472 = vsel %vm447, %v422, %v423
  %v473 = vsel %vm447, %v421, %v422
  %v474 = vsel %vm447, %v420, %v421
  %v475 = vsel %vm447, %v419, %v420
  %v476 = vsel %vm447, %v418, %v419
  %v477 = vsel %vm447, %v417, %v418
  %v478 = vsel %vm447, %v416, %v417
  %v479 = vsel %vm447, %v415, %v416
  %v480 = vsel %vm447, 0.0, %v415
  %v481 = vsel %vm447, %v414, 0.0
  %v482 = vsel %vm447, %v413, %v414
  %v483 = vsel %vm447, %v412, %v413
  %v484 = vsel %vm447, %v411, %v412
  %v485 = vsel %vm447, %v410, %v411
  %v486 = vsel %vm447, %v409, %v410
  %v487 = vsel %vm447, %v408, %v409
  %v488 = vsel %vm447, %v407, %v408
  %v489 = vsel %vm447, %v406, %v407
  %v490 = vsel %vm447, %v405, %v406
  %v491 = vsel %vm447, %v404, %v405
  %v492 = vsel %vm447, %v403, %v404
  %v493 = vsel %vm447, %v402, %v403
  %v494 = vsel %vm447, %v401, %v402
  %v495 = vsel %vm447, %v400, %v401
  %v496 = vsel %vm447, %v399, %v400
  %v497 = vsel %vm447, %v398, %v399
  %v498 = vsel %vm447, %v397, %v398
  %v499 = vsel %vm447, %v396, %v397
  %v500 = vsel %vm447, %v395, %v396
  %v501 = vsel %vm447, %v394, %v395
  %v502 = vsel %vm447, %v393, %v394
  %v503 = vsel %vm447, %v392, %v393
  %v504 = vsel %vm447, %v391, %v392
  %v505 = vsel %vm447, %v390, %v391
  %v506 = vsel %vm447, %v389, %v390
  %v507 = vsel %vm447, %v388, %v389
  %v508 = vsel %vm447, %v387, %v388
  %v509 = vsel %vm447, %v386, %v387
  %v510 = vsel %vm447, %v385, %v386
  %v511 = vsel %vm447, %v384, %v385
  %v512 = vsel %vm447, %v383, %v384
  %v513 = vsel %vm447, 0.0, %v383
  %v514 = vsel %vm50, 1, 0
  %v515 = vsel %vm51, 1, 0
  %vm516 = vcmp.eq.s32.totalorder %v514, 1
  %vm517 = vcmp.eq.s32.totalorder %v515, 1
  %v518 = vsel %vm516, 0.0, 0.0
  %v519 = vsel %vm517, %v513, 0.0
  %v520 = vsel %vm516, %v512, 0.0
  %v521 = vsel %vm517, %v511, 0.0
  %v522 = vsel %vm516, %v510, 0.0
  %v523 = vsel %vm517, %v509, 0.0
  %v524 = vsel %vm516, %v508, 0.0
  %v525 = vsel %vm517, %v507, 0.0
  %v526 = vsel %vm516, %v506, 0.0
  %v527 = vsel %vm517, %v505, 0.0
  %v528 = vsel %vm516, %v504, 0.0
  %v529 = vsel %vm517, %v503, 0.0
  %v530 = vsel %vm516, %v502, 0.0
  %v531 = vsel %vm517, %v501, 0.0
  %v532 = vsel %vm516, %v500, 0.0
  %v533 = vsel %vm517, %v499, 0.0
  %v534 = vsel %vm516, %v498, 0.0
  %v535 = vsel %vm517, %v497, 0.0
  %v536 = vsel %vm516, %v496, 0.0
  %v537 = vsel %vm517, %v495, 0.0
  %v538 = vsel %vm516, %v494, 0.0
  %v539 = vsel %vm517, %v493, 0.0
  %v540 = vsel %vm516, %v492, 0.0
  %v541 = vsel %vm517, %v491, 0.0
  %v542 = vsel %vm516, %v490, 0.0
  %v543 = vsel %vm517, %v489, 0.0
  %v544 = vsel %vm516, %v488, 0.0
  %v545 = vsel %vm517, %v487, 0.0
  %v546 = vsel %vm516, %v486, 0.0
  %v547 = vsel %vm517, %v485, 0.0
  %v548 = vsel %vm516, %v484, 0.0
  %v549 = vsel %vm517, %v483, 0.0
  %v550 = vsel %vm516, %v482, 0.0
  %v551 = vsel %vm517, %v481, 0.0
  %v552 = vsel %vm517, 0.0, 0.0
  %v553 = vsel %vm517, %v480, 0.0
  %v554 = vsel %vm516, %v479, 0.0
  %v555 = vsel %vm517, %v478, 0.0
  %v556 = vsel %vm516, %v477, 0.0
  %v557 = vsel %vm517, %v476, 0.0
  %v558 = vsel %vm516, %v475, 0.0
  %v559 = vsel %vm517, %v474, 0.0
  %v560 = vsel %vm516, %v473, 0.0
  %v561 = vsel %vm517, %v472, 0.0
  %v562 = vsel %vm516, %v471, 0.0
  %v563 = vsel %vm517, %v470, 0.0
  %v564 = vsel %vm516, %v469, 0.0
  %v565 = vsel %vm517, %v468, 0.0
  %v566 = vsel %vm516, %v467, 0.0
  %v567 = vsel %vm517, %v466, 0.0
  %v568 = vsel %vm516, %v465, 0.0
  %v569 = vsel %vm517, %v464, 0.0
  %v570 = vsel %vm516, %v463, 0.0
  %v571 = vsel %vm517, %v462, 0.0
  %v572 = vsel %vm516, %v461, 0.0
  %v573 = vsel %vm517, %v460, 0.0
  %v574 = vsel %vm516, %v459, 0.0
  %v575 = vsel %vm517, %v458, 0.0
  %v576 = vsel %vm516, %v457, 0.0
  %v577 = vsel %vm517, %v456, 0.0
  %v578 = vsel %vm516, %v455, 0.0
  %v579 = vsel %vm517, %v454, 0.0
  %v580 = vsel %vm516, %v453, 0.0
  %v581 = vsel %vm517, %v452, 0.0
  %v582 = vsel %vm516, %v451, 0.0
  %v583 = vsel %vm517, %v450, 0.0
  %v584 = vsel %vm516, %v449, 0.0
  %v585 = vsel %vm517, %v448, 0.0
  %v586 = vld [vmem:[%s1] sm:$0xff]
  %v587 = vld [vmem:[%s1 + $0x8] sm:$0x1]
  %v588 = vlaneseq
  %v589 = vshrl.u32 %v588, 7
  %v590 = vsub.s32 0, %v589
  %v591 = vrot.slane %v586, %v590
  %v592 = vmul.f32 %v315, %v591
  %v593 = vmul.f32 %v316, %v591
  %v594 = vmul.f32 %v317, %v591
  %v595 = vmul.f32 %v318, %v591
  %v596 = vmul.f32 %v319, %v591
  %v597 = vmul.f32 %v320, %v591
  %v598 = vmul.f32 %v321, %v591
  %v599 = vmul.f32 %v322, %v591
  %v600 = vmul.f32 %v323, %v591
  %v601 = vmul.f32 %v324, %v591
  %v602 = vmul.f32 %v325, %v591
  %v603 = vmul.f32 %v326, %v591
  %v604 = vmul.f32 %v327, %v591
  %v605 = vmul.f32 %v328, %v591
  %v606 = vmul.f32 %v329, %v591
  %v607 = vmul.f32 %v330, %v591
  %v608 = vmul.f32 %v331, %v591
  %v609 = vmul.f32 %v332, %v591
  %v610 = vmul.f32 %v333, %v591
  %v611 = vmul.f32 %v334, %v591
  %v612 = vmul.f32 %v335, %v591
  %v613 = vmul.f32 %v336, %v591
  %v614 = vmul.f32 %v337, %v591
  %v615 = vmul.f32 %v338, %v591
  %v616 = vmul.f32 %v339, %v591
  %v617 = vmul.f32 %v340, %v591
  %v618 = vmul.f32 %v341, %v591
  %v619 = vmul.f32 %v342, %v591
  %v620 = vmul.f32 %v343, %v591
  %v621 = vmul.f32 %v344, %v591
  %v622 = vmul.f32 %v345, %v591
  %v623 = vmul.f32 %v346, %v591
  %v624 = vmul.f32 %v350, %v591
  %v625 = vmul.f32 %v351, %v591
  %v626 = vmul.f32 %v352, %v591
  %v627 = vmul.f32 %v353, %v591
  %v628 = vmul.f32 %v354, %v591
  %v629 = vmul.f32 %v355, %v591
  %v630 = vmul.f32 %v356, %v591
  %v631 = vmul.f32 %v357, %v591
  %v632 = vmul.f32 %v358, %v591
  %v633 = vmul.f32 %v359, %v591
  %v634 = vmul.f32 %v360, %v591
  %v635 = vmul.f32 %v361, %v591
  %v636 = vmul.f32 %v362, %v591
  %v637 = vmul.f32 %v363, %v591
  %v638 = vmul.f32 %v364, %v591
  %v639 = vmul.f32 %v365, %v591
  %v640 = vmul.f32 %v366, %v591
  %v641 = vmul.f32 %v367, %v591
  %v642 = vmul.f32 %v368, %v591
  %v643 = vmul.f32 %v369, %v591
  %v644 = vmul.f32 %v370, %v591
  %v645 = vmul.f32 %v371, %v591
  %v646 = vmul.f32 %v372, %v591
  %v647 = vmul.f32 %v373, %v591
  %v648 = vmul.f32 %v374, %v591
  %v649 = vmul.f32 %v375, %v591
  %v650 = vmul.f32 %v376, %v591
  %v651 = vmul.f32 %v377, %v591
  %v652 = vmul.f32 %v378, %v591
  %v653 = vmul.f32 %v379, %v591
  %v654 = vlaneseq
  %v655 = vshrl.u32 %v654, 7
  %v656 = vsub.s32 1, %v655
  %v657 = vrot.slane %v586, %v656
  %v658 = vmul.f32 %v657, 0.0
  %v659 = vmul.f32 %v116, %v657
  %v660 = vmul.f32 %v117, %v657
  %v661 = vmul.f32 %v118, %v657
  %v662 = vmul.f32 %v119, %v657
  %v663 = vmul.f32 %v120, %v657
  %v664 = vmul.f32 %v121, %v657
  %v665 = vmul.f32 %v122, %v657
  %v666 = vmul.f32 %v123, %v657
  %v667 = vmul.f32 %v124, %v657
  %v668 = vmul.f32 %v125, %v657
  %v669 = vmul.f32 %v126, %v657
  %v670 = vmul.f32 %v127, %v657
  %v671 = vmul.f32 %v128, %v657
  %v672 = vmul.f32 %v129, %v657
  %v673 = vmul.f32 %v130, %v657
  %v674 = vmul.f32 %v131, %v657
  %v675 = vmul.f32 %v132, %v657
  %v676 = vmul.f32 %v133, %v657
  %v677 = vmul.f32 %v134, %v657
  %v678 = vmul.f32 %v135, %v657
  %v679 = vmul.f32 %v136, %v657
  %v680 = vmul.f32 %v137, %v657
  %v681 = vmul.f32 %v138, %v657
  %v682 = vmul.f32 %v139, %v657
  %v683 = vmul.f32 %v140, %v657
  %v684 = vmul.f32 %v141, %v657
  %v685 = vmul.f32 %v142, %v657
  %v686 = vmul.f32 %v143, %v657
  %v687 = vmul.f32 %v144, %v657
  %v688 = vmul.f32 %v145, %v657
  %v689 = vmul.f32 %v148, %v657
  %v690 = vmul.f32 %v149, %v657
  %v691 = vmul.f32 %v150, %v657
  %v692 = vmul.f32 %v151, %v657
  %v693 = vmul.f32 %v152, %v657
  %v694 = vmul.f32 %v153, %v657
  %v695 = vmul.f32 %v154, %v657
  %v696 = vmul.f32 %v155, %v657
  %v697 = vmul.f32 %v156, %v657
  %v698 = vmul.f32 %v157, %v657
  %v699 = vmul.f32 %v158, %v657
  %v700 = vmul.f32 %v159, %v657
  %v701 = vmul.f32 %v160, %v657
  %v702 = vmul.f32 %v161, %v657
  %v703 = vmul.f32 %v162, %v657
  %v704 = vmul.f32 %v163, %v657
  %v705 = vmul.f32 %v164, %v657
  %v706 = vmul.f32 %v165, %v657
  %v707 = vmul.f32 %v166, %v657
  %v708 = vmul.f32 %v167, %v657
  %v709 = vmul.f32 %v168, %v657
  %v710 = vmul.f32 %v169, %v657
  %v711 = vmul.f32 %v170, %v657
  %v712 = vmul.f32 %v171, %v657
  %v713 = vmul.f32 %v172, %v657
  %v714 = vmul.f32 %v173, %v657
  %v715 = vmul.f32 %v174, %v657
  %v716 = vmul.f32 %v175, %v657
  %v717 = vmul.f32 %v176, %v657
  %v718 = vmul.f32 %v177, %v657
  %v719 = vadd.f32 %v592, %v658
  %v720 = vadd.f32 %v593, %v658
  %v721 = vadd.f32 %v594, %v659
  %v722 = vadd.f32 %v595, %v660
  %v723 = vadd.f32 %v596, %v661
  %v724 = vadd.f32 %v597, %v662
  %v725 = vadd.f32 %v598, %v663
  %v726 = vadd.f32 %v599, %v664
  %v727 = vadd.f32 %v600, %v665
  %v728 = vadd.f32 %v601, %v666
  %v729 = vadd.f32 %v602, %v667
  %v730 = vadd.f32 %v603, %v668
  %v731 = vadd.f32 %v604, %v669
  %v732 = vadd.f32 %v605, %v670
  %v733 = vadd.f32 %v606, %v671
  %v734 = vadd.f32 %v607, %v672
  %v735 = vadd.f32 %v608, %v673
  %v736 = vadd.f32 %v609, %v674
  %v737 = vadd.f32 %v610, %v675
  %v738 = vadd.f32 %v611, %v676
  %v739 = vadd.f32 %v612, %v677
  %v740 = vadd.f32 %v613, %v678
  %v741 = vadd.f32 %v614, %v679
  %v742 = vadd.f32 %v615, %v680
  %v743 = vadd.f32 %v616, %v681
  %v744 = vadd.f32 %v617, %v682
  %v745 = vadd.f32 %v618, %v683
  %v746 = vadd.f32 %v619, %v684
  %v747 = vadd.f32 %v620, %v685
  %v748 = vadd.f32 %v621, %v686
  %v749 = vadd.f32 %v622, %v687
  %v750 = vadd.f32 %v623, %v688
  %v751 = vadd.f32 %v624, %v689
  %v752 = vadd.f32 %v625, %v690
  %v753 = vadd.f32 %v626, %v691
  %v754 = vadd.f32 %v627, %v692
  %v755 = vadd.f32 %v628, %v693
  %v756 = vadd.f32 %v629, %v694
  %v757 = vadd.f32 %v630, %v695
  %v758 = vadd.f32 %v631, %v696
  %v759 = vadd.f32 %v632, %v697
  %v760 = vadd.f32 %v633, %v698
  %v761 = vadd.f32 %v634, %v699
  %v762 = vadd.f32 %v635, %v700
  %v763 = vadd.f32 %v636, %v701
  %v764 = vadd.f32 %v637, %v702
  %v765 = vadd.f32 %v638, %v703
  %v766 = vadd.f32 %v639, %v704
  %v767 = vadd.f32 %v640, %v705
  %v768 = vadd.f32 %v641, %v706
  %v769 = vadd.f32 %v642, %v707
  %v770 = vadd.f32 %v643, %v708
  %v771 = vadd.f32 %v644, %v709
  %v772 = vadd.f32 %v645, %v710
  %v773 = vadd.f32 %v646, %v711
  %v774 = vadd.f32 %v647, %v712
  %v775 = vadd.f32 %v648, %v713
  %v776 = vadd.f32 %v649, %v714
  %v777 = vadd.f32 %v650, %v715
  %v778 = vadd.f32 %v651, %v716
  %v779 = vadd.f32 %v652, %v717
  %v780 = vadd.f32 %v653, %v718
  %v781 = vlaneseq
  %v782 = vshrl.u32 %v781, 7
  %v783 = vsub.s32 2, %v782
  %v784 = vrot.slane %v586, %v783
  %v785 = vmul.f32 %v518, %v784
  %v786 = vmul.f32 %v519, %v784
  %v787 = vmul.f32 %v520, %v784
  %v788 = vmul.f32 %v521, %v784
  %v789 = vmul.f32 %v522, %v784
  %v790 = vmul.f32 %v523, %v784
  %v791 = vmul.f32 %v524, %v784
  %v792 = vmul.f32 %v525, %v784
  %v793 = vmul.f32 %v526, %v784
  %v794 = vmul.f32 %v527, %v784
  %v795 = vmul.f32 %v528, %v784
  %v796 = vmul.f32 %v529, %v784
  %v797 = vmul.f32 %v530, %v784
  %v798 = vmul.f32 %v531, %v784
  %v799 = vmul.f32 %v532, %v784
  %v800 = vmul.f32 %v533, %v784
  %v801 = vmul.f32 %v534, %v784
  %v802 = vmul.f32 %v535, %v784
  %v803 = vmul.f32 %v536, %v784
  %v804 = vmul.f32 %v537, %v784
  %v805 = vmul.f32 %v538, %v784
  %v806 = vmul.f32 %v539, %v784
  %v807 = vmul.f32 %v540, %v784
  %v808 = vmul.f32 %v541, %v784
  %v809 = vmul.f32 %v542, %v784
  %v810 = vmul.f32 %v543, %v784
  %v811 = vmul.f32 %v544, %v784
  %v812 = vmul.f32 %v545, %v784
  %v813 = vmul.f32 %v546, %v784
  %v814 = vmul.f32 %v547, %v784
  %v815 = vmul.f32 %v548, %v784
  %v816 = vmul.f32 %v549, %v784
  %v817 = vmul.f32 %v553, %v784
  %v818 = vmul.f32 %v554, %v784
  %v819 = vmul.f32 %v555, %v784
  %v820 = vmul.f32 %v556, %v784
  %v821 = vmul.f32 %v557, %v784
  %v822 = vmul.f32 %v558, %v784
  %v823 = vmul.f32 %v559, %v784
  %v824 = vmul.f32 %v560, %v784
  %v825 = vmul.f32 %v561, %v784
  %v826 = vmul.f32 %v562, %v784
  %v827 = vmul.f32 %v563, %v784
  %v828 = vmul.f32 %v564, %v784
  %v829 = vmul.f32 %v565, %v784
  %v830 = vmul.f32 %v566, %v784
  %v831 = vmul.f32 %v567, %v784
  %v832 = vmul.f32 %v568, %v784
  %v833 = vmul.f32 %v569, %v784
  %v834 = vmul.f32 %v570, %v784
  %v835 = vmul.f32 %v571, %v784
  %v836 = vmul.f32 %v572, %v784
  %v837 = vmul.f32 %v573, %v784
  %v838 = vmul.f32 %v574, %v784
  %v839 = vmul.f32 %v575, %v784
  %v840 = vmul.f32 %v576, %v784
  %v841 = vmul.f32 %v577, %v784
  %v842 = vmul.f32 %v578, %v784
  %v843 = vmul.f32 %v579, %v784
  %v844 = vmul.f32 %v580, %v784
  %v845 = vmul.f32 %v581, %v784
  %v846 = vmul.f32 %v582, %v784
  %v847 = vmul.f32 %v583, %v784
  %v848 = vadd.f32 %v719, %v785
  %v849 = vadd.f32 %v720, %v786
  %v850 = vadd.f32 %v721, %v787
  %v851 = vadd.f32 %v722, %v788
  %v852 = vadd.f32 %v723, %v789
  %v853 = vadd.f32 %v724, %v790
  %v854 = vadd.f32 %v725, %v791
  %v855 = vadd.f32 %v726, %v792
  %v856 = vadd.f32 %v727, %v793
  %v857 = vadd.f32 %v728, %v794
  %v858 = vadd.f32 %v729, %v795
  %v859 = vadd.f32 %v730, %v796
  %v860 = vadd.f32 %v731, %v797
  %v861 = vadd.f32 %v732, %v798
  %v862 = vadd.f32 %v733, %v799
  %v863 = vadd.f32 %v734, %v800
  %v864 = vadd.f32 %v735, %v801
  %v865 = vadd.f32 %v736, %v802
  %v866 = vadd.f32 %v737, %v803
  %v867 = vadd.f32 %v738, %v804
  %v868 = vadd.f32 %v739, %v805
  %v869 = vadd.f32 %v740, %v806
  %v870 = vadd.f32 %v741, %v807
  %v871 = vadd.f32 %v742, %v808
  %v872 = vadd.f32 %v743, %v809
  %v873 = vadd.f32 %v744, %v810
  %v874 = vadd.f32 %v745, %v811
  %v875 = vadd.f32 %v746, %v812
  %v876 = vadd.f32 %v747, %v813
  %v877 = vadd.f32 %v748, %v814
  %v878 = vadd.f32 %v749, %v815
  %v879 = vadd.f32 %v750, %v816
  %v880 = vadd.f32 %v720, %v817
  %v881 = vadd.f32 %v751, %v818
  %v882 = vadd.f32 %v752, %v819
  %v883 = vadd.f32 %v753, %v820
  %v884 = vadd.f32 %v754, %v821
  %v885 = vadd.f32 %v755, %v822
  %v886 = vadd.f32 %v756, %v823
  %v887 = vadd.f32 %v757, %v824
  %v888 = vadd.f32 %v758, %v825
  %v889 = vadd.f32 %v759, %v826
  %v890 = vadd.f32 %v760, %v827
  %v891 = vadd.f32 %v761, %v828
  %v892 = vadd.f32 %v762, %v829
  %v893 = vadd.f32 %v763, %v830
  %v894 = vadd.f32 %v764, %v831
  %v895 = vadd.f32 %v765, %v832
  %v896 = vadd.f32 %v766, %v833
  %v897 = vadd.f32 %v767, %v834
  %v898 = vadd.f32 %v768, %v835
  %v899 = vadd.f32 %v769, %v836
  %v900 = vadd.f32 %v770, %v837
  %v901 = vadd.f32 %v771, %v838
  %v902 = vadd.f32 %v772, %v839
  %v903 = vadd.f32 %v773, %v840
  %v904 = vadd.f32 %v774, %v841
  %v905 = vadd.f32 %v775, %v842
  %v906 = vadd.f32 %v776, %v843
  %v907 = vadd.f32 %v777, %v844
  %v908 = vadd.f32 %v778, %v845
  %v909 = vadd.f32 %v779, %v846
  %v910 = vadd.f32 %v780, %v847
  %v911 = vlaneseq
  %v912 = vshrl.u32 %v911, 7
  %v913 = vsub.s32 3, %v912
  %v914 = vrot.slane %v586, %v913
  %v915 = vmul.f32 %v317, %v914
  %v916 = vmul.f32 %v318, %v914
  %v917 = vmul.f32 %v319, %v914
  %v918 = vmul.f32 %v320, %v914
  %v919 = vmul.f32 %v321, %v914
  %v920 = vmul.f32 %v322, %v914
  %v921 = vmul.f32 %v323, %v914
  %v922 = vmul.f32 %v324, %v914
  %v923 = vmul.f32 %v325, %v914
  %v924 = vmul.f32 %v326, %v914
  %v925 = vmul.f32 %v327, %v914
  %v926 = vmul.f32 %v328, %v914
  %v927 = vmul.f32 %v329, %v914
  %v928 = vmul.f32 %v330, %v914
  %v929 = vmul.f32 %v331, %v914
  %v930 = vmul.f32 %v332, %v914
  %v931 = vmul.f32 %v333, %v914
  %v932 = vmul.f32 %v334, %v914
  %v933 = vmul.f32 %v335, %v914
  %v934 = vmul.f32 %v336, %v914
  %v935 = vmul.f32 %v337, %v914
  %v936 = vmul.f32 %v338, %v914
  %v937 = vmul.f32 %v339, %v914
  %v938 = vmul.f32 %v340, %v914
  %v939 = vmul.f32 %v341, %v914
  %v940 = vmul.f32 %v342, %v914
  %v941 = vmul.f32 %v343, %v914
  %v942 = vmul.f32 %v344, %v914
  %v943 = vmul.f32 %v345, %v914
  %v944 = vmul.f32 %v346, %v914
  %v945 = vmul.f32 %v347, %v914
  %v946 = vmul.f32 %v348, %v914
  %v947 = vmul.f32 %v350, %v914
  %v948 = vmul.f32 %v351, %v914
  %v949 = vmul.f32 %v352, %v914
  %v950 = vmul.f32 %v353, %v914
  %v951 = vmul.f32 %v354, %v914
  %v952 = vmul.f32 %v355, %v914
  %v953 = vmul.f32 %v356, %v914
  %v954 = vmul.f32 %v357, %v914
  %v955 = vmul.f32 %v358, %v914
  %v956 = vmul.f32 %v359, %v914
  %v957 = vmul.f32 %v360, %v914
  %v958 = vmul.f32 %v361, %v914
  %v959 = vmul.f32 %v362, %v914
  %v960 = vmul.f32 %v363, %v914
  %v961 = vmul.f32 %v364, %v914
  %v962 = vmul.f32 %v365, %v914
  %v963 = vmul.f32 %v366, %v914
  %v964 = vmul.f32 %v367, %v914
  %v965 = vmul.f32 %v368, %v914
  %v966 = vmul.f32 %v369, %v914
  %v967 = vmul.f32 %v370, %v914
  %v968 = vmul.f32 %v371, %v914
  %v969 = vmul.f32 %v372, %v914
  %v970 = vmul.f32 %v373, %v914
  %v971 = vmul.f32 %v374, %v914
  %v972 = vmul.f32 %v375, %v914
  %v973 = vmul.f32 %v376, %v914
  %v974 = vmul.f32 %v377, %v914
  %v975 = vmul.f32 %v378, %v914
  %v976 = vmul.f32 %v379, %v914
  %v977 = vmul.f32 %v380, %v914
  %v978 = vmul.f32 %v381, %v914
  %v979 = vadd.f32 %v848, %v915
  %v980 = vadd.f32 %v849, %v916
  %v981 = vadd.f32 %v850, %v917
  %v982 = vadd.f32 %v851, %v918
  %v983 = vadd.f32 %v852, %v919
  %v984 = vadd.f32 %v853, %v920
  %v985 = vadd.f32 %v854, %v921
  %v986 = vadd.f32 %v855, %v922
  %v987 = vadd.f32 %v856, %v923
  %v988 = vadd.f32 %v857, %v924
  %v989 = vadd.f32 %v858, %v925
  %v990 = vadd.f32 %v859, %v926
  %v991 = vadd.f32 %v860, %v927
  %v992 = vadd.f32 %v861, %v928
  %v993 = vadd.f32 %v862, %v929
  %v994 = vadd.f32 %v863, %v930
  %v995 = vadd.f32 %v864, %v931
  %v996 = vadd.f32 %v865, %v932
  %v997 = vadd.f32 %v866, %v933
  %v998 = vadd.f32 %v867, %v934
  %v999 = vadd.f32 %v868, %v935
  %v1000 = vadd.f32 %v869, %v936
  %v1001 = vadd.f32 %v870, %v937
  %v1002 = vadd.f32 %v871, %v938
  %v1003 = vadd.f32 %v872, %v939
  %v1004 = vadd.f32 %v873, %v940
  %v1005 = vadd.f32 %v874, %v941
  %v1006 = vadd.f32 %v875, %v942
  %v1007 = vadd.f32 %v876, %v943
  %v1008 = vadd.f32 %v877, %v944
  %v1009 = vadd.f32 %v878, %v945
  %v1010 = vadd.f32 %v879, %v946
  %v1011 = vadd.f32 %v848, %v947
  %v1012 = vadd.f32 %v880, %v948
  %v1013 = vadd.f32 %v881, %v949
  %v1014 = vadd.f32 %v882, %v950
  %v1015 = vadd.f32 %v883, %v951
  %v1016 = vadd.f32 %v884, %v952
  %v1017 = vadd.f32 %v885, %v953
  %v1018 = vadd.f32 %v886, %v954
  %v1019 = vadd.f32 %v887, %v955
  %v1020 = vadd.f32 %v888, %v956
  %v1021 = vadd.f32 %v889, %v957
  %v1022 = vadd.f32 %v890, %v958
  %v1023 = vadd.f32 %v891, %v959
  %v1024 = vadd.f32 %v892, %v960
  %v1025 = vadd.f32 %v893, %v961
  %v1026 = vadd.f32 %v894, %v962
  %v1027 = vadd.f32 %v895, %v963
  %v1028 = vadd.f32 %v896, %v964
  %v1029 = vadd.f32 %v897, %v965
  %v1030 = vadd.f32 %v898, %v966
  %v1031 = vadd.f32 %v899, %v967
  %v1032 = vadd.f32 %v900, %v968
  %v1033 = vadd.f32 %v901, %v969
  %v1034 = vadd.f32 %v902, %v970
  %v1035 = vadd.f32 %v903, %v971
  %v1036 = vadd.f32 %v904, %v972
  %v1037 = vadd.f32 %v905, %v973
  %v1038 = vadd.f32 %v906, %v974
  %v1039 = vadd.f32 %v907, %v975
  %v1040 = vadd.f32 %v908, %v976
  %v1041 = vadd.f32 %v909, %v977
  %v1042 = vadd.f32 %v910, %v978
  %v1043 = vlaneseq
  %v1044 = vshrl.u32 %v1043, 7
  %v1045 = vsub.s32 4, %v1044
  %v1046 = vrot.slane %v586, %v1045
  %v1047 = vmul.f32 %v116, %v1046
  %v1048 = vmul.f32 %v117, %v1046
  %v1049 = vmul.f32 %v118, %v1046
  %v1050 = vmul.f32 %v119, %v1046
  %v1051 = vmul.f32 %v120, %v1046
  %v1052 = vmul.f32 %v121, %v1046
  %v1053 = vmul.f32 %v122, %v1046
  %v1054 = vmul.f32 %v123, %v1046
  %v1055 = vmul.f32 %v124, %v1046
  %v1056 = vmul.f32 %v125, %v1046
  %v1057 = vmul.f32 %v126, %v1046
  %v1058 = vmul.f32 %v127, %v1046
  %v1059 = vmul.f32 %v128, %v1046
  %v1060 = vmul.f32 %v129, %v1046
  %v1061 = vmul.f32 %v130, %v1046
  %v1062 = vmul.f32 %v131, %v1046
  %v1063 = vmul.f32 %v132, %v1046
  %v1064 = vmul.f32 %v133, %v1046
  %v1065 = vmul.f32 %v134, %v1046
  %v1066 = vmul.f32 %v135, %v1046
  %v1067 = vmul.f32 %v136, %v1046
  %v1068 = vmul.f32 %v137, %v1046
  %v1069 = vmul.f32 %v138, %v1046
  %v1070 = vmul.f32 %v139, %v1046
  %v1071 = vmul.f32 %v140, %v1046
  %v1072 = vmul.f32 %v141, %v1046
  %v1073 = vmul.f32 %v142, %v1046
  %v1074 = vmul.f32 %v143, %v1046
  %v1075 = vmul.f32 %v144, %v1046
  %v1076 = vmul.f32 %v145, %v1046
  %v1077 = vmul.f32 %v146, %v1046
  %v1078 = vmul.f32 %v147, %v1046
  %v1079 = vmul.f32 %v148, %v1046
  %v1080 = vmul.f32 %v149, %v1046
  %v1081 = vmul.f32 %v150, %v1046
  %v1082 = vmul.f32 %v151, %v1046
  %v1083 = vmul.f32 %v152, %v1046
  %v1084 = vmul.f32 %v153, %v1046
  %v1085 = vmul.f32 %v154, %v1046
  %v1086 = vmul.f32 %v155, %v1046
  %v1087 = vmul.f32 %v156, %v1046
  %v1088 = vmul.f32 %v157, %v1046
  %v1089 = vmul.f32 %v158, %v1046
  %v1090 = vmul.f32 %v159, %v1046
  %v1091 = vmul.f32 %v160, %v1046
  %v1092 = vmul.f32 %v161, %v1046
  %v1093 = vmul.f32 %v162, %v1046
  %v1094 = vmul.f32 %v163, %v1046
  %v1095 = vmul.f32 %v164, %v1046
  %v1096 = vmul.f32 %v165, %v1046
  %v1097 = vmul.f32 %v166, %v1046
  %v1098 = vmul.f32 %v167, %v1046
  %v1099 = vmul.f32 %v168, %v1046
  %v1100 = vmul.f32 %v169, %v1046
  %v1101 = vmul.f32 %v170, %v1046
  %v1102 = vmul.f32 %v171, %v1046
  %v1103 = vmul.f32 %v172, %v1046
  %v1104 = vmul.f32 %v173, %v1046
  %v1105 = vmul.f32 %v174, %v1046
  %v1106 = vmul.f32 %v175, %v1046
  %v1107 = vmul.f32 %v176, %v1046
  %v1108 = vmul.f32 %v177, %v1046
  %v1109 = vmul.f32 %v178, %v1046
  %v1110 = vmul.f32 %v179, %v1046
  %v1111 = vadd.f32 %v979, %v1047
  %v1112 = vadd.f32 %v980, %v1048
  %v1113 = vadd.f32 %v981, %v1049
  %v1114 = vadd.f32 %v982, %v1050
  %v1115 = vadd.f32 %v983, %v1051
  %v1116 = vadd.f32 %v984, %v1052
  %v1117 = vadd.f32 %v985, %v1053
  %v1118 = vadd.f32 %v986, %v1054
  %v1119 = vadd.f32 %v987, %v1055
  %v1120 = vadd.f32 %v988, %v1056
  %v1121 = vadd.f32 %v989, %v1057
  %v1122 = vadd.f32 %v990, %v1058
  %v1123 = vadd.f32 %v991, %v1059
  %v1124 = vadd.f32 %v992, %v1060
  %v1125 = vadd.f32 %v993, %v1061
  %v1126 = vadd.f32 %v994, %v1062
  %v1127 = vadd.f32 %v995, %v1063
  %v1128 = vadd.f32 %v996, %v1064
  %v1129 = vadd.f32 %v997, %v1065
  %v1130 = vadd.f32 %v998, %v1066
  %v1131 = vadd.f32 %v999, %v1067
  %v1132 = vadd.f32 %v1000, %v1068
  %v1133 = vadd.f32 %v1001, %v1069
  %v1134 = vadd.f32 %v1002, %v1070
  %v1135 = vadd.f32 %v1003, %v1071
  %v1136 = vadd.f32 %v1004, %v1072
  %v1137 = vadd.f32 %v1005, %v1073
  %v1138 = vadd.f32 %v1006, %v1074
  %v1139 = vadd.f32 %v1007, %v1075
  %v1140 = vadd.f32 %v1008, %v1076
  %v1141 = vadd.f32 %v1009, %v1077
  %v1142 = vadd.f32 %v1010, %v1078
  %v1143 = vadd.f32 %v1011, %v1079
  %v1144 = vadd.f32 %v1012, %v1080
  %v1145 = vadd.f32 %v1013, %v1081
  %v1146 = vadd.f32 %v1014, %v1082
  %v1147 = vadd.f32 %v1015, %v1083
  %v1148 = vadd.f32 %v1016, %v1084
  %v1149 = vadd.f32 %v1017, %v1085
  %v1150 = vadd.f32 %v1018, %v1086
  %v1151 = vadd.f32 %v1019, %v1087
  %v1152 = vadd.f32 %v1020, %v1088
  %v1153 = vadd.f32 %v1021, %v1089
  %v1154 = vadd.f32 %v1022, %v1090
  %v1155 = vadd.f32 %v1023, %v1091
  %v1156 = vadd.f32 %v1024, %v1092
  %v1157 = vadd.f32 %v1025, %v1093
  %v1158 = vadd.f32 %v1026, %v1094
  %v1159 = vadd.f32 %v1027, %v1095
  %v1160 = vadd.f32 %v1028, %v1096
  %v1161 = vadd.f32 %v1029, %v1097
  %v1162 = vadd.f32 %v1030, %v1098
  %v1163 = vadd.f32 %v1031, %v1099
  %v1164 = vadd.f32 %v1032, %v1100
  %v1165 = vadd.f32 %v1033, %v1101
  %v1166 = vadd.f32 %v1034, %v1102
  %v1167 = vadd.f32 %v1035, %v1103
  %v1168 = vadd.f32 %v1036, %v1104
  %v1169 = vadd.f32 %v1037, %v1105
  %v1170 = vadd.f32 %v1038, %v1106
  %v1171 = vadd.f32 %v1039, %v1107
  %v1172 = vadd.f32 %v1040, %v1108
  %v1173 = vadd.f32 %v1041, %v1109
  %v1174 = vadd.f32 %v1042, %v1110
  %v1175 = vlaneseq
  %v1176 = vshrl.u32 %v1175, 7
  %v1177 = vsub.s32 5, %v1176
  %v1178 = vrot.slane %v586, %v1177
  %v1179 = vmul.f32 %v520, %v1178
  %v1180 = vmul.f32 %v521, %v1178
  %v1181 = vmul.f32 %v522, %v1178
  %v1182 = vmul.f32 %v523, %v1178
  %v1183 = vmul.f32 %v524, %v1178
  %v1184 = vmul.f32 %v525, %v1178
  %v1185 = vmul.f32 %v526, %v1178
  %v1186 = vmul.f32 %v527, %v1178
  %v1187 = vmul.f32 %v528, %v1178
  %v1188 = vmul.f32 %v529, %v1178
  %v1189 = vmul.f32 %v530, %v1178
  %v1190 = vmul.f32 %v531, %v1178
  %v1191 = vmul.f32 %v532, %v1178
  %v1192 = vmul.f32 %v533, %v1178
  %v1193 = vmul.f32 %v534, %v1178
  %v1194 = vmul.f32 %v535, %v1178
  %v1195 = vmul.f32 %v536, %v1178
  %v1196 = vmul.f32 %v537, %v1178
  %v1197 = vmul.f32 %v538, %v1178
  %v1198 = vmul.f32 %v539, %v1178
  %v1199 = vmul.f32 %v540, %v1178
  %v1200 = vmul.f32 %v541, %v1178
  %v1201 = vmul.f32 %v542, %v1178
  %v1202 = vmul.f32 %v543, %v1178
  %v1203 = vmul.f32 %v544, %v1178
  %v1204 = vmul.f32 %v545, %v1178
  %v1205 = vmul.f32 %v546, %v1178
  %v1206 = vmul.f32 %v547, %v1178
  %v1207 = vmul.f32 %v548, %v1178
  %v1208 = vmul.f32 %v549, %v1178
  %v1209 = vmul.f32 %v550, %v1178
  %v1210 = vmul.f32 %v551, %v1178
  %v1211 = vmul.f32 %v554, %v1178
  %v1212 = vmul.f32 %v555, %v1178
  %v1213 = vmul.f32 %v556, %v1178
  %v1214 = vmul.f32 %v557, %v1178
  %v1215 = vmul.f32 %v558, %v1178
  %v1216 = vmul.f32 %v559, %v1178
  %v1217 = vmul.f32 %v560, %v1178
  %v1218 = vmul.f32 %v561, %v1178
  %v1219 = vmul.f32 %v562, %v1178
  %v1220 = vmul.f32 %v563, %v1178
  %v1221 = vmul.f32 %v564, %v1178
  %v1222 = vmul.f32 %v565, %v1178
  %v1223 = vmul.f32 %v566, %v1178
  %v1224 = vmul.f32 %v567, %v1178
  %v1225 = vmul.f32 %v568, %v1178
  %v1226 = vmul.f32 %v569, %v1178
  %v1227 = vmul.f32 %v570, %v1178
  %v1228 = vmul.f32 %v571, %v1178
  %v1229 = vmul.f32 %v572, %v1178
  %v1230 = vmul.f32 %v573, %v1178
  %v1231 = vmul.f32 %v574, %v1178
  %v1232 = vmul.f32 %v575, %v1178
  %v1233 = vmul.f32 %v576, %v1178
  %v1234 = vmul.f32 %v577, %v1178
  %v1235 = vmul.f32 %v578, %v1178
  %v1236 = vmul.f32 %v579, %v1178
  %v1237 = vmul.f32 %v580, %v1178
  %v1238 = vmul.f32 %v581, %v1178
  %v1239 = vmul.f32 %v582, %v1178
  %v1240 = vmul.f32 %v583, %v1178
  %v1241 = vmul.f32 %v584, %v1178
  %v1242 = vmul.f32 %v585, %v1178
  %v1243 = vadd.f32 %v1111, %v1179
  %v1244 = vadd.f32 %v1112, %v1180
  %v1245 = vadd.f32 %v1113, %v1181
  %v1246 = vadd.f32 %v1114, %v1182
  %v1247 = vadd.f32 %v1115, %v1183
  %v1248 = vadd.f32 %v1116, %v1184
  %v1249 = vadd.f32 %v1117, %v1185
  %v1250 = vadd.f32 %v1118, %v1186
  %v1251 = vadd.f32 %v1119, %v1187
  %v1252 = vadd.f32 %v1120, %v1188
  %v1253 = vadd.f32 %v1121, %v1189
  %v1254 = vadd.f32 %v1122, %v1190
  %v1255 = vadd.f32 %v1123, %v1191
  %v1256 = vadd.f32 %v1124, %v1192
  %v1257 = vadd.f32 %v1125, %v1193
  %v1258 = vadd.f32 %v1126, %v1194
  %v1259 = vadd.f32 %v1127, %v1195
  %v1260 = vadd.f32 %v1128, %v1196
  %v1261 = vadd.f32 %v1129, %v1197
  %v1262 = vadd.f32 %v1130, %v1198
  %v1263 = vadd.f32 %v1131, %v1199
  %v1264 = vadd.f32 %v1132, %v1200
  %v1265 = vadd.f32 %v1133, %v1201
  %v1266 = vadd.f32 %v1134, %v1202
  %v1267 = vadd.f32 %v1135, %v1203
  %v1268 = vadd.f32 %v1136, %v1204
  %v1269 = vadd.f32 %v1137, %v1205
  %v1270 = vadd.f32 %v1138, %v1206
  %v1271 = vadd.f32 %v1139, %v1207
  %v1272 = vadd.f32 %v1140, %v1208
  %v1273 = vadd.f32 %v1141, %v1209
  %v1274 = vadd.f32 %v1142, %v1210
  %v1275 = vadd.f32 %v1143, %v1211
  %v1276 = vadd.f32 %v1144, %v1212
  %v1277 = vadd.f32 %v1145, %v1213
  %v1278 = vadd.f32 %v1146, %v1214
  %v1279 = vadd.f32 %v1147, %v1215
  %v1280 = vadd.f32 %v1148, %v1216
  %v1281 = vadd.f32 %v1149, %v1217
  %v1282 = vadd.f32 %v1150, %v1218
  %v1283 = vadd.f32 %v1151, %v1219
  %v1284 = vadd.f32 %v1152, %v1220
  %v1285 = vadd.f32 %v1153, %v1221
  %v1286 = vadd.f32 %v1154, %v1222
  %v1287 = vadd.f32 %v1155, %v1223
  %v1288 = vadd.f32 %v1156, %v1224
  %v1289 = vadd.f32 %v1157, %v1225
  %v1290 = vadd.f32 %v1158, %v1226
  %v1291 = vadd.f32 %v1159, %v1227
  %v1292 = vadd.f32 %v1160, %v1228
  %v1293 = vadd.f32 %v1161, %v1229
  %v1294 = vadd.f32 %v1162, %v1230
  %v1295 = vadd.f32 %v1163, %v1231
  %v1296 = vadd.f32 %v1164, %v1232
  %v1297 = vadd.f32 %v1165, %v1233
  %v1298 = vadd.f32 %v1166, %v1234
  %v1299 = vadd.f32 %v1167, %v1235
  %v1300 = vadd.f32 %v1168, %v1236
  %v1301 = vadd.f32 %v1169, %v1237
  %v1302 = vadd.f32 %v1170, %v1238
  %v1303 = vadd.f32 %v1171, %v1239
  %v1304 = vadd.f32 %v1172, %v1240
  %v1305 = vadd.f32 %v1173, %v1241
  %v1306 = vadd.f32 %v1174, %v1242
  %v1307 = vlaneseq
  %v1308 = vshrl.u32 %v1307, 7
  %v1309 = vsub.s32 6, %v1308
  %v1310 = vrot.slane %v586, %v1309
  %v1311 = vmul.f32 %v319, %v1310
  %v1312 = vmul.f32 %v320, %v1310
  %v1313 = vmul.f32 %v321, %v1310
  %v1314 = vmul.f32 %v322, %v1310
  %v1315 = vmul.f32 %v323, %v1310
  %v1316 = vmul.f32 %v324, %v1310
  %v1317 = vmul.f32 %v325, %v1310
  %v1318 = vmul.f32 %v326, %v1310
  %v1319 = vmul.f32 %v327, %v1310
  %v1320 = vmul.f32 %v328, %v1310
  %v1321 = vmul.f32 %v329, %v1310
  %v1322 = vmul.f32 %v330, %v1310
  %v1323 = vmul.f32 %v331, %v1310
  %v1324 = vmul.f32 %v332, %v1310
  %v1325 = vmul.f32 %v333, %v1310
  %v1326 = vmul.f32 %v334, %v1310
  %v1327 = vmul.f32 %v335, %v1310
  %v1328 = vmul.f32 %v336, %v1310
  %v1329 = vmul.f32 %v337, %v1310
  %v1330 = vmul.f32 %v338, %v1310
  %v1331 = vmul.f32 %v339, %v1310
  %v1332 = vmul.f32 %v340, %v1310
  %v1333 = vmul.f32 %v341, %v1310
  %v1334 = vmul.f32 %v342, %v1310
  %v1335 = vmul.f32 %v343, %v1310
  %v1336 = vmul.f32 %v344, %v1310
  %v1337 = vmul.f32 %v345, %v1310
  %v1338 = vmul.f32 %v346, %v1310
  %v1339 = vmul.f32 %v347, %v1310
  %v1340 = vmul.f32 %v348, %v1310
  %v1341 = vmul.f32 %v349, %v1310
  %v1342 = vmul.f32 %v316, %v1310
  %v1343 = vmul.f32 %v352, %v1310
  %v1344 = vmul.f32 %v353, %v1310
  %v1345 = vmul.f32 %v354, %v1310
  %v1346 = vmul.f32 %v355, %v1310
  %v1347 = vmul.f32 %v356, %v1310
  %v1348 = vmul.f32 %v357, %v1310
  %v1349 = vmul.f32 %v358, %v1310
  %v1350 = vmul.f32 %v359, %v1310
  %v1351 = vmul.f32 %v360, %v1310
  %v1352 = vmul.f32 %v361, %v1310
  %v1353 = vmul.f32 %v362, %v1310
  %v1354 = vmul.f32 %v363, %v1310
  %v1355 = vmul.f32 %v364, %v1310
  %v1356 = vmul.f32 %v365, %v1310
  %v1357 = vmul.f32 %v366, %v1310
  %v1358 = vmul.f32 %v367, %v1310
  %v1359 = vmul.f32 %v368, %v1310
  %v1360 = vmul.f32 %v369, %v1310
  %v1361 = vmul.f32 %v370, %v1310
  %v1362 = vmul.f32 %v371, %v1310
  %v1363 = vmul.f32 %v372, %v1310
  %v1364 = vmul.f32 %v373, %v1310
  %v1365 = vmul.f32 %v374, %v1310
  %v1366 = vmul.f32 %v375, %v1310
  %v1367 = vmul.f32 %v376, %v1310
  %v1368 = vmul.f32 %v377, %v1310
  %v1369 = vmul.f32 %v378, %v1310
  %v1370 = vmul.f32 %v379, %v1310
  %v1371 = vmul.f32 %v380, %v1310
  %v1372 = vmul.f32 %v381, %v1310
  %v1373 = vmul.f32 %v382, %v1310
  %v1374 = vadd.f32 %v1243, %v1311
  %v1375 = vadd.f32 %v1244, %v1312
  %v1376 = vadd.f32 %v1245, %v1313
  %v1377 = vadd.f32 %v1246, %v1314
  %v1378 = vadd.f32 %v1247, %v1315
  %v1379 = vadd.f32 %v1248, %v1316
  %v1380 = vadd.f32 %v1249, %v1317
  %v1381 = vadd.f32 %v1250, %v1318
  %v1382 = vadd.f32 %v1251, %v1319
  %v1383 = vadd.f32 %v1252, %v1320
  %v1384 = vadd.f32 %v1253, %v1321
  %v1385 = vadd.f32 %v1254, %v1322
  %v1386 = vadd.f32 %v1255, %v1323
  %v1387 = vadd.f32 %v1256, %v1324
  %v1388 = vadd.f32 %v1257, %v1325
  %v1389 = vadd.f32 %v1258, %v1326
  %v1390 = vadd.f32 %v1259, %v1327
  %v1391 = vadd.f32 %v1260, %v1328
  %v1392 = vadd.f32 %v1261, %v1329
  %v1393 = vadd.f32 %v1262, %v1330
  %v1394 = vadd.f32 %v1263, %v1331
  %v1395 = vadd.f32 %v1264, %v1332
  %v1396 = vadd.f32 %v1265, %v1333
  %v1397 = vadd.f32 %v1266, %v1334
  %v1398 = vadd.f32 %v1267, %v1335
  %v1399 = vadd.f32 %v1268, %v1336
  %v1400 = vadd.f32 %v1269, %v1337
  %v1401 = vadd.f32 %v1270, %v1338
  %v1402 = vadd.f32 %v1271, %v1339
  %v1403 = vadd.f32 %v1272, %v1340
  %v1404 = vadd.f32 %v1273, %v1341
  %v1405 = vadd.f32 %v1274, %v1342
  %v1406 = vadd.f32 %v1275, %v1343
  %v1407 = vadd.f32 %v1276, %v1344
  %v1408 = vadd.f32 %v1277, %v1345
  %v1409 = vadd.f32 %v1278, %v1346
  %v1410 = vadd.f32 %v1279, %v1347
  %v1411 = vadd.f32 %v1280, %v1348
  %v1412 = vadd.f32 %v1281, %v1349
  %v1413 = vadd.f32 %v1282, %v1350
  %v1414 = vadd.f32 %v1283, %v1351
  %v1415 = vadd.f32 %v1284, %v1352
  %v1416 = vadd.f32 %v1285, %v1353
  %v1417 = vadd.f32 %v1286, %v1354
  %v1418 = vadd.f32 %v1287, %v1355
  %v1419 = vadd.f32 %v1288, %v1356
  %v1420 = vadd.f32 %v1289, %v1357
  %v1421 = vadd.f32 %v1290, %v1358
  %v1422 = vadd.f32 %v1291, %v1359
  %v1423 = vadd.f32 %v1292, %v1360
  %v1424 = vadd.f32 %v1293, %v1361
  %v1425 = vadd.f32 %v1294, %v1362
  %v1426 = vadd.f32 %v1295, %v1363
  %v1427 = vadd.f32 %v1296, %v1364
  %v1428 = vadd.f32 %v1297, %v1365
  %v1429 = vadd.f32 %v1298, %v1366
  %v1430 = vadd.f32 %v1299, %v1367
  %v1431 = vadd.f32 %v1300, %v1368
  %v1432 = vadd.f32 %v1301, %v1369
  %v1433 = vadd.f32 %v1302, %v1370
  %v1434 = vadd.f32 %v1303, %v1371
  %v1435 = vadd.f32 %v1304, %v1372
  %v1436 = vadd.f32 %v1305, %v1373
  %v1437 = vadd.f32 %v1306, %v1342
  %v1438 = vlaneseq
  %v1439 = vshrl.u32 %v1438, 7
  %v1440 = vsub.s32 7, %v1439
  %v1441 = vrot.slane %v586, %v1440
  %v1442 = vmul.f32 %v118, %v1441
  %v1443 = vmul.f32 %v119, %v1441
  %v1444 = vmul.f32 %v120, %v1441
  %v1445 = vmul.f32 %v121, %v1441
  %v1446 = vmul.f32 %v122, %v1441
  %v1447 = vmul.f32 %v123, %v1441
  %v1448 = vmul.f32 %v124, %v1441
  %v1449 = vmul.f32 %v125, %v1441
  %v1450 = vmul.f32 %v126, %v1441
  %v1451 = vmul.f32 %v127, %v1441
  %v1452 = vmul.f32 %v128, %v1441
  %v1453 = vmul.f32 %v129, %v1441
  %v1454 = vmul.f32 %v130, %v1441
  %v1455 = vmul.f32 %v131, %v1441
  %v1456 = vmul.f32 %v132, %v1441
  %v1457 = vmul.f32 %v133, %v1441
  %v1458 = vmul.f32 %v134, %v1441
  %v1459 = vmul.f32 %v135, %v1441
  %v1460 = vmul.f32 %v136, %v1441
  %v1461 = vmul.f32 %v137, %v1441
  %v1462 = vmul.f32 %v138, %v1441
  %v1463 = vmul.f32 %v139, %v1441
  %v1464 = vmul.f32 %v140, %v1441
  %v1465 = vmul.f32 %v141, %v1441
  %v1466 = vmul.f32 %v142, %v1441
  %v1467 = vmul.f32 %v143, %v1441
  %v1468 = vmul.f32 %v144, %v1441
  %v1469 = vmul.f32 %v145, %v1441
  %v1470 = vmul.f32 %v146, %v1441
  %v1471 = vmul.f32 %v147, %v1441
  %v1472 = vmul.f32 %v1441, 0.0
  %v1473 = vmul.f32 %v150, %v1441
  %v1474 = vmul.f32 %v151, %v1441
  %v1475 = vmul.f32 %v152, %v1441
  %v1476 = vmul.f32 %v153, %v1441
  %v1477 = vmul.f32 %v154, %v1441
  %v1478 = vmul.f32 %v155, %v1441
  %v1479 = vmul.f32 %v156, %v1441
  %v1480 = vmul.f32 %v157, %v1441
  %v1481 = vmul.f32 %v158, %v1441
  %v1482 = vmul.f32 %v159, %v1441
  %v1483 = vmul.f32 %v160, %v1441
  %v1484 = vmul.f32 %v161, %v1441
  %v1485 = vmul.f32 %v162, %v1441
  %v1486 = vmul.f32 %v163, %v1441
  %v1487 = vmul.f32 %v164, %v1441
  %v1488 = vmul.f32 %v165, %v1441
  %v1489 = vmul.f32 %v166, %v1441
  %v1490 = vmul.f32 %v167, %v1441
  %v1491 = vmul.f32 %v168, %v1441
  %v1492 = vmul.f32 %v169, %v1441
  %v1493 = vmul.f32 %v170, %v1441
  %v1494 = vmul.f32 %v171, %v1441
  %v1495 = vmul.f32 %v172, %v1441
  %v1496 = vmul.f32 %v173, %v1441
  %v1497 = vmul.f32 %v174, %v1441
  %v1498 = vmul.f32 %v175, %v1441
  %v1499 = vmul.f32 %v176, %v1441
  %v1500 = vmul.f32 %v177, %v1441
  %v1501 = vmul.f32 %v178, %v1441
  %v1502 = vmul.f32 %v179, %v1441
  %v1503 = vadd.f32 %v1374, %v1442
  %v1504 = vadd.f32 %v1375, %v1443
  %v1505 = vadd.f32 %v1376, %v1444
  %v1506 = vadd.f32 %v1377, %v1445
  %v1507 = vadd.f32 %v1378, %v1446
  %v1508 = vadd.f32 %v1379, %v1447
  %v1509 = vadd.f32 %v1380, %v1448
  %v1510 = vadd.f32 %v1381, %v1449
  %v1511 = vadd.f32 %v1382, %v1450
  %v1512 = vadd.f32 %v1383, %v1451
  %v1513 = vadd.f32 %v1384, %v1452
  %v1514 = vadd.f32 %v1385, %v1453
  %v1515 = vadd.f32 %v1386, %v1454
  %v1516 = vadd.f32 %v1387, %v1455
  %v1517 = vadd.f32 %v1388, %v1456
  %v1518 = vadd.f32 %v1389, %v1457
  %v1519 = vadd.f32 %v1390, %v1458
  %v1520 = vadd.f32 %v1391, %v1459
  %v1521 = vadd.f32 %v1392, %v1460
  %v1522 = vadd.f32 %v1393, %v1461
  %v1523 = vadd.f32 %v1394, %v1462
  %v1524 = vadd.f32 %v1395, %v1463
  %v1525 = vadd.f32 %v1396, %v1464
  %v1526 = vadd.f32 %v1397, %v1465
  %v1527 = vadd.f32 %v1398, %v1466
  %v1528 = vadd.f32 %v1399, %v1467
  %v1529 = vadd.f32 %v1400, %v1468
  %v1530 = vadd.f32 %v1401, %v1469
  %v1531 = vadd.f32 %v1402, %v1470
  %v1532 = vadd.f32 %v1403, %v1471
  %v1533 = vadd.f32 %v1404, %v1472
  %v1534 = vadd.f32 %v1405, %v1472
  %v1535 = vadd.f32 %v1406, %v1473
  %v1536 = vadd.f32 %v1407, %v1474
  %v1537 = vadd.f32 %v1408, %v1475
  %v1538 = vadd.f32 %v1409, %v1476
  %v1539 = vadd.f32 %v1410, %v1477
  %v1540 = vadd.f32 %v1411, %v1478
  %v1541 = vadd.f32 %v1412, %v1479
  %v1542 = vadd.f32 %v1413, %v1480
  %v1543 = vadd.f32 %v1414, %v1481
  %v1544 = vadd.f32 %v1415, %v1482
  %v1545 = vadd.f32 %v1416, %v1483
  %v1546 = vadd.f32 %v1417, %v1484
  %v1547 = vadd.f32 %v1418, %v1485
  %v1548 = vadd.f32 %v1419, %v1486
  %v1549 = vadd.f32 %v1420, %v1487
  %v1550 = vadd.f32 %v1421, %v1488
  %v1551 = vadd.f32 %v1422, %v1489
  %v1552 = vadd.f32 %v1423, %v1490
  %v1553 = vadd.f32 %v1424, %v1491
  %v1554 = vadd.f32 %v1425, %v1492
  %v1555 = vadd.f32 %v1426, %v1493
  %v1556 = vadd.f32 %v1427, %v1494
  %v1557 = vadd.f32 %v1428, %v1495
  %v1558 = vadd.f32 %v1429, %v1496
  %v1559 = vadd.f32 %v1430, %v1497
  %v1560 = vadd.f32 %v1431, %v1498
  %v1561 = vadd.f32 %v1432, %v1499
  %v1562 = vadd.f32 %v1433, %v1500
  %v1563 = vadd.f32 %v1434, %v1501
  %v1564 = vadd.f32 %v1435, %v1502
  %v1565 = vadd.f32 %v1436, %v1472
  %v1566 = vadd.f32 %v1437, %v1472
  %v1567 = vlaneseq
  %v1568 = vshrl.u32 %v1567, 7
  %v1569 = vsub.s32 0, %v1568
  %v1570 = vrot.slane %v587, %v1569
  %v1571 = vmul.f32 %v522, %v1570
  %v1572 = vmul.f32 %v523, %v1570
  %v1573 = vmul.f32 %v524, %v1570
  %v1574 = vmul.f32 %v525, %v1570
  %v1575 = vmul.f32 %v526, %v1570
  %v1576 = vmul.f32 %v527, %v1570
  %v1577 = vmul.f32 %v528, %v1570
  %v1578 = vmul.f32 %v529, %v1570
  %v1579 = vmul.f32 %v530, %v1570
  %v1580 = vmul.f32 %v531, %v1570
  %v1581 = vmul.f32 %v532, %v1570
  %v1582 = vmul.f32 %v533, %v1570
  %v1583 = vmul.f32 %v534, %v1570
  %v1584 = vmul.f32 %v535, %v1570
  %v1585 = vmul.f32 %v536, %v1570
  %v1586 = vmul.f32 %v537, %v1570
  %v1587 = vmul.f32 %v538, %v1570
  %v1588 = vmul.f32 %v539, %v1570
  %v1589 = vmul.f32 %v540, %v1570
  %v1590 = vmul.f32 %v541, %v1570
  %v1591 = vmul.f32 %v542, %v1570
  %v1592 = vmul.f32 %v543, %v1570
  %v1593 = vmul.f32 %v544, %v1570
  %v1594 = vmul.f32 %v545, %v1570
  %v1595 = vmul.f32 %v546, %v1570
  %v1596 = vmul.f32 %v547, %v1570
  %v1597 = vmul.f32 %v548, %v1570
  %v1598 = vmul.f32 %v549, %v1570
  %v1599 = vmul.f32 %v550, %v1570
  %v1600 = vmul.f32 %v551, %v1570
  %v1601 = vmul.f32 %v518, %v1570
  %v1602 = vmul.f32 %v552, %v1570
  %v1603 = vmul.f32 %v556, %v1570
  %v1604 = vmul.f32 %v557, %v1570
  %v1605 = vmul.f32 %v558, %v1570
  %v1606 = vmul.f32 %v559, %v1570
  %v1607 = vmul.f32 %v560, %v1570
  %v1608 = vmul.f32 %v561, %v1570
  %v1609 = vmul.f32 %v562, %v1570
  %v1610 = vmul.f32 %v563, %v1570
  %v1611 = vmul.f32 %v564, %v1570
  %v1612 = vmul.f32 %v565, %v1570
  %v1613 = vmul.f32 %v566, %v1570
  %v1614 = vmul.f32 %v567, %v1570
  %v1615 = vmul.f32 %v568, %v1570
  %v1616 = vmul.f32 %v569, %v1570
  %v1617 = vmul.f32 %v570, %v1570
  %v1618 = vmul.f32 %v571, %v1570
  %v1619 = vmul.f32 %v572, %v1570
  %v1620 = vmul.f32 %v573, %v1570
  %v1621 = vmul.f32 %v574, %v1570
  %v1622 = vmul.f32 %v575, %v1570
  %v1623 = vmul.f32 %v576, %v1570
  %v1624 = vmul.f32 %v577, %v1570
  %v1625 = vmul.f32 %v578, %v1570
  %v1626 = vmul.f32 %v579, %v1570
  %v1627 = vmul.f32 %v580, %v1570
  %v1628 = vmul.f32 %v581, %v1570
  %v1629 = vmul.f32 %v582, %v1570
  %v1630 = vmul.f32 %v583, %v1570
  %v1631 = vmul.f32 %v584, %v1570
  %v1632 = vmul.f32 %v585, %v1570
  %v1633 = vadd.f32 %v1503, %v1571
  %v1634 = vadd.f32 %v1504, %v1572
  %v1635 = vadd.f32 %v1505, %v1573
  %v1636 = vadd.f32 %v1506, %v1574
  %v1637 = vadd.f32 %v1507, %v1575
  %v1638 = vadd.f32 %v1508, %v1576
  %v1639 = vadd.f32 %v1509, %v1577
  %v1640 = vadd.f32 %v1510, %v1578
  %v1641 = vadd.f32 %v1511, %v1579
  %v1642 = vadd.f32 %v1512, %v1580
  %v1643 = vadd.f32 %v1513, %v1581
  %v1644 = vadd.f32 %v1514, %v1582
  %v1645 = vadd.f32 %v1515, %v1583
  %v1646 = vadd.f32 %v1516, %v1584
  %v1647 = vadd.f32 %v1517, %v1585
  %v1648 = vadd.f32 %v1518, %v1586
  %v1649 = vadd.f32 %v1519, %v1587
  %v1650 = vadd.f32 %v1520, %v1588
  %v1651 = vadd.f32 %v1521, %v1589
  %v1652 = vadd.f32 %v1522, %v1590
  %v1653 = vadd.f32 %v1523, %v1591
  %v1654 = vadd.f32 %v1524, %v1592
  %v1655 = vadd.f32 %v1525, %v1593
  %v1656 = vadd.f32 %v1526, %v1594
  %v1657 = vadd.f32 %v1527, %v1595
  %v1658 = vadd.f32 %v1528, %v1596
  %v1659 = vadd.f32 %v1529, %v1597
  %v1660 = vadd.f32 %v1530, %v1598
  %v1661 = vadd.f32 %v1531, %v1599
  %v1662 = vadd.f32 %v1532, %v1600
  %v1663 = vadd.f32 %v1533, %v1601
  %v1664 = vadd.f32 %v1534, %v1602
  %v1665 = vadd.f32 %v1535, %v1603
  %v1666 = vadd.f32 %v1536, %v1604
  %v1667 = vadd.f32 %v1537, %v1605
  %v1668 = vadd.f32 %v1538, %v1606
  %v1669 = vadd.f32 %v1539, %v1607
  %v1670 = vadd.f32 %v1540, %v1608
  %v1671 = vadd.f32 %v1541, %v1609
  %v1672 = vadd.f32 %v1542, %v1610
  %v1673 = vadd.f32 %v1543, %v1611
  %v1674 = vadd.f32 %v1544, %v1612
  %v1675 = vadd.f32 %v1545, %v1613
  %v1676 = vadd.f32 %v1546, %v1614
  %v1677 = vadd.f32 %v1547, %v1615
  %v1678 = vadd.f32 %v1548, %v1616
  %v1679 = vadd.f32 %v1549, %v1617
  %v1680 = vadd.f32 %v1550, %v1618
  %v1681 = vadd.f32 %v1551, %v1619
  %v1682 = vadd.f32 %v1552, %v1620
  %v1683 = vadd.f32 %v1553, %v1621
  %v1684 = vadd.f32 %v1554, %v1622
  %v1685 = vadd.f32 %v1555, %v1623
  %v1686 = vadd.f32 %v1556, %v1624
  %v1687 = vadd.f32 %v1557, %v1625
  %v1688 = vadd.f32 %v1558, %v1626
  %v1689 = vadd.f32 %v1559, %v1627
  %v1690 = vadd.f32 %v1560, %v1628
  %v1691 = vadd.f32 %v1561, %v1629
  %v1692 = vadd.f32 %v1562, %v1630
  %v1693 = vadd.f32 %v1563, %v1631
  %v1694 = vadd.f32 %v1564, %v1632
  %v1695 = vadd.f32 %v1565, %v1601
  %v1696 = vadd.f32 %v1566, %v1602
  %v1697 = vpack.c.bf16 %v1634, %v1633
  %v1698 = vpack.c.bf16 %v1636, %v1635
  %v1699 = vpack.c.bf16 %v1638, %v1637
  %v1700 = vpack.c.bf16 %v1640, %v1639
  %v1701 = vpack.c.bf16 %v1642, %v1641
  %v1702 = vpack.c.bf16 %v1644, %v1643
  %v1703 = vpack.c.bf16 %v1646, %v1645
  %v1704 = vpack.c.bf16 %v1648, %v1647
  %v1705 = vpack.c.bf16 %v1650, %v1649
  %v1706 = vpack.c.bf16 %v1652, %v1651
  %v1707 = vpack.c.bf16 %v1654, %v1653
  %v1708 = vpack.c.bf16 %v1656, %v1655
  %v1709 = vpack.c.bf16 %v1658, %v1657
  %v1710 = vpack.c.bf16 %v1660, %v1659
  %v1711 = vpack.c.bf16 %v1662, %v1661
  %v1712 = vpack.c.bf16 %v1664, %v1663
  %v1713 = vpack.c.bf16 %v1666, %v1665
  %v1714 = vpack.c.bf16 %v1668, %v1667
  %v1715 = vpack.c.bf16 %v1670, %v1669
  %v1716 = vpack.c.bf16 %v1672, %v1671
  %v1717 = vpack.c.bf16 %v1674, %v1673
  %v1718 = vpack.c.bf16 %v1676, %v1675
  %v1719 = vpack.c.bf16 %v1678, %v1677
  %v1720 = vpack.c.bf16 %v1680, %v1679
  %v1721 = vpack.c.bf16 %v1682, %v1681
  %v1722 = vpack.c.bf16 %v1684, %v1683
  %v1723 = vpack.c.bf16 %v1686, %v1685
  %v1724 = vpack.c.bf16 %v1688, %v1687
  %v1725 = vpack.c.bf16 %v1690, %v1689
  %v1726 = vpack.c.bf16 %v1692, %v1691
  %v1727 = vpack.c.bf16 %v1694, %v1693
  %v1728 = vpack.c.bf16 %v1696, %v1695
  %v1729 = vld [vmem:[%s2] sm:$0xff]
  %v1730 = vpack.c.bf16 %v1729, %v1729
  %vm1731 = vcmask 64512
  %v1733 = vsel %vm1731, %v1697, 0
  %v1736 = vsel %vm1731, %v1698, 0
  %v1739 = vsel %vm1731, %v1699, 0
  %v1742 = vsel %vm1731, %v1700, 0
  %v1745 = vsel %vm1731, %v1701, 0
  %v1748 = vsel %vm1731, %v1702, 0
  %v1751 = vsel %vm1731, %v1703, 0
  %v1754 = vsel %vm1731, %v1704, 0
  %v1757 = vsel %vm1731, %v1705, 0
  %v1760 = vsel %vm1731, %v1706, 0
  %v1763 = vsel %vm1731, %v1707, 0
  %v1766 = vsel %vm1731, %v1708, 0
  %v1769 = vsel %vm1731, %v1709, 0
  %v1772 = vsel %vm1731, %v1710, 0
  %v1775 = vsel %vm1731, %v1711, 0
  %v1778 = vsel %vm1731, %v1712, 0
  %v1781 = vsel %vm1731, %v1713, 0
  %v1784 = vsel %vm1731, %v1714, 0
  %v1787 = vsel %vm1731, %v1715, 0
  %v1790 = vsel %vm1731, %v1716, 0
  %v1793 = vsel %vm1731, %v1717, 0
  %v1796 = vsel %vm1731, %v1718, 0
  %v1799 = vsel %vm1731, %v1719, 0
  %v1802 = vsel %vm1731, %v1720, 0
  %v1805 = vsel %vm1731, %v1721, 0
  %v1808 = vsel %vm1731, %v1722, 0
  %v1811 = vsel %vm1731, %v1723, 0
  %v1814 = vsel %vm1731, %v1724, 0
  %v1817 = vsel %vm1731, %v1725, 0
  %v1820 = vsel %vm1731, %v1726, 0
  %v1823 = vsel %vm1731, %v1727, 0
  %v1826 = vsel %vm1731, %v1728, 0
  %vm1828 = vcmask 1043456
  %v1830 = vsel %vm1828, %v1730, 0
  %1832 = vmatprep.subr.bf16.mxu0 0
  %1833 = vmatpush1.bf16.msra.mxu0 0
  %1834 = vmatprep.subr.bf16.mxu0 0
  %1835 = vmatpush1.bf16.msra.mxu0 0
  %1836 = vmatprep.subr.bf16.mxu0 0
  %1837 = vmatpush1.bf16.msra.mxu0 0
  %1838 = vmatprep.subr.bf16.mxu0 0
  %1839 = vmatpush1.bf16.msra.mxu0 0
  %1840 = vmatprep.subr.bf16.mxu0 0
  %1841 = vmatpush1.bf16.msra.mxu0 0
  %1842 = vmatprep.subr.bf16.mxu0 0
  %1843 = vmatpush1.bf16.msra.mxu0 0
  %1844 = vmatprep.subr.bf16.mxu0 0
  %1845 = vmatpush1.bf16.msra.mxu0 0
  %1846 = vmatprep.subr.bf16.mxu0 0
  %1847 = vmatpush1.bf16.msra.mxu0 %v1830
  %1848 = vmatprep.subr.bf16.mxu0 0
  %1849 = vmatpush2.bf16.msra.mxu0 0
  %1850 = vmatprep.subr.bf16.mxu0 0
  %1851 = vmatpush2.bf16.msra.mxu0 0
  %1852 = vmatprep.subr.bf16.mxu0 0
  %1853 = vmatpush2.bf16.msra.mxu0 0
  %1854 = vmatprep.subr.bf16.mxu0 0
  %1855 = vmatpush2.bf16.msra.mxu0 0
  %1856 = vmatprep.subr.bf16.mxu0 0
  %1857 = vmatpush2.bf16.msra.mxu0 0
  %1858 = vmatprep.subr.bf16.mxu0 0
  %1859 = vmatpush2.bf16.msra.mxu0 0
  %1860 = vmatprep.subr.bf16.mxu0 0
  %1861 = vmatpush2.bf16.msra.mxu0 0
  %1862 = vmatprep.subr.bf16.mxu0 0
  %1863 = vmatpush2.bf16.msra.mxu0 0
  %1864 = vmatprep.mubr.bf16.mxu0 0
  %1865 = vmatmul.mubr.bf16.gmra.mxu0 %v1733
  %v1866 = vpop.f32.mrf.mxu0
  %v1867 = vadd.f32 0.0, %v1866
  %v1868 = vpop.f32.mrf.mxu0
  %v1869 = vpop.f32.mrf.mxu0
  %v1870 = vadd.f32 0.0, %v1869
  %v1871 = vpop.f32.mrf.mxu0
  %1872 = vmatprep.mubr.bf16.mxu0 0
  %1873 = vmatmul.mubr.bf16.gmra.mxu0 %v1736
  %v1874 = vpop.f32.mrf.mxu0
  %v1875 = vadd.f32 0.0, %v1874
  %v1876 = vpop.f32.mrf.mxu0
  %v1877 = vpop.f32.mrf.mxu0
  %v1878 = vadd.f32 0.0, %v1877
  %v1879 = vpop.f32.mrf.mxu0
  %1880 = vmatprep.mubr.bf16.mxu0 0
  %1881 = vmatmul.mubr.bf16.gmra.mxu0 %v1739
  %v1882 = vpop.f32.mrf.mxu0
  %v1883 = vadd.f32 0.0, %v1882
  %v1884 = vpop.f32.mrf.mxu0
  %v1885 = vpop.f32.mrf.mxu0
  %v1886 = vadd.f32 0.0, %v1885
  %v1887 = vpop.f32.mrf.mxu0
  %1888 = vmatprep.mubr.bf16.mxu0 0
  %1889 = vmatmul.mubr.bf16.gmra.mxu0 %v1742
  %v1890 = vpop.f32.mrf.mxu0
  %v1891 = vadd.f32 0.0, %v1890
  %v1892 = vpop.f32.mrf.mxu0
  %v1893 = vpop.f32.mrf.mxu0
  %v1894 = vadd.f32 0.0, %v1893
  %v1895 = vpop.f32.mrf.mxu0
  %1896 = vmatprep.mubr.bf16.mxu0 0
  %1897 = vmatmul.mubr.bf16.gmra.mxu0 %v1745
  %v1898 = vpop.f32.mrf.mxu0
  %v1899 = vadd.f32 0.0, %v1898
  %v1900 = vpop.f32.mrf.mxu0
  %v1901 = vpop.f32.mrf.mxu0
  %v1902 = vadd.f32 0.0, %v1901
  %v1903 = vpop.f32.mrf.mxu0
  %1904 = vmatprep.mubr.bf16.mxu0 0
  %1905 = vmatmul.mubr.bf16.gmra.mxu0 %v1748
  %v1906 = vpop.f32.mrf.mxu0
  %v1907 = vadd.f32 0.0, %v1906
  %v1908 = vpop.f32.mrf.mxu0
  %v1909 = vpop.f32.mrf.mxu0
  %v1910 = vadd.f32 0.0, %v1909
  %v1911 = vpop.f32.mrf.mxu0
  %1912 = vmatprep.mubr.bf16.mxu0 0
  %1913 = vmatmul.mubr.bf16.gmra.mxu0 %v1751
  %v1914 = vpop.f32.mrf.mxu0
  %v1915 = vadd.f32 0.0, %v1914
  %v1916 = vpop.f32.mrf.mxu0
  %v1917 = vpop.f32.mrf.mxu0
  %v1918 = vadd.f32 0.0, %v1917
  %v1919 = vpop.f32.mrf.mxu0
  %1920 = vmatprep.mubr.bf16.mxu0 0
  %1921 = vmatmul.mubr.bf16.gmra.mxu0 %v1754
  %v1922 = vpop.f32.mrf.mxu0
  %v1923 = vadd.f32 0.0, %v1922
  %v1924 = vpop.f32.mrf.mxu0
  %v1925 = vpop.f32.mrf.mxu0
  %v1926 = vadd.f32 0.0, %v1925
  %v1927 = vpop.f32.mrf.mxu0
  %1928 = vmatprep.mubr.bf16.mxu0 0
  %1929 = vmatmul.mubr.bf16.gmra.mxu0 %v1757
  %v1930 = vpop.f32.mrf.mxu0
  %v1931 = vadd.f32 0.0, %v1930
  %v1932 = vpop.f32.mrf.mxu0
  %v1933 = vpop.f32.mrf.mxu0
  %v1934 = vadd.f32 0.0, %v1933
  %v1935 = vpop.f32.mrf.mxu0
  %1936 = vmatprep.mubr.bf16.mxu0 0
  %1937 = vmatmul.mubr.bf16.gmra.mxu0 %v1760
  %v1938 = vpop.f32.mrf.mxu0
  %v1939 = vadd.f32 0.0, %v1938
  %v1940 = vpop.f32.mrf.mxu0
  %v1941 = vpop.f32.mrf.mxu0
  %v1942 = vadd.f32 0.0, %v1941
  %v1943 = vpop.f32.mrf.mxu0
  %1944 = vmatprep.mubr.bf16.mxu0 0
  %1945 = vmatmul.mubr.bf16.gmra.mxu0 %v1763
  %v1946 = vpop.f32.mrf.mxu0
  %v1947 = vadd.f32 0.0, %v1946
  %v1948 = vpop.f32.mrf.mxu0
  %v1949 = vpop.f32.mrf.mxu0
  %v1950 = vadd.f32 0.0, %v1949
  %v1951 = vpop.f32.mrf.mxu0
  %1952 = vmatprep.mubr.bf16.mxu0 0
  %1953 = vmatmul.mubr.bf16.gmra.mxu0 %v1766
  %v1954 = vpop.f32.mrf.mxu0
  %v1955 = vadd.f32 0.0, %v1954
  %v1956 = vpop.f32.mrf.mxu0
  %v1957 = vpop.f32.mrf.mxu0
  %v1958 = vadd.f32 0.0, %v1957
  %v1959 = vpop.f32.mrf.mxu0
  %1960 = vmatprep.mubr.bf16.mxu0 0
  %1961 = vmatmul.mubr.bf16.gmra.mxu0 %v1769
  %v1962 = vpop.f32.mrf.mxu0
  %v1963 = vadd.f32 0.0, %v1962
  %v1964 = vpop.f32.mrf.mxu0
  %v1965 = vpop.f32.mrf.mxu0
  %v1966 = vadd.f32 0.0, %v1965
  %v1967 = vpop.f32.mrf.mxu0
  %1968 = vmatprep.mubr.bf16.mxu0 0
  %1969 = vmatmul.mubr.bf16.gmra.mxu0 %v1772
  %v1970 = vpop.f32.mrf.mxu0
  %v1971 = vadd.f32 0.0, %v1970
  %v1972 = vpop.f32.mrf.mxu0
  %v1973 = vpop.f32.mrf.mxu0
  %v1974 = vadd.f32 0.0, %v1973
  %v1975 = vpop.f32.mrf.mxu0
  %1976 = vmatprep.mubr.bf16.mxu0 0
  %1977 = vmatmul.mubr.bf16.gmra.mxu0 %v1775
  %v1978 = vpop.f32.mrf.mxu0
  %v1979 = vadd.f32 0.0, %v1978
  %v1980 = vpop.f32.mrf.mxu0
  %v1981 = vpop.f32.mrf.mxu0
  %v1982 = vadd.f32 0.0, %v1981
  %v1983 = vpop.f32.mrf.mxu0
  %1984 = vmatprep.mubr.bf16.mxu0 0
  %1985 = vmatmul.mubr.bf16.gmra.mxu0 %v1778
  %v1986 = vpop.f32.mrf.mxu0
  %v1987 = vadd.f32 0.0, %v1986
  %v1988 = vpop.f32.mrf.mxu0
  %v1989 = vpop.f32.mrf.mxu0
  %v1990 = vadd.f32 0.0, %v1989
  %v1991 = vpop.f32.mrf.mxu0
  %1992 = vmatprep.mubr.bf16.mxu0 0
  %1993 = vmatmul.mubr.bf16.gmra.mxu0 %v1781
  %v1994 = vpop.f32.mrf.mxu0
  %v1995 = vadd.f32 0.0, %v1994
  %v1996 = vpop.f32.mrf.mxu0
  %v1997 = vpop.f32.mrf.mxu0
  %v1998 = vadd.f32 0.0, %v1997
  %v1999 = vpop.f32.mrf.mxu0
  %2000 = vmatprep.mubr.bf16.mxu0 0
  %2001 = vmatmul.mubr.bf16.gmra.mxu0 %v1784
  %v2002 = vpop.f32.mrf.mxu0
  %v2003 = vadd.f32 0.0, %v2002
  %v2004 = vpop.f32.mrf.mxu0
  %v2005 = vpop.f32.mrf.mxu0
  %v2006 = vadd.f32 0.0, %v2005
  %v2007 = vpop.f32.mrf.mxu0
  %2008 = vmatprep.mubr.bf16.mxu0 0
  %2009 = vmatmul.mubr.bf16.gmra.mxu0 %v1787
  %v2010 = vpop.f32.mrf.mxu0
  %v2011 = vadd.f32 0.0, %v2010
  %v2012 = vpop.f32.mrf.mxu0
  %v2013 = vpop.f32.mrf.mxu0
  %v2014 = vadd.f32 0.0, %v2013
  %v2015 = vpop.f32.mrf.mxu0
  %2016 = vmatprep.mubr.bf16.mxu0 0
  %2017 = vmatmul.mubr.bf16.gmra.mxu0 %v1790
  %v2018 = vpop.f32.mrf.mxu0
  %v2019 = vadd.f32 0.0, %v2018
  %v2020 = vpop.f32.mrf.mxu0
  %v2021 = vpop.f32.mrf.mxu0
  %v2022 = vadd.f32 0.0, %v2021
  %v2023 = vpop.f32.mrf.mxu0
  %2024 = vmatprep.mubr.bf16.mxu0 0
  %2025 = vmatmul.mubr.bf16.gmra.mxu0 %v1793
  %v2026 = vpop.f32.mrf.mxu0
  %v2027 = vadd.f32 0.0, %v2026
  %v2028 = vpop.f32.mrf.mxu0
  %v2029 = vpop.f32.mrf.mxu0
  %v2030 = vadd.f32 0.0, %v2029
  %v2031 = vpop.f32.mrf.mxu0
  %2032 = vmatprep.mubr.bf16.mxu0 0
  %2033 = vmatmul.mubr.bf16.gmra.mxu0 %v1796
  %v2034 = vpop.f32.mrf.mxu0
  %v2035 = vadd.f32 0.0, %v2034
  %v2036 = vpop.f32.mrf.mxu0
  %v2037 = vpop.f32.mrf.mxu0
  %v2038 = vadd.f32 0.0, %v2037
  %v2039 = vpop.f32.mrf.mxu0
  %2040 = vmatprep.mubr.bf16.mxu0 0
  %2041 = vmatmul.mubr.bf16.gmra.mxu0 %v1799
  %v2042 = vpop.f32.mrf.mxu0
  %v2043 = vadd.f32 0.0, %v2042
  %v2044 = vpop.f32.mrf.mxu0
  %v2045 = vpop.f32.mrf.mxu0
  %v2046 = vadd.f32 0.0, %v2045
  %v2047 = vpop.f32.mrf.mxu0
  %2048 = vmatprep.mubr.bf16.mxu0 0
  %2049 = vmatmul.mubr.bf16.gmra.mxu0 %v1802
  %v2050 = vpop.f32.mrf.mxu0
  %v2051 = vadd.f32 0.0, %v2050
  %v2052 = vpop.f32.mrf.mxu0
  %v2053 = vpop.f32.mrf.mxu0
  %v2054 = vadd.f32 0.0, %v2053
  %v2055 = vpop.f32.mrf.mxu0
  %2056 = vmatprep.mubr.bf16.mxu0 0
  %2057 = vmatmul.mubr.bf16.gmra.mxu0 %v1805
  %v2058 = vpop.f32.mrf.mxu0
  %v2059 = vadd.f32 0.0, %v2058
  %v2060 = vpop.f32.mrf.mxu0
  %v2061 = vpop.f32.mrf.mxu0
  %v2062 = vadd.f32 0.0, %v2061
  %v2063 = vpop.f32.mrf.mxu0
  %2064 = vmatprep.mubr.bf16.mxu0 0
  %2065 = vmatmul.mubr.bf16.gmra.mxu0 %v1808
  %v2066 = vpop.f32.mrf.mxu0
  %v2067 = vadd.f32 0.0, %v2066
  %v2068 = vpop.f32.mrf.mxu0
  %v2069 = vpop.f32.mrf.mxu0
  %v2070 = vadd.f32 0.0, %v2069
  %v2071 = vpop.f32.mrf.mxu0
  %2072 = vmatprep.mubr.bf16.mxu0 0
  %2073 = vmatmul.mubr.bf16.gmra.mxu0 %v1811
  %v2074 = vpop.f32.mrf.mxu0
  %v2075 = vadd.f32 0.0, %v2074
  %v2076 = vpop.f32.mrf.mxu0
  %v2077 = vpop.f32.mrf.mxu0
  %v2078 = vadd.f32 0.0, %v2077
  %v2079 = vpop.f32.mrf.mxu0
  %2080 = vmatprep.mubr.bf16.mxu0 0
  %2081 = vmatmul.mubr.bf16.gmra.mxu0 %v1814
  %v2082 = vpop.f32.mrf.mxu0
  %v2083 = vadd.f32 0.0, %v2082
  %v2084 = vpop.f32.mrf.mxu0
  %v2085 = vpop.f32.mrf.mxu0
  %v2086 = vadd.f32 0.0, %v2085
  %v2087 = vpop.f32.mrf.mxu0
  %2088 = vmatprep.mubr.bf16.mxu0 0
  %2089 = vmatmul.mubr.bf16.gmra.mxu0 %v1817
  %v2090 = vpop.f32.mrf.mxu0
  %v2091 = vadd.f32 0.0, %v2090
  %v2092 = vpop.f32.mrf.mxu0
  %v2093 = vpop.f32.mrf.mxu0
  %v2094 = vadd.f32 0.0, %v2093
  %v2095 = vpop.f32.mrf.mxu0
  %2096 = vmatprep.mubr.bf16.mxu0 0
  %2097 = vmatmul.mubr.bf16.gmra.mxu0 %v1820
  %v2098 = vpop.f32.mrf.mxu0
  %v2099 = vadd.f32 0.0, %v2098
  %v2100 = vpop.f32.mrf.mxu0
  %v2101 = vpop.f32.mrf.mxu0
  %v2102 = vadd.f32 0.0, %v2101
  %v2103 = vpop.f32.mrf.mxu0
  %2104 = vmatprep.mubr.bf16.mxu0 0
  %2105 = vmatmul.mubr.bf16.gmra.mxu0 %v1823
  %v2106 = vpop.f32.mrf.mxu0
  %v2107 = vadd.f32 0.0, %v2106
  %v2108 = vpop.f32.mrf.mxu0
  %v2109 = vpop.f32.mrf.mxu0
  %v2110 = vadd.f32 0.0, %v2109
  %v2111 = vpop.f32.mrf.mxu0
  %2112 = vmatprep.mubr.bf16.mxu0 0
  %2113 = vmatmul.mubr.bf16.gmra.mxu0 %v1826
  %v2114 = vpop.f32.mrf.mxu0
  %v2115 = vadd.f32 0.0, %v2114
  %v2116 = vpop.f32.mrf.mxu0
  %v2117 = vpop.f32.mrf.mxu0
  %v2118 = vadd.f32 0.0, %v2117
  %v2119 = vpop.f32.mrf.mxu0
  %2120 = vdwg.mxu0
  %v2121 = vsel %vm1731, %v1867, 0.0
  %v2122 = vsel %vm1731, %v1870, 0.0
  %v2123 = vadd.f32 %v2121, %v2122
  %v2124 = vsel %vm1731, %v1875, 0.0
  %v2125 = vadd.f32 %v2123, %v2124
  %v2126 = vsel %vm1731, %v1878, 0.0
  %v2127 = vadd.f32 %v2125, %v2126
  %v2128 = vsel %vm1731, %v1883, 0.0
  %v2129 = vadd.f32 %v2127, %v2128
  %v2130 = vsel %vm1731, %v1886, 0.0
  %v2131 = vadd.f32 %v2129, %v2130
  %v2132 = vsel %vm1731, %v1891, 0.0
  %v2133 = vadd.f32 %v2131, %v2132
  %v2134 = vsel %vm1731, %v1894, 0.0
  %v2135 = vadd.f32 %v2133, %v2134
  %v2136 = vsel %vm1731, %v1899, 0.0
  %v2137 = vadd.f32 %v2135, %v2136
  %v2138 = vsel %vm1731, %v1902, 0.0
  %v2139 = vadd.f32 %v2137, %v2138
  %v2140 = vsel %vm1731, %v1907, 0.0
  %v2141 = vadd.f32 %v2139, %v2140
  %v2142 = vsel %vm1731, %v1910, 0.0
  %v2143 = vadd.f32 %v2141, %v2142
  %v2144 = vsel %vm1731, %v1915, 0.0
  %v2145 = vadd.f32 %v2143, %v2144
  %v2146 = vsel %vm1731, %v1918, 0.0
  %v2147 = vadd.f32 %v2145, %v2146
  %v2148 = vsel %vm1731, %v1923, 0.0
  %v2149 = vadd.f32 %v2147, %v2148
  %v2150 = vsel %vm1731, %v1926, 0.0
  %v2151 = vadd.f32 %v2149, %v2150
  %v2152 = vsel %vm1731, %v1931, 0.0
  %v2153 = vadd.f32 %v2151, %v2152
  %v2154 = vsel %vm1731, %v1934, 0.0
  %v2155 = vadd.f32 %v2153, %v2154
  %v2156 = vsel %vm1731, %v1939, 0.0
  %v2157 = vadd.f32 %v2155, %v2156
  %v2158 = vsel %vm1731, %v1942, 0.0
  %v2159 = vadd.f32 %v2157, %v2158
  %v2160 = vsel %vm1731, %v1947, 0.0
  %v2161 = vadd.f32 %v2159, %v2160
  %v2162 = vsel %vm1731, %v1950, 0.0
  %v2163 = vadd.f32 %v2161, %v2162
  %v2164 = vsel %vm1731, %v1955, 0.0
  %v2165 = vadd.f32 %v2163, %v2164
  %v2166 = vsel %vm1731, %v1958, 0.0
  %v2167 = vadd.f32 %v2165, %v2166
  %v2168 = vsel %vm1731, %v1963, 0.0
  %v2169 = vadd.f32 %v2167, %v2168
  %v2170 = vsel %vm1731, %v1966, 0.0
  %v2171 = vadd.f32 %v2169, %v2170
  %v2172 = vsel %vm1731, %v1971, 0.0
  %v2173 = vadd.f32 %v2171, %v2172
  %v2174 = vsel %vm1731, %v1974, 0.0
  %v2175 = vadd.f32 %v2173, %v2174
  %v2176 = vsel %vm1731, %v1979, 0.0
  %v2177 = vadd.f32 %v2175, %v2176
  %v2178 = vsel %vm1731, %v1982, 0.0
  %v2179 = vadd.f32 %v2177, %v2178
  %v2180 = vsel %vm1731, %v1987, 0.0
  %v2181 = vadd.f32 %v2179, %v2180
  %v2182 = vsel %vm1731, %v1990, 0.0
  %v2183 = vadd.f32 %v2181, %v2182
  %v2184 = vsel %vm1731, %v1995, 0.0
  %v2185 = vadd.f32 %v2183, %v2184
  %v2186 = vsel %vm1731, %v1998, 0.0
  %v2187 = vadd.f32 %v2185, %v2186
  %v2188 = vsel %vm1731, %v2003, 0.0
  %v2189 = vadd.f32 %v2187, %v2188
  %v2190 = vsel %vm1731, %v2006, 0.0
  %v2191 = vadd.f32 %v2189, %v2190
  %v2192 = vsel %vm1731, %v2011, 0.0
  %v2193 = vadd.f32 %v2191, %v2192
  %v2194 = vsel %vm1731, %v2014, 0.0
  %v2195 = vadd.f32 %v2193, %v2194
  %v2196 = vsel %vm1731, %v2019, 0.0
  %v2197 = vadd.f32 %v2195, %v2196
  %v2198 = vsel %vm1731, %v2022, 0.0
  %v2199 = vadd.f32 %v2197, %v2198
  %v2200 = vsel %vm1731, %v2027, 0.0
  %v2201 = vadd.f32 %v2199, %v2200
  %v2202 = vsel %vm1731, %v2030, 0.0
  %v2203 = vadd.f32 %v2201, %v2202
  %v2204 = vsel %vm1731, %v2035, 0.0
  %v2205 = vadd.f32 %v2203, %v2204
  %v2206 = vsel %vm1731, %v2038, 0.0
  %v2207 = vadd.f32 %v2205, %v2206
  %v2208 = vsel %vm1731, %v2043, 0.0
  %v2209 = vadd.f32 %v2207, %v2208
  %v2210 = vsel %vm1731, %v2046, 0.0
  %v2211 = vadd.f32 %v2209, %v2210
  %v2212 = vsel %vm1731, %v2051, 0.0
  %v2213 = vadd.f32 %v2211, %v2212
  %v2214 = vsel %vm1731, %v2054, 0.0
  %v2215 = vadd.f32 %v2213, %v2214
  %v2216 = vsel %vm1731, %v2059, 0.0
  %v2217 = vadd.f32 %v2215, %v2216
  %v2218 = vsel %vm1731, %v2062, 0.0
  %v2219 = vadd.f32 %v2217, %v2218
  %v2220 = vsel %vm1731, %v2067, 0.0
  %v2221 = vadd.f32 %v2219, %v2220
  %v2222 = vsel %vm1731, %v2070, 0.0
  %v2223 = vadd.f32 %v2221, %v2222
  %v2224 = vsel %vm1731, %v2075, 0.0
  %v2225 = vadd.f32 %v2223, %v2224
  %v2226 = vsel %vm1731, %v2078, 0.0
  %v2227 = vadd.f32 %v2225, %v2226
  %v2228 = vsel %vm1731, %v2083, 0.0
  %v2229 = vadd.f32 %v2227, %v2228
  %v2230 = vsel %vm1731, %v2086, 0.0
  %v2231 = vadd.f32 %v2229, %v2230
  %v2232 = vsel %vm1731, %v2091, 0.0
  %v2233 = vadd.f32 %v2231, %v2232
  %v2234 = vsel %vm1731, %v2094, 0.0
  %v2235 = vadd.f32 %v2233, %v2234
  %v2236 = vsel %vm1731, %v2099, 0.0
  %v2237 = vadd.f32 %v2235, %v2236
  %v2238 = vsel %vm1731, %v2102, 0.0
  %v2239 = vadd.f32 %v2237, %v2238
  %v2240 = vsel %vm1731, %v2107, 0.0
  %v2241 = vadd.f32 %v2239, %v2240
  %v2242 = vsel %vm1731, %v2110, 0.0
  %v2243 = vadd.f32 %v2241, %v2242
  %v2244 = vsel %vm1731, %v2115, 0.0
  %v2245 = vadd.f32 %v2243, %v2244
  %v2246 = vsel %vm1731, %v2118, 0.0
  %v2247 = vadd.f32 %v2245, %v2246
  %v2248 = vrot.slane %v2247, 4
  %v2249 = vadd.f32 %v2247, %v2248
  %v2250 = vrot.slane %v2249, 2
  %v2251 = vadd.f32 %v2249, %v2250
  %v2252 = vrot.slane %v2251, 1
  %v2253 = vadd.f32 %v2251, %v2252
  %v2254 = vmul.f32 %v1867, %v1867
  %v2255 = vmul.f32 %v1870, %v1870
  %v2256 = vmul.f32 %v1875, %v1875
  %v2257 = vmul.f32 %v1878, %v1878
  %v2258 = vmul.f32 %v1883, %v1883
  %v2259 = vmul.f32 %v1886, %v1886
  %v2260 = vmul.f32 %v1891, %v1891
  %v2261 = vmul.f32 %v1894, %v1894
  %v2262 = vmul.f32 %v1899, %v1899
  %v2263 = vmul.f32 %v1902, %v1902
  %v2264 = vmul.f32 %v1907, %v1907
  %v2265 = vmul.f32 %v1910, %v1910
  %v2266 = vmul.f32 %v1915, %v1915
  %v2267 = vmul.f32 %v1918, %v1918
  %v2268 = vmul.f32 %v1923, %v1923
  %v2269 = vmul.f32 %v1926, %v1926
  %v2270 = vmul.f32 %v1931, %v1931
  %v2271 = vmul.f32 %v1934, %v1934
  %v2272 = vmul.f32 %v1939, %v1939
  %v2273 = vmul.f32 %v1942, %v1942
  %v2274 = vmul.f32 %v1947, %v1947
  %v2275 = vmul.f32 %v1950, %v1950
  %v2276 = vmul.f32 %v1955, %v1955
  %v2277 = vmul.f32 %v1958, %v1958
  %v2278 = vmul.f32 %v1963, %v1963
  %v2279 = vmul.f32 %v1966, %v1966
  %v2280 = vmul.f32 %v1971, %v1971
  %v2281 = vmul.f32 %v1974, %v1974
  %v2282 = vmul.f32 %v1979, %v1979
  %v2283 = vmul.f32 %v1982, %v1982
  %v2284 = vmul.f32 %v1987, %v1987
  %v2285 = vmul.f32 %v1990, %v1990
  %v2286 = vmul.f32 %v1995, %v1995
  %v2287 = vmul.f32 %v1998, %v1998
  %v2288 = vmul.f32 %v2003, %v2003
  %v2289 = vmul.f32 %v2006, %v2006
  %v2290 = vmul.f32 %v2011, %v2011
  %v2291 = vmul.f32 %v2014, %v2014
  %v2292 = vmul.f32 %v2019, %v2019
  %v2293 = vmul.f32 %v2022, %v2022
  %v2294 = vmul.f32 %v2027, %v2027
  %v2295 = vmul.f32 %v2030, %v2030
  %v2296 = vmul.f32 %v2035, %v2035
  %v2297 = vmul.f32 %v2038, %v2038
  %v2298 = vmul.f32 %v2043, %v2043
  %v2299 = vmul.f32 %v2046, %v2046
  %v2300 = vmul.f32 %v2051, %v2051
  %v2301 = vmul.f32 %v2054, %v2054
  %v2302 = vmul.f32 %v2059, %v2059
  %v2303 = vmul.f32 %v2062, %v2062
  %v2304 = vmul.f32 %v2067, %v2067
  %v2305 = vmul.f32 %v2070, %v2070
  %v2306 = vmul.f32 %v2075, %v2075
  %v2307 = vmul.f32 %v2078, %v2078
  %v2308 = vmul.f32 %v2083, %v2083
  %v2309 = vmul.f32 %v2086, %v2086
  %v2310 = vmul.f32 %v2091, %v2091
  %v2311 = vmul.f32 %v2094, %v2094
  %v2312 = vmul.f32 %v2099, %v2099
  %v2313 = vmul.f32 %v2102, %v2102
  %v2314 = vmul.f32 %v2107, %v2107
  %v2315 = vmul.f32 %v2110, %v2110
  %v2316 = vmul.f32 %v2115, %v2115
  %v2317 = vmul.f32 %v2118, %v2118
  %v2318 = vsel %vm1731, %v2254, 0.0
  %v2319 = vsel %vm1731, %v2255, 0.0
  %v2320 = vadd.f32 %v2318, %v2319
  %v2321 = vsel %vm1731, %v2256, 0.0
  %v2322 = vadd.f32 %v2320, %v2321
  %v2323 = vsel %vm1731, %v2257, 0.0
  %v2324 = vadd.f32 %v2322, %v2323
  %v2325 = vsel %vm1731, %v2258, 0.0
  %v2326 = vadd.f32 %v2324, %v2325
  %v2327 = vsel %vm1731, %v2259, 0.0
  %v2328 = vadd.f32 %v2326, %v2327
  %v2329 = vsel %vm1731, %v2260, 0.0
  %v2330 = vadd.f32 %v2328, %v2329
  %v2331 = vsel %vm1731, %v2261, 0.0
  %v2332 = vadd.f32 %v2330, %v2331
  %v2333 = vsel %vm1731, %v2262, 0.0
  %v2334 = vadd.f32 %v2332, %v2333
  %v2335 = vsel %vm1731, %v2263, 0.0
  %v2336 = vadd.f32 %v2334, %v2335
  %v2337 = vsel %vm1731, %v2264, 0.0
  %v2338 = vadd.f32 %v2336, %v2337
  %v2339 = vsel %vm1731, %v2265, 0.0
  %v2340 = vadd.f32 %v2338, %v2339
  %v2341 = vsel %vm1731, %v2266, 0.0
  %v2342 = vadd.f32 %v2340, %v2341
  %v2343 = vsel %vm1731, %v2267, 0.0
  %v2344 = vadd.f32 %v2342, %v2343
  %v2345 = vsel %vm1731, %v2268, 0.0
  %v2346 = vadd.f32 %v2344, %v2345
  %v2347 = vsel %vm1731, %v2269, 0.0
  %v2348 = vadd.f32 %v2346, %v2347
  %v2349 = vsel %vm1731, %v2270, 0.0
  %v2350 = vadd.f32 %v2348, %v2349
  %v2351 = vsel %vm1731, %v2271, 0.0
  %v2352 = vadd.f32 %v2350, %v2351
  %v2353 = vsel %vm1731, %v2272, 0.0
  %v2354 = vadd.f32 %v2352, %v2353
  %v2355 = vsel %vm1731, %v2273, 0.0
  %v2356 = vadd.f32 %v2354, %v2355
  %v2357 = vsel %vm1731, %v2274, 0.0
  %v2358 = vadd.f32 %v2356, %v2357
  %v2359 = vsel %vm1731, %v2275, 0.0
  %v2360 = vadd.f32 %v2358, %v2359
  %v2361 = vsel %vm1731, %v2276, 0.0
  %v2362 = vadd.f32 %v2360, %v2361
  %v2363 = vsel %vm1731, %v2277, 0.0
  %v2364 = vadd.f32 %v2362, %v2363
  %v2365 = vsel %vm1731, %v2278, 0.0
  %v2366 = vadd.f32 %v2364, %v2365
  %v2367 = vsel %vm1731, %v2279, 0.0
  %v2368 = vadd.f32 %v2366, %v2367
  %v2369 = vsel %vm1731, %v2280, 0.0
  %v2370 = vadd.f32 %v2368, %v2369
  %v2371 = vsel %vm1731, %v2281, 0.0
  %v2372 = vadd.f32 %v2370, %v2371
  %v2373 = vsel %vm1731, %v2282, 0.0
  %v2374 = vadd.f32 %v2372, %v2373
  %v2375 = vsel %vm1731, %v2283, 0.0
  %v2376 = vadd.f32 %v2374, %v2375
  %v2377 = vsel %vm1731, %v2284, 0.0
  %v2378 = vadd.f32 %v2376, %v2377
  %v2379 = vsel %vm1731, %v2285, 0.0
  %v2380 = vadd.f32 %v2378, %v2379
  %v2381 = vsel %vm1731, %v2286, 0.0
  %v2382 = vadd.f32 %v2380, %v2381
  %v2383 = vsel %vm1731, %v2287, 0.0
  %v2384 = vadd.f32 %v2382, %v2383
  %v2385 = vsel %vm1731, %v2288, 0.0
  %v2386 = vadd.f32 %v2384, %v2385
  %v2387 = vsel %vm1731, %v2289, 0.0
  %v2388 = vadd.f32 %v2386, %v2387
  %v2389 = vsel %vm1731, %v2290, 0.0
  %v2390 = vadd.f32 %v2388, %v2389
  %v2391 = vsel %vm1731, %v2291, 0.0
  %v2392 = vadd.f32 %v2390, %v2391
  %v2393 = vsel %vm1731, %v2292, 0.0
  %v2394 = vadd.f32 %v2392, %v2393
  %v2395 = vsel %vm1731, %v2293, 0.0
  %v2396 = vadd.f32 %v2394, %v2395
  %v2397 = vsel %vm1731, %v2294, 0.0
  %v2398 = vadd.f32 %v2396, %v2397
  %v2399 = vsel %vm1731, %v2295, 0.0
  %v2400 = vadd.f32 %v2398, %v2399
  %v2401 = vsel %vm1731, %v2296, 0.0
  %v2402 = vadd.f32 %v2400, %v2401
  %v2403 = vsel %vm1731, %v2297, 0.0
  %v2404 = vadd.f32 %v2402, %v2403
  %v2405 = vsel %vm1731, %v2298, 0.0
  %v2406 = vadd.f32 %v2404, %v2405
  %v2407 = vsel %vm1731, %v2299, 0.0
  %v2408 = vadd.f32 %v2406, %v2407
  %v2409 = vsel %vm1731, %v2300, 0.0
  %v2410 = vadd.f32 %v2408, %v2409
  %v2411 = vsel %vm1731, %v2301, 0.0
  %v2412 = vadd.f32 %v2410, %v2411
  %v2413 = vsel %vm1731, %v2302, 0.0
  %v2414 = vadd.f32 %v2412, %v2413
  %v2415 = vsel %vm1731, %v2303, 0.0
  %v2416 = vadd.f32 %v2414, %v2415
  %v2417 = vsel %vm1731, %v2304, 0.0
  %v2418 = vadd.f32 %v2416, %v2417
  %v2419 = vsel %vm1731, %v2305, 0.0
  %v2420 = vadd.f32 %v2418, %v2419
  %v2421 = vsel %vm1731, %v2306, 0.0
  %v2422 = vadd.f32 %v2420, %v2421
  %v2423 = vsel %vm1731, %v2307, 0.0
  %v2424 = vadd.f32 %v2422, %v2423
  %v2425 = vsel %vm1731, %v2308, 0.0
  %v2426 = vadd.f32 %v2424, %v2425
  %v2427 = vsel %vm1731, %v2309, 0.0
  %v2428 = vadd.f32 %v2426, %v2427
  %v2429 = vsel %vm1731, %v2310, 0.0
  %v2430 = vadd.f32 %v2428, %v2429
  %v2431 = vsel %vm1731, %v2311, 0.0
  %v2432 = vadd.f32 %v2430, %v2431
  %v2433 = vsel %vm1731, %v2312, 0.0
  %v2434 = vadd.f32 %v2432, %v2433
  %v2435 = vsel %vm1731, %v2313, 0.0
  %v2436 = vadd.f32 %v2434, %v2435
  %v2437 = vsel %vm1731, %v2314, 0.0
  %v2438 = vadd.f32 %v2436, %v2437
  %v2439 = vsel %vm1731, %v2315, 0.0
  %v2440 = vadd.f32 %v2438, %v2439
  %v2441 = vsel %vm1731, %v2316, 0.0
  %v2442 = vadd.f32 %v2440, %v2441
  %v2443 = vsel %vm1731, %v2317, 0.0
  %v2444 = vadd.f32 %v2442, %v2443
  %v2445 = vrot.slane %v2444, 4
  %v2446 = vadd.f32 %v2444, %v2445
  %v2447 = vrot.slane %v2446, 2
  %v2448 = vadd.f32 %v2446, %v2447
  %v2449 = vrot.slane %v2448, 1
  %v2450 = vadd.f32 %v2448, %v2449
  %v2451 = vmul.f32 %v2253, 0.001953125
  %v2452 = vmul.f32 %v2450, 0.001953125
  %v2453 = vmul.f32 %v2451, %v2451
  %v2454 = vsub.f32 %v2452, %v2453
  %v2455 = vld [vmem:[%s3] sm:$0x1]
  %v2456 = vadd.f32 %v2454, 1e-05
  %v2457 = vrsqrt.pop %v2456
  %v2458 = vmul.f32 %v2455, %v2457
  %v2459 = vld [vmem:[%s4] sm:$0x1]
  %v2460 = vmul.f32 %v2451, %v2458
  %v2461 = vsub.f32 %v2459, %v2460
  %v2463 = vlaneseq
  %v2464 = vshrl.u32 %v2463, 7
  %v2465 = vsub.s32 0, %v2464
  %v2466 = vrot.slane %v2458, %v2465
  %v2468 = vmul.f32 %v1867, %v2466
  %v2469 = vmul.f32 %v1870, %v2466
  %v2470 = vmul.f32 %v1875, %v2466
  %v2471 = vmul.f32 %v1878, %v2466
  %v2472 = vmul.f32 %v1883, %v2466
  %v2473 = vmul.f32 %v1886, %v2466
  %v2474 = vmul.f32 %v1891, %v2466
  %v2475 = vmul.f32 %v1894, %v2466
  %v2476 = vmul.f32 %v1899, %v2466
  %v2477 = vmul.f32 %v1902, %v2466
  %v2478 = vmul.f32 %v1907, %v2466
  %v2479 = vmul.f32 %v1910, %v2466
  %v2480 = vmul.f32 %v1915, %v2466
  %v2481 = vmul.f32 %v1918, %v2466
  %v2482 = vmul.f32 %v1923, %v2466
  %v2483 = vmul.f32 %v1926, %v2466
  %v2484 = vmul.f32 %v1931, %v2466
  %v2485 = vmul.f32 %v1934, %v2466
  %v2486 = vmul.f32 %v1939, %v2466
  %v2487 = vmul.f32 %v1942, %v2466
  %v2488 = vmul.f32 %v1947, %v2466
  %v2489 = vmul.f32 %v1950, %v2466
  %v2490 = vmul.f32 %v1955, %v2466
  %v2491 = vmul.f32 %v1958, %v2466
  %v2492 = vmul.f32 %v1963, %v2466
  %v2493 = vmul.f32 %v1966, %v2466
  %v2494 = vmul.f32 %v1971, %v2466
  %v2495 = vmul.f32 %v1974, %v2466
  %v2496 = vmul.f32 %v1979, %v2466
  %v2497 = vmul.f32 %v1982, %v2466
  %v2498 = vmul.f32 %v1987, %v2466
  %v2499 = vmul.f32 %v1990, %v2466
  %v2500 = vmul.f32 %v1995, %v2466
  %v2501 = vmul.f32 %v1998, %v2466
  %v2502 = vmul.f32 %v2003, %v2466
  %v2503 = vmul.f32 %v2006, %v2466
  %v2504 = vmul.f32 %v2011, %v2466
  %v2505 = vmul.f32 %v2014, %v2466
  %v2506 = vmul.f32 %v2019, %v2466
  %v2507 = vmul.f32 %v2022, %v2466
  %v2508 = vmul.f32 %v2027, %v2466
  %v2509 = vmul.f32 %v2030, %v2466
  %v2510 = vmul.f32 %v2035, %v2466
  %v2511 = vmul.f32 %v2038, %v2466
  %v2512 = vmul.f32 %v2043, %v2466
  %v2513 = vmul.f32 %v2046, %v2466
  %v2514 = vmul.f32 %v2051, %v2466
  %v2515 = vmul.f32 %v2054, %v2466
  %v2516 = vmul.f32 %v2059, %v2466
  %v2517 = vmul.f32 %v2062, %v2466
  %v2518 = vmul.f32 %v2067, %v2466
  %v2519 = vmul.f32 %v2070, %v2466
  %v2520 = vmul.f32 %v2075, %v2466
  %v2521 = vmul.f32 %v2078, %v2466
  %v2522 = vmul.f32 %v2083, %v2466
  %v2523 = vmul.f32 %v2086, %v2466
  %v2524 = vmul.f32 %v2091, %v2466
  %v2525 = vmul.f32 %v2094, %v2466
  %v2526 = vmul.f32 %v2099, %v2466
  %v2527 = vmul.f32 %v2102, %v2466
  %v2528 = vmul.f32 %v2107, %v2466
  %v2529 = vmul.f32 %v2110, %v2466
  %v2530 = vmul.f32 %v2115, %v2466
  %v2531 = vmul.f32 %v2118, %v2466
  %v2533 = vlaneseq
  %v2534 = vshrl.u32 %v2533, 7
  %v2535 = vsub.s32 0, %v2534
  %v2536 = vrot.slane %v2461, %v2535
  %v2538 = vadd.f32 %v2468, %v2536
  %v2539 = vadd.f32 %v2469, %v2536
  %v2540 = vadd.f32 %v2470, %v2536
  %v2541 = vadd.f32 %v2471, %v2536
  %v2542 = vadd.f32 %v2472, %v2536
  %v2543 = vadd.f32 %v2473, %v2536
  %v2544 = vadd.f32 %v2474, %v2536
  %v2545 = vadd.f32 %v2475, %v2536
  %v2546 = vadd.f32 %v2476, %v2536
  %v2547 = vadd.f32 %v2477, %v2536
  %v2548 = vadd.f32 %v2478, %v2536
  %v2549 = vadd.f32 %v2479, %v2536
  %v2550 = vadd.f32 %v2480, %v2536
  %v2551 = vadd.f32 %v2481, %v2536
  %v2552 = vadd.f32 %v2482, %v2536
  %v2553 = vadd.f32 %v2483, %v2536
  %v2554 = vadd.f32 %v2484, %v2536
  %v2555 = vadd.f32 %v2485, %v2536
  %v2556 = vadd.f32 %v2486, %v2536
  %v2557 = vadd.f32 %v2487, %v2536
  %v2558 = vadd.f32 %v2488, %v2536
  %v2559 = vadd.f32 %v2489, %v2536
  %v2560 = vadd.f32 %v2490, %v2536
  %v2561 = vadd.f32 %v2491, %v2536
  %v2562 = vadd.f32 %v2492, %v2536
  %v2563 = vadd.f32 %v2493, %v2536
  %v2564 = vadd.f32 %v2494, %v2536
  %v2565 = vadd.f32 %v2495, %v2536
  %v2566 = vadd.f32 %v2496, %v2536
  %v2567 = vadd.f32 %v2497, %v2536
  %v2568 = vadd.f32 %v2498, %v2536
  %v2569 = vadd.f32 %v2499, %v2536
  %v2570 = vadd.f32 %v2500, %v2536
  %v2571 = vadd.f32 %v2501, %v2536
  %v2572 = vadd.f32 %v2502, %v2536
  %v2573 = vadd.f32 %v2503, %v2536
  %v2574 = vadd.f32 %v2504, %v2536
  %v2575 = vadd.f32 %v2505, %v2536
  %v2576 = vadd.f32 %v2506, %v2536
  %v2577 = vadd.f32 %v2507, %v2536
  %v2578 = vadd.f32 %v2508, %v2536
  %v2579 = vadd.f32 %v2509, %v2536
  %v2580 = vadd.f32 %v2510, %v2536
  %v2581 = vadd.f32 %v2511, %v2536
  %v2582 = vadd.f32 %v2512, %v2536
  %v2583 = vadd.f32 %v2513, %v2536
  %v2584 = vadd.f32 %v2514, %v2536
  %v2585 = vadd.f32 %v2515, %v2536
  %v2586 = vadd.f32 %v2516, %v2536
  %v2587 = vadd.f32 %v2517, %v2536
  %v2588 = vadd.f32 %v2518, %v2536
  %v2589 = vadd.f32 %v2519, %v2536
  %v2590 = vadd.f32 %v2520, %v2536
  %v2591 = vadd.f32 %v2521, %v2536
  %v2592 = vadd.f32 %v2522, %v2536
  %v2593 = vadd.f32 %v2523, %v2536
  %v2594 = vadd.f32 %v2524, %v2536
  %v2595 = vadd.f32 %v2525, %v2536
  %v2596 = vadd.f32 %v2526, %v2536
  %v2597 = vadd.f32 %v2527, %v2536
  %v2598 = vadd.f32 %v2528, %v2536
  %v2599 = vadd.f32 %v2529, %v2536
  %v2600 = vadd.f32 %v2530, %v2536
  %v2601 = vadd.f32 %v2531, %v2536
  %v2602 = vmax.f32 %v2538, 0.0
  %v2603 = vmax.f32 %v2539, 0.0
  %v2604 = vmax.f32 %v2540, 0.0
  %v2605 = vmax.f32 %v2541, 0.0
  %v2606 = vmax.f32 %v2542, 0.0
  %v2607 = vmax.f32 %v2543, 0.0
  %v2608 = vmax.f32 %v2544, 0.0
  %v2609 = vmax.f32 %v2545, 0.0
  %v2610 = vmax.f32 %v2546, 0.0
  %v2611 = vmax.f32 %v2547, 0.0
  %v2612 = vmax.f32 %v2548, 0.0
  %v2613 = vmax.f32 %v2549, 0.0
  %v2614 = vmax.f32 %v2550, 0.0
  %v2615 = vmax.f32 %v2551, 0.0
  %v2616 = vmax.f32 %v2552, 0.0
  %v2617 = vmax.f32 %v2553, 0.0
  %v2618 = vmax.f32 %v2554, 0.0
  %v2619 = vmax.f32 %v2555, 0.0
  %v2620 = vmax.f32 %v2556, 0.0
  %v2621 = vmax.f32 %v2557, 0.0
  %v2622 = vmax.f32 %v2558, 0.0
  %v2623 = vmax.f32 %v2559, 0.0
  %v2624 = vmax.f32 %v2560, 0.0
  %v2625 = vmax.f32 %v2561, 0.0
  %v2626 = vmax.f32 %v2562, 0.0
  %v2627 = vmax.f32 %v2563, 0.0
  %v2628 = vmax.f32 %v2564, 0.0
  %v2629 = vmax.f32 %v2565, 0.0
  %v2630 = vmax.f32 %v2566, 0.0
  %v2631 = vmax.f32 %v2567, 0.0
  %v2632 = vmax.f32 %v2568, 0.0
  %v2633 = vmax.f32 %v2569, 0.0
  %v2634 = vmax.f32 %v2570, 0.0
  %v2635 = vmax.f32 %v2571, 0.0
  %v2636 = vmax.f32 %v2572, 0.0
  %v2637 = vmax.f32 %v2573, 0.0
  %v2638 = vmax.f32 %v2574, 0.0
  %v2639 = vmax.f32 %v2575, 0.0
  %v2640 = vmax.f32 %v2576, 0.0
  %v2641 = vmax.f32 %v2577, 0.0
  %v2642 = vmax.f32 %v2578, 0.0
  %v2643 = vmax.f32 %v2579, 0.0
  %v2644 = vmax.f32 %v2580, 0.0
  %v2645 = vmax.f32 %v2581, 0.0
  %v2646 = vmax.f32 %v2582, 0.0
  %v2647 = vmax.f32 %v2583, 0.0
  %v2648 = vmax.f32 %v2584, 0.0
  %v2649 = vmax.f32 %v2585, 0.0
  %v2650 = vmax.f32 %v2586, 0.0
  %v2651 = vmax.f32 %v2587, 0.0
  %v2652 = vmax.f32 %v2588, 0.0
  %v2653 = vmax.f32 %v2589, 0.0
  %v2654 = vmax.f32 %v2590, 0.0
  %v2655 = vmax.f32 %v2591, 0.0
  %v2656 = vmax.f32 %v2592, 0.0
  %v2657 = vmax.f32 %v2593, 0.0
  %v2658 = vmax.f32 %v2594, 0.0
  %v2659 = vmax.f32 %v2595, 0.0
  %v2660 = vmax.f32 %v2596, 0.0
  %v2661 = vmax.f32 %v2597, 0.0
  %v2662 = vmax.f32 %v2598, 0.0
  %v2663 = vmax.f32 %v2599, 0.0
  %v2664 = vmax.f32 %v2600, 0.0
  %v2665 = vmax.f32 %v2601, 0.0
  %v2666 = vrot.slane %v2602, 7
  %v2667 = vrot.slane %v2603, 7
  %v2668 = vrot.slane %v2604, 7
  %v2669 = vrot.slane %v2605, 7
  %v2670 = vrot.slane %v2606, 7
  %v2671 = vrot.slane %v2607, 7
  %v2672 = vrot.slane %v2608, 7
  %v2673 = vrot.slane %v2609, 7
  %v2674 = vrot.slane %v2610, 7
  %v2675 = vrot.slane %v2611, 7
  %v2676 = vrot.slane %v2612, 7
  %v2677 = vrot.slane %v2613, 7
  %v2678 = vrot.slane %v2614, 7
  %v2679 = vrot.slane %v2615, 7
  %v2680 = vrot.slane %v2616, 7
  %v2681 = vrot.slane %v2617, 7
  %v2682 = vrot.slane %v2618, 7
  %v2683 = vrot.slane %v2619, 7
  %v2684 = vrot.slane %v2620, 7
  %v2685 = vrot.slane %v2621, 7
  %v2686 = vrot.slane %v2622, 7
  %v2687 = vrot.slane %v2623, 7
  %v2688 = vrot.slane %v2624, 7
  %v2689 = vrot.slane %v2625, 7
  %v2690 = vrot.slane %v2626, 7
  %v2691 = vrot.slane %v2627, 7
  %v2692 = vrot.slane %v2628, 7
  %v2693 = vrot.slane %v2629, 7
  %v2694 = vrot.slane %v2630, 7
  %v2695 = vrot.slane %v2631, 7
  %v2696 = vrot.slane %v2632, 7
  %v2697 = vrot.slane %v2633, 7
  %v2698 = vrot.slane %v2634, 7
  %v2699 = vrot.slane %v2635, 7
  %v2700 = vrot.slane %v2636, 7
  %v2701 = vrot.slane %v2637, 7
  %v2702 = vrot.slane %v2638, 7
  %v2703 = vrot.slane %v2639, 7
  %v2704 = vrot.slane %v2640, 7
  %v2705 = vrot.slane %v2641, 7
  %v2706 = vrot.slane %v2642, 7
  %v2707 = vrot.slane %v2643, 7
  %v2708 = vrot.slane %v2644, 7
  %v2709 = vrot.slane %v2645, 7
  %v2710 = vrot.slane %v2646, 7
  %v2711 = vrot.slane %v2647, 7
  %v2712 = vrot.slane %v2648, 7
  %v2713 = vrot.slane %v2649, 7
  %v2714 = vrot.slane %v2650, 7
  %v2715 = vrot.slane %v2651, 7
  %v2716 = vrot.slane %v2652, 7
  %v2717 = vrot.slane %v2653, 7
  %v2718 = vrot.slane %v2654, 7
  %v2719 = vrot.slane %v2655, 7
  %v2720 = vrot.slane %v2656, 7
  %v2721 = vrot.slane %v2657, 7
  %v2722 = vrot.slane %v2658, 7
  %v2723 = vrot.slane %v2659, 7
  %v2724 = vrot.slane %v2660, 7
  %v2725 = vrot.slane %v2661, 7
  %v2726 = vrot.slane %v2662, 7
  %v2727 = vrot.slane %v2663, 7
  %v2728 = vrot.slane %v2664, 7
  %v2729 = vrot.slane %v2665, 7
  %v2730 = vsel %vm244, %v2729, 0.0
  %v2731 = vsel %vm244, %v2728, %v2729
  %v2732 = vsel %vm244, %v2727, %v2728
  %v2733 = vsel %vm244, %v2726, %v2727
  %v2734 = vsel %vm244, %v2725, %v2726
  %v2735 = vsel %vm244, %v2724, %v2725
  %v2736 = vsel %vm244, %v2723, %v2724
  %v2737 = vsel %vm244, %v2722, %v2723
  %v2738 = vsel %vm244, %v2721, %v2722
  %v2739 = vsel %vm244, %v2720, %v2721
  %v2740 = vsel %vm244, %v2719, %v2720
  %v2741 = vsel %vm244, %v2718, %v2719
  %v2742 = vsel %vm244, %v2717, %v2718
  %v2743 = vsel %vm244, %v2716, %v2717
  %v2744 = vsel %vm244, %v2715, %v2716
  %v2745 = vsel %vm244, %v2714, %v2715
  %v2746 = vsel %vm244, %v2713, %v2714
  %v2747 = vsel %vm244, %v2712, %v2713
  %v2748 = vsel %vm244, %v2711, %v2712
  %v2749 = vsel %vm244, %v2710, %v2711
  %v2750 = vsel %vm244, %v2709, %v2710
  %v2751 = vsel %vm244, %v2708, %v2709
  %v2752 = vsel %vm244, %v2707, %v2708
  %v2753 = vsel %vm244, %v2706, %v2707
  %v2754 = vsel %vm244, %v2705, %v2706
  %v2755 = vsel %vm244, %v2704, %v2705
  %v2756 = vsel %vm244, %v2703, %v2704
  %v2757 = vsel %vm244, %v2702, %v2703
  %v2758 = vsel %vm244, %v2701, %v2702
  %v2759 = vsel %vm244, %v2700, %v2701
  %v2760 = vsel %vm244, %v2699, %v2700
  %v2761 = vsel %vm244, %v2698, %v2699
  %v2762 = vsel %vm244, 0.0, %v2698
  %v2763 = vsel %vm244, %v2697, 0.0
  %v2764 = vsel %vm244, %v2696, %v2697
  %v2765 = vsel %vm244, %v2695, %v2696
  %v2766 = vsel %vm244, %v2694, %v2695
  %v2767 = vsel %vm244, %v2693, %v2694
  %v2768 = vsel %vm244, %v2692, %v2693
  %v2769 = vsel %vm244, %v2691, %v2692
  %v2770 = vsel %vm244, %v2690, %v2691
  %v2771 = vsel %vm244, %v2689, %v2690
  %v2772 = vsel %vm244, %v2688, %v2689
  %v2773 = vsel %vm244, %v2687, %v2688
  %v2774 = vsel %vm244, %v2686, %v2687
  %v2775 = vsel %vm244, %v2685, %v2686
  %v2776 = vsel %vm244, %v2684, %v2685
  %v2777 = vsel %vm244, %v2683, %v2684
  %v2778 = vsel %vm244, %v2682, %v2683
  %v2779 = vsel %vm244, %v2681, %v2682
  %v2780 = vsel %vm244, %v2680, %v2681
  %v2781 = vsel %vm244, %v2679, %v2680
  %v2782 = vsel %vm244, %v2678, %v2679
  %v2783 = vsel %vm244, %v2677, %v2678
  %v2784 = vsel %vm244, %v2676, %v2677
  %v2785 = vsel %vm244, %v2675, %v2676
  %v2786 = vsel %vm244, %v2674, %v2675
  %v2787 = vsel %vm244, %v2673, %v2674
  %v2788 = vsel %vm244, %v2672, %v2673
  %v2789 = vsel %vm244, %v2671, %v2672
  %v2790 = vsel %vm244, %v2670, %v2671
  %v2791 = vsel %vm244, %v2669, %v2670
  %v2792 = vsel %vm244, %v2668, %v2669
  %v2793 = vsel %vm244, %v2667, %v2668
  %v2794 = vsel %vm244, %v2666, %v2667
  %v2795 = vsel %vm244, 0.0, %v2666
  %v2796 = vsel %vm313, %v2795, 0.0
  %v2797 = vsel %vm314, %v2794, 0.0
  %v2798 = vsel %vm313, %v2793, 0.0
  %v2799 = vsel %vm314, %v2792, 0.0
  %v2800 = vsel %vm313, %v2791, 0.0
  %v2801 = vsel %vm314, %v2790, 0.0
  %v2802 = vsel %vm313, %v2789, 0.0
  %v2803 = vsel %vm314, %v2788, 0.0
  %v2804 = vsel %vm313, %v2787, 0.0
  %v2805 = vsel %vm314, %v2786, 0.0
  %v2806 = vsel %vm313, %v2785, 0.0
  %v2807 = vsel %vm314, %v2784, 0.0
  %v2808 = vsel %vm313, %v2783, 0.0
  %v2809 = vsel %vm314, %v2782, 0.0
  %v2810 = vsel %vm313, %v2781, 0.0
  %v2811 = vsel %vm314, %v2780, 0.0
  %v2812 = vsel %vm313, %v2779, 0.0
  %v2813 = vsel %vm314, %v2778, 0.0
  %v2814 = vsel %vm313, %v2777, 0.0
  %v2815 = vsel %vm314, %v2776, 0.0
  %v2816 = vsel %vm313, %v2775, 0.0
  %v2817 = vsel %vm314, %v2774, 0.0
  %v2818 = vsel %vm313, %v2773, 0.0
  %v2819 = vsel %vm314, %v2772, 0.0
  %v2820 = vsel %vm313, %v2771, 0.0
  %v2821 = vsel %vm314, %v2770, 0.0
  %v2822 = vsel %vm313, %v2769, 0.0
  %v2823 = vsel %vm314, %v2768, 0.0
  %v2824 = vsel %vm313, %v2767, 0.0
  %v2825 = vsel %vm314, %v2766, 0.0
  %v2826 = vsel %vm313, %v2765, 0.0
  %v2827 = vsel %vm314, %v2764, 0.0
  %v2828 = vsel %vm313, %v2763, 0.0
  %v2829 = vsel %vm313, %v2762, 0.0
  %v2830 = vsel %vm314, %v2761, 0.0
  %v2831 = vsel %vm313, %v2760, 0.0
  %v2832 = vsel %vm314, %v2759, 0.0
  %v2833 = vsel %vm313, %v2758, 0.0
  %v2834 = vsel %vm314, %v2757, 0.0
  %v2835 = vsel %vm313, %v2756, 0.0
  %v2836 = vsel %vm314, %v2755, 0.0
  %v2837 = vsel %vm313, %v2754, 0.0
  %v2838 = vsel %vm314, %v2753, 0.0
  %v2839 = vsel %vm313, %v2752, 0.0
  %v2840 = vsel %vm314, %v2751, 0.0
  %v2841 = vsel %vm313, %v2750, 0.0
  %v2842 = vsel %vm314, %v2749, 0.0
  %v2843 = vsel %vm313, %v2748, 0.0
  %v2844 = vsel %vm314, %v2747, 0.0
  %v2845 = vsel %vm313, %v2746, 0.0
  %v2846 = vsel %vm314, %v2745, 0.0
  %v2847 = vsel %vm313, %v2744, 0.0
  %v2848 = vsel %vm314, %v2743, 0.0
  %v2849 = vsel %vm313, %v2742, 0.0
  %v2850 = vsel %vm314, %v2741, 0.0
  %v2851 = vsel %vm313, %v2740, 0.0
  %v2852 = vsel %vm314, %v2739, 0.0
  %v2853 = vsel %vm313, %v2738, 0.0
  %v2854 = vsel %vm314, %v2737, 0.0
  %v2855 = vsel %vm313, %v2736, 0.0
  %v2856 = vsel %vm314, %v2735, 0.0
  %v2857 = vsel %vm313, %v2734, 0.0
  %v2858 = vsel %vm314, %v2733, 0.0
  %v2859 = vsel %vm313, %v2732, 0.0
  %v2860 = vsel %vm314, %v2731, 0.0
  %v2861 = vsel %vm313, %v2730, 0.0
  %v2862 = vrot.slane %v2602, 1
  %v2863 = vrot.slane %v2603, 1
  %v2864 = vrot.slane %v2604, 1
  %v2865 = vrot.slane %v2605, 1
  %v2866 = vrot.slane %v2606, 1
  %v2867 = vrot.slane %v2607, 1
  %v2868 = vrot.slane %v2608, 1
  %v2869 = vrot.slane %v2609, 1
  %v2870 = vrot.slane %v2610, 1
  %v2871 = vrot.slane %v2611, 1
  %v2872 = vrot.slane %v2612, 1
  %v2873 = vrot.slane %v2613, 1
  %v2874 = vrot.slane %v2614, 1
  %v2875 = vrot.slane %v2615, 1
  %v2876 = vrot.slane %v2616, 1
  %v2877 = vrot.slane %v2617, 1
  %v2878 = vrot.slane %v2618, 1
  %v2879 = vrot.slane %v2619, 1
  %v2880 = vrot.slane %v2620, 1
  %v2881 = vrot.slane %v2621, 1
  %v2882 = vrot.slane %v2622, 1
  %v2883 = vrot.slane %v2623, 1
  %v2884 = vrot.slane %v2624, 1
  %v2885 = vrot.slane %v2625, 1
  %v2886 = vrot.slane %v2626, 1
  %v2887 = vrot.slane %v2627, 1
  %v2888 = vrot.slane %v2628, 1
  %v2889 = vrot.slane %v2629, 1
  %v2890 = vrot.slane %v2630, 1
  %v2891 = vrot.slane %v2631, 1
  %v2892 = vrot.slane %v2632, 1
  %v2893 = vrot.slane %v2633, 1
  %v2894 = vrot.slane %v2634, 1
  %v2895 = vrot.slane %v2635, 1
  %v2896 = vrot.slane %v2636, 1
  %v2897 = vrot.slane %v2637, 1
  %v2898 = vrot.slane %v2638, 1
  %v2899 = vrot.slane %v2639, 1
  %v2900 = vrot.slane %v2640, 1
  %v2901 = vrot.slane %v2641, 1
  %v2902 = vrot.slane %v2642, 1
  %v2903 = vrot.slane %v2643, 1
  %v2904 = vrot.slane %v2644, 1
  %v2905 = vrot.slane %v2645, 1
  %v2906 = vrot.slane %v2646, 1
  %v2907 = vrot.slane %v2647, 1
  %v2908 = vrot.slane %v2648, 1
  %v2909 = vrot.slane %v2649, 1
  %v2910 = vrot.slane %v2650, 1
  %v2911 = vrot.slane %v2651, 1
  %v2912 = vrot.slane %v2652, 1
  %v2913 = vrot.slane %v2653, 1
  %v2914 = vrot.slane %v2654, 1
  %v2915 = vrot.slane %v2655, 1
  %v2916 = vrot.slane %v2656, 1
  %v2917 = vrot.slane %v2657, 1
  %v2918 = vrot.slane %v2658, 1
  %v2919 = vrot.slane %v2659, 1
  %v2920 = vrot.slane %v2660, 1
  %v2921 = vrot.slane %v2661, 1
  %v2922 = vrot.slane %v2662, 1
  %v2923 = vrot.slane %v2663, 1
  %v2924 = vrot.slane %v2664, 1
  %v2925 = vrot.slane %v2665, 1
  %v2926 = vsel %vm447, %v2925, 0.0
  %v2927 = vsel %vm447, %v2924, %v2925
  %v2928 = vsel %vm447, %v2923, %v2924
  %v2929 = vsel %vm447, %v2922, %v2923
  %v2930 = vsel %vm447, %v2921, %v2922
  %v2931 = vsel %vm447, %v2920, %v2921
  %v2932 = vsel %vm447, %v2919, %v2920
  %v2933 = vsel %vm447, %v2918, %v2919
  %v2934 = vsel %vm447, %v2917, %v2918
  %v2935 = vsel %vm447, %v2916, %v2917
  %v2936 = vsel %vm447, %v2915, %v2916
  %v2937 = vsel %vm447, %v2914, %v2915
  %v2938 = vsel %vm447, %v2913, %v2914
  %v2939 = vsel %vm447, %v2912, %v2913
  %v2940 = vsel %vm447, %v2911, %v2912
  %v2941 = vsel %vm447, %v2910, %v2911
  %v2942 = vsel %vm447, %v2909, %v2910
  %v2943 = vsel %vm447, %v2908, %v2909
  %v2944 = vsel %vm447, %v2907, %v2908
  %v2945 = vsel %vm447, %v2906, %v2907
  %v2946 = vsel %vm447, %v2905, %v2906
  %v2947 = vsel %vm447, %v2904, %v2905
  %v2948 = vsel %vm447, %v2903, %v2904
  %v2949 = vsel %vm447, %v2902, %v2903
  %v2950 = vsel %vm447, %v2901, %v2902
  %v2951 = vsel %vm447, %v2900, %v2901
  %v2952 = vsel %vm447, %v2899, %v2900
  %v2953 = vsel %vm447, %v2898, %v2899
  %v2954 = vsel %vm447, %v2897, %v2898
  %v2955 = vsel %vm447, %v2896, %v2897
  %v2956 = vsel %vm447, %v2895, %v2896
  %v2957 = vsel %vm447, %v2894, %v2895
  %v2958 = vsel %vm447, 0.0, %v2894
  %v2959 = vsel %vm447, %v2893, 0.0
  %v2960 = vsel %vm447, %v2892, %v2893
  %v2961 = vsel %vm447, %v2891, %v2892
  %v2962 = vsel %vm447, %v2890, %v2891
  %v2963 = vsel %vm447, %v2889, %v2890
  %v2964 = vsel %vm447, %v2888, %v2889
  %v2965 = vsel %vm447, %v2887, %v2888
  %v2966 = vsel %vm447, %v2886, %v2887
  %v2967 = vsel %vm447, %v2885, %v2886
  %v2968 = vsel %vm447, %v2884, %v2885
  %v2969 = vsel %vm447, %v2883, %v2884
  %v2970 = vsel %vm447, %v2882, %v2883
  %v2971 = vsel %vm447, %v2881, %v2882
  %v2972 = vsel %vm447, %v2880, %v2881
  %v2973 = vsel %vm447, %v2879, %v2880
  %v2974 = vsel %vm447, %v2878, %v2879
  %v2975 = vsel %vm447, %v2877, %v2878
  %v2976 = vsel %vm447, %v2876, %v2877
  %v2977 = vsel %vm447, %v2875, %v2876
  %v2978 = vsel %vm447, %v2874, %v2875
  %v2979 = vsel %vm447, %v2873, %v2874
  %v2980 = vsel %vm447, %v2872, %v2873
  %v2981 = vsel %vm447, %v2871, %v2872
  %v2982 = vsel %vm447, %v2870, %v2871
  %v2983 = vsel %vm447, %v2869, %v2870
  %v2984 = vsel %vm447, %v2868, %v2869
  %v2985 = vsel %vm447, %v2867, %v2868
  %v2986 = vsel %vm447, %v2866, %v2867
  %v2987 = vsel %vm447, %v2865, %v2866
  %v2988 = vsel %vm447, %v2864, %v2865
  %v2989 = vsel %vm447, %v2863, %v2864
  %v2990 = vsel %vm447, %v2862, %v2863
  %v2991 = vsel %vm447, 0.0, %v2862
  %v2992 = vsel %vm517, %v2991, 0.0
  %v2993 = vsel %vm516, %v2990, 0.0
  %v2994 = vsel %vm517, %v2989, 0.0
  %v2995 = vsel %vm516, %v2988, 0.0
  %v2996 = vsel %vm517, %v2987, 0.0
  %v2997 = vsel %vm516, %v2986, 0.0
  %v2998 = vsel %vm517, %v2985, 0.0
  %v2999 = vsel %vm516, %v2984, 0.0
  %v3000 = vsel %vm517, %v2983, 0.0
  %v3001 = vsel %vm516, %v2982, 0.0
  %v3002 = vsel %vm517, %v2981, 0.0
  %v3003 = vsel %vm516, %v2980, 0.0
  %v3004 = vsel %vm517, %v2979, 0.0
  %v3005 = vsel %vm516, %v2978, 0.0
  %v3006 = vsel %vm517, %v2977, 0.0
  %v3007 = vsel %vm516, %v2976, 0.0
  %v3008 = vsel %vm517, %v2975, 0.0
  %v3009 = vsel %vm516, %v2974, 0.0
  %v3010 = vsel %vm517, %v2973, 0.0
  %v3011 = vsel %vm516, %v2972, 0.0
  %v3012 = vsel %vm517, %v2971, 0.0
  %v3013 = vsel %vm516, %v2970, 0.0
  %v3014 = vsel %vm517, %v2969, 0.0
  %v3015 = vsel %vm516, %v2968, 0.0
  %v3016 = vsel %vm517, %v2967, 0.0
  %v3017 = vsel %vm516, %v2966, 0.0
  %v3018 = vsel %vm517, %v2965, 0.0
  %v3019 = vsel %vm516, %v2964, 0.0
  %v3020 = vsel %vm517, %v2963, 0.0
  %v3021 = vsel %vm516, %v2962, 0.0
  %v3022 = vsel %vm517, %v2961, 0.0
  %v3023 = vsel %vm516, %v2960, 0.0
  %v3024 = vsel %vm517, %v2959, 0.0
  %v3025 = vsel %vm517, %v2958, 0.0
  %v3026 = vsel %vm516, %v2957, 0.0
  %v3027 = vsel %vm517, %v2956, 0.0
  %v3028 = vsel %vm516, %v2955, 0.0
  %v3029 = vsel %vm517, %v2954, 0.0
  %v3030 = vsel %vm516, %v2953, 0.0
  %v3031 = vsel %vm517, %v2952, 0.0
  %v3032 = vsel %vm516, %v2951, 0.0
  %v3033 = vsel %vm517, %v2950, 0.0
  %v3034 = vsel %vm516, %v2949, 0.0
  %v3035 = vsel %vm517, %v2948, 0.0
  %v3036 = vsel %vm516, %v2947, 0.0
  %v3037 = vsel %vm517, %v2946, 0.0
  %v3038 = vsel %vm516, %v2945, 0.0
  %v3039 = vsel %vm517, %v2944, 0.0
  %v3040 = vsel %vm516, %v2943, 0.0
  %v3041 = vsel %vm517, %v2942, 0.0
  %v3042 = vsel %vm516, %v2941, 0.0
  %v3043 = vsel %vm517, %v2940, 0.0
  %v3044 = vsel %vm516, %v2939, 0.0
  %v3045 = vsel %vm517, %v2938, 0.0
  %v3046 = vsel %vm516, %v2937, 0.0
  %v3047 = vsel %vm517, %v2936, 0.0
  %v3048 = vsel %vm516, %v2935, 0.0
  %v3049 = vsel %vm517, %v2934, 0.0
  %v3050 = vsel %vm516, %v2933, 0.0
  %v3051 = vsel %vm517, %v2932, 0.0
  %v3052 = vsel %vm516, %v2931, 0.0
  %v3053 = vsel %vm517, %v2930, 0.0
  %v3054 = vsel %vm516, %v2929, 0.0
  %v3055 = vsel %vm517, %v2928, 0.0
  %v3056 = vsel %vm516, %v2927, 0.0
  %v3057 = vsel %vm517, %v2926, 0.0
  %v3058 = vld [vmem:[%s5] sm:$0xff]
  %v3059 = vld [vmem:[%s5 + $0x8] sm:$0x1]
  %v3060 = vlaneseq
  %v3061 = vshrl.u32 %v3060, 7
  %v3062 = vsub.s32 0, %v3061
  %v3063 = vrot.slane %v3058, %v3062
  %v3064 = vmul.f32 %v315, %v3063
  %v3065 = vmul.f32 %v316, %v3063
  %v3066 = vmul.f32 %v2796, %v3063
  %v3067 = vmul.f32 %v2797, %v3063
  %v3068 = vmul.f32 %v2798, %v3063
  %v3069 = vmul.f32 %v2799, %v3063
  %v3070 = vmul.f32 %v2800, %v3063
  %v3071 = vmul.f32 %v2801, %v3063
  %v3072 = vmul.f32 %v2802, %v3063
  %v3073 = vmul.f32 %v2803, %v3063
  %v3074 = vmul.f32 %v2804, %v3063
  %v3075 = vmul.f32 %v2805, %v3063
  %v3076 = vmul.f32 %v2806, %v3063
  %v3077 = vmul.f32 %v2807, %v3063
  %v3078 = vmul.f32 %v2808, %v3063
  %v3079 = vmul.f32 %v2809, %v3063
  %v3080 = vmul.f32 %v2810, %v3063
  %v3081 = vmul.f32 %v2811, %v3063
  %v3082 = vmul.f32 %v2812, %v3063
  %v3083 = vmul.f32 %v2813, %v3063
  %v3084 = vmul.f32 %v2814, %v3063
  %v3085 = vmul.f32 %v2815, %v3063
  %v3086 = vmul.f32 %v2816, %v3063
  %v3087 = vmul.f32 %v2817, %v3063
  %v3088 = vmul.f32 %v2818, %v3063
  %v3089 = vmul.f32 %v2819, %v3063
  %v3090 = vmul.f32 %v2820, %v3063
  %v3091 = vmul.f32 %v2821, %v3063
  %v3092 = vmul.f32 %v2822, %v3063
  %v3093 = vmul.f32 %v2823, %v3063
  %v3094 = vmul.f32 %v2824, %v3063
  %v3095 = vmul.f32 %v2825, %v3063
  %v3096 = vmul.f32 %v2829, %v3063
  %v3097 = vmul.f32 %v2830, %v3063
  %v3098 = vmul.f32 %v2831, %v3063
  %v3099 = vmul.f32 %v2832, %v3063
  %v3100 = vmul.f32 %v2833, %v3063
  %v3101 = vmul.f32 %v2834, %v3063
  %v3102 = vmul.f32 %v2835, %v3063
  %v3103 = vmul.f32 %v2836, %v3063
  %v3104 = vmul.f32 %v2837, %v3063
  %v3105 = vmul.f32 %v2838, %v3063
  %v3106 = vmul.f32 %v2839, %v3063
  %v3107 = vmul.f32 %v2840, %v3063
  %v3108 = vmul.f32 %v2841, %v3063
  %v3109 = vmul.f32 %v2842, %v3063
  %v3110 = vmul.f32 %v2843, %v3063
  %v3111 = vmul.f32 %v2844, %v3063
  %v3112 = vmul.f32 %v2845, %v3063
  %v3113 = vmul.f32 %v2846, %v3063
  %v3114 = vmul.f32 %v2847, %v3063
  %v3115 = vmul.f32 %v2848, %v3063
  %v3116 = vmul.f32 %v2849, %v3063
  %v3117 = vmul.f32 %v2850, %v3063
  %v3118 = vmul.f32 %v2851, %v3063
  %v3119 = vmul.f32 %v2852, %v3063
  %v3120 = vmul.f32 %v2853, %v3063
  %v3121 = vmul.f32 %v2854, %v3063
  %v3122 = vmul.f32 %v2855, %v3063
  %v3123 = vmul.f32 %v2856, %v3063
  %v3124 = vmul.f32 %v2857, %v3063
  %v3125 = vmul.f32 %v2858, %v3063
  %v3126 = vlaneseq
  %v3127 = vshrl.u32 %v3126, 7
  %v3128 = vsub.s32 1, %v3127
  %v3129 = vrot.slane %v3058, %v3128
  %v3130 = vmul.f32 %v3129, 0.0
  %v3131 = vmul.f32 %v2602, %v3129
  %v3132 = vmul.f32 %v2603, %v3129
  %v3133 = vmul.f32 %v2604, %v3129
  %v3134 = vmul.f32 %v2605, %v3129
  %v3135 = vmul.f32 %v2606, %v3129
  %v3136 = vmul.f32 %v2607, %v3129
  %v3137 = vmul.f32 %v2608, %v3129
  %v3138 = vmul.f32 %v2609, %v3129
  %v3139 = vmul.f32 %v2610, %v3129
  %v3140 = vmul.f32 %v2611, %v3129
  %v3141 = vmul.f32 %v2612, %v3129
  %v3142 = vmul.f32 %v2613, %v3129
  %v3143 = vmul.f32 %v2614, %v3129
  %v3144 = vmul.f32 %v2615, %v3129
  %v3145 = vmul.f32 %v2616, %v3129
  %v3146 = vmul.f32 %v2617, %v3129
  %v3147 = vmul.f32 %v2618, %v3129
  %v3148 = vmul.f32 %v2619, %v3129
  %v3149 = vmul.f32 %v2620, %v3129
  %v3150 = vmul.f32 %v2621, %v3129
  %v3151 = vmul.f32 %v2622, %v3129
  %v3152 = vmul.f32 %v2623, %v3129
  %v3153 = vmul.f32 %v2624, %v3129
  %v3154 = vmul.f32 %v2625, %v3129
  %v3155 = vmul.f32 %v2626, %v3129
  %v3156 = vmul.f32 %v2627, %v3129
  %v3157 = vmul.f32 %v2628, %v3129
  %v3158 = vmul.f32 %v2629, %v3129
  %v3159 = vmul.f32 %v2630, %v3129
  %v3160 = vmul.f32 %v2631, %v3129
  %v3161 = vmul.f32 %v2634, %v3129
  %v3162 = vmul.f32 %v2635, %v3129
  %v3163 = vmul.f32 %v2636, %v3129
  %v3164 = vmul.f32 %v2637, %v3129
  %v3165 = vmul.f32 %v2638, %v3129
  %v3166 = vmul.f32 %v2639, %v3129
  %v3167 = vmul.f32 %v2640, %v3129
  %v3168 = vmul.f32 %v2641, %v3129
  %v3169 = vmul.f32 %v2642, %v3129
  %v3170 = vmul.f32 %v2643, %v3129
  %v3171 = vmul.f32 %v2644, %v3129
  %v3172 = vmul.f32 %v2645, %v3129
  %v3173 = vmul.f32 %v2646, %v3129
  %v3174 = vmul.f32 %v2647, %v3129
  %v3175 = vmul.f32 %v2648, %v3129
  %v3176 = vmul.f32 %v2649, %v3129
  %v3177 = vmul.f32 %v2650, %v3129
  %v3178 = vmul.f32 %v2651, %v3129
  %v3179 = vmul.f32 %v2652, %v3129
  %v3180 = vmul.f32 %v2653, %v3129
  %v3181 = vmul.f32 %v2654, %v3129
  %v3182 = vmul.f32 %v2655, %v3129
  %v3183 = vmul.f32 %v2656, %v3129
  %v3184 = vmul.f32 %v2657, %v3129
  %v3185 = vmul.f32 %v2658, %v3129
  %v3186 = vmul.f32 %v2659, %v3129
  %v3187 = vmul.f32 %v2660, %v3129
  %v3188 = vmul.f32 %v2661, %v3129
  %v3189 = vmul.f32 %v2662, %v3129
  %v3190 = vmul.f32 %v2663, %v3129
  %v3191 = vadd.f32 %v3064, %v3130
  %v3192 = vadd.f32 %v3065, %v3130
  %v3193 = vadd.f32 %v3066, %v3131
  %v3194 = vadd.f32 %v3067, %v3132
  %v3195 = vadd.f32 %v3068, %v3133
  %v3196 = vadd.f32 %v3069, %v3134
  %v3197 = vadd.f32 %v3070, %v3135
  %v3198 = vadd.f32 %v3071, %v3136
  %v3199 = vadd.f32 %v3072, %v3137
  %v3200 = vadd.f32 %v3073, %v3138
  %v3201 = vadd.f32 %v3074, %v3139
  %v3202 = vadd.f32 %v3075, %v3140
  %v3203 = vadd.f32 %v3076, %v3141
  %v3204 = vadd.f32 %v3077, %v3142
  %v3205 = vadd.f32 %v3078, %v3143
  %v3206 = vadd.f32 %v3079, %v3144
  %v3207 = vadd.f32 %v3080, %v3145
  %v3208 = vadd.f32 %v3081, %v3146
  %v3209 = vadd.f32 %v3082, %v3147
  %v3210 = vadd.f32 %v3083, %v3148
  %v3211 = vadd.f32 %v3084, %v3149
  %v3212 = vadd.f32 %v3085, %v3150
  %v3213 = vadd.f32 %v3086, %v3151
  %v3214 = vadd.f32 %v3087, %v3152
  %v3215 = vadd.f32 %v3088, %v3153
  %v3216 = vadd.f32 %v3089, %v3154
  %v3217 = vadd.f32 %v3090, %v3155
  %v3218 = vadd.f32 %v3091, %v3156
  %v3219 = vadd.f32 %v3092, %v3157
  %v3220 = vadd.f32 %v3093, %v3158
  %v3221 = vadd.f32 %v3094, %v3159
  %v3222 = vadd.f32 %v3095, %v3160
  %v3223 = vadd.f32 %v3096, %v3161
  %v3224 = vadd.f32 %v3097, %v3162
  %v3225 = vadd.f32 %v3098, %v3163
  %v3226 = vadd.f32 %v3099, %v3164
  %v3227 = vadd.f32 %v3100, %v3165
  %v3228 = vadd.f32 %v3101, %v3166
  %v3229 = vadd.f32 %v3102, %v3167
  %v3230 = vadd.f32 %v3103, %v3168
  %v3231 = vadd.f32 %v3104, %v3169
  %v3232 = vadd.f32 %v3105, %v3170
  %v3233 = vadd.f32 %v3106, %v3171
  %v3234 = vadd.f32 %v3107, %v3172
  %v3235 = vadd.f32 %v3108, %v3173
  %v3236 = vadd.f32 %v3109, %v3174
  %v3237 = vadd.f32 %v3110, %v3175
  %v3238 = vadd.f32 %v3111, %v3176
  %v3239 = vadd.f32 %v3112, %v3177
  %v3240 = vadd.f32 %v3113, %v3178
  %v3241 = vadd.f32 %v3114, %v3179
  %v3242 = vadd.f32 %v3115, %v3180
  %v3243 = vadd.f32 %v3116, %v3181
  %v3244 = vadd.f32 %v3117, %v3182
  %v3245 = vadd.f32 %v3118, %v3183
  %v3246 = vadd.f32 %v3119, %v3184
  %v3247 = vadd.f32 %v3120, %v3185
  %v3248 = vadd.f32 %v3121, %v3186
  %v3249 = vadd.f32 %v3122, %v3187
  %v3250 = vadd.f32 %v3123, %v3188
  %v3251 = vadd.f32 %v3124, %v3189
  %v3252 = vadd.f32 %v3125, %v3190
  %v3253 = vlaneseq
  %v3254 = vshrl.u32 %v3253, 7
  %v3255 = vsub.s32 2, %v3254
  %v3256 = vrot.slane %v3058, %v3255
  %v3257 = vmul.f32 %v518, %v3256
  %v3258 = vmul.f32 %v2992, %v3256
  %v3259 = vmul.f32 %v2993, %v3256
  %v3260 = vmul.f32 %v2994, %v3256
  %v3261 = vmul.f32 %v2995, %v3256
  %v3262 = vmul.f32 %v2996, %v3256
  %v3263 = vmul.f32 %v2997, %v3256
  %v3264 = vmul.f32 %v2998, %v3256
  %v3265 = vmul.f32 %v2999, %v3256
  %v3266 = vmul.f32 %v3000, %v3256
  %v3267 = vmul.f32 %v3001, %v3256
  %v3268 = vmul.f32 %v3002, %v3256
  %v3269 = vmul.f32 %v3003, %v3256
  %v3270 = vmul.f32 %v3004, %v3256
  %v3271 = vmul.f32 %v3005, %v3256
  %v3272 = vmul.f32 %v3006, %v3256
  %v3273 = vmul.f32 %v3007, %v3256
  %v3274 = vmul.f32 %v3008, %v3256
  %v3275 = vmul.f32 %v3009, %v3256
  %v3276 = vmul.f32 %v3010, %v3256
  %v3277 = vmul.f32 %v3011, %v3256
  %v3278 = vmul.f32 %v3012, %v3256
  %v3279 = vmul.f32 %v3013, %v3256
  %v3280 = vmul.f32 %v3014, %v3256
  %v3281 = vmul.f32 %v3015, %v3256
  %v3282 = vmul.f32 %v3016, %v3256
  %v3283 = vmul.f32 %v3017, %v3256
  %v3284 = vmul.f32 %v3018, %v3256
  %v3285 = vmul.f32 %v3019, %v3256
  %v3286 = vmul.f32 %v3020, %v3256
  %v3287 = vmul.f32 %v3021, %v3256
  %v3288 = vmul.f32 %v3022, %v3256
  %v3289 = vmul.f32 %v3025, %v3256
  %v3290 = vmul.f32 %v3026, %v3256
  %v3291 = vmul.f32 %v3027, %v3256
  %v3292 = vmul.f32 %v3028, %v3256
  %v3293 = vmul.f32 %v3029, %v3256
  %v3294 = vmul.f32 %v3030, %v3256
  %v3295 = vmul.f32 %v3031, %v3256
  %v3296 = vmul.f32 %v3032, %v3256
  %v3297 = vmul.f32 %v3033, %v3256
  %v3298 = vmul.f32 %v3034, %v3256
  %v3299 = vmul.f32 %v3035, %v3256
  %v3300 = vmul.f32 %v3036, %v3256
  %v3301 = vmul.f32 %v3037, %v3256
  %v3302 = vmul.f32 %v3038, %v3256
  %v3303 = vmul.f32 %v3039, %v3256
  %v3304 = vmul.f32 %v3040, %v3256
  %v3305 = vmul.f32 %v3041, %v3256
  %v3306 = vmul.f32 %v3042, %v3256
  %v3307 = vmul.f32 %v3043, %v3256
  %v3308 = vmul.f32 %v3044, %v3256
  %v3309 = vmul.f32 %v3045, %v3256
  %v3310 = vmul.f32 %v3046, %v3256
  %v3311 = vmul.f32 %v3047, %v3256
  %v3312 = vmul.f32 %v3048, %v3256
  %v3313 = vmul.f32 %v3049, %v3256
  %v3314 = vmul.f32 %v3050, %v3256
  %v3315 = vmul.f32 %v3051, %v3256
  %v3316 = vmul.f32 %v3052, %v3256
  %v3317 = vmul.f32 %v3053, %v3256
  %v3318 = vmul.f32 %v3054, %v3256
  %v3319 = vmul.f32 %v3055, %v3256
  %v3320 = vadd.f32 %v3191, %v3257
  %v3321 = vadd.f32 %v3192, %v3258
  %v3322 = vadd.f32 %v3193, %v3259
  %v3323 = vadd.f32 %v3194, %v3260
  %v3324 = vadd.f32 %v3195, %v3261
  %v3325 = vadd.f32 %v3196, %v3262
  %v3326 = vadd.f32 %v3197, %v3263
  %v3327 = vadd.f32 %v3198, %v3264
  %v3328 = vadd.f32 %v3199, %v3265
  %v3329 = vadd.f32 %v3200, %v3266
  %v3330 = vadd.f32 %v3201, %v3267
  %v3331 = vadd.f32 %v3202, %v3268
  %v3332 = vadd.f32 %v3203, %v3269
  %v3333 = vadd.f32 %v3204, %v3270
  %v3334 = vadd.f32 %v3205, %v3271
  %v3335 = vadd.f32 %v3206, %v3272
  %v3336 = vadd.f32 %v3207, %v3273
  %v3337 = vadd.f32 %v3208, %v3274
  %v3338 = vadd.f32 %v3209, %v3275
  %v3339 = vadd.f32 %v3210, %v3276
  %v3340 = vadd.f32 %v3211, %v3277
  %v3341 = vadd.f32 %v3212, %v3278
  %v3342 = vadd.f32 %v3213, %v3279
  %v3343 = vadd.f32 %v3214, %v3280
  %v3344 = vadd.f32 %v3215, %v3281
  %v3345 = vadd.f32 %v3216, %v3282
  %v3346 = vadd.f32 %v3217, %v3283
  %v3347 = vadd.f32 %v3218, %v3284
  %v3348 = vadd.f32 %v3219, %v3285
  %v3349 = vadd.f32 %v3220, %v3286
  %v3350 = vadd.f32 %v3221, %v3287
  %v3351 = vadd.f32 %v3222, %v3288
  %v3352 = vadd.f32 %v3192, %v3289
  %v3353 = vadd.f32 %v3223, %v3290
  %v3354 = vadd.f32 %v3224, %v3291
  %v3355 = vadd.f32 %v3225, %v3292
  %v3356 = vadd.f32 %v3226, %v3293
  %v3357 = vadd.f32 %v3227, %v3294
  %v3358 = vadd.f32 %v3228, %v3295
  %v3359 = vadd.f32 %v3229, %v3296
  %v3360 = vadd.f32 %v3230, %v3297
  %v3361 = vadd.f32 %v3231, %v3298
  %v3362 = vadd.f32 %v3232, %v3299
  %v3363 = vadd.f32 %v3233, %v3300
  %v3364 = vadd.f32 %v3234, %v3301
  %v3365 = vadd.f32 %v3235, %v3302
  %v3366 = vadd.f32 %v3236, %v3303
  %v3367 = vadd.f32 %v3237, %v3304
  %v3368 = vadd.f32 %v3238, %v3305
  %v3369 = vadd.f32 %v3239, %v3306
  %v3370 = vadd.f32 %v3240, %v3307
  %v3371 = vadd.f32 %v3241, %v3308
  %v3372 = vadd.f32 %v3242, %v3309
  %v3373 = vadd.f32 %v3243, %v3310
  %v3374 = vadd.f32 %v3244, %v3311
  %v3375 = vadd.f32 %v3245, %v3312
  %v3376 = vadd.f32 %v3246, %v3313
  %v3377 = vadd.f32 %v3247, %v3314
  %v3378 = vadd.f32 %v3248, %v3315
  %v3379 = vadd.f32 %v3249, %v3316
  %v3380 = vadd.f32 %v3250, %v3317
  %v3381 = vadd.f32 %v3251, %v3318
  %v3382 = vadd.f32 %v3252, %v3319
  %v3383 = vlaneseq
  %v3384 = vshrl.u32 %v3383, 7
  %v3385 = vsub.s32 3, %v3384
  %v3386 = vrot.slane %v3058, %v3385
  %v3387 = vmul.f32 %v2796, %v3386
  %v3388 = vmul.f32 %v2797, %v3386
  %v3389 = vmul.f32 %v2798, %v3386
  %v3390 = vmul.f32 %v2799, %v3386
  %v3391 = vmul.f32 %v2800, %v3386
  %v3392 = vmul.f32 %v2801, %v3386
  %v3393 = vmul.f32 %v2802, %v3386
  %v3394 = vmul.f32 %v2803, %v3386
  %v3395 = vmul.f32 %v2804, %v3386
  %v3396 = vmul.f32 %v2805, %v3386
  %v3397 = vmul.f32 %v2806, %v3386
  %v3398 = vmul.f32 %v2807, %v3386
  %v3399 = vmul.f32 %v2808, %v3386
  %v3400 = vmul.f32 %v2809, %v3386
  %v3401 = vmul.f32 %v2810, %v3386
  %v3402 = vmul.f32 %v2811, %v3386
  %v3403 = vmul.f32 %v2812, %v3386
  %v3404 = vmul.f32 %v2813, %v3386
  %v3405 = vmul.f32 %v2814, %v3386
  %v3406 = vmul.f32 %v2815, %v3386
  %v3407 = vmul.f32 %v2816, %v3386
  %v3408 = vmul.f32 %v2817, %v3386
  %v3409 = vmul.f32 %v2818, %v3386
  %v3410 = vmul.f32 %v2819, %v3386
  %v3411 = vmul.f32 %v2820, %v3386
  %v3412 = vmul.f32 %v2821, %v3386
  %v3413 = vmul.f32 %v2822, %v3386
  %v3414 = vmul.f32 %v2823, %v3386
  %v3415 = vmul.f32 %v2824, %v3386
  %v3416 = vmul.f32 %v2825, %v3386
  %v3417 = vmul.f32 %v2826, %v3386
  %v3418 = vmul.f32 %v2827, %v3386
  %v3419 = vmul.f32 %v2829, %v3386
  %v3420 = vmul.f32 %v2830, %v3386
  %v3421 = vmul.f32 %v2831, %v3386
  %v3422 = vmul.f32 %v2832, %v3386
  %v3423 = vmul.f32 %v2833, %v3386
  %v3424 = vmul.f32 %v2834, %v3386
  %v3425 = vmul.f32 %v2835, %v3386
  %v3426 = vmul.f32 %v2836, %v3386
  %v3427 = vmul.f32 %v2837, %v3386
  %v3428 = vmul.f32 %v2838, %v3386
  %v3429 = vmul.f32 %v2839, %v3386
  %v3430 = vmul.f32 %v2840, %v3386
  %v3431 = vmul.f32 %v2841, %v3386
  %v3432 = vmul.f32 %v2842, %v3386
  %v3433 = vmul.f32 %v2843, %v3386
  %v3434 = vmul.f32 %v2844, %v3386
  %v3435 = vmul.f32 %v2845, %v3386
  %v3436 = vmul.f32 %v2846, %v3386
  %v3437 = vmul.f32 %v2847, %v3386
  %v3438 = vmul.f32 %v2848, %v3386
  %v3439 = vmul.f32 %v2849, %v3386
  %v3440 = vmul.f32 %v2850, %v3386
  %v3441 = vmul.f32 %v2851, %v3386
  %v3442 = vmul.f32 %v2852, %v3386
  %v3443 = vmul.f32 %v2853, %v3386
  %v3444 = vmul.f32 %v2854, %v3386
  %v3445 = vmul.f32 %v2855, %v3386
  %v3446 = vmul.f32 %v2856, %v3386
  %v3447 = vmul.f32 %v2857, %v3386
  %v3448 = vmul.f32 %v2858, %v3386
  %v3449 = vmul.f32 %v2859, %v3386
  %v3450 = vmul.f32 %v2860, %v3386
  %v3451 = vadd.f32 %v3320, %v3387
  %v3452 = vadd.f32 %v3321, %v3388
  %v3453 = vadd.f32 %v3322, %v3389
  %v3454 = vadd.f32 %v3323, %v3390
  %v3455 = vadd.f32 %v3324, %v3391
  %v3456 = vadd.f32 %v3325, %v3392
  %v3457 = vadd.f32 %v3326, %v3393
  %v3458 = vadd.f32 %v3327, %v3394
  %v3459 = vadd.f32 %v3328, %v3395
  %v3460 = vadd.f32 %v3329, %v3396
  %v3461 = vadd.f32 %v3330, %v3397
  %v3462 = vadd.f32 %v3331, %v3398
  %v3463 = vadd.f32 %v3332, %v3399
  %v3464 = vadd.f32 %v3333, %v3400
  %v3465 = vadd.f32 %v3334, %v3401
  %v3466 = vadd.f32 %v3335, %v3402
  %v3467 = vadd.f32 %v3336, %v3403
  %v3468 = vadd.f32 %v3337, %v3404
  %v3469 = vadd.f32 %v3338, %v3405
  %v3470 = vadd.f32 %v3339, %v3406
  %v3471 = vadd.f32 %v3340, %v3407
  %v3472 = vadd.f32 %v3341, %v3408
  %v3473 = vadd.f32 %v3342, %v3409
  %v3474 = vadd.f32 %v3343, %v3410
  %v3475 = vadd.f32 %v3344, %v3411
  %v3476 = vadd.f32 %v3345, %v3412
  %v3477 = vadd.f32 %v3346, %v3413
  %v3478 = vadd.f32 %v3347, %v3414
  %v3479 = vadd.f32 %v3348, %v3415
  %v3480 = vadd.f32 %v3349, %v3416
  %v3481 = vadd.f32 %v3350, %v3417
  %v3482 = vadd.f32 %v3351, %v3418
  %v3483 = vadd.f32 %v3320, %v3419
  %v3484 = vadd.f32 %v3352, %v3420
  %v3485 = vadd.f32 %v3353, %v3421
  %v3486 = vadd.f32 %v3354, %v3422
  %v3487 = vadd.f32 %v3355, %v3423
  %v3488 = vadd.f32 %v3356, %v3424
  %v3489 = vadd.f32 %v3357, %v3425
  %v3490 = vadd.f32 %v3358, %v3426
  %v3491 = vadd.f32 %v3359, %v3427
  %v3492 = vadd.f32 %v3360, %v3428
  %v3493 = vadd.f32 %v3361, %v3429
  %v3494 = vadd.f32 %v3362, %v3430
  %v3495 = vadd.f32 %v3363, %v3431
  %v3496 = vadd.f32 %v3364, %v3432
  %v3497 = vadd.f32 %v3365, %v3433
  %v3498 = vadd.f32 %v3366, %v3434
  %v3499 = vadd.f32 %v3367, %v3435
  %v3500 = vadd.f32 %v3368, %v3436
  %v3501 = vadd.f32 %v3369, %v3437
  %v3502 = vadd.f32 %v3370, %v3438
  %v3503 = vadd.f32 %v3371, %v3439
  %v3504 = vadd.f32 %v3372, %v3440
  %v3505 = vadd.f32 %v3373, %v3441
  %v3506 = vadd.f32 %v3374, %v3442
  %v3507 = vadd.f32 %v3375, %v3443
  %v3508 = vadd.f32 %v3376, %v3444
  %v3509 = vadd.f32 %v3377, %v3445
  %v3510 = vadd.f32 %v3378, %v3446
  %v3511 = vadd.f32 %v3379, %v3447
  %v3512 = vadd.f32 %v3380, %v3448
  %v3513 = vadd.f32 %v3381, %v3449
  %v3514 = vadd.f32 %v3382, %v3450
  %v3515 = vlaneseq
  %v3516 = vshrl.u32 %v3515, 7
  %v3517 = vsub.s32 4, %v3516
  %v3518 = vrot.slane %v3058, %v3517
  %v3519 = vmul.f32 %v2602, %v3518
  %v3520 = vmul.f32 %v2603, %v3518
  %v3521 = vmul.f32 %v2604, %v3518
  %v3522 = vmul.f32 %v2605, %v3518
  %v3523 = vmul.f32 %v2606, %v3518
  %v3524 = vmul.f32 %v2607, %v3518
  %v3525 = vmul.f32 %v2608, %v3518
  %v3526 = vmul.f32 %v2609, %v3518
  %v3527 = vmul.f32 %v2610, %v3518
  %v3528 = vmul.f32 %v2611, %v3518
  %v3529 = vmul.f32 %v2612, %v3518
  %v3530 = vmul.f32 %v2613, %v3518
  %v3531 = vmul.f32 %v2614, %v3518
  %v3532 = vmul.f32 %v2615, %v3518
  %v3533 = vmul.f32 %v2616, %v3518
  %v3534 = vmul.f32 %v2617, %v3518
  %v3535 = vmul.f32 %v2618, %v3518
  %v3536 = vmul.f32 %v2619, %v3518
  %v3537 = vmul.f32 %v2620, %v3518
  %v3538 = vmul.f32 %v2621, %v3518
  %v3539 = vmul.f32 %v2622, %v3518
  %v3540 = vmul.f32 %v2623, %v3518
  %v3541 = vmul.f32 %v2624, %v3518
  %v3542 = vmul.f32 %v2625, %v3518
  %v3543 = vmul.f32 %v2626, %v3518
  %v3544 = vmul.f32 %v2627, %v3518
  %v3545 = vmul.f32 %v2628, %v3518
  %v3546 = vmul.f32 %v2629, %v3518
  %v3547 = vmul.f32 %v2630, %v3518
  %v3548 = vmul.f32 %v2631, %v3518
  %v3549 = vmul.f32 %v2632, %v3518
  %v3550 = vmul.f32 %v2633, %v3518
  %v3551 = vmul.f32 %v2634, %v3518
  %v3552 = vmul.f32 %v2635, %v3518
  %v3553 = vmul.f32 %v2636, %v3518
  %v3554 = vmul.f32 %v2637, %v3518
  %v3555 = vmul.f32 %v2638, %v3518
  %v3556 = vmul.f32 %v2639, %v3518
  %v3557 = vmul.f32 %v2640, %v3518
  %v3558 = vmul.f32 %v2641, %v3518
  %v3559 = vmul.f32 %v2642, %v3518
  %v3560 = vmul.f32 %v2643, %v3518
  %v3561 = vmul.f32 %v2644, %v3518
  %v3562 = vmul.f32 %v2645, %v3518
  %v3563 = vmul.f32 %v2646, %v3518
  %v3564 = vmul.f32 %v2647, %v3518
  %v3565 = vmul.f32 %v2648, %v3518
  %v3566 = vmul.f32 %v2649, %v3518
  %v3567 = vmul.f32 %v2650, %v3518
  %v3568 = vmul.f32 %v2651, %v3518
  %v3569 = vmul.f32 %v2652, %v3518
  %v3570 = vmul.f32 %v2653, %v3518
  %v3571 = vmul.f32 %v2654, %v3518
  %v3572 = vmul.f32 %v2655, %v3518
  %v3573 = vmul.f32 %v2656, %v3518
  %v3574 = vmul.f32 %v2657, %v3518
  %v3575 = vmul.f32 %v2658, %v3518
  %v3576 = vmul.f32 %v2659, %v3518
  %v3577 = vmul.f32 %v2660, %v3518
  %v3578 = vmul.f32 %v2661, %v3518
  %v3579 = vmul.f32 %v2662, %v3518
  %v3580 = vmul.f32 %v2663, %v3518
  %v3581 = vmul.f32 %v2664, %v3518
  %v3582 = vmul.f32 %v2665, %v3518
  %v3583 = vadd.f32 %v3451, %v3519
  %v3584 = vadd.f32 %v3452, %v3520
  %v3585 = vadd.f32 %v3453, %v3521
  %v3586 = vadd.f32 %v3454, %v3522
  %v3587 = vadd.f32 %v3455, %v3523
  %v3588 = vadd.f32 %v3456, %v3524
  %v3589 = vadd.f32 %v3457, %v3525
  %v3590 = vadd.f32 %v3458, %v3526
  %v3591 = vadd.f32 %v3459, %v3527
  %v3592 = vadd.f32 %v3460, %v3528
  %v3593 = vadd.f32 %v3461, %v3529
  %v3594 = vadd.f32 %v3462, %v3530
  %v3595 = vadd.f32 %v3463, %v3531
  %v3596 = vadd.f32 %v3464, %v3532
  %v3597 = vadd.f32 %v3465, %v3533
  %v3598 = vadd.f32 %v3466, %v3534
  %v3599 = vadd.f32 %v3467, %v3535
  %v3600 = vadd.f32 %v3468, %v3536
  %v3601 = vadd.f32 %v3469, %v3537
  %v3602 = vadd.f32 %v3470, %v3538
  %v3603 = vadd.f32 %v3471, %v3539
  %v3604 = vadd.f32 %v3472, %v3540
  %v3605 = vadd.f32 %v3473, %v3541
  %v3606 = vadd.f32 %v3474, %v3542
  %v3607 = vadd.f32 %v3475, %v3543
  %v3608 = vadd.f32 %v3476, %v3544
  %v3609 = vadd.f32 %v3477, %v3545
  %v3610 = vadd.f32 %v3478, %v3546
  %v3611 = vadd.f32 %v3479, %v3547
  %v3612 = vadd.f32 %v3480, %v3548
  %v3613 = vadd.f32 %v3481, %v3549
  %v3614 = vadd.f32 %v3482, %v3550
  %v3615 = vadd.f32 %v3483, %v3551
  %v3616 = vadd.f32 %v3484, %v3552
  %v3617 = vadd.f32 %v3485, %v3553
  %v3618 = vadd.f32 %v3486, %v3554
  %v3619 = vadd.f32 %v3487, %v3555
  %v3620 = vadd.f32 %v3488, %v3556
  %v3621 = vadd.f32 %v3489, %v3557
  %v3622 = vadd.f32 %v3490, %v3558
  %v3623 = vadd.f32 %v3491, %v3559
  %v3624 = vadd.f32 %v3492, %v3560
  %v3625 = vadd.f32 %v3493, %v3561
  %v3626 = vadd.f32 %v3494, %v3562
  %v3627 = vadd.f32 %v3495, %v3563
  %v3628 = vadd.f32 %v3496, %v3564
  %v3629 = vadd.f32 %v3497, %v3565
  %v3630 = vadd.f32 %v3498, %v3566
  %v3631 = vadd.f32 %v3499, %v3567
  %v3632 = vadd.f32 %v3500, %v3568
  %v3633 = vadd.f32 %v3501, %v3569
  %v3634 = vadd.f32 %v3502, %v3570
  %v3635 = vadd.f32 %v3503, %v3571
  %v3636 = vadd.f32 %v3504, %v3572
  %v3637 = vadd.f32 %v3505, %v3573
  %v3638 = vadd.f32 %v3506, %v3574
  %v3639 = vadd.f32 %v3507, %v3575
  %v3640 = vadd.f32 %v3508, %v3576
  %v3641 = vadd.f32 %v3509, %v3577
  %v3642 = vadd.f32 %v3510, %v3578
  %v3643 = vadd.f32 %v3511, %v3579
  %v3644 = vadd.f32 %v3512, %v3580
  %v3645 = vadd.f32 %v3513, %v3581
  %v3646 = vadd.f32 %v3514, %v3582
  %v3647 = vlaneseq
  %v3648 = vshrl.u32 %v3647, 7
  %v3649 = vsub.s32 5, %v3648
  %v3650 = vrot.slane %v3058, %v3649
  %v3651 = vmul.f32 %v2993, %v3650
  %v3652 = vmul.f32 %v2994, %v3650
  %v3653 = vmul.f32 %v2995, %v3650
  %v3654 = vmul.f32 %v2996, %v3650
  %v3655 = vmul.f32 %v2997, %v3650
  %v3656 = vmul.f32 %v2998, %v3650
  %v3657 = vmul.f32 %v2999, %v3650
  %v3658 = vmul.f32 %v3000, %v3650
  %v3659 = vmul.f32 %v3001, %v3650
  %v3660 = vmul.f32 %v3002, %v3650
  %v3661 = vmul.f32 %v3003, %v3650
  %v3662 = vmul.f32 %v3004, %v3650
  %v3663 = vmul.f32 %v3005, %v3650
  %v3664 = vmul.f32 %v3006, %v3650
  %v3665 = vmul.f32 %v3007, %v3650
  %v3666 = vmul.f32 %v3008, %v3650
  %v3667 = vmul.f32 %v3009, %v3650
  %v3668 = vmul.f32 %v3010, %v3650
  %v3669 = vmul.f32 %v3011, %v3650
  %v3670 = vmul.f32 %v3012, %v3650
  %v3671 = vmul.f32 %v3013, %v3650
  %v3672 = vmul.f32 %v3014, %v3650
  %v3673 = vmul.f32 %v3015, %v3650
  %v3674 = vmul.f32 %v3016, %v3650
  %v3675 = vmul.f32 %v3017, %v3650
  %v3676 = vmul.f32 %v3018, %v3650
  %v3677 = vmul.f32 %v3019, %v3650
  %v3678 = vmul.f32 %v3020, %v3650
  %v3679 = vmul.f32 %v3021, %v3650
  %v3680 = vmul.f32 %v3022, %v3650
  %v3681 = vmul.f32 %v3023, %v3650
  %v3682 = vmul.f32 %v3024, %v3650
  %v3683 = vmul.f32 %v3026, %v3650
  %v3684 = vmul.f32 %v3027, %v3650
  %v3685 = vmul.f32 %v3028, %v3650
  %v3686 = vmul.f32 %v3029, %v3650
  %v3687 = vmul.f32 %v3030, %v3650
  %v3688 = vmul.f32 %v3031, %v3650
  %v3689 = vmul.f32 %v3032, %v3650
  %v3690 = vmul.f32 %v3033, %v3650
  %v3691 = vmul.f32 %v3034, %v3650
  %v3692 = vmul.f32 %v3035, %v3650
  %v3693 = vmul.f32 %v3036, %v3650
  %v3694 = vmul.f32 %v3037, %v3650
  %v3695 = vmul.f32 %v3038, %v3650
  %v3696 = vmul.f32 %v3039, %v3650
  %v3697 = vmul.f32 %v3040, %v3650
  %v3698 = vmul.f32 %v3041, %v3650
  %v3699 = vmul.f32 %v3042, %v3650
  %v3700 = vmul.f32 %v3043, %v3650
  %v3701 = vmul.f32 %v3044, %v3650
  %v3702 = vmul.f32 %v3045, %v3650
  %v3703 = vmul.f32 %v3046, %v3650
  %v3704 = vmul.f32 %v3047, %v3650
  %v3705 = vmul.f32 %v3048, %v3650
  %v3706 = vmul.f32 %v3049, %v3650
  %v3707 = vmul.f32 %v3050, %v3650
  %v3708 = vmul.f32 %v3051, %v3650
  %v3709 = vmul.f32 %v3052, %v3650
  %v3710 = vmul.f32 %v3053, %v3650
  %v3711 = vmul.f32 %v3054, %v3650
  %v3712 = vmul.f32 %v3055, %v3650
  %v3713 = vmul.f32 %v3056, %v3650
  %v3714 = vmul.f32 %v3057, %v3650
  %v3715 = vadd.f32 %v3583, %v3651
  %v3716 = vadd.f32 %v3584, %v3652
  %v3717 = vadd.f32 %v3585, %v3653
  %v3718 = vadd.f32 %v3586, %v3654
  %v3719 = vadd.f32 %v3587, %v3655
  %v3720 = vadd.f32 %v3588, %v3656
  %v3721 = vadd.f32 %v3589, %v3657
  %v3722 = vadd.f32 %v3590, %v3658
  %v3723 = vadd.f32 %v3591, %v3659
  %v3724 = vadd.f32 %v3592, %v3660
  %v3725 = vadd.f32 %v3593, %v3661
  %v3726 = vadd.f32 %v3594, %v3662
  %v3727 = vadd.f32 %v3595, %v3663
  %v3728 = vadd.f32 %v3596, %v3664
  %v3729 = vadd.f32 %v3597, %v3665
  %v3730 = vadd.f32 %v3598, %v3666
  %v3731 = vadd.f32 %v3599, %v3667
  %v3732 = vadd.f32 %v3600, %v3668
  %v3733 = vadd.f32 %v3601, %v3669
  %v3734 = vadd.f32 %v3602, %v3670
  %v3735 = vadd.f32 %v3603, %v3671
  %v3736 = vadd.f32 %v3604, %v3672
  %v3737 = vadd.f32 %v3605, %v3673
  %v3738 = vadd.f32 %v3606, %v3674
  %v3739 = vadd.f32 %v3607, %v3675
  %v3740 = vadd.f32 %v3608, %v3676
  %v3741 = vadd.f32 %v3609, %v3677
  %v3742 = vadd.f32 %v3610, %v3678
  %v3743 = vadd.f32 %v3611, %v3679
  %v3744 = vadd.f32 %v3612, %v3680
  %v3745 = vadd.f32 %v3613, %v3681
  %v3746 = vadd.f32 %v3614, %v3682
  %v3747 = vadd.f32 %v3615, %v3683
  %v3748 = vadd.f32 %v3616, %v3684
  %v3749 = vadd.f32 %v3617, %v3685
  %v3750 = vadd.f32 %v3618, %v3686
  %v3751 = vadd.f32 %v3619, %v3687
  %v3752 = vadd.f32 %v3620, %v3688
  %v3753 = vadd.f32 %v3621, %v3689
  %v3754 = vadd.f32 %v3622, %v3690
  %v3755 = vadd.f32 %v3623, %v3691
  %v3756 = vadd.f32 %v3624, %v3692
  %v3757 = vadd.f32 %v3625, %v3693
  %v3758 = vadd.f32 %v3626, %v3694
  %v3759 = vadd.f32 %v3627, %v3695
  %v3760 = vadd.f32 %v3628, %v3696
  %v3761 = vadd.f32 %v3629, %v3697
  %v3762 = vadd.f32 %v3630, %v3698
  %v3763 = vadd.f32 %v3631, %v3699
  %v3764 = vadd.f32 %v3632, %v3700
  %v3765 = vadd.f32 %v3633, %v3701
  %v3766 = vadd.f32 %v3634, %v3702
  %v3767 = vadd.f32 %v3635, %v3703
  %v3768 = vadd.f32 %v3636, %v3704
  %v3769 = vadd.f32 %v3637, %v3705
  %v3770 = vadd.f32 %v3638, %v3706
  %v3771 = vadd.f32 %v3639, %v3707
  %v3772 = vadd.f32 %v3640, %v3708
  %v3773 = vadd.f32 %v3641, %v3709
  %v3774 = vadd.f32 %v3642, %v3710
  %v3775 = vadd.f32 %v3643, %v3711
  %v3776 = vadd.f32 %v3644, %v3712
  %v3777 = vadd.f32 %v3645, %v3713
  %v3778 = vadd.f32 %v3646, %v3714
  %v3779 = vlaneseq
  %v3780 = vshrl.u32 %v3779, 7
  %v3781 = vsub.s32 6, %v3780
  %v3782 = vrot.slane %v3058, %v3781
  %v3783 = vmul.f32 %v2798, %v3782
  %v3784 = vmul.f32 %v2799, %v3782
  %v3785 = vmul.f32 %v2800, %v3782
  %v3786 = vmul.f32 %v2801, %v3782
  %v3787 = vmul.f32 %v2802, %v3782
  %v3788 = vmul.f32 %v2803, %v3782
  %v3789 = vmul.f32 %v2804, %v3782
  %v3790 = vmul.f32 %v2805, %v3782
  %v3791 = vmul.f32 %v2806, %v3782
  %v3792 = vmul.f32 %v2807, %v3782
  %v3793 = vmul.f32 %v2808, %v3782
  %v3794 = vmul.f32 %v2809, %v3782
  %v3795 = vmul.f32 %v2810, %v3782
  %v3796 = vmul.f32 %v2811, %v3782
  %v3797 = vmul.f32 %v2812, %v3782
  %v3798 = vmul.f32 %v2813, %v3782
  %v3799 = vmul.f32 %v2814, %v3782
  %v3800 = vmul.f32 %v2815, %v3782
  %v3801 = vmul.f32 %v2816, %v3782
  %v3802 = vmul.f32 %v2817, %v3782
  %v3803 = vmul.f32 %v2818, %v3782
  %v3804 = vmul.f32 %v2819, %v3782
  %v3805 = vmul.f32 %v2820, %v3782
  %v3806 = vmul.f32 %v2821, %v3782
  %v3807 = vmul.f32 %v2822, %v3782
  %v3808 = vmul.f32 %v2823, %v3782
  %v3809 = vmul.f32 %v2824, %v3782
  %v3810 = vmul.f32 %v2825, %v3782
  %v3811 = vmul.f32 %v2826, %v3782
  %v3812 = vmul.f32 %v2827, %v3782
  %v3813 = vmul.f32 %v2828, %v3782
  %v3814 = vmul.f32 %v316, %v3782
  %v3815 = vmul.f32 %v2831, %v3782
  %v3816 = vmul.f32 %v2832, %v3782
  %v3817 = vmul.f32 %v2833, %v3782
  %v3818 = vmul.f32 %v2834, %v3782
  %v3819 = vmul.f32 %v2835, %v3782
  %v3820 = vmul.f32 %v2836, %v3782
  %v3821 = vmul.f32 %v2837, %v3782
  %v3822 = vmul.f32 %v2838, %v3782
  %v3823 = vmul.f32 %v2839, %v3782
  %v3824 = vmul.f32 %v2840, %v3782
  %v3825 = vmul.f32 %v2841, %v3782
  %v3826 = vmul.f32 %v2842, %v3782
  %v3827 = vmul.f32 %v2843, %v3782
  %v3828 = vmul.f32 %v2844, %v3782
  %v3829 = vmul.f32 %v2845, %v3782
  %v3830 = vmul.f32 %v2846, %v3782
  %v3831 = vmul.f32 %v2847, %v3782
  %v3832 = vmul.f32 %v2848, %v3782
  %v3833 = vmul.f32 %v2849, %v3782
  %v3834 = vmul.f32 %v2850, %v3782
  %v3835 = vmul.f32 %v2851, %v3782
  %v3836 = vmul.f32 %v2852, %v3782
  %v3837 = vmul.f32 %v2853, %v3782
  %v3838 = vmul.f32 %v2854, %v3782
  %v3839 = vmul.f32 %v2855, %v3782
  %v3840 = vmul.f32 %v2856, %v3782
  %v3841 = vmul.f32 %v2857, %v3782
  %v3842 = vmul.f32 %v2858, %v3782
  %v3843 = vmul.f32 %v2859, %v3782
  %v3844 = vmul.f32 %v2860, %v3782
  %v3845 = vmul.f32 %v2861, %v3782
  %v3846 = vadd.f32 %v3715, %v3783
  %v3847 = vadd.f32 %v3716, %v3784
  %v3848 = vadd.f32 %v3717, %v3785
  %v3849 = vadd.f32 %v3718, %v3786
  %v3850 = vadd.f32 %v3719, %v3787
  %v3851 = vadd.f32 %v3720, %v3788
  %v3852 = vadd.f32 %v3721, %v3789
  %v3853 = vadd.f32 %v3722, %v3790
  %v3854 = vadd.f32 %v3723, %v3791
  %v3855 = vadd.f32 %v3724, %v3792
  %v3856 = vadd.f32 %v3725, %v3793
  %v3857 = vadd.f32 %v3726, %v3794
  %v3858 = vadd.f32 %v3727, %v3795
  %v3859 = vadd.f32 %v3728, %v3796
  %v3860 = vadd.f32 %v3729, %v3797
  %v3861 = vadd.f32 %v3730, %v3798
  %v3862 = vadd.f32 %v3731, %v3799
  %v3863 = vadd.f32 %v3732, %v3800
  %v3864 = vadd.f32 %v3733, %v3801
  %v3865 = vadd.f32 %v3734, %v3802
  %v3866 = vadd.f32 %v3735, %v3803
  %v3867 = vadd.f32 %v3736, %v3804
  %v3868 = vadd.f32 %v3737, %v3805
  %v3869 = vadd.f32 %v3738, %v3806
  %v3870 = vadd.f32 %v3739, %v3807
  %v3871 = vadd.f32 %v3740, %v3808
  %v3872 = vadd.f32 %v3741, %v3809
  %v3873 = vadd.f32 %v3742, %v3810
  %v3874 = vadd.f32 %v3743, %v3811
  %v3875 = vadd.f32 %v3744, %v3812
  %v3876 = vadd.f32 %v3745, %v3813
  %v3877 = vadd.f32 %v3746, %v3814
  %v3878 = vadd.f32 %v3747, %v3815
  %v3879 = vadd.f32 %v3748, %v3816
  %v3880 = vadd.f32 %v3749, %v3817
  %v3881 = vadd.f32 %v3750, %v3818
  %v3882 = vadd.f32 %v3751, %v3819
  %v3883 = vadd.f32 %v3752, %v3820
  %v3884 = vadd.f32 %v3753, %v3821
  %v3885 = vadd.f32 %v3754, %v3822
  %v3886 = vadd.f32 %v3755, %v3823
  %v3887 = vadd.f32 %v3756, %v3824
  %v3888 = vadd.f32 %v3757, %v3825
  %v3889 = vadd.f32 %v3758, %v3826
  %v3890 = vadd.f32 %v3759, %v3827
  %v3891 = vadd.f32 %v3760, %v3828
  %v3892 = vadd.f32 %v3761, %v3829
  %v3893 = vadd.f32 %v3762, %v3830
  %v3894 = vadd.f32 %v3763, %v3831
  %v3895 = vadd.f32 %v3764, %v3832
  %v3896 = vadd.f32 %v3765, %v3833
  %v3897 = vadd.f32 %v3766, %v3834
  %v3898 = vadd.f32 %v3767, %v3835
  %v3899 = vadd.f32 %v3768, %v3836
  %v3900 = vadd.f32 %v3769, %v3837
  %v3901 = vadd.f32 %v3770, %v3838
  %v3902 = vadd.f32 %v3771, %v3839
  %v3903 = vadd.f32 %v3772, %v3840
  %v3904 = vadd.f32 %v3773, %v3841
  %v3905 = vadd.f32 %v3774, %v3842
  %v3906 = vadd.f32 %v3775, %v3843
  %v3907 = vadd.f32 %v3776, %v3844
  %v3908 = vadd.f32 %v3777, %v3845
  %v3909 = vadd.f32 %v3778, %v3814
  %v3910 = vlaneseq
  %v3911 = vshrl.u32 %v3910, 7
  %v3912 = vsub.s32 7, %v3911
  %v3913 = vrot.slane %v3058, %v3912
  %v3914 = vmul.f32 %v2604, %v3913
  %v3915 = vmul.f32 %v2605, %v3913
  %v3916 = vmul.f32 %v2606, %v3913
  %v3917 = vmul.f32 %v2607, %v3913
  %v3918 = vmul.f32 %v2608, %v3913
  %v3919 = vmul.f32 %v2609, %v3913
  %v3920 = vmul.f32 %v2610, %v3913
  %v3921 = vmul.f32 %v2611, %v3913
  %v3922 = vmul.f32 %v2612, %v3913
  %v3923 = vmul.f32 %v2613, %v3913
  %v3924 = vmul.f32 %v2614, %v3913
  %v3925 = vmul.f32 %v2615, %v3913
  %v3926 = vmul.f32 %v2616, %v3913
  %v3927 = vmul.f32 %v2617, %v3913
  %v3928 = vmul.f32 %v2618, %v3913
  %v3929 = vmul.f32 %v2619, %v3913
  %v3930 = vmul.f32 %v2620, %v3913
  %v3931 = vmul.f32 %v2621, %v3913
  %v3932 = vmul.f32 %v2622, %v3913
  %v3933 = vmul.f32 %v2623, %v3913
  %v3934 = vmul.f32 %v2624, %v3913
  %v3935 = vmul.f32 %v2625, %v3913
  %v3936 = vmul.f32 %v2626, %v3913
  %v3937 = vmul.f32 %v2627, %v3913
  %v3938 = vmul.f32 %v2628, %v3913
  %v3939 = vmul.f32 %v2629, %v3913
  %v3940 = vmul.f32 %v2630, %v3913
  %v3941 = vmul.f32 %v2631, %v3913
  %v3942 = vmul.f32 %v2632, %v3913
  %v3943 = vmul.f32 %v2633, %v3913
  %v3944 = vmul.f32 %v3913, 0.0
  %v3945 = vmul.f32 %v2636, %v3913
  %v3946 = vmul.f32 %v2637, %v3913
  %v3947 = vmul.f32 %v2638, %v3913
  %v3948 = vmul.f32 %v2639, %v3913
  %v3949 = vmul.f32 %v2640, %v3913
  %v3950 = vmul.f32 %v2641, %v3913
  %v3951 = vmul.f32 %v2642, %v3913
  %v3952 = vmul.f32 %v2643, %v3913
  %v3953 = vmul.f32 %v2644, %v3913
  %v3954 = vmul.f32 %v2645, %v3913
  %v3955 = vmul.f32 %v2646, %v3913
  %v3956 = vmul.f32 %v2647, %v3913
  %v3957 = vmul.f32 %v2648, %v3913
  %v3958 = vmul.f32 %v2649, %v3913
  %v3959 = vmul.f32 %v2650, %v3913
  %v3960 = vmul.f32 %v2651, %v3913
  %v3961 = vmul.f32 %v2652, %v3913
  %v3962 = vmul.f32 %v2653, %v3913
  %v3963 = vmul.f32 %v2654, %v3913
  %v3964 = vmul.f32 %v2655, %v3913
  %v3965 = vmul.f32 %v2656, %v3913
  %v3966 = vmul.f32 %v2657, %v3913
  %v3967 = vmul.f32 %v2658, %v3913
  %v3968 = vmul.f32 %v2659, %v3913
  %v3969 = vmul.f32 %v2660, %v3913
  %v3970 = vmul.f32 %v2661, %v3913
  %v3971 = vmul.f32 %v2662, %v3913
  %v3972 = vmul.f32 %v2663, %v3913
  %v3973 = vmul.f32 %v2664, %v3913
  %v3974 = vmul.f32 %v2665, %v3913
  %v3975 = vadd.f32 %v3846, %v3914
  %v3976 = vadd.f32 %v3847, %v3915
  %v3977 = vadd.f32 %v3848, %v3916
  %v3978 = vadd.f32 %v3849, %v3917
  %v3979 = vadd.f32 %v3850, %v3918
  %v3980 = vadd.f32 %v3851, %v3919
  %v3981 = vadd.f32 %v3852, %v3920
  %v3982 = vadd.f32 %v3853, %v3921
  %v3983 = vadd.f32 %v3854, %v3922
  %v3984 = vadd.f32 %v3855, %v3923
  %v3985 = vadd.f32 %v3856, %v3924
  %v3986 = vadd.f32 %v3857, %v3925
  %v3987 = vadd.f32 %v3858, %v3926
  %v3988 = vadd.f32 %v3859, %v3927
  %v3989 = vadd.f32 %v3860, %v3928
  %v3990 = vadd.f32 %v3861, %v3929
  %v3991 = vadd.f32 %v3862, %v3930
  %v3992 = vadd.f32 %v3863, %v3931
  %v3993 = vadd.f32 %v3864, %v3932
  %v3994 = vadd.f32 %v3865, %v3933
  %v3995 = vadd.f32 %v3866, %v3934
  %v3996 = vadd.f32 %v3867, %v3935
  %v3997 = vadd.f32 %v3868, %v3936
  %v3998 = vadd.f32 %v3869, %v3937
  %v3999 = vadd.f32 %v3870, %v3938
  %v4000 = vadd.f32 %v3871, %v3939
  %v4001 = vadd.f32 %v3872, %v3940
  %v4002 = vadd.f32 %v3873, %v3941
  %v4003 = vadd.f32 %v3874, %v3942
  %v4004 = vadd.f32 %v3875, %v3943
  %v4005 = vadd.f32 %v3876, %v3944
  %v4006 = vadd.f32 %v3877, %v3944
  %v4007 = vadd.f32 %v3878, %v3945
  %v4008 = vadd.f32 %v3879, %v3946
  %v4009 = vadd.f32 %v3880, %v3947
  %v4010 = vadd.f32 %v3881, %v3948
  %v4011 = vadd.f32 %v3882, %v3949
  %v4012 = vadd.f32 %v3883, %v3950
  %v4013 = vadd.f32 %v3884, %v3951
  %v4014 = vadd.f32 %v3885, %v3952
  %v4015 = vadd.f32 %v3886, %v3953
  %v4016 = vadd.f32 %v3887, %v3954
  %v4017 = vadd.f32 %v3888, %v3955
  %v4018 = vadd.f32 %v3889, %v3956
  %v4019 = vadd.f32 %v3890, %v3957
  %v4020 = vadd.f32 %v3891, %v3958
  %v4021 = vadd.f32 %v3892, %v3959
  %v4022 = vadd.f32 %v3893, %v3960
  %v4023 = vadd.f32 %v3894, %v3961
  %v4024 = vadd.f32 %v3895, %v3962
  %v4025 = vadd.f32 %v3896, %v3963
  %v4026 = vadd.f32 %v3897, %v3964
  %v4027 = vadd.f32 %v3898, %v3965
  %v4028 = vadd.f32 %v3899, %v3966
  %v4029 = vadd.f32 %v3900, %v3967
  %v4030 = vadd.f32 %v3901, %v3968
  %v4031 = vadd.f32 %v3902, %v3969
  %v4032 = vadd.f32 %v3903, %v3970
  %v4033 = vadd.f32 %v3904, %v3971
  %v4034 = vadd.f32 %v3905, %v3972
  %v4035 = vadd.f32 %v3906, %v3973
  %v4036 = vadd.f32 %v3907, %v3974
  %v4037 = vadd.f32 %v3908, %v3944
  %v4038 = vadd.f32 %v3909, %v3944
  %v4039 = vlaneseq
  %v4040 = vshrl.u32 %v4039, 7
  %v4041 = vsub.s32 0, %v4040
  %v4042 = vrot.slane %v3059, %v4041
  %v4043 = vmul.f32 %v2995, %v4042
  %v4044 = vmul.f32 %v2996, %v4042
  %v4045 = vmul.f32 %v2997, %v4042
  %v4046 = vmul.f32 %v2998, %v4042
  %v4047 = vmul.f32 %v2999, %v4042
  %v4048 = vmul.f32 %v3000, %v4042
  %v4049 = vmul.f32 %v3001, %v4042
  %v4050 = vmul.f32 %v3002, %v4042
  %v4051 = vmul.f32 %v3003, %v4042
  %v4052 = vmul.f32 %v3004, %v4042
  %v4053 = vmul.f32 %v3005, %v4042
  %v4054 = vmul.f32 %v3006, %v4042
  %v4055 = vmul.f32 %v3007, %v4042
  %v4056 = vmul.f32 %v3008, %v4042
  %v4057 = vmul.f32 %v3009, %v4042
  %v4058 = vmul.f32 %v3010, %v4042
  %v4059 = vmul.f32 %v3011, %v4042
  %v4060 = vmul.f32 %v3012, %v4042
  %v4061 = vmul.f32 %v3013, %v4042
  %v4062 = vmul.f32 %v3014, %v4042
  %v4063 = vmul.f32 %v3015, %v4042
  %v4064 = vmul.f32 %v3016, %v4042
  %v4065 = vmul.f32 %v3017, %v4042
  %v4066 = vmul.f32 %v3018, %v4042
  %v4067 = vmul.f32 %v3019, %v4042
  %v4068 = vmul.f32 %v3020, %v4042
  %v4069 = vmul.f32 %v3021, %v4042
  %v4070 = vmul.f32 %v3022, %v4042
  %v4071 = vmul.f32 %v3023, %v4042
  %v4072 = vmul.f32 %v3024, %v4042
  %v4073 = vmul.f32 %v518, %v4042
  %v4074 = vmul.f32 %v552, %v4042
  %v4075 = vmul.f32 %v3028, %v4042
  %v4076 = vmul.f32 %v3029, %v4042
  %v4077 = vmul.f32 %v3030, %v4042
  %v4078 = vmul.f32 %v3031, %v4042
  %v4079 = vmul.f32 %v3032, %v4042
  %v4080 = vmul.f32 %v3033, %v4042
  %v4081 = vmul.f32 %v3034, %v4042
  %v4082 = vmul.f32 %v3035, %v4042
  %v4083 = vmul.f32 %v3036, %v4042
  %v4084 = vmul.f32 %v3037, %v4042
  %v4085 = vmul.f32 %v3038, %v4042
  %v4086 = vmul.f32 %v3039, %v4042
  %v4087 = vmul.f32 %v3040, %v4042
  %v4088 = vmul.f32 %v3041, %v4042
  %v4089 = vmul.f32 %v3042, %v4042
  %v4090 = vmul.f32 %v3043, %v4042
  %v4091 = vmul.f32 %v3044, %v4042
  %v4092 = vmul.f32 %v3045, %v4042
  %v4093 = vmul.f32 %v3046, %v4042
  %v4094 = vmul.f32 %v3047, %v4042
  %v4095 = vmul.f32 %v3048, %v4042
  %v4096 = vmul.f32 %v3049, %v4042
  %v4097 = vmul.f32 %v3050, %v4042
  %v4098 = vmul.f32 %v3051, %v4042
  %v4099 = vmul.f32 %v3052, %v4042
  %v4100 = vmul.f32 %v3053, %v4042
  %v4101 = vmul.f32 %v3054, %v4042
  %v4102 = vmul.f32 %v3055, %v4042
  %v4103 = vmul.f32 %v3056, %v4042
  %v4104 = vmul.f32 %v3057, %v4042
  %v4105 = vadd.f32 %v3975, %v4043
  %v4106 = vadd.f32 %v3976, %v4044
  %v4107 = vadd.f32 %v3977, %v4045
  %v4108 = vadd.f32 %v3978, %v4046
  %v4109 = vadd.f32 %v3979, %v4047
  %v4110 = vadd.f32 %v3980, %v4048
  %v4111 = vadd.f32 %v3981, %v4049
  %v4112 = vadd.f32 %v3982, %v4050
  %v4113 = vadd.f32 %v3983, %v4051
  %v4114 = vadd.f32 %v3984, %v4052
  %v4115 = vadd.f32 %v3985, %v4053
  %v4116 = vadd.f32 %v3986, %v4054
  %v4117 = vadd.f32 %v3987, %v4055
  %v4118 = vadd.f32 %v3988, %v4056
  %v4119 = vadd.f32 %v3989, %v4057
  %v4120 = vadd.f32 %v3990, %v4058
  %v4121 = vadd.f32 %v3991, %v4059
  %v4122 = vadd.f32 %v3992, %v4060
  %v4123 = vadd.f32 %v3993, %v4061
  %v4124 = vadd.f32 %v3994, %v4062
  %v4125 = vadd.f32 %v3995, %v4063
  %v4126 = vadd.f32 %v3996, %v4064
  %v4127 = vadd.f32 %v3997, %v4065
  %v4128 = vadd.f32 %v3998, %v4066
  %v4129 = vadd.f32 %v3999, %v4067
  %v4130 = vadd.f32 %v4000, %v4068
  %v4131 = vadd.f32 %v4001, %v4069
  %v4132 = vadd.f32 %v4002, %v4070
  %v4133 = vadd.f32 %v4003, %v4071
  %v4134 = vadd.f32 %v4004, %v4072
  %v4135 = vadd.f32 %v4005, %v4073
  %v4136 = vadd.f32 %v4006, %v4074
  %v4137 = vadd.f32 %v4007, %v4075
  %v4138 = vadd.f32 %v4008, %v4076
  %v4139 = vadd.f32 %v4009, %v4077
  %v4140 = vadd.f32 %v4010, %v4078
  %v4141 = vadd.f32 %v4011, %v4079
  %v4142 = vadd.f32 %v4012, %v4080
  %v4143 = vadd.f32 %v4013, %v4081
  %v4144 = vadd.f32 %v4014, %v4082
  %v4145 = vadd.f32 %v4015, %v4083
  %v4146 = vadd.f32 %v4016, %v4084
  %v4147 = vadd.f32 %v4017, %v4085
  %v4148 = vadd.f32 %v4018, %v4086
  %v4149 = vadd.f32 %v4019, %v4087
  %v4150 = vadd.f32 %v4020, %v4088
  %v4151 = vadd.f32 %v4021, %v4089
  %v4152 = vadd.f32 %v4022, %v4090
  %v4153 = vadd.f32 %v4023, %v4091
  %v4154 = vadd.f32 %v4024, %v4092
  %v4155 = vadd.f32 %v4025, %v4093
  %v4156 = vadd.f32 %v4026, %v4094
  %v4157 = vadd.f32 %v4027, %v4095
  %v4158 = vadd.f32 %v4028, %v4096
  %v4159 = vadd.f32 %v4029, %v4097
  %v4160 = vadd.f32 %v4030, %v4098
  %v4161 = vadd.f32 %v4031, %v4099
  %v4162 = vadd.f32 %v4032, %v4100
  %v4163 = vadd.f32 %v4033, %v4101
  %v4164 = vadd.f32 %v4034, %v4102
  %v4165 = vadd.f32 %v4035, %v4103
  %v4166 = vadd.f32 %v4036, %v4104
  %v4167 = vadd.f32 %v4037, %v4073
  %v4168 = vadd.f32 %v4038, %v4074
  %v4169 = vpack.c.bf16 %v4106, %v4105
  %v4170 = vpack.c.bf16 %v4108, %v4107
  %v4171 = vpack.c.bf16 %v4110, %v4109
  %v4172 = vpack.c.bf16 %v4112, %v4111
  %v4173 = vpack.c.bf16 %v4114, %v4113
  %v4174 = vpack.c.bf16 %v4116, %v4115
  %v4175 = vpack.c.bf16 %v4118, %v4117
  %v4176 = vpack.c.bf16 %v4120, %v4119
  %v4177 = vpack.c.bf16 %v4122, %v4121
  %v4178 = vpack.c.bf16 %v4124, %v4123
  %v4179 = vpack.c.bf16 %v4126, %v4125
  %v4180 = vpack.c.bf16 %v4128, %v4127
  %v4181 = vpack.c.bf16 %v4130, %v4129
  %v4182 = vpack.c.bf16 %v4132, %v4131
  %v4183 = vpack.c.bf16 %v4134, %v4133
  %v4184 = vpack.c.bf16 %v4136, %v4135
  %v4185 = vpack.c.bf16 %v4138, %v4137
  %v4186 = vpack.c.bf16 %v4140, %v4139
  %v4187 = vpack.c.bf16 %v4142, %v4141
  %v4188 = vpack.c.bf16 %v4144, %v4143
  %v4189 = vpack.c.bf16 %v4146, %v4145
  %v4190 = vpack.c.bf16 %v4148, %v4147
  %v4191 = vpack.c.bf16 %v4150, %v4149
  %v4192 = vpack.c.bf16 %v4152, %v4151
  %v4193 = vpack.c.bf16 %v4154, %v4153
  %v4194 = vpack.c.bf16 %v4156, %v4155
  %v4195 = vpack.c.bf16 %v4158, %v4157
  %v4196 = vpack.c.bf16 %v4160, %v4159
  %v4197 = vpack.c.bf16 %v4162, %v4161
  %v4198 = vpack.c.bf16 %v4164, %v4163
  %v4199 = vpack.c.bf16 %v4166, %v4165
  %v4200 = vpack.c.bf16 %v4168, %v4167
  %v4201 = vld [vmem:[%s6] sm:$0xff]
  %v4202 = vpack.c.bf16 %v4201, %v4201
  %v4204 = vsel %vm1731, %v4169, 0
  %v4207 = vsel %vm1731, %v4170, 0
  %v4210 = vsel %vm1731, %v4171, 0
  %v4213 = vsel %vm1731, %v4172, 0
  %v4216 = vsel %vm1731, %v4173, 0
  %v4219 = vsel %vm1731, %v4174, 0
  %v4222 = vsel %vm1731, %v4175, 0
  %v4225 = vsel %vm1731, %v4176, 0
  %v4228 = vsel %vm1731, %v4177, 0
  %v4231 = vsel %vm1731, %v4178, 0
  %v4234 = vsel %vm1731, %v4179, 0
  %v4237 = vsel %vm1731, %v4180, 0
  %v4240 = vsel %vm1731, %v4181, 0
  %v4243 = vsel %vm1731, %v4182, 0
  %v4246 = vsel %vm1731, %v4183, 0
  %v4249 = vsel %vm1731, %v4184, 0
  %v4252 = vsel %vm1731, %v4185, 0
  %v4255 = vsel %vm1731, %v4186, 0
  %v4258 = vsel %vm1731, %v4187, 0
  %v4261 = vsel %vm1731, %v4188, 0
  %v4264 = vsel %vm1731, %v4189, 0
  %v4267 = vsel %vm1731, %v4190, 0
  %v4270 = vsel %vm1731, %v4191, 0
  %v4273 = vsel %vm1731, %v4192, 0
  %v4276 = vsel %vm1731, %v4193, 0
  %v4279 = vsel %vm1731, %v4194, 0
  %v4282 = vsel %vm1731, %v4195, 0
  %v4285 = vsel %vm1731, %v4196, 0
  %v4288 = vsel %vm1731, %v4197, 0
  %v4291 = vsel %vm1731, %v4198, 0
  %v4294 = vsel %vm1731, %v4199, 0
  %v4297 = vsel %vm1731, %v4200, 0
  %v4300 = vsel %vm1828, %v4202, 0
  %4302 = vmatprep.subr.bf16.mxu0 0
  %4303 = vmatpush1.bf16.msra.mxu0 0
  %4304 = vmatprep.subr.bf16.mxu0 0
  %4305 = vmatpush1.bf16.msra.mxu0 0
  %4306 = vmatprep.subr.bf16.mxu0 0
  %4307 = vmatpush1.bf16.msra.mxu0 0
  %4308 = vmatprep.subr.bf16.mxu0 0
  %4309 = vmatpush1.bf16.msra.mxu0 0
  %4310 = vmatprep.subr.bf16.mxu0 0
  %4311 = vmatpush1.bf16.msra.mxu0 0
  %4312 = vmatprep.subr.bf16.mxu0 0
  %4313 = vmatpush1.bf16.msra.mxu0 0
  %4314 = vmatprep.subr.bf16.mxu0 0
  %4315 = vmatpush1.bf16.msra.mxu0 0
  %4316 = vmatprep.subr.bf16.mxu0 0
  %4317 = vmatpush1.bf16.msra.mxu0 %v4300
  %4318 = vmatprep.subr.bf16.mxu0 0
  %4319 = vmatpush2.bf16.msra.mxu0 0
  %4320 = vmatprep.subr.bf16.mxu0 0
  %4321 = vmatpush2.bf16.msra.mxu0 0
  %4322 = vmatprep.subr.bf16.mxu0 0
  %4323 = vmatpush2.bf16.msra.mxu0 0
  %4324 = vmatprep.subr.bf16.mxu0 0
  %4325 = vmatpush2.bf16.msra.mxu0 0
  %4326 = vmatprep.subr.bf16.mxu0 0
  %4327 = vmatpush2.bf16.msra.mxu0 0
  %4328 = vmatprep.subr.bf16.mxu0 0
  %4329 = vmatpush2.bf16.msra.mxu0 0
  %4330 = vmatprep.subr.bf16.mxu0 0
  %4331 = vmatpush2.bf16.msra.mxu0 0
  %4332 = vmatprep.subr.bf16.mxu0 0
  %4333 = vmatpush2.bf16.msra.mxu0 0
  %4334 = vmatprep.mubr.bf16.mxu0 0
  %4335 = vmatmul.mubr.bf16.gmra.mxu0 %v4204
  %v4336 = vpop.f32.mrf.mxu0
  %v4337 = vadd.f32 0.0, %v4336
  %v4338 = vpop.f32.mrf.mxu0
  %v4339 = vpop.f32.mrf.mxu0
  %v4340 = vadd.f32 0.0, %v4339
  %v4341 = vpop.f32.mrf.mxu0
  %4342 = vmatprep.mubr.bf16.mxu0 0
  %4343 = vmatmul.mubr.bf16.gmra.mxu0 %v4207
  %v4344 = vpop.f32.mrf.mxu0
  %v4345 = vadd.f32 0.0, %v4344
  %v4346 = vpop.f32.mrf.mxu0
  %v4347 = vpop.f32.mrf.mxu0
  %v4348 = vadd.f32 0.0, %v4347
  %v4349 = vpop.f32.mrf.mxu0
  %4350 = vmatprep.mubr.bf16.mxu0 0
  %4351 = vmatmul.mubr.bf16.gmra.mxu0 %v4210
  %v4352 = vpop.f32.mrf.mxu0
  %v4353 = vadd.f32 0.0, %v4352
  %v4354 = vpop.f32.mrf.mxu0
  %v4355 = vpop.f32.mrf.mxu0
  %v4356 = vadd.f32 0.0, %v4355
  %v4357 = vpop.f32.mrf.mxu0
  %4358 = vmatprep.mubr.bf16.mxu0 0
  %4359 = vmatmul.mubr.bf16.gmra.mxu0 %v4213
  %v4360 = vpop.f32.mrf.mxu0
  %v4361 = vadd.f32 0.0, %v4360
  %v4362 = vpop.f32.mrf.mxu0
  %v4363 = vpop.f32.mrf.mxu0
  %v4364 = vadd.f32 0.0, %v4363
  %v4365 = vpop.f32.mrf.mxu0
  %4366 = vmatprep.mubr.bf16.mxu0 0
  %4367 = vmatmul.mubr.bf16.gmra.mxu0 %v4216
  %v4368 = vpop.f32.mrf.mxu0
  %v4369 = vadd.f32 0.0, %v4368
  %v4370 = vpop.f32.mrf.mxu0
  %v4371 = vpop.f32.mrf.mxu0
  %v4372 = vadd.f32 0.0, %v4371
  %v4373 = vpop.f32.mrf.mxu0
  %4374 = vmatprep.mubr.bf16.mxu0 0
  %4375 = vmatmul.mubr.bf16.gmra.mxu0 %v4219
  %v4376 = vpop.f32.mrf.mxu0
  %v4377 = vadd.f32 0.0, %v4376
  %v4378 = vpop.f32.mrf.mxu0
  %v4379 = vpop.f32.mrf.mxu0
  %v4380 = vadd.f32 0.0, %v4379
  %v4381 = vpop.f32.mrf.mxu0
  %4382 = vmatprep.mubr.bf16.mxu0 0
  %4383 = vmatmul.mubr.bf16.gmra.mxu0 %v4222
  %v4384 = vpop.f32.mrf.mxu0
  %v4385 = vadd.f32 0.0, %v4384
  %v4386 = vpop.f32.mrf.mxu0
  %v4387 = vpop.f32.mrf.mxu0
  %v4388 = vadd.f32 0.0, %v4387
  %v4389 = vpop.f32.mrf.mxu0
  %4390 = vmatprep.mubr.bf16.mxu0 0
  %4391 = vmatmul.mubr.bf16.gmra.mxu0 %v4225
  %v4392 = vpop.f32.mrf.mxu0
  %v4393 = vadd.f32 0.0, %v4392
  %v4394 = vpop.f32.mrf.mxu0
  %v4395 = vpop.f32.mrf.mxu0
  %v4396 = vadd.f32 0.0, %v4395
  %v4397 = vpop.f32.mrf.mxu0
  %4398 = vmatprep.mubr.bf16.mxu0 0
  %4399 = vmatmul.mubr.bf16.gmra.mxu0 %v4228
  %v4400 = vpop.f32.mrf.mxu0
  %v4401 = vadd.f32 0.0, %v4400
  %v4402 = vpop.f32.mrf.mxu0
  %v4403 = vpop.f32.mrf.mxu0
  %v4404 = vadd.f32 0.0, %v4403
  %v4405 = vpop.f32.mrf.mxu0
  %4406 = vmatprep.mubr.bf16.mxu0 0
  %4407 = vmatmul.mubr.bf16.gmra.mxu0 %v4231
  %v4408 = vpop.f32.mrf.mxu0
  %v4409 = vadd.f32 0.0, %v4408
  %v4410 = vpop.f32.mrf.mxu0
  %v4411 = vpop.f32.mrf.mxu0
  %v4412 = vadd.f32 0.0, %v4411
  %v4413 = vpop.f32.mrf.mxu0
  %4414 = vmatprep.mubr.bf16.mxu0 0
  %4415 = vmatmul.mubr.bf16.gmra.mxu0 %v4234
  %v4416 = vpop.f32.mrf.mxu0
  %v4417 = vadd.f32 0.0, %v4416
  %v4418 = vpop.f32.mrf.mxu0
  %v4419 = vpop.f32.mrf.mxu0
  %v4420 = vadd.f32 0.0, %v4419
  %v4421 = vpop.f32.mrf.mxu0
  %4422 = vmatprep.mubr.bf16.mxu0 0
  %4423 = vmatmul.mubr.bf16.gmra.mxu0 %v4237
  %v4424 = vpop.f32.mrf.mxu0
  %v4425 = vadd.f32 0.0, %v4424
  %v4426 = vpop.f32.mrf.mxu0
  %v4427 = vpop.f32.mrf.mxu0
  %v4428 = vadd.f32 0.0, %v4427
  %v4429 = vpop.f32.mrf.mxu0
  %4430 = vmatprep.mubr.bf16.mxu0 0
  %4431 = vmatmul.mubr.bf16.gmra.mxu0 %v4240
  %v4432 = vpop.f32.mrf.mxu0
  %v4433 = vadd.f32 0.0, %v4432
  %v4434 = vpop.f32.mrf.mxu0
  %v4435 = vpop.f32.mrf.mxu0
  %v4436 = vadd.f32 0.0, %v4435
  %v4437 = vpop.f32.mrf.mxu0
  %4438 = vmatprep.mubr.bf16.mxu0 0
  %4439 = vmatmul.mubr.bf16.gmra.mxu0 %v4243
  %v4440 = vpop.f32.mrf.mxu0
  %v4441 = vadd.f32 0.0, %v4440
  %v4442 = vpop.f32.mrf.mxu0
  %v4443 = vpop.f32.mrf.mxu0
  %v4444 = vadd.f32 0.0, %v4443
  %v4445 = vpop.f32.mrf.mxu0
  %4446 = vmatprep.mubr.bf16.mxu0 0
  %4447 = vmatmul.mubr.bf16.gmra.mxu0 %v4246
  %v4448 = vpop.f32.mrf.mxu0
  %v4449 = vadd.f32 0.0, %v4448
  %v4450 = vpop.f32.mrf.mxu0
  %v4451 = vpop.f32.mrf.mxu0
  %v4452 = vadd.f32 0.0, %v4451
  %v4453 = vpop.f32.mrf.mxu0
  %4454 = vmatprep.mubr.bf16.mxu0 0
  %4455 = vmatmul.mubr.bf16.gmra.mxu0 %v4249
  %v4456 = vpop.f32.mrf.mxu0
  %v4457 = vadd.f32 0.0, %v4456
  %v4458 = vpop.f32.mrf.mxu0
  %v4459 = vpop.f32.mrf.mxu0
  %v4460 = vadd.f32 0.0, %v4459
  %v4461 = vpop.f32.mrf.mxu0
  %4462 = vmatprep.mubr.bf16.mxu0 0
  %4463 = vmatmul.mubr.bf16.gmra.mxu0 %v4252
  %v4464 = vpop.f32.mrf.mxu0
  %v4465 = vadd.f32 0.0, %v4464
  %v4466 = vpop.f32.mrf.mxu0
  %v4467 = vpop.f32.mrf.mxu0
  %v4468 = vadd.f32 0.0, %v4467
  %v4469 = vpop.f32.mrf.mxu0
  %4470 = vmatprep.mubr.bf16.mxu0 0
  %4471 = vmatmul.mubr.bf16.gmra.mxu0 %v4255
  %v4472 = vpop.f32.mrf.mxu0
  %v4473 = vadd.f32 0.0, %v4472
  %v4474 = vpop.f32.mrf.mxu0
  %v4475 = vpop.f32.mrf.mxu0
  %v4476 = vadd.f32 0.0, %v4475
  %v4477 = vpop.f32.mrf.mxu0
  %4478 = vmatprep.mubr.bf16.mxu0 0
  %4479 = vmatmul.mubr.bf16.gmra.mxu0 %v4258
  %v4480 = vpop.f32.mrf.mxu0
  %v4481 = vadd.f32 0.0, %v4480
  %v4482 = vpop.f32.mrf.mxu0
  %v4483 = vpop.f32.mrf.mxu0
  %v4484 = vadd.f32 0.0, %v4483
  %v4485 = vpop.f32.mrf.mxu0
  %4486 = vmatprep.mubr.bf16.mxu0 0
  %4487 = vmatmul.mubr.bf16.gmra.mxu0 %v4261
  %v4488 = vpop.f32.mrf.mxu0
  %v4489 = vadd.f32 0.0, %v4488
  %v4490 = vpop.f32.mrf.mxu0
  %v4491 = vpop.f32.mrf.mxu0
  %v4492 = vadd.f32 0.0, %v4491
  %v4493 = vpop.f32.mrf.mxu0
  %4494 = vmatprep.mubr.bf16.mxu0 0
  %4495 = vmatmul.mubr.bf16.gmra.mxu0 %v4264
  %v4496 = vpop.f32.mrf.mxu0
  %v4497 = vadd.f32 0.0, %v4496
  %v4498 = vpop.f32.mrf.mxu0
  %v4499 = vpop.f32.mrf.mxu0
  %v4500 = vadd.f32 0.0, %v4499
  %v4501 = vpop.f32.mrf.mxu0
  %4502 = vmatprep.mubr.bf16.mxu0 0
  %4503 = vmatmul.mubr.bf16.gmra.mxu0 %v4267
  %v4504 = vpop.f32.mrf.mxu0
  %v4505 = vadd.f32 0.0, %v4504
  %v4506 = vpop.f32.mrf.mxu0
  %v4507 = vpop.f32.mrf.mxu0
  %v4508 = vadd.f32 0.0, %v4507
  %v4509 = vpop.f32.mrf.mxu0
  %4510 = vmatprep.mubr.bf16.mxu0 0
  %4511 = vmatmul.mubr.bf16.gmra.mxu0 %v4270
  %v4512 = vpop.f32.mrf.mxu0
  %v4513 = vadd.f32 0.0, %v4512
  %v4514 = vpop.f32.mrf.mxu0
  %v4515 = vpop.f32.mrf.mxu0
  %v4516 = vadd.f32 0.0, %v4515
  %v4517 = vpop.f32.mrf.mxu0
  %4518 = vmatprep.mubr.bf16.mxu0 0
  %4519 = vmatmul.mubr.bf16.gmra.mxu0 %v4273
  %v4520 = vpop.f32.mrf.mxu0
  %v4521 = vadd.f32 0.0, %v4520
  %v4522 = vpop.f32.mrf.mxu0
  %v4523 = vpop.f32.mrf.mxu0
  %v4524 = vadd.f32 0.0, %v4523
  %v4525 = vpop.f32.mrf.mxu0
  %4526 = vmatprep.mubr.bf16.mxu0 0
  %4527 = vmatmul.mubr.bf16.gmra.mxu0 %v4276
  %v4528 = vpop.f32.mrf.mxu0
  %v4529 = vadd.f32 0.0, %v4528
  %v4530 = vpop.f32.mrf.mxu0
  %v4531 = vpop.f32.mrf.mxu0
  %v4532 = vadd.f32 0.0, %v4531
  %v4533 = vpop.f32.mrf.mxu0
  %4534 = vmatprep.mubr.bf16.mxu0 0
  %4535 = vmatmul.mubr.bf16.gmra.mxu0 %v4279
  %v4536 = vpop.f32.mrf.mxu0
  %v4537 = vadd.f32 0.0, %v4536
  %v4538 = vpop.f32.mrf.mxu0
  %v4539 = vpop.f32.mrf.mxu0
  %v4540 = vadd.f32 0.0, %v4539
  %v4541 = vpop.f32.mrf.mxu0
  %4542 = vmatprep.mubr.bf16.mxu0 0
  %4543 = vmatmul.mubr.bf16.gmra.mxu0 %v4282
  %v4544 = vpop.f32.mrf.mxu0
  %v4545 = vadd.f32 0.0, %v4544
  %v4546 = vpop.f32.mrf.mxu0
  %v4547 = vpop.f32.mrf.mxu0
  %v4548 = vadd.f32 0.0, %v4547
  %v4549 = vpop.f32.mrf.mxu0
  %4550 = vmatprep.mubr.bf16.mxu0 0
  %4551 = vmatmul.mubr.bf16.gmra.mxu0 %v4285
  %v4552 = vpop.f32.mrf.mxu0
  %v4553 = vadd.f32 0.0, %v4552
  %v4554 = vpop.f32.mrf.mxu0
  %v4555 = vpop.f32.mrf.mxu0
  %v4556 = vadd.f32 0.0, %v4555
  %v4557 = vpop.f32.mrf.mxu0
  %4558 = vmatprep.mubr.bf16.mxu0 0
  %4559 = vmatmul.mubr.bf16.gmra.mxu0 %v4288
  %v4560 = vpop.f32.mrf.mxu0
  %v4561 = vadd.f32 0.0, %v4560
  %v4562 = vpop.f32.mrf.mxu0
  %v4563 = vpop.f32.mrf.mxu0
  %v4564 = vadd.f32 0.0, %v4563
  %v4565 = vpop.f32.mrf.mxu0
  %4566 = vmatprep.mubr.bf16.mxu0 0
  %4567 = vmatmul.mubr.bf16.gmra.mxu0 %v4291
  %v4568 = vpop.f32.mrf.mxu0
  %v4569 = vadd.f32 0.0, %v4568
  %v4570 = vpop.f32.mrf.mxu0
  %v4571 = vpop.f32.mrf.mxu0
  %v4572 = vadd.f32 0.0, %v4571
  %v4573 = vpop.f32.mrf.mxu0
  %4574 = vmatprep.mubr.bf16.mxu0 0
  %4575 = vmatmul.mubr.bf16.gmra.mxu0 %v4294
  %v4576 = vpop.f32.mrf.mxu0
  %v4577 = vadd.f32 0.0, %v4576
  %v4578 = vpop.f32.mrf.mxu0
  %v4579 = vpop.f32.mrf.mxu0
  %v4580 = vadd.f32 0.0, %v4579
  %v4581 = vpop.f32.mrf.mxu0
  %4582 = vmatprep.mubr.bf16.mxu0 0
  %4583 = vmatmul.mubr.bf16.gmra.mxu0 %v4297
  %v4584 = vpop.f32.mrf.mxu0
  %v4585 = vadd.f32 0.0, %v4584
  %v4586 = vpop.f32.mrf.mxu0
  %v4587 = vpop.f32.mrf.mxu0
  %v4588 = vadd.f32 0.0, %v4587
  %v4589 = vpop.f32.mrf.mxu0
  %4590 = vdwg.mxu0
  %v4591 = vsel %vm1731, %v4337, 0.0
  %v4592 = vsel %vm1731, %v4340, 0.0
  %v4593 = vadd.f32 %v4591, %v4592
  %v4594 = vsel %vm1731, %v4345, 0.0
  %v4595 = vadd.f32 %v4593, %v4594
  %v4596 = vsel %vm1731, %v4348, 0.0
  %v4597 = vadd.f32 %v4595, %v4596
  %v4598 = vsel %vm1731, %v4353, 0.0
  %v4599 = vadd.f32 %v4597, %v4598
  %v4600 = vsel %vm1731, %v4356, 0.0
  %v4601 = vadd.f32 %v4599, %v4600
  %v4602 = vsel %vm1731, %v4361, 0.0
  %v4603 = vadd.f32 %v4601, %v4602
  %v4604 = vsel %vm1731, %v4364, 0.0
  %v4605 = vadd.f32 %v4603, %v4604
  %v4606 = vsel %vm1731, %v4369, 0.0
  %v4607 = vadd.f32 %v4605, %v4606
  %v4608 = vsel %vm1731, %v4372, 0.0
  %v4609 = vadd.f32 %v4607, %v4608
  %v4610 = vsel %vm1731, %v4377, 0.0
  %v4611 = vadd.f32 %v4609, %v4610
  %v4612 = vsel %vm1731, %v4380, 0.0
  %v4613 = vadd.f32 %v4611, %v4612
  %v4614 = vsel %vm1731, %v4385, 0.0
  %v4615 = vadd.f32 %v4613, %v4614
  %v4616 = vsel %vm1731, %v4388, 0.0
  %v4617 = vadd.f32 %v4615, %v4616
  %v4618 = vsel %vm1731, %v4393, 0.0
  %v4619 = vadd.f32 %v4617, %v4618
  %v4620 = vsel %vm1731, %v4396, 0.0
  %v4621 = vadd.f32 %v4619, %v4620
  %v4622 = vsel %vm1731, %v4401, 0.0
  %v4623 = vadd.f32 %v4621, %v4622
  %v4624 = vsel %vm1731, %v4404, 0.0
  %v4625 = vadd.f32 %v4623, %v4624
  %v4626 = vsel %vm1731, %v4409, 0.0
  %v4627 = vadd.f32 %v4625, %v4626
  %v4628 = vsel %vm1731, %v4412, 0.0
  %v4629 = vadd.f32 %v4627, %v4628
  %v4630 = vsel %vm1731, %v4417, 0.0
  %v4631 = vadd.f32 %v4629, %v4630
  %v4632 = vsel %vm1731, %v4420, 0.0
  %v4633 = vadd.f32 %v4631, %v4632
  %v4634 = vsel %vm1731, %v4425, 0.0
  %v4635 = vadd.f32 %v4633, %v4634
  %v4636 = vsel %vm1731, %v4428, 0.0
  %v4637 = vadd.f32 %v4635, %v4636
  %v4638 = vsel %vm1731, %v4433, 0.0
  %v4639 = vadd.f32 %v4637, %v4638
  %v4640 = vsel %vm1731, %v4436, 0.0
  %v4641 = vadd.f32 %v4639, %v4640
  %v4642 = vsel %vm1731, %v4441, 0.0
  %v4643 = vadd.f32 %v4641, %v4642
  %v4644 = vsel %vm1731, %v4444, 0.0
  %v4645 = vadd.f32 %v4643, %v4644
  %v4646 = vsel %vm1731, %v4449, 0.0
  %v4647 = vadd.f32 %v4645, %v4646
  %v4648 = vsel %vm1731, %v4452, 0.0
  %v4649 = vadd.f32 %v4647, %v4648
  %v4650 = vsel %vm1731, %v4457, 0.0
  %v4651 = vadd.f32 %v4649, %v4650
  %v4652 = vsel %vm1731, %v4460, 0.0
  %v4653 = vadd.f32 %v4651, %v4652
  %v4654 = vsel %vm1731, %v4465, 0.0
  %v4655 = vadd.f32 %v4653, %v4654
  %v4656 = vsel %vm1731, %v4468, 0.0
  %v4657 = vadd.f32 %v4655, %v4656
  %v4658 = vsel %vm1731, %v4473, 0.0
  %v4659 = vadd.f32 %v4657, %v4658
  %v4660 = vsel %vm1731, %v4476, 0.0
  %v4661 = vadd.f32 %v4659, %v4660
  %v4662 = vsel %vm1731, %v4481, 0.0
  %v4663 = vadd.f32 %v4661, %v4662
  %v4664 = vsel %vm1731, %v4484, 0.0
  %v4665 = vadd.f32 %v4663, %v4664
  %v4666 = vsel %vm1731, %v4489, 0.0
  %v4667 = vadd.f32 %v4665, %v4666
  %v4668 = vsel %vm1731, %v4492, 0.0
  %v4669 = vadd.f32 %v4667, %v4668
  %v4670 = vsel %vm1731, %v4497, 0.0
  %v4671 = vadd.f32 %v4669, %v4670
  %v4672 = vsel %vm1731, %v4500, 0.0
  %v4673 = vadd.f32 %v4671, %v4672
  %v4674 = vsel %vm1731, %v4505, 0.0
  %v4675 = vadd.f32 %v4673, %v4674
  %v4676 = vsel %vm1731, %v4508, 0.0
  %v4677 = vadd.f32 %v4675, %v4676
  %v4678 = vsel %vm1731, %v4513, 0.0
  %v4679 = vadd.f32 %v4677, %v4678
  %v4680 = vsel %vm1731, %v4516, 0.0
  %v4681 = vadd.f32 %v4679, %v4680
  %v4682 = vsel %vm1731, %v4521, 0.0
  %v4683 = vadd.f32 %v4681, %v4682
  %v4684 = vsel %vm1731, %v4524, 0.0
  %v4685 = vadd.f32 %v4683, %v4684
  %v4686 = vsel %vm1731, %v4529, 0.0
  %v4687 = vadd.f32 %v4685, %v4686
  %v4688 = vsel %vm1731, %v4532, 0.0
  %v4689 = vadd.f32 %v4687, %v4688
  %v4690 = vsel %vm1731, %v4537, 0.0
  %v4691 = vadd.f32 %v4689, %v4690
  %v4692 = vsel %vm1731, %v4540, 0.0
  %v4693 = vadd.f32 %v4691, %v4692
  %v4694 = vsel %vm1731, %v4545, 0.0
  %v4695 = vadd.f32 %v4693, %v4694
  %v4696 = vsel %vm1731, %v4548, 0.0
  %v4697 = vadd.f32 %v4695, %v4696
  %v4698 = vsel %vm1731, %v4553, 0.0
  %v4699 = vadd.f32 %v4697, %v4698
  %v4700 = vsel %vm1731, %v4556, 0.0
  %v4701 = vadd.f32 %v4699, %v4700
  %v4702 = vsel %vm1731, %v4561, 0.0
  %v4703 = vadd.f32 %v4701, %v4702
  %v4704 = vsel %vm1731, %v4564, 0.0
  %v4705 = vadd.f32 %v4703, %v4704
  %v4706 = vsel %vm1731, %v4569, 0.0
  %v4707 = vadd.f32 %v4705, %v4706
  %v4708 = vsel %vm1731, %v4572, 0.0
  %v4709 = vadd.f32 %v4707, %v4708
  %v4710 = vsel %vm1731, %v4577, 0.0
  %v4711 = vadd.f32 %v4709, %v4710
  %v4712 = vsel %vm1731, %v4580, 0.0
  %v4713 = vadd.f32 %v4711, %v4712
  %v4714 = vsel %vm1731, %v4585, 0.0
  %v4715 = vadd.f32 %v4713, %v4714
  %v4716 = vsel %vm1731, %v4588, 0.0
  %v4717 = vadd.f32 %v4715, %v4716
  %v4718 = vrot.slane %v4717, 4
  %v4719 = vadd.f32 %v4717, %v4718
  %v4720 = vrot.slane %v4719, 2
  %v4721 = vadd.f32 %v4719, %v4720
  %v4722 = vrot.slane %v4721, 1
  %v4723 = vadd.f32 %v4721, %v4722
  %v4724 = vmul.f32 %v4337, %v4337
  %v4725 = vmul.f32 %v4340, %v4340
  %v4726 = vmul.f32 %v4345, %v4345
  %v4727 = vmul.f32 %v4348, %v4348
  %v4728 = vmul.f32 %v4353, %v4353
  %v4729 = vmul.f32 %v4356, %v4356
  %v4730 = vmul.f32 %v4361, %v4361
  %v4731 = vmul.f32 %v4364, %v4364
  %v4732 = vmul.f32 %v4369, %v4369
  %v4733 = vmul.f32 %v4372, %v4372
  %v4734 = vmul.f32 %v4377, %v4377
  %v4735 = vmul.f32 %v4380, %v4380
  %v4736 = vmul.f32 %v4385, %v4385
  %v4737 = vmul.f32 %v4388, %v4388
  %v4738 = vmul.f32 %v4393, %v4393
  %v4739 = vmul.f32 %v4396, %v4396
  %v4740 = vmul.f32 %v4401, %v4401
  %v4741 = vmul.f32 %v4404, %v4404
  %v4742 = vmul.f32 %v4409, %v4409
  %v4743 = vmul.f32 %v4412, %v4412
  %v4744 = vmul.f32 %v4417, %v4417
  %v4745 = vmul.f32 %v4420, %v4420
  %v4746 = vmul.f32 %v4425, %v4425
  %v4747 = vmul.f32 %v4428, %v4428
  %v4748 = vmul.f32 %v4433, %v4433
  %v4749 = vmul.f32 %v4436, %v4436
  %v4750 = vmul.f32 %v4441, %v4441
  %v4751 = vmul.f32 %v4444, %v4444
  %v4752 = vmul.f32 %v4449, %v4449
  %v4753 = vmul.f32 %v4452, %v4452
  %v4754 = vmul.f32 %v4457, %v4457
  %v4755 = vmul.f32 %v4460, %v4460
  %v4756 = vmul.f32 %v4465, %v4465
  %v4757 = vmul.f32 %v4468, %v4468
  %v4758 = vmul.f32 %v4473, %v4473
  %v4759 = vmul.f32 %v4476, %v4476
  %v4760 = vmul.f32 %v4481, %v4481
  %v4761 = vmul.f32 %v4484, %v4484
  %v4762 = vmul.f32 %v4489, %v4489
  %v4763 = vmul.f32 %v4492, %v4492
  %v4764 = vmul.f32 %v4497, %v4497
  %v4765 = vmul.f32 %v4500, %v4500
  %v4766 = vmul.f32 %v4505, %v4505
  %v4767 = vmul.f32 %v4508, %v4508
  %v4768 = vmul.f32 %v4513, %v4513
  %v4769 = vmul.f32 %v4516, %v4516
  %v4770 = vmul.f32 %v4521, %v4521
  %v4771 = vmul.f32 %v4524, %v4524
  %v4772 = vmul.f32 %v4529, %v4529
  %v4773 = vmul.f32 %v4532, %v4532
  %v4774 = vmul.f32 %v4537, %v4537
  %v4775 = vmul.f32 %v4540, %v4540
  %v4776 = vmul.f32 %v4545, %v4545
  %v4777 = vmul.f32 %v4548, %v4548
  %v4778 = vmul.f32 %v4553, %v4553
  %v4779 = vmul.f32 %v4556, %v4556
  %v4780 = vmul.f32 %v4561, %v4561
  %v4781 = vmul.f32 %v4564, %v4564
  %v4782 = vmul.f32 %v4569, %v4569
  %v4783 = vmul.f32 %v4572, %v4572
  %v4784 = vmul.f32 %v4577, %v4577
  %v4785 = vmul.f32 %v4580, %v4580
  %v4786 = vmul.f32 %v4585, %v4585
  %v4787 = vmul.f32 %v4588, %v4588
  %v4788 = vsel %vm1731, %v4724, 0.0
  %v4789 = vsel %vm1731, %v4725, 0.0
  %v4790 = vadd.f32 %v4788, %v4789
  %v4791 = vsel %vm1731, %v4726, 0.0
  %v4792 = vadd.f32 %v4790, %v4791
  %v4793 = vsel %vm1731, %v4727, 0.0
  %v4794 = vadd.f32 %v4792, %v4793
  %v4795 = vsel %vm1731, %v4728, 0.0
  %v4796 = vadd.f32 %v4794, %v4795
  %v4797 = vsel %vm1731, %v4729, 0.0
  %v4798 = vadd.f32 %v4796, %v4797
  %v4799 = vsel %vm1731, %v4730, 0.0
  %v4800 = vadd.f32 %v4798, %v4799
  %v4801 = vsel %vm1731, %v4731, 0.0
  %v4802 = vadd.f32 %v4800, %v4801
  %v4803 = vsel %vm1731, %v4732, 0.0
  %v4804 = vadd.f32 %v4802, %v4803
  %v4805 = vsel %vm1731, %v4733, 0.0
  %v4806 = vadd.f32 %v4804, %v4805
  %v4807 = vsel %vm1731, %v4734, 0.0
  %v4808 = vadd.f32 %v4806, %v4807
  %v4809 = vsel %vm1731, %v4735, 0.0
  %v4810 = vadd.f32 %v4808, %v4809
  %v4811 = vsel %vm1731, %v4736, 0.0
  %v4812 = vadd.f32 %v4810, %v4811
  %v4813 = vsel %vm1731, %v4737, 0.0
  %v4814 = vadd.f32 %v4812, %v4813
  %v4815 = vsel %vm1731, %v4738, 0.0
  %v4816 = vadd.f32 %v4814, %v4815
  %v4817 = vsel %vm1731, %v4739, 0.0
  %v4818 = vadd.f32 %v4816, %v4817
  %v4819 = vsel %vm1731, %v4740, 0.0
  %v4820 = vadd.f32 %v4818, %v4819
  %v4821 = vsel %vm1731, %v4741, 0.0
  %v4822 = vadd.f32 %v4820, %v4821
  %v4823 = vsel %vm1731, %v4742, 0.0
  %v4824 = vadd.f32 %v4822, %v4823
  %v4825 = vsel %vm1731, %v4743, 0.0
  %v4826 = vadd.f32 %v4824, %v4825
  %v4827 = vsel %vm1731, %v4744, 0.0
  %v4828 = vadd.f32 %v4826, %v4827
  %v4829 = vsel %vm1731, %v4745, 0.0
  %v4830 = vadd.f32 %v4828, %v4829
  %v4831 = vsel %vm1731, %v4746, 0.0
  %v4832 = vadd.f32 %v4830, %v4831
  %v4833 = vsel %vm1731, %v4747, 0.0
  %v4834 = vadd.f32 %v4832, %v4833
  %v4835 = vsel %vm1731, %v4748, 0.0
  %v4836 = vadd.f32 %v4834, %v4835
  %v4837 = vsel %vm1731, %v4749, 0.0
  %v4838 = vadd.f32 %v4836, %v4837
  %v4839 = vsel %vm1731, %v4750, 0.0
  %v4840 = vadd.f32 %v4838, %v4839
  %v4841 = vsel %vm1731, %v4751, 0.0
  %v4842 = vadd.f32 %v4840, %v4841
  %v4843 = vsel %vm1731, %v4752, 0.0
  %v4844 = vadd.f32 %v4842, %v4843
  %v4845 = vsel %vm1731, %v4753, 0.0
  %v4846 = vadd.f32 %v4844, %v4845
  %v4847 = vsel %vm1731, %v4754, 0.0
  %v4848 = vadd.f32 %v4846, %v4847
  %v4849 = vsel %vm1731, %v4755, 0.0
  %v4850 = vadd.f32 %v4848, %v4849
  %v4851 = vsel %vm1731, %v4756, 0.0
  %v4852 = vadd.f32 %v4850, %v4851
  %v4853 = vsel %vm1731, %v4757, 0.0
  %v4854 = vadd.f32 %v4852, %v4853
  %v4855 = vsel %vm1731, %v4758, 0.0
  %v4856 = vadd.f32 %v4854, %v4855
  %v4857 = vsel %vm1731, %v4759, 0.0
  %v4858 = vadd.f32 %v4856, %v4857
  %v4859 = vsel %vm1731, %v4760, 0.0
  %v4860 = vadd.f32 %v4858, %v4859
  %v4861 = vsel %vm1731, %v4761, 0.0
  %v4862 = vadd.f32 %v4860, %v4861
  %v4863 = vsel %vm1731, %v4762, 0.0
  %v4864 = vadd.f32 %v4862, %v4863
  %v4865 = vsel %vm1731, %v4763, 0.0
  %v4866 = vadd.f32 %v4864, %v4865
  %v4867 = vsel %vm1731, %v4764, 0.0
  %v4868 = vadd.f32 %v4866, %v4867
  %v4869 = vsel %vm1731, %v4765, 0.0
  %v4870 = vadd.f32 %v4868, %v4869
  %v4871 = vsel %vm1731, %v4766, 0.0
  %v4872 = vadd.f32 %v4870, %v4871
  %v4873 = vsel %vm1731, %v4767, 0.0
  %v4874 = vadd.f32 %v4872, %v4873
  %v4875 = vsel %vm1731, %v4768, 0.0
  %v4876 = vadd.f32 %v4874, %v4875
  %v4877 = vsel %vm1731, %v4769, 0.0
  %v4878 = vadd.f32 %v4876, %v4877
  %v4879 = vsel %vm1731, %v4770, 0.0
  %v4880 = vadd.f32 %v4878, %v4879
  %v4881 = vsel %vm1731, %v4771, 0.0
  %v4882 = vadd.f32 %v4880, %v4881
  %v4883 = vsel %vm1731, %v4772, 0.0
  %v4884 = vadd.f32 %v4882, %v4883
  %v4885 = vsel %vm1731, %v4773, 0.0
  %v4886 = vadd.f32 %v4884, %v4885
  %v4887 = vsel %vm1731, %v4774, 0.0
  %v4888 = vadd.f32 %v4886, %v4887
  %v4889 = vsel %vm1731, %v4775, 0.0
  %v4890 = vadd.f32 %v4888, %v4889
  %v4891 = vsel %vm1731, %v4776, 0.0
  %v4892 = vadd.f32 %v4890, %v4891
  %v4893 = vsel %vm1731, %v4777, 0.0
  %v4894 = vadd.f32 %v4892, %v4893
  %v4895 = vsel %vm1731, %v4778, 0.0
  %v4896 = vadd.f32 %v4894, %v4895
  %v4897 = vsel %vm1731, %v4779, 0.0
  %v4898 = vadd.f32 %v4896, %v4897
  %v4899 = vsel %vm1731, %v4780, 0.0
  %v4900 = vadd.f32 %v4898, %v4899
  %v4901 = vsel %vm1731, %v4781, 0.0
  %v4902 = vadd.f32 %v4900, %v4901
  %v4903 = vsel %vm1731, %v4782, 0.0
  %v4904 = vadd.f32 %v4902, %v4903
  %v4905 = vsel %vm1731, %v4783, 0.0
  %v4906 = vadd.f32 %v4904, %v4905
  %v4907 = vsel %vm1731, %v4784, 0.0
  %v4908 = vadd.f32 %v4906, %v4907
  %v4909 = vsel %vm1731, %v4785, 0.0
  %v4910 = vadd.f32 %v4908, %v4909
  %v4911 = vsel %vm1731, %v4786, 0.0
  %v4912 = vadd.f32 %v4910, %v4911
  %v4913 = vsel %vm1731, %v4787, 0.0
  %v4914 = vadd.f32 %v4912, %v4913
  %v4915 = vrot.slane %v4914, 4
  %v4916 = vadd.f32 %v4914, %v4915
  %v4917 = vrot.slane %v4916, 2
  %v4918 = vadd.f32 %v4916, %v4917
  %v4919 = vrot.slane %v4918, 1
  %v4920 = vadd.f32 %v4918, %v4919
  %v4921 = vmul.f32 %v4723, 0.001953125
  %v4922 = vmul.f32 %v4920, 0.001953125
  %v4923 = vmul.f32 %v4921, %v4921
  %v4924 = vsub.f32 %v4922, %v4923
  %v4925 = vld [vmem:[%s7] sm:$0x1]
  %v4926 = vadd.f32 %v4924, 1e-05
  %v4927 = vrsqrt.pop %v4926
  %v4928 = vmul.f32 %v4925, %v4927
  %v4929 = vld [vmem:[%s8] sm:$0x1]
  %v4930 = vmul.f32 %v4921, %v4928
  %v4931 = vsub.f32 %v4929, %v4930
  %v4933 = vlaneseq
  %v4934 = vshrl.u32 %v4933, 7
  %v4935 = vsub.s32 0, %v4934
  %v4936 = vrot.slane %v4928, %v4935
  %v4938 = vmul.f32 %v4337, %v4936
  %v4939 = vmul.f32 %v4340, %v4936
  %v4940 = vmul.f32 %v4345, %v4936
  %v4941 = vmul.f32 %v4348, %v4936
  %v4942 = vmul.f32 %v4353, %v4936
  %v4943 = vmul.f32 %v4356, %v4936
  %v4944 = vmul.f32 %v4361, %v4936
  %v4945 = vmul.f32 %v4364, %v4936
  %v4946 = vmul.f32 %v4369, %v4936
  %v4947 = vmul.f32 %v4372, %v4936
  %v4948 = vmul.f32 %v4377, %v4936
  %v4949 = vmul.f32 %v4380, %v4936
  %v4950 = vmul.f32 %v4385, %v4936
  %v4951 = vmul.f32 %v4388, %v4936
  %v4952 = vmul.f32 %v4393, %v4936
  %v4953 = vmul.f32 %v4396, %v4936
  %v4954 = vmul.f32 %v4401, %v4936
  %v4955 = vmul.f32 %v4404, %v4936
  %v4956 = vmul.f32 %v4409, %v4936
  %v4957 = vmul.f32 %v4412, %v4936
  %v4958 = vmul.f32 %v4417, %v4936
  %v4959 = vmul.f32 %v4420, %v4936
  %v4960 = vmul.f32 %v4425, %v4936
  %v4961 = vmul.f32 %v4428, %v4936
  %v4962 = vmul.f32 %v4433, %v4936
  %v4963 = vmul.f32 %v4436, %v4936
  %v4964 = vmul.f32 %v4441, %v4936
  %v4965 = vmul.f32 %v4444, %v4936
  %v4966 = vmul.f32 %v4449, %v4936
  %v4967 = vmul.f32 %v4452, %v4936
  %v4968 = vmul.f32 %v4457, %v4936
  %v4969 = vmul.f32 %v4460, %v4936
  %v4970 = vmul.f32 %v4465, %v4936
  %v4971 = vmul.f32 %v4468, %v4936
  %v4972 = vmul.f32 %v4473, %v4936
  %v4973 = vmul.f32 %v4476, %v4936
  %v4974 = vmul.f32 %v4481, %v4936
  %v4975 = vmul.f32 %v4484, %v4936
  %v4976 = vmul.f32 %v4489, %v4936
  %v4977 = vmul.f32 %v4492, %v4936
  %v4978 = vmul.f32 %v4497, %v4936
  %v4979 = vmul.f32 %v4500, %v4936
  %v4980 = vmul.f32 %v4505, %v4936
  %v4981 = vmul.f32 %v4508, %v4936
  %v4982 = vmul.f32 %v4513, %v4936
  %v4983 = vmul.f32 %v4516, %v4936
  %v4984 = vmul.f32 %v4521, %v4936
  %v4985 = vmul.f32 %v4524, %v4936
  %v4986 = vmul.f32 %v4529, %v4936
  %v4987 = vmul.f32 %v4532, %v4936
  %v4988 = vmul.f32 %v4537, %v4936
  %v4989 = vmul.f32 %v4540, %v4936
  %v4990 = vmul.f32 %v4545, %v4936
  %v4991 = vmul.f32 %v4548, %v4936
  %v4992 = vmul.f32 %v4553, %v4936
  %v4993 = vmul.f32 %v4556, %v4936
  %v4994 = vmul.f32 %v4561, %v4936
  %v4995 = vmul.f32 %v4564, %v4936
  %v4996 = vmul.f32 %v4569, %v4936
  %v4997 = vmul.f32 %v4572, %v4936
  %v4998 = vmul.f32 %v4577, %v4936
  %v4999 = vmul.f32 %v4580, %v4936
  %v5000 = vmul.f32 %v4585, %v4936
  %v5001 = vmul.f32 %v4588, %v4936
  %v5003 = vlaneseq
  %v5004 = vshrl.u32 %v5003, 7
  %v5005 = vsub.s32 0, %v5004
  %v5006 = vrot.slane %v4931, %v5005
  %v5008 = vadd.f32 %v4938, %v5006
  %v5009 = vadd.f32 %v4939, %v5006
  %v5010 = vadd.f32 %v4940, %v5006
  %v5011 = vadd.f32 %v4941, %v5006
  %v5012 = vadd.f32 %v4942, %v5006
  %v5013 = vadd.f32 %v4943, %v5006
  %v5014 = vadd.f32 %v4944, %v5006
  %v5015 = vadd.f32 %v4945, %v5006
  %v5016 = vadd.f32 %v4946, %v5006
  %v5017 = vadd.f32 %v4947, %v5006
  %v5018 = vadd.f32 %v4948, %v5006
  %v5019 = vadd.f32 %v4949, %v5006
  %v5020 = vadd.f32 %v4950, %v5006
  %v5021 = vadd.f32 %v4951, %v5006
  %v5022 = vadd.f32 %v4952, %v5006
  %v5023 = vadd.f32 %v4953, %v5006
  %v5024 = vadd.f32 %v4954, %v5006
  %v5025 = vadd.f32 %v4955, %v5006
  %v5026 = vadd.f32 %v4956, %v5006
  %v5027 = vadd.f32 %v4957, %v5006
  %v5028 = vadd.f32 %v4958, %v5006
  %v5029 = vadd.f32 %v4959, %v5006
  %v5030 = vadd.f32 %v4960, %v5006
  %v5031 = vadd.f32 %v4961, %v5006
  %v5032 = vadd.f32 %v4962, %v5006
  %v5033 = vadd.f32 %v4963, %v5006
  %v5034 = vadd.f32 %v4964, %v5006
  %v5035 = vadd.f32 %v4965, %v5006
  %v5036 = vadd.f32 %v4966, %v5006
  %v5037 = vadd.f32 %v4967, %v5006
  %v5038 = vadd.f32 %v4968, %v5006
  %v5039 = vadd.f32 %v4969, %v5006
  %v5040 = vadd.f32 %v4970, %v5006
  %v5041 = vadd.f32 %v4971, %v5006
  %v5042 = vadd.f32 %v4972, %v5006
  %v5043 = vadd.f32 %v4973, %v5006
  %v5044 = vadd.f32 %v4974, %v5006
  %v5045 = vadd.f32 %v4975, %v5006
  %v5046 = vadd.f32 %v4976, %v5006
  %v5047 = vadd.f32 %v4977, %v5006
  %v5048 = vadd.f32 %v4978, %v5006
  %v5049 = vadd.f32 %v4979, %v5006
  %v5050 = vadd.f32 %v4980, %v5006
  %v5051 = vadd.f32 %v4981, %v5006
  %v5052 = vadd.f32 %v4982, %v5006
  %v5053 = vadd.f32 %v4983, %v5006
  %v5054 = vadd.f32 %v4984, %v5006
  %v5055 = vadd.f32 %v4985, %v5006
  %v5056 = vadd.f32 %v4986, %v5006
  %v5057 = vadd.f32 %v4987, %v5006
  %v5058 = vadd.f32 %v4988, %v5006
  %v5059 = vadd.f32 %v4989, %v5006
  %v5060 = vadd.f32 %v4990, %v5006
  %v5061 = vadd.f32 %v4991, %v5006
  %v5062 = vadd.f32 %v4992, %v5006
  %v5063 = vadd.f32 %v4993, %v5006
  %v5064 = vadd.f32 %v4994, %v5006
  %v5065 = vadd.f32 %v4995, %v5006
  %v5066 = vadd.f32 %v4996, %v5006
  %v5067 = vadd.f32 %v4997, %v5006
  %v5068 = vadd.f32 %v4998, %v5006
  %v5069 = vadd.f32 %v4999, %v5006
  %v5070 = vadd.f32 %v5000, %v5006
  %v5071 = vadd.f32 %v5001, %v5006
  %v5072 = vmax.f32 %v5008, 0.0
  %v5073 = vmax.f32 %v5009, 0.0
  %v5074 = vmax.f32 %v5010, 0.0
  %v5075 = vmax.f32 %v5011, 0.0
  %v5076 = vmax.f32 %v5012, 0.0
  %v5077 = vmax.f32 %v5013, 0.0
  %v5078 = vmax.f32 %v5014, 0.0
  %v5079 = vmax.f32 %v5015, 0.0
  %v5080 = vmax.f32 %v5016, 0.0
  %v5081 = vmax.f32 %v5017, 0.0
  %v5082 = vmax.f32 %v5018, 0.0
  %v5083 = vmax.f32 %v5019, 0.0
  %v5084 = vmax.f32 %v5020, 0.0
  %v5085 = vmax.f32 %v5021, 0.0
  %v5086 = vmax.f32 %v5022, 0.0
  %v5087 = vmax.f32 %v5023, 0.0
  %v5088 = vmax.f32 %v5024, 0.0
  %v5089 = vmax.f32 %v5025, 0.0
  %v5090 = vmax.f32 %v5026, 0.0
  %v5091 = vmax.f32 %v5027, 0.0
  %v5092 = vmax.f32 %v5028, 0.0
  %v5093 = vmax.f32 %v5029, 0.0
  %v5094 = vmax.f32 %v5030, 0.0
  %v5095 = vmax.f32 %v5031, 0.0
  %v5096 = vmax.f32 %v5032, 0.0
  %v5097 = vmax.f32 %v5033, 0.0
  %v5098 = vmax.f32 %v5034, 0.0
  %v5099 = vmax.f32 %v5035, 0.0
  %v5100 = vmax.f32 %v5036, 0.0
  %v5101 = vmax.f32 %v5037, 0.0
  %v5102 = vmax.f32 %v5038, 0.0
  %v5103 = vmax.f32 %v5039, 0.0
  %v5104 = vmax.f32 %v5040, 0.0
  %v5105 = vmax.f32 %v5041, 0.0
  %v5106 = vmax.f32 %v5042, 0.0
  %v5107 = vmax.f32 %v5043, 0.0
  %v5108 = vmax.f32 %v5044, 0.0
  %v5109 = vmax.f32 %v5045, 0.0
  %v5110 = vmax.f32 %v5046, 0.0
  %v5111 = vmax.f32 %v5047, 0.0
  %v5112 = vmax.f32 %v5048, 0.0
  %v5113 = vmax.f32 %v5049, 0.0
  %v5114 = vmax.f32 %v5050, 0.0
  %v5115 = vmax.f32 %v5051, 0.0
  %v5116 = vmax.f32 %v5052, 0.0
  %v5117 = vmax.f32 %v5053, 0.0
  %v5118 = vmax.f32 %v5054, 0.0
  %v5119 = vmax.f32 %v5055, 0.0
  %v5120 = vmax.f32 %v5056, 0.0
  %v5121 = vmax.f32 %v5057, 0.0
  %v5122 = vmax.f32 %v5058, 0.0
  %v5123 = vmax.f32 %v5059, 0.0
  %v5124 = vmax.f32 %v5060, 0.0
  %v5125 = vmax.f32 %v5061, 0.0
  %v5126 = vmax.f32 %v5062, 0.0
  %v5127 = vmax.f32 %v5063, 0.0
  %v5128 = vmax.f32 %v5064, 0.0
  %v5129 = vmax.f32 %v5065, 0.0
  %v5130 = vmax.f32 %v5066, 0.0
  %v5131 = vmax.f32 %v5067, 0.0
  %v5132 = vmax.f32 %v5068, 0.0
  %v5133 = vmax.f32 %v5069, 0.0
  %v5134 = vmax.f32 %v5070, 0.0
  %v5135 = vmax.f32 %v5071, 0.0
  %v5136 = vrot.slane %v5072, 7
  %v5137 = vrot.slane %v5073, 7
  %v5138 = vrot.slane %v5074, 7
  %v5139 = vrot.slane %v5075, 7
  %v5140 = vrot.slane %v5076, 7
  %v5141 = vrot.slane %v5077, 7
  %v5142 = vrot.slane %v5078, 7
  %v5143 = vrot.slane %v5079, 7
  %v5144 = vrot.slane %v5080, 7
  %v5145 = vrot.slane %v5081, 7
  %v5146 = vrot.slane %v5082, 7
  %v5147 = vrot.slane %v5083, 7
  %v5148 = vrot.slane %v5084, 7
  %v5149 = vrot.slane %v5085, 7
  %v5150 = vrot.slane %v5086, 7
  %v5151 = vrot.slane %v5087, 7
  %v5152 = vrot.slane %v5088, 7
  %v5153 = vrot.slane %v5089, 7
  %v5154 = vrot.slane %v5090, 7
  %v5155 = vrot.slane %v5091, 7
  %v5156 = vrot.slane %v5092, 7
  %v5157 = vrot.slane %v5093, 7
  %v5158 = vrot.slane %v5094, 7
  %v5159 = vrot.slane %v5095, 7
  %v5160 = vrot.slane %v5096, 7
  %v5161 = vrot.slane %v5097, 7
  %v5162 = vrot.slane %v5098, 7
  %v5163 = vrot.slane %v5099, 7
  %v5164 = vrot.slane %v5100, 7
  %v5165 = vrot.slane %v5101, 7
  %v5166 = vrot.slane %v5102, 7
  %v5167 = vrot.slane %v5103, 7
  %v5168 = vrot.slane %v5104, 7
  %v5169 = vrot.slane %v5105, 7
  %v5170 = vrot.slane %v5106, 7
  %v5171 = vrot.slane %v5107, 7
  %v5172 = vrot.slane %v5108, 7
  %v5173 = vrot.slane %v5109, 7
  %v5174 = vrot.slane %v5110, 7
  %v5175 = vrot.slane %v5111, 7
  %v5176 = vrot.slane %v5112, 7
  %v5177 = vrot.slane %v5113, 7
  %v5178 = vrot.slane %v5114, 7
  %v5179 = vrot.slane %v5115, 7
  %v5180 = vrot.slane %v5116, 7
  %v5181 = vrot.slane %v5117, 7
  %v5182 = vrot.slane %v5118, 7
  %v5183 = vrot.slane %v5119, 7
  %v5184 = vrot.slane %v5120, 7
  %v5185 = vrot.slane %v5121, 7
  %v5186 = vrot.slane %v5122, 7
  %v5187 = vrot.slane %v5123, 7
  %v5188 = vrot.slane %v5124, 7
  %v5189 = vrot.slane %v5125, 7
  %v5190 = vrot.slane %v5126, 7
  %v5191 = vrot.slane %v5127, 7
  %v5192 = vrot.slane %v5128, 7
  %v5193 = vrot.slane %v5129, 7
  %v5194 = vrot.slane %v5130, 7
  %v5195 = vrot.slane %v5131, 7
  %v5196 = vrot.slane %v5132, 7
  %v5197 = vrot.slane %v5133, 7
  %v5198 = vrot.slane %v5134, 7
  %v5199 = vrot.slane %v5135, 7
  %v5200 = vsel %vm244, %v5199, 0.0
  %v5201 = vsel %vm244, %v5198, %v5199
  %v5202 = vsel %vm244, %v5197, %v5198
  %v5203 = vsel %vm244, %v5196, %v5197
  %v5204 = vsel %vm244, %v5195, %v5196
  %v5205 = vsel %vm244, %v5194, %v5195
  %v5206 = vsel %vm244, %v5193, %v5194
  %v5207 = vsel %vm244, %v5192, %v5193
  %v5208 = vsel %vm244, %v5191, %v5192
  %v5209 = vsel %vm244, %v5190, %v5191
  %v5210 = vsel %vm244, %v5189, %v5190
  %v5211 = vsel %vm244, %v5188, %v5189
  %v5212 = vsel %vm244, %v5187, %v5188
  %v5213 = vsel %vm244, %v5186, %v5187
  %v5214 = vsel %vm244, %v5185, %v5186
  %v5215 = vsel %vm244, %v5184, %v5185
  %v5216 = vsel %vm244, %v5183, %v5184
  %v5217 = vsel %vm244, %v5182, %v5183
  %v5218 = vsel %vm244, %v5181, %v5182
  %v5219 = vsel %vm244, %v5180, %v5181
  %v5220 = vsel %vm244, %v5179, %v5180
  %v5221 = vsel %vm244, %v5178, %v5179
  %v5222 = vsel %vm244, %v5177, %v5178
  %v5223 = vsel %vm244, %v5176, %v5177
  %v5224 = vsel %vm244, %v5175, %v5176
  %v5225 = vsel %vm244, %v5174, %v5175
  %v5226 = vsel %vm244, %v5173, %v5174
  %v5227 = vsel %vm244, %v5172, %v5173
  %v5228 = vsel %vm244, %v5171, %v5172
  %v5229 = vsel %vm244, %v5170, %v5171
  %v5230 = vsel %vm244, %v5169, %v5170
  %v5231 = vsel %vm244, %v5168, %v5169
  %v5232 = vsel %vm244, 0.0, %v5168
  %v5233 = vsel %vm244, %v5167, 0.0
  %v5234 = vsel %vm244, %v5166, %v5167
  %v5235 = vsel %vm244, %v5165, %v5166
  %v5236 = vsel %vm244, %v5164, %v5165
  %v5237 = vsel %vm244, %v5163, %v5164
  %v5238 = vsel %vm244, %v5162, %v5163
  %v5239 = vsel %vm244, %v5161, %v5162
  %v5240 = vsel %vm244, %v5160, %v5161
  %v5241 = vsel %vm244, %v5159, %v5160
  %v5242 = vsel %vm244, %v5158, %v5159
  %v5243 = vsel %vm244, %v5157, %v5158
  %v5244 = vsel %vm244, %v5156, %v5157
  %v5245 = vsel %vm244, %v5155, %v5156
  %v5246 = vsel %vm244, %v5154, %v5155
  %v5247 = vsel %vm244, %v5153, %v5154
  %v5248 = vsel %vm244, %v5152, %v5153
  %v5249 = vsel %vm244, %v5151, %v5152
  %v5250 = vsel %vm244, %v5150, %v5151
  %v5251 = vsel %vm244, %v5149, %v5150
  %v5252 = vsel %vm244, %v5148, %v5149
  %v5253 = vsel %vm244, %v5147, %v5148
  %v5254 = vsel %vm244, %v5146, %v5147
  %v5255 = vsel %vm244, %v5145, %v5146
  %v5256 = vsel %vm244, %v5144, %v5145
  %v5257 = vsel %vm244, %v5143, %v5144
  %v5258 = vsel %vm244, %v5142, %v5143
  %v5259 = vsel %vm244, %v5141, %v5142
  %v5260 = vsel %vm244, %v5140, %v5141
  %v5261 = vsel %vm244, %v5139, %v5140
  %v5262 = vsel %vm244, %v5138, %v5139
  %v5263 = vsel %vm244, %v5137, %v5138
  %v5264 = vsel %vm244, %v5136, %v5137
  %v5265 = vsel %vm244, 0.0, %v5136
  %v5266 = vsel %vm313, %v5265, 0.0
  %v5267 = vsel %vm314, %v5264, 0.0
  %v5268 = vsel %vm313, %v5263, 0.0
  %v5269 = vsel %vm314, %v5262, 0.0
  %v5270 = vsel %vm313, %v5261, 0.0
  %v5271 = vsel %vm314, %v5260, 0.0
  %v5272 = vsel %vm313, %v5259, 0.0
  %v5273 = vsel %vm314, %v5258, 0.0
  %v5274 = vsel %vm313, %v5257, 0.0
  %v5275 = vsel %vm314, %v5256, 0.0
  %v5276 = vsel %vm313, %v5255, 0.0
  %v5277 = vsel %vm314, %v5254, 0.0
  %v5278 = vsel %vm313, %v5253, 0.0
  %v5279 = vsel %vm314, %v5252, 0.0
  %v5280 = vsel %vm313, %v5251, 0.0
  %v5281 = vsel %vm314, %v5250, 0.0
  %v5282 = vsel %vm313, %v5249, 0.0
  %v5283 = vsel %vm314, %v5248, 0.0
  %v5284 = vsel %vm313, %v5247, 0.0
  %v5285 = vsel %vm314, %v5246, 0.0
  %v5286 = vsel %vm313, %v5245, 0.0
  %v5287 = vsel %vm314, %v5244, 0.0
  %v5288 = vsel %vm313, %v5243, 0.0
  %v5289 = vsel %vm314, %v5242, 0.0
  %v5290 = vsel %vm313, %v5241, 0.0
  %v5291 = vsel %vm314, %v5240, 0.0
  %v5292 = vsel %vm313, %v5239, 0.0
  %v5293 = vsel %vm314, %v5238, 0.0
  %v5294 = vsel %vm313, %v5237, 0.0
  %v5295 = vsel %vm314, %v5236, 0.0
  %v5296 = vsel %vm313, %v5235, 0.0
  %v5297 = vsel %vm314, %v5234, 0.0
  %v5298 = vsel %vm313, %v5233, 0.0
  %v5299 = vsel %vm313, %v5232, 0.0
  %v5300 = vsel %vm314, %v5231, 0.0
  %v5301 = vsel %vm313, %v5230, 0.0
  %v5302 = vsel %vm314, %v5229, 0.0
  %v5303 = vsel %vm313, %v5228, 0.0
  %v5304 = vsel %vm314, %v5227, 0.0
  %v5305 = vsel %vm313, %v5226, 0.0
  %v5306 = vsel %vm314, %v5225, 0.0
  %v5307 = vsel %vm313, %v5224, 0.0
  %v5308 = vsel %vm314, %v5223, 0.0
  %v5309 = vsel %vm313, %v5222, 0.0
  %v5310 = vsel %vm314, %v5221, 0.0
  %v5311 = vsel %vm313, %v5220, 0.0
  %v5312 = vsel %vm314, %v5219, 0.0
  %v5313 = vsel %vm313, %v5218, 0.0
  %v5314 = vsel %vm314, %v5217, 0.0
  %v5315 = vsel %vm313, %v5216, 0.0
  %v5316 = vsel %vm314, %v5215, 0.0
  %v5317 = vsel %vm313, %v5214, 0.0
  %v5318 = vsel %vm314, %v5213, 0.0
  %v5319 = vsel %vm313, %v5212, 0.0
  %v5320 = vsel %vm314, %v5211, 0.0
  %v5321 = vsel %vm313, %v5210, 0.0
  %v5322 = vsel %vm314, %v5209, 0.0
  %v5323 = vsel %vm313, %v5208, 0.0
  %v5324 = vsel %vm314, %v5207, 0.0
  %v5325 = vsel %vm313, %v5206, 0.0
  %v5326 = vsel %vm314, %v5205, 0.0
  %v5327 = vsel %vm313, %v5204, 0.0
  %v5328 = vsel %vm314, %v5203, 0.0
  %v5329 = vsel %vm313, %v5202, 0.0
  %v5330 = vsel %vm314, %v5201, 0.0
  %v5331 = vsel %vm313, %v5200, 0.0
  %v5332 = vrot.slane %v5072, 1
  %v5333 = vrot.slane %v5073, 1
  %v5334 = vrot.slane %v5074, 1
  %v5335 = vrot.slane %v5075, 1
  %v5336 = vrot.slane %v5076, 1
  %v5337 = vrot.slane %v5077, 1
  %v5338 = vrot.slane %v5078, 1
  %v5339 = vrot.slane %v5079, 1
  %v5340 = vrot.slane %v5080, 1
  %v5341 = vrot.slane %v5081, 1
  %v5342 = vrot.slane %v5082, 1
  %v5343 = vrot.slane %v5083, 1
  %v5344 = vrot.slane %v5084, 1
  %v5345 = vrot.slane %v5085, 1
  %v5346 = vrot.slane %v5086, 1
  %v5347 = vrot.slane %v5087, 1
  %v5348 = vrot.slane %v5088, 1
  %v5349 = vrot.slane %v5089, 1
  %v5350 = vrot.slane %v5090, 1
  %v5351 = vrot.slane %v5091, 1
  %v5352 = vrot.slane %v5092, 1
  %v5353 = vrot.slane %v5093, 1
  %v5354 = vrot.slane %v5094, 1
  %v5355 = vrot.slane %v5095, 1
  %v5356 = vrot.slane %v5096, 1
  %v5357 = vrot.slane %v5097, 1
  %v5358 = vrot.slane %v5098, 1
  %v5359 = vrot.slane %v5099, 1
  %v5360 = vrot.slane %v5100, 1
  %v5361 = vrot.slane %v5101, 1
  %v5362 = vrot.slane %v5102, 1
  %v5363 = vrot.slane %v5103, 1
  %v5364 = vrot.slane %v5104, 1
  %v5365 = vrot.slane %v5105, 1
  %v5366 = vrot.slane %v5106, 1
  %v5367 = vrot.slane %v5107, 1
  %v5368 = vrot.slane %v5108, 1
  %v5369 = vrot.slane %v5109, 1
  %v5370 = vrot.slane %v5110, 1
  %v5371 = vrot.slane %v5111, 1
  %v5372 = vrot.slane %v5112, 1
  %v5373 = vrot.slane %v5113, 1
  %v5374 = vrot.slane %v5114, 1
  %v5375 = vrot.slane %v5115, 1
  %v5376 = vrot.slane %v5116, 1
  %v5377 = vrot.slane %v5117, 1
  %v5378 = vrot.slane %v5118, 1
  %v5379 = vrot.slane %v5119, 1
  %v5380 = vrot.slane %v5120, 1
  %v5381 = vrot.slane %v5121, 1
  %v5382 = vrot.slane %v5122, 1
  %v5383 = vrot.slane %v5123, 1
  %v5384 = vrot.slane %v5124, 1
  %v5385 = vrot.slane %v5125, 1
  %v5386 = vrot.slane %v5126, 1
  %v5387 = vrot.slane %v5127, 1
  %v5388 = vrot.slane %v5128, 1
  %v5389 = vrot.slane %v5129, 1
  %v5390 = vrot.slane %v5130, 1
  %v5391 = vrot.slane %v5131, 1
  %v5392 = vrot.slane %v5132, 1
  %v5393 = vrot.slane %v5133, 1
  %v5394 = vrot.slane %v5134, 1
  %v5395 = vrot.slane %v5135, 1
  %v5396 = vsel %vm447, %v5395, 0.0
  %v5397 = vsel %vm447, %v5394, %v5395
  %v5398 = vsel %vm447, %v5393, %v5394
  %v5399 = vsel %vm447, %v5392, %v5393
  %v5400 = vsel %vm447, %v5391, %v5392
  %v5401 = vsel %vm447, %v5390, %v5391
  %v5402 = vsel %vm447, %v5389, %v5390
  %v5403 = vsel %vm447, %v5388, %v5389
  %v5404 = vsel %vm447, %v5387, %v5388
  %v5405 = vsel %vm447, %v5386, %v5387
  %v5406 = vsel %vm447, %v5385, %v5386
  %v5407 = vsel %vm447, %v5384, %v5385
  %v5408 = vsel %vm447, %v5383, %v5384
  %v5409 = vsel %vm447, %v5382, %v5383
  %v5410 = vsel %vm447, %v5381, %v5382
  %v5411 = vsel %vm447, %v5380, %v5381
  %v5412 = vsel %vm447, %v5379, %v5380
  %v5413 = vsel %vm447, %v5378, %v5379
  %v5414 = vsel %vm447, %v5377, %v5378
  %v5415 = vsel %vm447, %v5376, %v5377
  %v5416 = vsel %vm447, %v5375, %v5376
  %v5417 = vsel %vm447, %v5374, %v5375
  %v5418 = vsel %vm447, %v5373, %v5374
  %v5419 = vsel %vm447, %v5372, %v5373
  %v5420 = vsel %vm447, %v5371, %v5372
  %v5421 = vsel %vm447, %v5370, %v5371
  %v5422 = vsel %vm447, %v5369, %v5370
  %v5423 = vsel %vm447, %v5368, %v5369
  %v5424 = vsel %vm447, %v5367, %v5368
  %v5425 = vsel %vm447, %v5366, %v5367
  %v5426 = vsel %vm447, %v5365, %v5366
  %v5427 = vsel %vm447, %v5364, %v5365
  %v5428 = vsel %vm447, 0.0, %v5364
  %v5429 = vsel %vm447, %v5363, 0.0
  %v5430 = vsel %vm447, %v5362, %v5363
  %v5431 = vsel %vm447, %v5361, %v5362
  %v5432 = vsel %vm447, %v5360, %v5361
  %v5433 = vsel %vm447, %v5359, %v5360
  %v5434 = vsel %vm447, %v5358, %v5359
  %v5435 = vsel %vm447, %v5357, %v5358
  %v5436 = vsel %vm447, %v5356, %v5357
  %v5437 = vsel %vm447, %v5355, %v5356
  %v5438 = vsel %vm447, %v5354, %v5355
  %v5439 = vsel %vm447, %v5353, %v5354
  %v5440 = vsel %vm447, %v5352, %v5353
  %v5441 = vsel %vm447, %v5351, %v5352
  %v5442 = vsel %vm447, %v5350, %v5351
  %v5443 = vsel %vm447, %v5349, %v5350
  %v5444 = vsel %vm447, %v5348, %v5349
  %v5445 = vsel %vm447, %v5347, %v5348
  %v5446 = vsel %vm447, %v5346, %v5347
  %v5447 = vsel %vm447, %v5345, %v5346
  %v5448 = vsel %vm447, %v5344, %v5345
  %v5449 = vsel %vm447, %v5343, %v5344
  %v5450 = vsel %vm447, %v5342, %v5343
  %v5451 = vsel %vm447, %v5341, %v5342
  %v5452 = vsel %vm447, %v5340, %v5341
  %v5453 = vsel %vm447, %v5339, %v5340
  %v5454 = vsel %vm447, %v5338, %v5339
  %v5455 = vsel %vm447, %v5337, %v5338
  %v5456 = vsel %vm447, %v5336, %v5337
  %v5457 = vsel %vm447, %v5335, %v5336
  %v5458 = vsel %vm447, %v5334, %v5335
  %v5459 = vsel %vm447, %v5333, %v5334
  %v5460 = vsel %vm447, %v5332, %v5333
  %v5461 = vsel %vm447, 0.0, %v5332
  %v5462 = vsel %vm517, %v5461, 0.0
  %v5463 = vsel %vm516, %v5460, 0.0
  %v5464 = vsel %vm517, %v5459, 0.0
  %v5465 = vsel %vm516, %v5458, 0.0
  %v5466 = vsel %vm517, %v5457, 0.0
  %v5467 = vsel %vm516, %v5456, 0.0
  %v5468 = vsel %vm517, %v5455, 0.0
  %v5469 = vsel %vm516, %v5454, 0.0
  %v5470 = vsel %vm517, %v5453, 0.0
  %v5471 = vsel %vm516, %v5452, 0.0
  %v5472 = vsel %vm517, %v5451, 0.0
  %v5473 = vsel %vm516, %v5450, 0.0
  %v5474 = vsel %vm517, %v5449, 0.0
  %v5475 = vsel %vm516, %v5448, 0.0
  %v5476 = vsel %vm517, %v5447, 0.0
  %v5477 = vsel %vm516, %v5446, 0.0
  %v5478 = vsel %vm517, %v5445, 0.0
  %v5479 = vsel %vm516, %v5444, 0.0
  %v5480 = vsel %vm517, %v5443, 0.0
  %v5481 = vsel %vm516, %v5442, 0.0
  %v5482 = vsel %vm517, %v5441, 0.0
  %v5483 = vsel %vm516, %v5440, 0.0
  %v5484 = vsel %vm517, %v5439, 0.0
  %v5485 = vsel %vm516, %v5438, 0.0
  %v5486 = vsel %vm517, %v5437, 0.0
  %v5487 = vsel %vm516, %v5436, 0.0
  %v5488 = vsel %vm517, %v5435, 0.0
  %v5489 = vsel %vm516, %v5434, 0.0
  %v5490 = vsel %vm517, %v5433, 0.0
  %v5491 = vsel %vm516, %v5432, 0.0
  %v5492 = vsel %vm517, %v5431, 0.0
  %v5493 = vsel %vm516, %v5430, 0.0
  %v5494 = vsel %vm517, %v5429, 0.0
  %v5495 = vsel %vm517, %v5428, 0.0
  %v5496 = vsel %vm516, %v5427, 0.0
  %v5497 = vsel %vm517, %v5426, 0.0
  %v5498 = vsel %vm516, %v5425, 0.0
  %v5499 = vsel %vm517, %v5424, 0.0
  %v5500 = vsel %vm516, %v5423, 0.0
  %v5501 = vsel %vm517, %v5422, 0.0
  %v5502 = vsel %vm516, %v5421, 0.0
  %v5503 = vsel %vm517, %v5420, 0.0
  %v5504 = vsel %vm516, %v5419, 0.0
  %v5505 = vsel %vm517, %v5418, 0.0
  %v5506 = vsel %vm516, %v5417, 0.0
  %v5507 = vsel %vm517, %v5416, 0.0
  %v5508 = vsel %vm516, %v5415, 0.0
  %v5509 = vsel %vm517, %v5414, 0.0
  %v5510 = vsel %vm516, %v5413, 0.0
  %v5511 = vsel %vm517, %v5412, 0.0
  %v5512 = vsel %vm516, %v5411, 0.0
  %v5513 = vsel %vm517, %v5410, 0.0
  %v5514 = vsel %vm516, %v5409, 0.0
  %v5515 = vsel %vm517, %v5408, 0.0
  %v5516 = vsel %vm516, %v5407, 0.0
  %v5517 = vsel %vm517, %v5406, 0.0
  %v5518 = vsel %vm516, %v5405, 0.0
  %v5519 = vsel %vm517, %v5404, 0.0
  %v5520 = vsel %vm516, %v5403, 0.0
  %v5521 = vsel %vm517, %v5402, 0.0
  %v5522 = vsel %vm516, %v5401, 0.0
  %v5523 = vsel %vm517, %v5400, 0.0
  %v5524 = vsel %vm516, %v5399, 0.0
  %v5525 = vsel %vm517, %v5398, 0.0
  %v5526 = vsel %vm516, %v5397, 0.0
  %v5527 = vsel %vm517, %v5396, 0.0
  %v5528 = vld [vmem:[%s9] sm:$0xff]
  %v5529 = vld [vmem:[%s9 + $0x8] sm:$0x1]
  %v5530 = vlaneseq
  %v5531 = vshrl.u32 %v5530, 7
  %v5532 = vsub.s32 0, %v5531
  %v5533 = vrot.slane %v5528, %v5532
  %v5534 = vmul.f32 %v315, %v5533
  %v5535 = vmul.f32 %v316, %v5533
  %v5536 = vmul.f32 %v5266, %v5533
  %v5537 = vmul.f32 %v5267, %v5533
  %v5538 = vmul.f32 %v5268, %v5533
  %v5539 = vmul.f32 %v5269, %v5533
  %v5540 = vmul.f32 %v5270, %v5533
  %v5541 = vmul.f32 %v5271, %v5533
  %v5542 = vmul.f32 %v5272, %v5533
  %v5543 = vmul.f32 %v5273, %v5533
  %v5544 = vmul.f32 %v5274, %v5533
  %v5545 = vmul.f32 %v5275, %v5533
  %v5546 = vmul.f32 %v5276, %v5533
  %v5547 = vmul.f32 %v5277, %v5533
  %v5548 = vmul.f32 %v5278, %v5533
  %v5549 = vmul.f32 %v5279, %v5533
  %v5550 = vmul.f32 %v5280, %v5533
  %v5551 = vmul.f32 %v5281, %v5533
  %v5552 = vmul.f32 %v5282, %v5533
  %v5553 = vmul.f32 %v5283, %v5533
  %v5554 = vmul.f32 %v5284, %v5533
  %v5555 = vmul.f32 %v5285, %v5533
  %v5556 = vmul.f32 %v5286, %v5533
  %v5557 = vmul.f32 %v5287, %v5533
  %v5558 = vmul.f32 %v5288, %v5533
  %v5559 = vmul.f32 %v5289, %v5533
  %v5560 = vmul.f32 %v5290, %v5533
  %v5561 = vmul.f32 %v5291, %v5533
  %v5562 = vmul.f32 %v5292, %v5533
  %v5563 = vmul.f32 %v5293, %v5533
  %v5564 = vmul.f32 %v5294, %v5533
  %v5565 = vmul.f32 %v5295, %v5533
  %v5566 = vmul.f32 %v5299, %v5533
  %v5567 = vmul.f32 %v5300, %v5533
  %v5568 = vmul.f32 %v5301, %v5533
  %v5569 = vmul.f32 %v5302, %v5533
  %v5570 = vmul.f32 %v5303, %v5533
  %v5571 = vmul.f32 %v5304, %v5533
  %v5572 = vmul.f32 %v5305, %v5533
  %v5573 = vmul.f32 %v5306, %v5533
  %v5574 = vmul.f32 %v5307, %v5533
  %v5575 = vmul.f32 %v5308, %v5533
  %v5576 = vmul.f32 %v5309, %v5533
  %v5577 = vmul.f32 %v5310, %v5533
  %v5578 = vmul.f32 %v5311, %v5533
  %v5579 = vmul.f32 %v5312, %v5533
  %v5580 = vmul.f32 %v5313, %v5533
  %v5581 = vmul.f32 %v5314, %v5533
  %v5582 = vmul.f32 %v5315, %v5533
  %v5583 = vmul.f32 %v5316, %v5533
  %v5584 = vmul.f32 %v5317, %v5533
  %v5585 = vmul.f32 %v5318, %v5533
  %v5586 = vmul.f32 %v5319, %v5533
  %v5587 = vmul.f32 %v5320, %v5533
  %v5588 = vmul.f32 %v5321, %v5533
  %v5589 = vmul.f32 %v5322, %v5533
  %v5590 = vmul.f32 %v5323, %v5533
  %v5591 = vmul.f32 %v5324, %v5533
  %v5592 = vmul.f32 %v5325, %v5533
  %v5593 = vmul.f32 %v5326, %v5533
  %v5594 = vmul.f32 %v5327, %v5533
  %v5595 = vmul.f32 %v5328, %v5533
  %v5596 = vlaneseq
  %v5597 = vshrl.u32 %v5596, 7
  %v5598 = vsub.s32 1, %v5597
  %v5599 = vrot.slane %v5528, %v5598
  %v5600 = vmul.f32 %v5599, 0.0
  %v5601 = vmul.f32 %v5072, %v5599
  %v5602 = vmul.f32 %v5073, %v5599
  %v5603 = vmul.f32 %v5074, %v5599
  %v5604 = vmul.f32 %v5075, %v5599
  %v5605 = vmul.f32 %v5076, %v5599
  %v5606 = vmul.f32 %v5077, %v5599
  %v5607 = vmul.f32 %v5078, %v5599
  %v5608 = vmul.f32 %v5079, %v5599
  %v5609 = vmul.f32 %v5080, %v5599
  %v5610 = vmul.f32 %v5081, %v5599
  %v5611 = vmul.f32 %v5082, %v5599
  %v5612 = vmul.f32 %v5083, %v5599
  %v5613 = vmul.f32 %v5084, %v5599
  %v5614 = vmul.f32 %v5085, %v5599
  %v5615 = vmul.f32 %v5086, %v5599
  %v5616 = vmul.f32 %v5087, %v5599
  %v5617 = vmul.f32 %v5088, %v5599
  %v5618 = vmul.f32 %v5089, %v5599
  %v5619 = vmul.f32 %v5090, %v5599
  %v5620 = vmul.f32 %v5091, %v5599
  %v5621 = vmul.f32 %v5092, %v5599
  %v5622 = vmul.f32 %v5093, %v5599
  %v5623 = vmul.f32 %v5094, %v5599
  %v5624 = vmul.f32 %v5095, %v5599
  %v5625 = vmul.f32 %v5096, %v5599
  %v5626 = vmul.f32 %v5097, %v5599
  %v5627 = vmul.f32 %v5098, %v5599
  %v5628 = vmul.f32 %v5099, %v5599
  %v5629 = vmul.f32 %v5100, %v5599
  %v5630 = vmul.f32 %v5101, %v5599
  %v5631 = vmul.f32 %v5104, %v5599
  %v5632 = vmul.f32 %v5105, %v5599
  %v5633 = vmul.f32 %v5106, %v5599
  %v5634 = vmul.f32 %v5107, %v5599
  %v5635 = vmul.f32 %v5108, %v5599
  %v5636 = vmul.f32 %v5109, %v5599
  %v5637 = vmul.f32 %v5110, %v5599
  %v5638 = vmul.f32 %v5111, %v5599
  %v5639 = vmul.f32 %v5112, %v5599
  %v5640 = vmul.f32 %v5113, %v5599
  %v5641 = vmul.f32 %v5114, %v5599
  %v5642 = vmul.f32 %v5115, %v5599
  %v5643 = vmul.f32 %v5116, %v5599
  %v5644 = vmul.f32 %v5117, %v5599
  %v5645 = vmul.f32 %v5118, %v5599
  %v5646 = vmul.f32 %v5119, %v5599
  %v5647 = vmul.f32 %v5120, %v5599
  %v5648 = vmul.f32 %v5121, %v5599
  %v5649 = vmul.f32 %v5122, %v5599
  %v5650 = vmul.f32 %v5123, %v5599
  %v5651 = vmul.f32 %v5124, %v5599
  %v5652 = vmul.f32 %v5125, %v5599
  %v5653 = vmul.f32 %v5126, %v5599
  %v5654 = vmul.f32 %v5127, %v5599
  %v5655 = vmul.f32 %v5128, %v5599
  %v5656 = vmul.f32 %v5129, %v5599
  %v5657 = vmul.f32 %v5130, %v5599
  %v5658 = vmul.f32 %v5131, %v5599
  %v5659 = vmul.f32 %v5132, %v5599
  %v5660 = vmul.f32 %v5133, %v5599
  %v5661 = vadd.f32 %v5534, %v5600
  %v5662 = vadd.f32 %v5535, %v5600
  %v5663 = vadd.f32 %v5536, %v5601
  %v5664 = vadd.f32 %v5537, %v5602
  %v5665 = vadd.f32 %v5538, %v5603
  %v5666 = vadd.f32 %v5539, %v5604
  %v5667 = vadd.f32 %v5540, %v5605
  %v5668 = vadd.f32 %v5541, %v5606
  %v5669 = vadd.f32 %v5542, %v5607
  %v5670 = vadd.f32 %v5543, %v5608
  %v5671 = vadd.f32 %v5544, %v5609
  %v5672 = vadd.f32 %v5545, %v5610
  %v5673 = vadd.f32 %v5546, %v5611
  %v5674 = vadd.f32 %v5547, %v5612
  %v5675 = vadd.f32 %v5548, %v5613
  %v5676 = vadd.f32 %v5549, %v5614
  %v5677 = vadd.f32 %v5550, %v5615
  %v5678 = vadd.f32 %v5551, %v5616
  %v5679 = vadd.f32 %v5552, %v5617
  %v5680 = vadd.f32 %v5553, %v5618
  %v5681 = vadd.f32 %v5554, %v5619
  %v5682 = vadd.f32 %v5555, %v5620
  %v5683 = vadd.f32 %v5556, %v5621
  %v5684 = vadd.f32 %v5557, %v5622
  %v5685 = vadd.f32 %v5558, %v5623
  %v5686 = vadd.f32 %v5559, %v5624
  %v5687 = vadd.f32 %v5560, %v5625
  %v5688 = vadd.f32 %v5561, %v5626
  %v5689 = vadd.f32 %v5562, %v5627
  %v5690 = vadd.f32 %v5563, %v5628
  %v5691 = vadd.f32 %v5564, %v5629
  %v5692 = vadd.f32 %v5565, %v5630
  %v5693 = vadd.f32 %v5566, %v5631
  %v5694 = vadd.f32 %v5567, %v5632
  %v5695 = vadd.f32 %v5568, %v5633
  %v5696 = vadd.f32 %v5569, %v5634
  %v5697 = vadd.f32 %v5570, %v5635
  %v5698 = vadd.f32 %v5571, %v5636
  %v5699 = vadd.f32 %v5572, %v5637
  %v5700 = vadd.f32 %v5573, %v5638
  %v5701 = vadd.f32 %v5574, %v5639
  %v5702 = vadd.f32 %v5575, %v5640
  %v5703 = vadd.f32 %v5576, %v5641
  %v5704 = vadd.f32 %v5577, %v5642
  %v5705 = vadd.f32 %v5578, %v5643
  %v5706 = vadd.f32 %v5579, %v5644
  %v5707 = vadd.f32 %v5580, %v5645
  %v5708 = vadd.f32 %v5581, %v5646
  %v5709 = vadd.f32 %v5582, %v5647
  %v5710 = vadd.f32 %v5583, %v5648
  %v5711 = vadd.f32 %v5584, %v5649
  %v5712 = vadd.f32 %v5585, %v5650
  %v5713 = vadd.f32 %v5586, %v5651
  %v5714 = vadd.f32 %v5587, %v5652
  %v5715 = vadd.f32 %v5588, %v5653
  %v5716 = vadd.f32 %v5589, %v5654
  %v5717 = vadd.f32 %v5590, %v5655
  %v5718 = vadd.f32 %v5591, %v5656
  %v5719 = vadd.f32 %v5592, %v5657
  %v5720 = vadd.f32 %v5593, %v5658
  %v5721 = vadd.f32 %v5594, %v5659
  %v5722 = vadd.f32 %v5595, %v5660
  %v5723 = vlaneseq
  %v5724 = vshrl.u32 %v5723, 7
  %v5725 = vsub.s32 2, %v5724
  %v5726 = vrot.slane %v5528, %v5725
  %v5727 = vmul.f32 %v518, %v5726
  %v5728 = vmul.f32 %v5462, %v5726
  %v5729 = vmul.f32 %v5463, %v5726
  %v5730 = vmul.f32 %v5464, %v5726
  %v5731 = vmul.f32 %v5465, %v5726
  %v5732 = vmul.f32 %v5466, %v5726
  %v5733 = vmul.f32 %v5467, %v5726
  %v5734 = vmul.f32 %v5468, %v5726
  %v5735 = vmul.f32 %v5469, %v5726
  %v5736 = vmul.f32 %v5470, %v5726
  %v5737 = vmul.f32 %v5471, %v5726
  %v5738 = vmul.f32 %v5472, %v5726
  %v5739 = vmul.f32 %v5473, %v5726
  %v5740 = vmul.f32 %v5474, %v5726
  %v5741 = vmul.f32 %v5475, %v5726
  %v5742 = vmul.f32 %v5476, %v5726
  %v5743 = vmul.f32 %v5477, %v5726
  %v5744 = vmul.f32 %v5478, %v5726
  %v5745 = vmul.f32 %v5479, %v5726
  %v5746 = vmul.f32 %v5480, %v5726
  %v5747 = vmul.f32 %v5481, %v5726
  %v5748 = vmul.f32 %v5482, %v5726
  %v5749 = vmul.f32 %v5483, %v5726
  %v5750 = vmul.f32 %v5484, %v5726
  %v5751 = vmul.f32 %v5485, %v5726
  %v5752 = vmul.f32 %v5486, %v5726
  %v5753 = vmul.f32 %v5487, %v5726
  %v5754 = vmul.f32 %v5488, %v5726
  %v5755 = vmul.f32 %v5489, %v5726
  %v5756 = vmul.f32 %v5490, %v5726
  %v5757 = vmul.f32 %v5491, %v5726
  %v5758 = vmul.f32 %v5492, %v5726
  %v5759 = vmul.f32 %v5495, %v5726
  %v5760 = vmul.f32 %v5496, %v5726
  %v5761 = vmul.f32 %v5497, %v5726
  %v5762 = vmul.f32 %v5498, %v5726
  %v5763 = vmul.f32 %v5499, %v5726
  %v5764 = vmul.f32 %v5500, %v5726
  %v5765 = vmul.f32 %v5501, %v5726
  %v5766 = vmul.f32 %v5502, %v5726
  %v5767 = vmul.f32 %v5503, %v5726
  %v5768 = vmul.f32 %v5504, %v5726
  %v5769 = vmul.f32 %v5505, %v5726
  %v5770 = vmul.f32 %v5506, %v5726
  %v5771 = vmul.f32 %v5507, %v5726
  %v5772 = vmul.f32 %v5508, %v5726
  %v5773 = vmul.f32 %v5509, %v5726
  %v5774 = vmul.f32 %v5510, %v5726
  %v5775 = vmul.f32 %v5511, %v5726
  %v5776 = vmul.f32 %v5512, %v5726
  %v5777 = vmul.f32 %v5513, %v5726
  %v5778 = vmul.f32 %v5514, %v5726
  %v5779 = vmul.f32 %v5515, %v5726
  %v5780 = vmul.f32 %v5516, %v5726
  %v5781 = vmul.f32 %v5517, %v5726
  %v5782 = vmul.f32 %v5518, %v5726
  %v5783 = vmul.f32 %v5519, %v5726
  %v5784 = vmul.f32 %v5520, %v5726
  %v5785 = vmul.f32 %v5521, %v5726
  %v5786 = vmul.f32 %v5522, %v5726
  %v5787 = vmul.f32 %v5523, %v5726
  %v5788 = vmul.f32 %v5524, %v5726
  %v5789 = vmul.f32 %v5525, %v5726
  %v5790 = vadd.f32 %v5661, %v5727
  %v5791 = vadd.f32 %v5662, %v5728
  %v5792 = vadd.f32 %v5663, %v5729
  %v5793 = vadd.f32 %v5664, %v5730
  %v5794 = vadd.f32 %v5665, %v5731
  %v5795 = vadd.f32 %v5666, %v5732
  %v5796 = vadd.f32 %v5667, %v5733
  %v5797 = vadd.f32 %v5668, %v5734
  %v5798 = vadd.f32 %v5669, %v5735
  %v5799 = vadd.f32 %v5670, %v5736
  %v5800 = vadd.f32 %v5671, %v5737
  %v5801 = vadd.f32 %v5672, %v5738
  %v5802 = vadd.f32 %v5673, %v5739
  %v5803 = vadd.f32 %v5674, %v5740
  %v5804 = vadd.f32 %v5675, %v5741
  %v5805 = vadd.f32 %v5676, %v5742
  %v5806 = vadd.f32 %v5677, %v5743
  %v5807 = vadd.f32 %v5678, %v5744
  %v5808 = vadd.f32 %v5679, %v5745
  %v5809 = vadd.f32 %v5680, %v5746
  %v5810 = vadd.f32 %v5681, %v5747
  %v5811 = vadd.f32 %v5682, %v5748
  %v5812 = vadd.f32 %v5683, %v5749
  %v5813 = vadd.f32 %v5684, %v5750
  %v5814 = vadd.f32 %v5685, %v5751
  %v5815 = vadd.f32 %v5686, %v5752
  %v5816 = vadd.f32 %v5687, %v5753
  %v5817 = vadd.f32 %v5688, %v5754
  %v5818 = vadd.f32 %v5689, %v5755
  %v5819 = vadd.f32 %v5690, %v5756
  %v5820 = vadd.f32 %v5691, %v5757
  %v5821 = vadd.f32 %v5692, %v5758
  %v5822 = vadd.f32 %v5662, %v5759
  %v5823 = vadd.f32 %v5693, %v5760
  %v5824 = vadd.f32 %v5694, %v5761
  %v5825 = vadd.f32 %v5695, %v5762
  %v5826 = vadd.f32 %v5696, %v5763
  %v5827 = vadd.f32 %v5697, %v5764
  %v5828 = vadd.f32 %v5698, %v5765
  %v5829 = vadd.f32 %v5699, %v5766
  %v5830 = vadd.f32 %v5700, %v5767
  %v5831 = vadd.f32 %v5701, %v5768
  %v5832 = vadd.f32 %v5702, %v5769
  %v5833 = vadd.f32 %v5703, %v5770
  %v5834 = vadd.f32 %v5704, %v5771
  %v5835 = vadd.f32 %v5705, %v5772
  %v5836 = vadd.f32 %v5706, %v5773
  %v5837 = vadd.f32 %v5707, %v5774
  %v5838 = vadd.f32 %v5708, %v5775
  %v5839 = vadd.f32 %v5709, %v5776
  %v5840 = vadd.f32 %v5710, %v5777
  %v5841 = vadd.f32 %v5711, %v5778
  %v5842 = vadd.f32 %v5712, %v5779
  %v5843 = vadd.f32 %v5713, %v5780
  %v5844 = vadd.f32 %v5714, %v5781
  %v5845 = vadd.f32 %v5715, %v5782
  %v5846 = vadd.f32 %v5716, %v5783
  %v5847 = vadd.f32 %v5717, %v5784
  %v5848 = vadd.f32 %v5718, %v5785
  %v5849 = vadd.f32 %v5719, %v5786
  %v5850 = vadd.f32 %v5720, %v5787
  %v5851 = vadd.f32 %v5721, %v5788
  %v5852 = vadd.f32 %v5722, %v5789
  %v5853 = vlaneseq
  %v5854 = vshrl.u32 %v5853, 7
  %v5855 = vsub.s32 3, %v5854
  %v5856 = vrot.slane %v5528, %v5855
  %v5857 = vmul.f32 %v5266, %v5856
  %v5858 = vmul.f32 %v5267, %v5856
  %v5859 = vmul.f32 %v5268, %v5856
  %v5860 = vmul.f32 %v5269, %v5856
  %v5861 = vmul.f32 %v5270, %v5856
  %v5862 = vmul.f32 %v5271, %v5856
  %v5863 = vmul.f32 %v5272, %v5856
  %v5864 = vmul.f32 %v5273, %v5856
  %v5865 = vmul.f32 %v5274, %v5856
  %v5866 = vmul.f32 %v5275, %v5856
  %v5867 = vmul.f32 %v5276, %v5856
  %v5868 = vmul.f32 %v5277, %v5856
  %v5869 = vmul.f32 %v5278, %v5856
  %v5870 = vmul.f32 %v5279, %v5856
  %v5871 = vmul.f32 %v5280, %v5856
  %v5872 = vmul.f32 %v5281, %v5856
  %v5873 = vmul.f32 %v5282, %v5856
  %v5874 = vmul.f32 %v5283, %v5856
  %v5875 = vmul.f32 %v5284, %v5856
  %v5876 = vmul.f32 %v5285, %v5856
  %v5877 = vmul.f32 %v5286, %v5856
  %v5878 = vmul.f32 %v5287, %v5856
  %v5879 = vmul.f32 %v5288, %v5856
  %v5880 = vmul.f32 %v5289, %v5856
  %v5881 = vmul.f32 %v5290, %v5856
  %v5882 = vmul.f32 %v5291, %v5856
  %v5883 = vmul.f32 %v5292, %v5856
  %v5884 = vmul.f32 %v5293, %v5856
  %v5885 = vmul.f32 %v5294, %v5856
  %v5886 = vmul.f32 %v5295, %v5856
  %v5887 = vmul.f32 %v5296, %v5856
  %v5888 = vmul.f32 %v5297, %v5856
  %v5889 = vmul.f32 %v5299, %v5856
  %v5890 = vmul.f32 %v5300, %v5856
  %v5891 = vmul.f32 %v5301, %v5856
  %v5892 = vmul.f32 %v5302, %v5856
  %v5893 = vmul.f32 %v5303, %v5856
  %v5894 = vmul.f32 %v5304, %v5856
  %v5895 = vmul.f32 %v5305, %v5856
  %v5896 = vmul.f32 %v5306, %v5856
  %v5897 = vmul.f32 %v5307, %v5856
  %v5898 = vmul.f32 %v5308, %v5856
  %v5899 = vmul.f32 %v5309, %v5856
  %v5900 = vmul.f32 %v5310, %v5856
  %v5901 = vmul.f32 %v5311, %v5856
  %v5902 = vmul.f32 %v5312, %v5856
  %v5903 = vmul.f32 %v5313, %v5856
  %v5904 = vmul.f32 %v5314, %v5856
  %v5905 = vmul.f32 %v5315, %v5856
  %v5906 = vmul.f32 %v5316, %v5856
  %v5907 = vmul.f32 %v5317, %v5856
  %v5908 = vmul.f32 %v5318, %v5856
  %v5909 = vmul.f32 %v5319, %v5856
  %v5910 = vmul.f32 %v5320, %v5856
  %v5911 = vmul.f32 %v5321, %v5856
  %v5912 = vmul.f32 %v5322, %v5856
  %v5913 = vmul.f32 %v5323, %v5856
  %v5914 = vmul.f32 %v5324, %v5856
  %v5915 = vmul.f32 %v5325, %v5856
  %v5916 = vmul.f32 %v5326, %v5856
  %v5917 = vmul.f32 %v5327, %v5856
  %v5918 = vmul.f32 %v5328, %v5856
  %v5919 = vmul.f32 %v5329, %v5856
  %v5920 = vmul.f32 %v5330, %v5856
  %v5921 = vadd.f32 %v5790, %v5857
  %v5922 = vadd.f32 %v5791, %v5858
  %v5923 = vadd.f32 %v5792, %v5859
  %v5924 = vadd.f32 %v5793, %v5860
  %v5925 = vadd.f32 %v5794, %v5861
  %v5926 = vadd.f32 %v5795, %v5862
  %v5927 = vadd.f32 %v5796, %v5863
  %v5928 = vadd.f32 %v5797, %v5864
  %v5929 = vadd.f32 %v5798, %v5865
  %v5930 = vadd.f32 %v5799, %v5866
  %v5931 = vadd.f32 %v5800, %v5867
  %v5932 = vadd.f32 %v5801, %v5868
  %v5933 = vadd.f32 %v5802, %v5869
  %v5934 = vadd.f32 %v5803, %v5870
  %v5935 = vadd.f32 %v5804, %v5871
  %v5936 = vadd.f32 %v5805, %v5872
  %v5937 = vadd.f32 %v5806, %v5873
  %v5938 = vadd.f32 %v5807, %v5874
  %v5939 = vadd.f32 %v5808, %v5875
  %v5940 = vadd.f32 %v5809, %v5876
  %v5941 = vadd.f32 %v5810, %v5877
  %v5942 = vadd.f32 %v5811, %v5878
  %v5943 = vadd.f32 %v5812, %v5879
  %v5944 = vadd.f32 %v5813, %v5880
  %v5945 = vadd.f32 %v5814, %v5881
  %v5946 = vadd.f32 %v5815, %v5882
  %v5947 = vadd.f32 %v5816, %v5883
  %v5948 = vadd.f32 %v5817, %v5884
  %v5949 = vadd.f32 %v5818, %v5885
  %v5950 = vadd.f32 %v5819, %v5886
  %v5951 = vadd.f32 %v5820, %v5887
  %v5952 = vadd.f32 %v5821, %v5888
  %v5953 = vadd.f32 %v5790, %v5889
  %v5954 = vadd.f32 %v5822, %v5890
  %v5955 = vadd.f32 %v5823, %v5891
  %v5956 = vadd.f32 %v5824, %v5892
  %v5957 = vadd.f32 %v5825, %v5893
  %v5958 = vadd.f32 %v5826, %v5894
  %v5959 = vadd.f32 %v5827, %v5895
  %v5960 = vadd.f32 %v5828, %v5896
  %v5961 = vadd.f32 %v5829, %v5897
  %v5962 = vadd.f32 %v5830, %v5898
  %v5963 = vadd.f32 %v5831, %v5899
  %v5964 = vadd.f32 %v5832, %v5900
  %v5965 = vadd.f32 %v5833, %v5901
  %v5966 = vadd.f32 %v5834, %v5902
  %v5967 = vadd.f32 %v5835, %v5903
  %v5968 = vadd.f32 %v5836, %v5904
  %v5969 = vadd.f32 %v5837, %v5905
  %v5970 = vadd.f32 %v5838, %v5906
  %v5971 = vadd.f32 %v5839, %v5907
  %v5972 = vadd.f32 %v5840, %v5908
  %v5973 = vadd.f32 %v5841, %v5909
  %v5974 = vadd.f32 %v5842, %v5910
  %v5975 = vadd.f32 %v5843, %v5911
  %v5976 = vadd.f32 %v5844, %v5912
  %v5977 = vadd.f32 %v5845, %v5913
  %v5978 = vadd.f32 %v5846, %v5914
  %v5979 = vadd.f32 %v5847, %v5915
  %v5980 = vadd.f32 %v5848, %v5916
  %v5981 = vadd.f32 %v5849, %v5917
  %v5982 = vadd.f32 %v5850, %v5918
  %v5983 = vadd.f32 %v5851, %v5919
  %v5984 = vadd.f32 %v5852, %v5920
  %v5985 = vlaneseq
  %v5986 = vshrl.u32 %v5985, 7
  %v5987 = vsub.s32 4, %v5986
  %v5988 = vrot.slane %v5528, %v5987
  %v5989 = vmul.f32 %v5072, %v5988
  %v5990 = vmul.f32 %v5073, %v5988
  %v5991 = vmul.f32 %v5074, %v5988
  %v5992 = vmul.f32 %v5075, %v5988
  %v5993 = vmul.f32 %v5076, %v5988
  %v5994 = vmul.f32 %v5077, %v5988
  %v5995 = vmul.f32 %v5078, %v5988
  %v5996 = vmul.f32 %v5079, %v5988
  %v5997 = vmul.f32 %v5080, %v5988
  %v5998 = vmul.f32 %v5081, %v5988
  %v5999 = vmul.f32 %v5082, %v5988
  %v6000 = vmul.f32 %v5083, %v5988
  %v6001 = vmul.f32 %v5084, %v5988
  %v6002 = vmul.f32 %v5085, %v5988
  %v6003 = vmul.f32 %v5086, %v5988
  %v6004 = vmul.f32 %v5087, %v5988
  %v6005 = vmul.f32 %v5088, %v5988
  %v6006 = vmul.f32 %v5089, %v5988
  %v6007 = vmul.f32 %v5090, %v5988
  %v6008 = vmul.f32 %v5091, %v5988
  %v6009 = vmul.f32 %v5092, %v5988
  %v6010 = vmul.f32 %v5093, %v5988
  %v6011 = vmul.f32 %v5094, %v5988
  %v6012 = vmul.f32 %v5095, %v5988
  %v6013 = vmul.f32 %v5096, %v5988
  %v6014 = vmul.f32 %v5097, %v5988
  %v6015 = vmul.f32 %v5098, %v5988
  %v6016 = vmul.f32 %v5099, %v5988
  %v6017 = vmul.f32 %v5100, %v5988
  %v6018 = vmul.f32 %v5101, %v5988
  %v6019 = vmul.f32 %v5102, %v5988
  %v6020 = vmul.f32 %v5103, %v5988
  %v6021 = vmul.f32 %v5104, %v5988
  %v6022 = vmul.f32 %v5105, %v5988
  %v6023 = vmul.f32 %v5106, %v5988
  %v6024 = vmul.f32 %v5107, %v5988
  %v6025 = vmul.f32 %v5108, %v5988
  %v6026 = vmul.f32 %v5109, %v5988
  %v6027 = vmul.f32 %v5110, %v5988
  %v6028 = vmul.f32 %v5111, %v5988
  %v6029 = vmul.f32 %v5112, %v5988
  %v6030 = vmul.f32 %v5113, %v5988
  %v6031 = vmul.f32 %v5114, %v5988
  %v6032 = vmul.f32 %v5115, %v5988
  %v6033 = vmul.f32 %v5116, %v5988
  %v6034 = vmul.f32 %v5117, %v5988
  %v6035 = vmul.f32 %v5118, %v5988
  %v6036 = vmul.f32 %v5119, %v5988
  %v6037 = vmul.f32 %v5120, %v5988
  %v6038 = vmul.f32 %v5121, %v5988
  %v6039 = vmul.f32 %v5122, %v5988
  %v6040 = vmul.f32 %v5123, %v5988
  %v6041 = vmul.f32 %v5124, %v5988
  %v6042 = vmul.f32 %v5125, %v5988
  %v6043 = vmul.f32 %v5126, %v5988
  %v6044 = vmul.f32 %v5127, %v5988
  %v6045 = vmul.f32 %v5128, %v5988
  %v6046 = vmul.f32 %v5129, %v5988
  %v6047 = vmul.f32 %v5130, %v5988
  %v6048 = vmul.f32 %v5131, %v5988
  %v6049 = vmul.f32 %v5132, %v5988
  %v6050 = vmul.f32 %v5133, %v5988
  %v6051 = vmul.f32 %v5134, %v5988
  %v6052 = vmul.f32 %v5135, %v5988
  %v6053 = vadd.f32 %v5921, %v5989
  %v6054 = vadd.f32 %v5922, %v5990
  %v6055 = vadd.f32 %v5923, %v5991
  %v6056 = vadd.f32 %v5924, %v5992
  %v6057 = vadd.f32 %v5925, %v5993
  %v6058 = vadd.f32 %v5926, %v5994
  %v6059 = vadd.f32 %v5927, %v5995
  %v6060 = vadd.f32 %v5928, %v5996
  %v6061 = vadd.f32 %v5929, %v5997
  %v6062 = vadd.f32 %v5930, %v5998
  %v6063 = vadd.f32 %v5931, %v5999
  %v6064 = vadd.f32 %v5932, %v6000
  %v6065 = vadd.f32 %v5933, %v6001
  %v6066 = vadd.f32 %v5934, %v6002
  %v6067 = vadd.f32 %v5935, %v6003
  %v6068 = vadd.f32 %v5936, %v6004
  %v6069 = vadd.f32 %v5937, %v6005
  %v6070 = vadd.f32 %v5938, %v6006
  %v6071 = vadd.f32 %v5939, %v6007
  %v6072 = vadd.f32 %v5940, %v6008
  %v6073 = vadd.f32 %v5941, %v6009
  %v6074 = vadd.f32 %v5942, %v6010
  %v6075 = vadd.f32 %v5943, %v6011
  %v6076 = vadd.f32 %v5944, %v6012
  %v6077 = vadd.f32 %v5945, %v6013
  %v6078 = vadd.f32 %v5946, %v6014
  %v6079 = vadd.f32 %v5947, %v6015
  %v6080 = vadd.f32 %v5948, %v6016
  %v6081 = vadd.f32 %v5949, %v6017
  %v6082 = vadd.f32 %v5950, %v6018
  %v6083 = vadd.f32 %v5951, %v6019
  %v6084 = vadd.f32 %v5952, %v6020
  %v6085 = vadd.f32 %v5953, %v6021
  %v6086 = vadd.f32 %v5954, %v6022
  %v6087 = vadd.f32 %v5955, %v6023
  %v6088 = vadd.f32 %v5956, %v6024
  %v6089 = vadd.f32 %v5957, %v6025
  %v6090 = vadd.f32 %v5958, %v6026
  %v6091 = vadd.f32 %v5959, %v6027
  %v6092 = vadd.f32 %v5960, %v6028
  %v6093 = vadd.f32 %v5961, %v6029
  %v6094 = vadd.f32 %v5962, %v6030
  %v6095 = vadd.f32 %v5963, %v6031
  %v6096 = vadd.f32 %v5964, %v6032
  %v6097 = vadd.f32 %v5965, %v6033
  %v6098 = vadd.f32 %v5966, %v6034
  %v6099 = vadd.f32 %v5967, %v6035
  %v6100 = vadd.f32 %v5968, %v6036
  %v6101 = vadd.f32 %v5969, %v6037
  %v6102 = vadd.f32 %v5970, %v6038
  %v6103 = vadd.f32 %v5971, %v6039
  %v6104 = vadd.f32 %v5972, %v6040
  %v6105 = vadd.f32 %v5973, %v6041
  %v6106 = vadd.f32 %v5974, %v6042
  %v6107 = vadd.f32 %v5975, %v6043
  %v6108 = vadd.f32 %v5976, %v6044
  %v6109 = vadd.f32 %v5977, %v6045
  %v6110 = vadd.f32 %v5978, %v6046
  %v6111 = vadd.f32 %v5979, %v6047
  %v6112 = vadd.f32 %v5980, %v6048
  %v6113 = vadd.f32 %v5981, %v6049
  %v6114 = vadd.f32 %v5982, %v6050
  %v6115 = vadd.f32 %v5983, %v6051
  %v6116 = vadd.f32 %v5984, %v6052
  %v6117 = vlaneseq
  %v6118 = vshrl.u32 %v6117, 7
  %v6119 = vsub.s32 5, %v6118
  %v6120 = vrot.slane %v5528, %v6119
  %v6121 = vmul.f32 %v5463, %v6120
  %v6122 = vmul.f32 %v5464, %v6120
  %v6123 = vmul.f32 %v5465, %v6120
  %v6124 = vmul.f32 %v5466, %v6120
  %v6125 = vmul.f32 %v5467, %v6120
  %v6126 = vmul.f32 %v5468, %v6120
  %v6127 = vmul.f32 %v5469, %v6120
  %v6128 = vmul.f32 %v5470, %v6120
  %v6129 = vmul.f32 %v5471, %v6120
  %v6130 = vmul.f32 %v5472, %v6120
  %v6131 = vmul.f32 %v5473, %v6120
  %v6132 = vmul.f32 %v5474, %v6120
  %v6133 = vmul.f32 %v5475, %v6120
  %v6134 = vmul.f32 %v5476, %v6120
  %v6135 = vmul.f32 %v5477, %v6120
  %v6136 = vmul.f32 %v5478, %v6120
  %v6137 = vmul.f32 %v5479, %v6120
  %v6138 = vmul.f32 %v5480, %v6120
  %v6139 = vmul.f32 %v5481, %v6120
  %v6140 = vmul.f32 %v5482, %v6120
  %v6141 = vmul.f32 %v5483, %v6120
  %v6142 = vmul.f32 %v5484, %v6120
  %v6143 = vmul.f32 %v5485, %v6120
  %v6144 = vmul.f32 %v5486, %v6120
  %v6145 = vmul.f32 %v5487, %v6120
  %v6146 = vmul.f32 %v5488, %v6120
  %v6147 = vmul.f32 %v5489, %v6120
  %v6148 = vmul.f32 %v5490, %v6120
  %v6149 = vmul.f32 %v5491, %v6120
  %v6150 = vmul.f32 %v5492, %v6120
  %v6151 = vmul.f32 %v5493, %v6120
  %v6152 = vmul.f32 %v5494, %v6120
  %v6153 = vmul.f32 %v5496, %v6120
  %v6154 = vmul.f32 %v5497, %v6120
  %v6155 = vmul.f32 %v5498, %v6120
  %v6156 = vmul.f32 %v5499, %v6120
  %v6157 = vmul.f32 %v5500, %v6120
  %v6158 = vmul.f32 %v5501, %v6120
  %v6159 = vmul.f32 %v5502, %v6120
  %v6160 = vmul.f32 %v5503, %v6120
  %v6161 = vmul.f32 %v5504, %v6120
  %v6162 = vmul.f32 %v5505, %v6120
  %v6163 = vmul.f32 %v5506, %v6120
  %v6164 = vmul.f32 %v5507, %v6120
  %v6165 = vmul.f32 %v5508, %v6120
  %v6166 = vmul.f32 %v5509, %v6120
  %v6167 = vmul.f32 %v5510, %v6120
  %v6168 = vmul.f32 %v5511, %v6120
  %v6169 = vmul.f32 %v5512, %v6120
  %v6170 = vmul.f32 %v5513, %v6120
  %v6171 = vmul.f32 %v5514, %v6120
  %v6172 = vmul.f32 %v5515, %v6120
  %v6173 = vmul.f32 %v5516, %v6120
  %v6174 = vmul.f32 %v5517, %v6120
  %v6175 = vmul.f32 %v5518, %v6120
  %v6176 = vmul.f32 %v5519, %v6120
  %v6177 = vmul.f32 %v5520, %v6120
  %v6178 = vmul.f32 %v5521, %v6120
  %v6179 = vmul.f32 %v5522, %v6120
  %v6180 = vmul.f32 %v5523, %v6120
  %v6181 = vmul.f32 %v5524, %v6120
  %v6182 = vmul.f32 %v5525, %v6120
  %v6183 = vmul.f32 %v5526, %v6120
  %v6184 = vmul.f32 %v5527, %v6120
  %v6185 = vadd.f32 %v6053, %v6121
  %v6186 = vadd.f32 %v6054, %v6122
  %v6187 = vadd.f32 %v6055, %v6123
  %v6188 = vadd.f32 %v6056, %v6124
  %v6189 = vadd.f32 %v6057, %v6125
  %v6190 = vadd.f32 %v6058, %v6126
  %v6191 = vadd.f32 %v6059, %v6127
  %v6192 = vadd.f32 %v6060, %v6128
  %v6193 = vadd.f32 %v6061, %v6129
  %v6194 = vadd.f32 %v6062, %v6130
  %v6195 = vadd.f32 %v6063, %v6131
  %v6196 = vadd.f32 %v6064, %v6132
  %v6197 = vadd.f32 %v6065, %v6133
  %v6198 = vadd.f32 %v6066, %v6134
  %v6199 = vadd.f32 %v6067, %v6135
  %v6200 = vadd.f32 %v6068, %v6136
  %v6201 = vadd.f32 %v6069, %v6137
  %v6202 = vadd.f32 %v6070, %v6138
  %v6203 = vadd.f32 %v6071, %v6139
  %v6204 = vadd.f32 %v6072, %v6140
  %v6205 = vadd.f32 %v6073, %v6141
  %v6206 = vadd.f32 %v6074, %v6142
  %v6207 = vadd.f32 %v6075, %v6143
  %v6208 = vadd.f32 %v6076, %v6144
  %v6209 = vadd.f32 %v6077, %v6145
  %v6210 = vadd.f32 %v6078, %v6146
  %v6211 = vadd.f32 %v6079, %v6147
  %v6212 = vadd.f32 %v6080, %v6148
  %v6213 = vadd.f32 %v6081, %v6149
  %v6214 = vadd.f32 %v6082, %v6150
  %v6215 = vadd.f32 %v6083, %v6151
  %v6216 = vadd.f32 %v6084, %v6152
  %v6217 = vadd.f32 %v6085, %v6153
  %v6218 = vadd.f32 %v6086, %v6154
  %v6219 = vadd.f32 %v6087, %v6155
  %v6220 = vadd.f32 %v6088, %v6156
  %v6221 = vadd.f32 %v6089, %v6157
  %v6222 = vadd.f32 %v6090, %v6158
  %v6223 = vadd.f32 %v6091, %v6159
  %v6224 = vadd.f32 %v6092, %v6160
  %v6225 = vadd.f32 %v6093, %v6161
  %v6226 = vadd.f32 %v6094, %v6162
  %v6227 = vadd.f32 %v6095, %v6163
  %v6228 = vadd.f32 %v6096, %v6164
  %v6229 = vadd.f32 %v6097, %v6165
  %v6230 = vadd.f32 %v6098, %v6166
  %v6231 = vadd.f32 %v6099, %v6167
  %v6232 = vadd.f32 %v6100, %v6168
  %v6233 = vadd.f32 %v6101, %v6169
  %v6234 = vadd.f32 %v6102, %v6170
  %v6235 = vadd.f32 %v6103, %v6171
  %v6236 = vadd.f32 %v6104, %v6172
  %v6237 = vadd.f32 %v6105, %v6173
  %v6238 = vadd.f32 %v6106, %v6174
  %v6239 = vadd.f32 %v6107, %v6175
  %v6240 = vadd.f32 %v6108, %v6176
  %v6241 = vadd.f32 %v6109, %v6177
  %v6242 = vadd.f32 %v6110, %v6178
  %v6243 = vadd.f32 %v6111, %v6179
  %v6244 = vadd.f32 %v6112, %v6180
  %v6245 = vadd.f32 %v6113, %v6181
  %v6246 = vadd.f32 %v6114, %v6182
  %v6247 = vadd.f32 %v6115, %v6183
  %v6248 = vadd.f32 %v6116, %v6184
  %v6249 = vlaneseq
  %v6250 = vshrl.u32 %v6249, 7
  %v6251 = vsub.s32 6, %v6250
  %v6252 = vrot.slane %v5528, %v6251
  %v6253 = vmul.f32 %v5268, %v6252
  %v6254 = vmul.f32 %v5269, %v6252
  %v6255 = vmul.f32 %v5270, %v6252
  %v6256 = vmul.f32 %v5271, %v6252
  %v6257 = vmul.f32 %v5272, %v6252
  %v6258 = vmul.f32 %v5273, %v6252
  %v6259 = vmul.f32 %v5274, %v6252
  %v6260 = vmul.f32 %v5275, %v6252
  %v6261 = vmul.f32 %v5276, %v6252
  %v6262 = vmul.f32 %v5277, %v6252
  %v6263 = vmul.f32 %v5278, %v6252
  %v6264 = vmul.f32 %v5279, %v6252
  %v6265 = vmul.f32 %v5280, %v6252
  %v6266 = vmul.f32 %v5281, %v6252
  %v6267 = vmul.f32 %v5282, %v6252
  %v6268 = vmul.f32 %v5283, %v6252
  %v6269 = vmul.f32 %v5284, %v6252
  %v6270 = vmul.f32 %v5285, %v6252
  %v6271 = vmul.f32 %v5286, %v6252
  %v6272 = vmul.f32 %v5287, %v6252
  %v6273 = vmul.f32 %v5288, %v6252
  %v6274 = vmul.f32 %v5289, %v6252
  %v6275 = vmul.f32 %v5290, %v6252
  %v6276 = vmul.f32 %v5291, %v6252
  %v6277 = vmul.f32 %v5292, %v6252
  %v6278 = vmul.f32 %v5293, %v6252
  %v6279 = vmul.f32 %v5294, %v6252
  %v6280 = vmul.f32 %v5295, %v6252
  %v6281 = vmul.f32 %v5296, %v6252
  %v6282 = vmul.f32 %v5297, %v6252
  %v6283 = vmul.f32 %v5298, %v6252
  %v6284 = vmul.f32 %v316, %v6252
  %v6285 = vmul.f32 %v5301, %v6252
  %v6286 = vmul.f32 %v5302, %v6252
  %v6287 = vmul.f32 %v5303, %v6252
  %v6288 = vmul.f32 %v5304, %v6252
  %v6289 = vmul.f32 %v5305, %v6252
  %v6290 = vmul.f32 %v5306, %v6252
  %v6291 = vmul.f32 %v5307, %v6252
  %v6292 = vmul.f32 %v5308, %v6252
  %v6293 = vmul.f32 %v5309, %v6252
  %v6294 = vmul.f32 %v5310, %v6252
  %v6295 = vmul.f32 %v5311, %v6252
  %v6296 = vmul.f32 %v5312, %v6252
  %v6297 = vmul.f32 %v5313, %v6252
  %v6298 = vmul.f32 %v5314, %v6252
  %v6299 = vmul.f32 %v5315, %v6252
  %v6300 = vmul.f32 %v5316, %v6252
  %v6301 = vmul.f32 %v5317, %v6252
  %v6302 = vmul.f32 %v5318, %v6252
  %v6303 = vmul.f32 %v5319, %v6252
  %v6304 = vmul.f32 %v5320, %v6252
  %v6305 = vmul.f32 %v5321, %v6252
  %v6306 = vmul.f32 %v5322, %v6252
  %v6307 = vmul.f32 %v5323, %v6252
  %v6308 = vmul.f32 %v5324, %v6252
  %v6309 = vmul.f32 %v5325, %v6252
  %v6310 = vmul.f32 %v5326, %v6252
  %v6311 = vmul.f32 %v5327, %v6252
  %v6312 = vmul.f32 %v5328, %v6252
  %v6313 = vmul.f32 %v5329, %v6252
  %v6314 = vmul.f32 %v5330, %v6252
  %v6315 = vmul.f32 %v5331, %v6252
  %v6316 = vadd.f32 %v6185, %v6253
  %v6317 = vadd.f32 %v6186, %v6254
  %v6318 = vadd.f32 %v6187, %v6255
  %v6319 = vadd.f32 %v6188, %v6256
  %v6320 = vadd.f32 %v6189, %v6257
  %v6321 = vadd.f32 %v6190, %v6258
  %v6322 = vadd.f32 %v6191, %v6259
  %v6323 = vadd.f32 %v6192, %v6260
  %v6324 = vadd.f32 %v6193, %v6261
  %v6325 = vadd.f32 %v6194, %v6262
  %v6326 = vadd.f32 %v6195, %v6263
  %v6327 = vadd.f32 %v6196, %v6264
  %v6328 = vadd.f32 %v6197, %v6265
  %v6329 = vadd.f32 %v6198, %v6266
  %v6330 = vadd.f32 %v6199, %v6267
  %v6331 = vadd.f32 %v6200, %v6268
  %v6332 = vadd.f32 %v6201, %v6269
  %v6333 = vadd.f32 %v6202, %v6270
  %v6334 = vadd.f32 %v6203, %v6271
  %v6335 = vadd.f32 %v6204, %v6272
  %v6336 = vadd.f32 %v6205, %v6273
  %v6337 = vadd.f32 %v6206, %v6274
  %v6338 = vadd.f32 %v6207, %v6275
  %v6339 = vadd.f32 %v6208, %v6276
  %v6340 = vadd.f32 %v6209, %v6277
  %v6341 = vadd.f32 %v6210, %v6278
  %v6342 = vadd.f32 %v6211, %v6279
  %v6343 = vadd.f32 %v6212, %v6280
  %v6344 = vadd.f32 %v6213, %v6281
  %v6345 = vadd.f32 %v6214, %v6282
  %v6346 = vadd.f32 %v6215, %v6283
  %v6347 = vadd.f32 %v6216, %v6284
  %v6348 = vadd.f32 %v6217, %v6285
  %v6349 = vadd.f32 %v6218, %v6286
  %v6350 = vadd.f32 %v6219, %v6287
  %v6351 = vadd.f32 %v6220, %v6288
  %v6352 = vadd.f32 %v6221, %v6289
  %v6353 = vadd.f32 %v6222, %v6290
  %v6354 = vadd.f32 %v6223, %v6291
  %v6355 = vadd.f32 %v6224, %v6292
  %v6356 = vadd.f32 %v6225, %v6293
  %v6357 = vadd.f32 %v6226, %v6294
  %v6358 = vadd.f32 %v6227, %v6295
  %v6359 = vadd.f32 %v6228, %v6296
  %v6360 = vadd.f32 %v6229, %v6297
  %v6361 = vadd.f32 %v6230, %v6298
  %v6362 = vadd.f32 %v6231, %v6299
  %v6363 = vadd.f32 %v6232, %v6300
  %v6364 = vadd.f32 %v6233, %v6301
  %v6365 = vadd.f32 %v6234, %v6302
  %v6366 = vadd.f32 %v6235, %v6303
  %v6367 = vadd.f32 %v6236, %v6304
  %v6368 = vadd.f32 %v6237, %v6305
  %v6369 = vadd.f32 %v6238, %v6306
  %v6370 = vadd.f32 %v6239, %v6307
  %v6371 = vadd.f32 %v6240, %v6308
  %v6372 = vadd.f32 %v6241, %v6309
  %v6373 = vadd.f32 %v6242, %v6310
  %v6374 = vadd.f32 %v6243, %v6311
  %v6375 = vadd.f32 %v6244, %v6312
  %v6376 = vadd.f32 %v6245, %v6313
  %v6377 = vadd.f32 %v6246, %v6314
  %v6378 = vadd.f32 %v6247, %v6315
  %v6379 = vadd.f32 %v6248, %v6284
  %v6380 = vlaneseq
  %v6381 = vshrl.u32 %v6380, 7
  %v6382 = vsub.s32 7, %v6381
  %v6383 = vrot.slane %v5528, %v6382
  %v6384 = vmul.f32 %v5074, %v6383
  %v6385 = vmul.f32 %v5075, %v6383
  %v6386 = vmul.f32 %v5076, %v6383
  %v6387 = vmul.f32 %v5077, %v6383
  %v6388 = vmul.f32 %v5078, %v6383
  %v6389 = vmul.f32 %v5079, %v6383
  %v6390 = vmul.f32 %v5080, %v6383
  %v6391 = vmul.f32 %v5081, %v6383
  %v6392 = vmul.f32 %v5082, %v6383
  %v6393 = vmul.f32 %v5083, %v6383
  %v6394 = vmul.f32 %v5084, %v6383
  %v6395 = vmul.f32 %v5085, %v6383
  %v6396 = vmul.f32 %v5086, %v6383
  %v6397 = vmul.f32 %v5087, %v6383
  %v6398 = vmul.f32 %v5088, %v6383
  %v6399 = vmul.f32 %v5089, %v6383
  %v6400 = vmul.f32 %v5090, %v6383
  %v6401 = vmul.f32 %v5091, %v6383
  %v6402 = vmul.f32 %v5092, %v6383
  %v6403 = vmul.f32 %v5093, %v6383
  %v6404 = vmul.f32 %v5094, %v6383
  %v6405 = vmul.f32 %v5095, %v6383
  %v6406 = vmul.f32 %v5096, %v6383
  %v6407 = vmul.f32 %v5097, %v6383
  %v6408 = vmul.f32 %v5098, %v6383
  %v6409 = vmul.f32 %v5099, %v6383
  %v6410 = vmul.f32 %v5100, %v6383
  %v6411 = vmul.f32 %v5101, %v6383
  %v6412 = vmul.f32 %v5102, %v6383
  %v6413 = vmul.f32 %v5103, %v6383
  %v6414 = vmul.f32 %v6383, 0.0
  %v6415 = vmul.f32 %v5106, %v6383
  %v6416 = vmul.f32 %v5107, %v6383
  %v6417 = vmul.f32 %v5108, %v6383
  %v6418 = vmul.f32 %v5109, %v6383
  %v6419 = vmul.f32 %v5110, %v6383
  %v6420 = vmul.f32 %v5111, %v6383
  %v6421 = vmul.f32 %v5112, %v6383
  %v6422 = vmul.f32 %v5113, %v6383
  %v6423 = vmul.f32 %v5114, %v6383
  %v6424 = vmul.f32 %v5115, %v6383
  %v6425 = vmul.f32 %v5116, %v6383
  %v6426 = vmul.f32 %v5117, %v6383
  %v6427 = vmul.f32 %v5118, %v6383
  %v6428 = vmul.f32 %v5119, %v6383
  %v6429 = vmul.f32 %v5120, %v6383
  %v6430 = vmul.f32 %v5121, %v6383
  %v6431 = vmul.f32 %v5122, %v6383
  %v6432 = vmul.f32 %v5123, %v6383
  %v6433 = vmul.f32 %v5124, %v6383
  %v6434 = vmul.f32 %v5125, %v6383
  %v6435 = vmul.f32 %v5126, %v6383
  %v6436 = vmul.f32 %v5127, %v6383
  %v6437 = vmul.f32 %v5128, %v6383
  %v6438 = vmul.f32 %v5129, %v6383
  %v6439 = vmul.f32 %v5130, %v6383
  %v6440 = vmul.f32 %v5131, %v6383
  %v6441 = vmul.f32 %v5132, %v6383
  %v6442 = vmul.f32 %v5133, %v6383
  %v6443 = vmul.f32 %v5134, %v6383
  %v6444 = vmul.f32 %v5135, %v6383
  %v6445 = vadd.f32 %v6316, %v6384
  %v6446 = vadd.f32 %v6317, %v6385
  %v6447 = vadd.f32 %v6318, %v6386
  %v6448 = vadd.f32 %v6319, %v6387
  %v6449 = vadd.f32 %v6320, %v6388
  %v6450 = vadd.f32 %v6321, %v6389
  %v6451 = vadd.f32 %v6322, %v6390
  %v6452 = vadd.f32 %v6323, %v6391
  %v6453 = vadd.f32 %v6324, %v6392
  %v6454 = vadd.f32 %v6325, %v6393
  %v6455 = vadd.f32 %v6326, %v6394
  %v6456 = vadd.f32 %v6327, %v6395
  %v6457 = vadd.f32 %v6328, %v6396
  %v6458 = vadd.f32 %v6329, %v6397
  %v6459 = vadd.f32 %v6330, %v6398
  %v6460 = vadd.f32 %v6331, %v6399
  %v6461 = vadd.f32 %v6332, %v6400
  %v6462 = vadd.f32 %v6333, %v6401
  %v6463 = vadd.f32 %v6334, %v6402
  %v6464 = vadd.f32 %v6335, %v6403
  %v6465 = vadd.f32 %v6336, %v6404
  %v6466 = vadd.f32 %v6337, %v6405
  %v6467 = vadd.f32 %v6338, %v6406
  %v6468 = vadd.f32 %v6339, %v6407
  %v6469 = vadd.f32 %v6340, %v6408
  %v6470 = vadd.f32 %v6341, %v6409
  %v6471 = vadd.f32 %v6342, %v6410
  %v6472 = vadd.f32 %v6343, %v6411
  %v6473 = vadd.f32 %v6344, %v6412
  %v6474 = vadd.f32 %v6345, %v6413
  %v6475 = vadd.f32 %v6346, %v6414
  %v6476 = vadd.f32 %v6347, %v6414
  %v6477 = vadd.f32 %v6348, %v6415
  %v6478 = vadd.f32 %v6349, %v6416
  %v6479 = vadd.f32 %v6350, %v6417
  %v6480 = vadd.f32 %v6351, %v6418
  %v6481 = vadd.f32 %v6352, %v6419
  %v6482 = vadd.f32 %v6353, %v6420
  %v6483 = vadd.f32 %v6354, %v6421
  %v6484 = vadd.f32 %v6355, %v6422
  %v6485 = vadd.f32 %v6356, %v6423
  %v6486 = vadd.f32 %v6357, %v6424
  %v6487 = vadd.f32 %v6358, %v6425
  %v6488 = vadd.f32 %v6359, %v6426
  %v6489 = vadd.f32 %v6360, %v6427
  %v6490 = vadd.f32 %v6361, %v6428
  %v6491 = vadd.f32 %v6362, %v6429
  %v6492 = vadd.f32 %v6363, %v6430
  %v6493 = vadd.f32 %v6364, %v6431
  %v6494 = vadd.f32 %v6365, %v6432
  %v6495 = vadd.f32 %v6366, %v6433
  %v6496 = vadd.f32 %v6367, %v6434
  %v6497 = vadd.f32 %v6368, %v6435
  %v6498 = vadd.f32 %v6369, %v6436
  %v6499 = vadd.f32 %v6370, %v6437
  %v6500 = vadd.f32 %v6371, %v6438
  %v6501 = vadd.f32 %v6372, %v6439
  %v6502 = vadd.f32 %v6373, %v6440
  %v6503 = vadd.f32 %v6374, %v6441
  %v6504 = vadd.f32 %v6375, %v6442
  %v6505 = vadd.f32 %v6376, %v6443
  %v6506 = vadd.f32 %v6377, %v6444
  %v6507 = vadd.f32 %v6378, %v6414
  %v6508 = vadd.f32 %v6379, %v6414
  %v6509 = vlaneseq
  %v6510 = vshrl.u32 %v6509, 7
  %v6511 = vsub.s32 0, %v6510
  %v6512 = vrot.slane %v5529, %v6511
  %v6513 = vmul.f32 %v5465, %v6512
  %v6514 = vmul.f32 %v5466, %v6512
  %v6515 = vmul.f32 %v5467, %v6512
  %v6516 = vmul.f32 %v5468, %v6512
  %v6517 = vmul.f32 %v5469, %v6512
  %v6518 = vmul.f32 %v5470, %v6512
  %v6519 = vmul.f32 %v5471, %v6512
  %v6520 = vmul.f32 %v5472, %v6512
  %v6521 = vmul.f32 %v5473, %v6512
  %v6522 = vmul.f32 %v5474, %v6512
  %v6523 = vmul.f32 %v5475, %v6512
  %v6524 = vmul.f32 %v5476, %v6512
  %v6525 = vmul.f32 %v5477, %v6512
  %v6526 = vmul.f32 %v5478, %v6512
  %v6527 = vmul.f32 %v5479, %v6512
  %v6528 = vmul.f32 %v5480, %v6512
  %v6529 = vmul.f32 %v5481, %v6512
  %v6530 = vmul.f32 %v5482, %v6512
  %v6531 = vmul.f32 %v5483, %v6512
  %v6532 = vmul.f32 %v5484, %v6512
  %v6533 = vmul.f32 %v5485, %v6512
  %v6534 = vmul.f32 %v5486, %v6512
  %v6535 = vmul.f32 %v5487, %v6512
  %v6536 = vmul.f32 %v5488, %v6512
  %v6537 = vmul.f32 %v5489, %v6512
  %v6538 = vmul.f32 %v5490, %v6512
  %v6539 = vmul.f32 %v5491, %v6512
  %v6540 = vmul.f32 %v5492, %v6512
  %v6541 = vmul.f32 %v5493, %v6512
  %v6542 = vmul.f32 %v5494, %v6512
  %v6543 = vmul.f32 %v518, %v6512
  %v6544 = vmul.f32 %v552, %v6512
  %v6545 = vmul.f32 %v5498, %v6512
  %v6546 = vmul.f32 %v5499, %v6512
  %v6547 = vmul.f32 %v5500, %v6512
  %v6548 = vmul.f32 %v5501, %v6512
  %v6549 = vmul.f32 %v5502, %v6512
  %v6550 = vmul.f32 %v5503, %v6512
  %v6551 = vmul.f32 %v5504, %v6512
  %v6552 = vmul.f32 %v5505, %v6512
  %v6553 = vmul.f32 %v5506, %v6512
  %v6554 = vmul.f32 %v5507, %v6512
  %v6555 = vmul.f32 %v5508, %v6512
  %v6556 = vmul.f32 %v5509, %v6512
  %v6557 = vmul.f32 %v5510, %v6512
  %v6558 = vmul.f32 %v5511, %v6512
  %v6559 = vmul.f32 %v5512, %v6512
  %v6560 = vmul.f32 %v5513, %v6512
  %v6561 = vmul.f32 %v5514, %v6512
  %v6562 = vmul.f32 %v5515, %v6512
  %v6563 = vmul.f32 %v5516, %v6512
  %v6564 = vmul.f32 %v5517, %v6512
  %v6565 = vmul.f32 %v5518, %v6512
  %v6566 = vmul.f32 %v5519, %v6512
  %v6567 = vmul.f32 %v5520, %v6512
  %v6568 = vmul.f32 %v5521, %v6512
  %v6569 = vmul.f32 %v5522, %v6512
  %v6570 = vmul.f32 %v5523, %v6512
  %v6571 = vmul.f32 %v5524, %v6512
  %v6572 = vmul.f32 %v5525, %v6512
  %v6573 = vmul.f32 %v5526, %v6512
  %v6574 = vmul.f32 %v5527, %v6512
  %v6575 = vadd.f32 %v6445, %v6513
  %v6576 = vadd.f32 %v6446, %v6514
  %v6577 = vadd.f32 %v6447, %v6515
  %v6578 = vadd.f32 %v6448, %v6516
  %v6579 = vadd.f32 %v6449, %v6517
  %v6580 = vadd.f32 %v6450, %v6518
  %v6581 = vadd.f32 %v6451, %v6519
  %v6582 = vadd.f32 %v6452, %v6520
  %v6583 = vadd.f32 %v6453, %v6521
  %v6584 = vadd.f32 %v6454, %v6522
  %v6585 = vadd.f32 %v6455, %v6523
  %v6586 = vadd.f32 %v6456, %v6524
  %v6587 = vadd.f32 %v6457, %v6525
  %v6588 = vadd.f32 %v6458, %v6526
  %v6589 = vadd.f32 %v6459, %v6527
  %v6590 = vadd.f32 %v6460, %v6528
  %v6591 = vadd.f32 %v6461, %v6529
  %v6592 = vadd.f32 %v6462, %v6530
  %v6593 = vadd.f32 %v6463, %v6531
  %v6594 = vadd.f32 %v6464, %v6532
  %v6595 = vadd.f32 %v6465, %v6533
  %v6596 = vadd.f32 %v6466, %v6534
  %v6597 = vadd.f32 %v6467, %v6535
  %v6598 = vadd.f32 %v6468, %v6536
  %v6599 = vadd.f32 %v6469, %v6537
  %v6600 = vadd.f32 %v6470, %v6538
  %v6601 = vadd.f32 %v6471, %v6539
  %v6602 = vadd.f32 %v6472, %v6540
  %v6603 = vadd.f32 %v6473, %v6541
  %v6604 = vadd.f32 %v6474, %v6542
  %v6605 = vadd.f32 %v6475, %v6543
  %v6606 = vadd.f32 %v6476, %v6544
  %v6607 = vadd.f32 %v6477, %v6545
  %v6608 = vadd.f32 %v6478, %v6546
  %v6609 = vadd.f32 %v6479, %v6547
  %v6610 = vadd.f32 %v6480, %v6548
  %v6611 = vadd.f32 %v6481, %v6549
  %v6612 = vadd.f32 %v6482, %v6550
  %v6613 = vadd.f32 %v6483, %v6551
  %v6614 = vadd.f32 %v6484, %v6552
  %v6615 = vadd.f32 %v6485, %v6553
  %v6616 = vadd.f32 %v6486, %v6554
  %v6617 = vadd.f32 %v6487, %v6555
  %v6618 = vadd.f32 %v6488, %v6556
  %v6619 = vadd.f32 %v6489, %v6557
  %v6620 = vadd.f32 %v6490, %v6558
  %v6621 = vadd.f32 %v6491, %v6559
  %v6622 = vadd.f32 %v6492, %v6560
  %v6623 = vadd.f32 %v6493, %v6561
  %v6624 = vadd.f32 %v6494, %v6562
  %v6625 = vadd.f32 %v6495, %v6563
  %v6626 = vadd.f32 %v6496, %v6564
  %v6627 = vadd.f32 %v6497, %v6565
  %v6628 = vadd.f32 %v6498, %v6566
  %v6629 = vadd.f32 %v6499, %v6567
  %v6630 = vadd.f32 %v6500, %v6568
  %v6631 = vadd.f32 %v6501, %v6569
  %v6632 = vadd.f32 %v6502, %v6570
  %v6633 = vadd.f32 %v6503, %v6571
  %v6634 = vadd.f32 %v6504, %v6572
  %v6635 = vadd.f32 %v6505, %v6573
  %v6636 = vadd.f32 %v6506, %v6574
  %v6637 = vadd.f32 %v6507, %v6543
  %v6638 = vadd.f32 %v6508, %v6544
  %v6639 = vpack.c.bf16 %v6576, %v6575
  %v6640 = vpack.c.bf16 %v6578, %v6577
  %v6641 = vpack.c.bf16 %v6580, %v6579
  %v6642 = vpack.c.bf16 %v6582, %v6581
  %v6643 = vpack.c.bf16 %v6584, %v6583
  %v6644 = vpack.c.bf16 %v6586, %v6585
  %v6645 = vpack.c.bf16 %v6588, %v6587
  %v6646 = vpack.c.bf16 %v6590, %v6589
  %v6647 = vpack.c.bf16 %v6592, %v6591
  %v6648 = vpack.c.bf16 %v6594, %v6593
  %v6649 = vpack.c.bf16 %v6596, %v6595
  %v6650 = vpack.c.bf16 %v6598, %v6597
  %v6651 = vpack.c.bf16 %v6600, %v6599
  %v6652 = vpack.c.bf16 %v6602, %v6601
  %v6653 = vpack.c.bf16 %v6604, %v6603
  %v6654 = vpack.c.bf16 %v6606, %v6605
  %v6655 = vpack.c.bf16 %v6608, %v6607
  %v6656 = vpack.c.bf16 %v6610, %v6609
  %v6657 = vpack.c.bf16 %v6612, %v6611
  %v6658 = vpack.c.bf16 %v6614, %v6613
  %v6659 = vpack.c.bf16 %v6616, %v6615
  %v6660 = vpack.c.bf16 %v6618, %v6617
  %v6661 = vpack.c.bf16 %v6620, %v6619
  %v6662 = vpack.c.bf16 %v6622, %v6621
  %v6663 = vpack.c.bf16 %v6624, %v6623
  %v6664 = vpack.c.bf16 %v6626, %v6625
  %v6665 = vpack.c.bf16 %v6628, %v6627
  %v6666 = vpack.c.bf16 %v6630, %v6629
  %v6667 = vpack.c.bf16 %v6632, %v6631
  %v6668 = vpack.c.bf16 %v6634, %v6633
  %v6669 = vpack.c.bf16 %v6636, %v6635
  %v6670 = vpack.c.bf16 %v6638, %v6637
  %v6671 = vld [vmem:[%s10] sm:$0xff]
  %v6672 = vpack.c.bf16 %v6671, %v6671
  %v6674 = vsel %vm1731, %v6639, 0
  %v6677 = vsel %vm1731, %v6640, 0
  %v6680 = vsel %vm1731, %v6641, 0
  %v6683 = vsel %vm1731, %v6642, 0
  %v6686 = vsel %vm1731, %v6643, 0
  %v6689 = vsel %vm1731, %v6644, 0
  %v6692 = vsel %vm1731, %v6645, 0
  %v6695 = vsel %vm1731, %v6646, 0
  %v6698 = vsel %vm1731, %v6647, 0
  %v6701 = vsel %vm1731, %v6648, 0
  %v6704 = vsel %vm1731, %v6649, 0
  %v6707 = vsel %vm1731, %v6650, 0
  %v6710 = vsel %vm1731, %v6651, 0
  %v6713 = vsel %vm1731, %v6652, 0
  %v6716 = vsel %vm1731, %v6653, 0
  %v6719 = vsel %vm1731, %v6654, 0
  %v6722 = vsel %vm1731, %v6655, 0
  %v6725 = vsel %vm1731, %v6656, 0
  %v6728 = vsel %vm1731, %v6657, 0
  %v6731 = vsel %vm1731, %v6658, 0
  %v6734 = vsel %vm1731, %v6659, 0
  %v6737 = vsel %vm1731, %v6660, 0
  %v6740 = vsel %vm1731, %v6661, 0
  %v6743 = vsel %vm1731, %v6662, 0
  %v6746 = vsel %vm1731, %v6663, 0
  %v6749 = vsel %vm1731, %v6664, 0
  %v6752 = vsel %vm1731, %v6665, 0
  %v6755 = vsel %vm1731, %v6666, 0
  %v6758 = vsel %vm1731, %v6667, 0
  %v6761 = vsel %vm1731, %v6668, 0
  %v6764 = vsel %vm1731, %v6669, 0
  %v6767 = vsel %vm1731, %v6670, 0
  %v6770 = vsel %vm1828, %v6672, 0
  %6772 = vmatprep.subr.bf16.mxu0 0
  %6773 = vmatpush1.bf16.msra.mxu0 0
  %6774 = vmatprep.subr.bf16.mxu0 0
  %6775 = vmatpush1.bf16.msra.mxu0 0
  %6776 = vmatprep.subr.bf16.mxu0 0
  %6777 = vmatpush1.bf16.msra.mxu0 0
  %6778 = vmatprep.subr.bf16.mxu0 0
  %6779 = vmatpush1.bf16.msra.mxu0 0
  %6780 = vmatprep.subr.bf16.mxu0 0
  %6781 = vmatpush1.bf16.msra.mxu0 0
  %6782 = vmatprep.subr.bf16.mxu0 0
  %6783 = vmatpush1.bf16.msra.mxu0 0
  %6784 = vmatprep.subr.bf16.mxu0 0
  %6785 = vmatpush1.bf16.msra.mxu0 0
  %6786 = vmatprep.subr.bf16.mxu0 0
  %6787 = vmatpush1.bf16.msra.mxu0 %v6770
  %6788 = vmatprep.subr.bf16.mxu0 0
  %6789 = vmatpush2.bf16.msra.mxu0 0
  %6790 = vmatprep.subr.bf16.mxu0 0
  %6791 = vmatpush2.bf16.msra.mxu0 0
  %6792 = vmatprep.subr.bf16.mxu0 0
  %6793 = vmatpush2.bf16.msra.mxu0 0
  %6794 = vmatprep.subr.bf16.mxu0 0
  %6795 = vmatpush2.bf16.msra.mxu0 0
  %6796 = vmatprep.subr.bf16.mxu0 0
  %6797 = vmatpush2.bf16.msra.mxu0 0
  %6798 = vmatprep.subr.bf16.mxu0 0
  %6799 = vmatpush2.bf16.msra.mxu0 0
  %6800 = vmatprep.subr.bf16.mxu0 0
  %6801 = vmatpush2.bf16.msra.mxu0 0
  %6802 = vmatprep.subr.bf16.mxu0 0
  %6803 = vmatpush2.bf16.msra.mxu0 0
  %6804 = vmatprep.mubr.bf16.mxu0 0
  %6805 = vmatmul.mubr.bf16.gmra.mxu0 %v6674
  %v6806 = vpop.f32.mrf.mxu0
  %v6807 = vadd.f32 0.0, %v6806
  %v6808 = vpop.f32.mrf.mxu0
  %v6809 = vpop.f32.mrf.mxu0
  %v6810 = vadd.f32 0.0, %v6809
  %v6811 = vpop.f32.mrf.mxu0
  %6812 = vmatprep.mubr.bf16.mxu0 0
  %6813 = vmatmul.mubr.bf16.gmra.mxu0 %v6677
  %v6814 = vpop.f32.mrf.mxu0
  %v6815 = vadd.f32 0.0, %v6814
  %v6816 = vpop.f32.mrf.mxu0
  %v6817 = vpop.f32.mrf.mxu0
  %v6818 = vadd.f32 0.0, %v6817
  %v6819 = vpop.f32.mrf.mxu0
  %6820 = vmatprep.mubr.bf16.mxu0 0
  %6821 = vmatmul.mubr.bf16.gmra.mxu0 %v6680
  %v6822 = vpop.f32.mrf.mxu0
  %v6823 = vadd.f32 0.0, %v6822
  %v6824 = vpop.f32.mrf.mxu0
  %v6825 = vpop.f32.mrf.mxu0
  %v6826 = vadd.f32 0.0, %v6825
  %v6827 = vpop.f32.mrf.mxu0
  %6828 = vmatprep.mubr.bf16.mxu0 0
  %6829 = vmatmul.mubr.bf16.gmra.mxu0 %v6683
  %v6830 = vpop.f32.mrf.mxu0
  %v6831 = vadd.f32 0.0, %v6830
  %v6832 = vpop.f32.mrf.mxu0
  %v6833 = vpop.f32.mrf.mxu0
  %v6834 = vadd.f32 0.0, %v6833
  %v6835 = vpop.f32.mrf.mxu0
  %6836 = vmatprep.mubr.bf16.mxu0 0
  %6837 = vmatmul.mubr.bf16.gmra.mxu0 %v6686
  %v6838 = vpop.f32.mrf.mxu0
  %v6839 = vadd.f32 0.0, %v6838
  %v6840 = vpop.f32.mrf.mxu0
  %v6841 = vpop.f32.mrf.mxu0
  %v6842 = vadd.f32 0.0, %v6841
  %v6843 = vpop.f32.mrf.mxu0
  %6844 = vmatprep.mubr.bf16.mxu0 0
  %6845 = vmatmul.mubr.bf16.gmra.mxu0 %v6689
  %v6846 = vpop.f32.mrf.mxu0
  %v6847 = vadd.f32 0.0, %v6846
  %v6848 = vpop.f32.mrf.mxu0
  %v6849 = vpop.f32.mrf.mxu0
  %v6850 = vadd.f32 0.0, %v6849
  %v6851 = vpop.f32.mrf.mxu0
  %6852 = vmatprep.mubr.bf16.mxu0 0
  %6853 = vmatmul.mubr.bf16.gmra.mxu0 %v6692
  %v6854 = vpop.f32.mrf.mxu0
  %v6855 = vadd.f32 0.0, %v6854
  %v6856 = vpop.f32.mrf.mxu0
  %v6857 = vpop.f32.mrf.mxu0
  %v6858 = vadd.f32 0.0, %v6857
  %v6859 = vpop.f32.mrf.mxu0
  %6860 = vmatprep.mubr.bf16.mxu0 0
  %6861 = vmatmul.mubr.bf16.gmra.mxu0 %v6695
  %v6862 = vpop.f32.mrf.mxu0
  %v6863 = vadd.f32 0.0, %v6862
  %v6864 = vpop.f32.mrf.mxu0
  %v6865 = vpop.f32.mrf.mxu0
  %v6866 = vadd.f32 0.0, %v6865
  %v6867 = vpop.f32.mrf.mxu0
  %6868 = vmatprep.mubr.bf16.mxu0 0
  %6869 = vmatmul.mubr.bf16.gmra.mxu0 %v6698
  %v6870 = vpop.f32.mrf.mxu0
  %v6871 = vadd.f32 0.0, %v6870
  %v6872 = vpop.f32.mrf.mxu0
  %v6873 = vpop.f32.mrf.mxu0
  %v6874 = vadd.f32 0.0, %v6873
  %v6875 = vpop.f32.mrf.mxu0
  %6876 = vmatprep.mubr.bf16.mxu0 0
  %6877 = vmatmul.mubr.bf16.gmra.mxu0 %v6701
  %v6878 = vpop.f32.mrf.mxu0
  %v6879 = vadd.f32 0.0, %v6878
  %v6880 = vpop.f32.mrf.mxu0
  %v6881 = vpop.f32.mrf.mxu0
  %v6882 = vadd.f32 0.0, %v6881
  %v6883 = vpop.f32.mrf.mxu0
  %6884 = vmatprep.mubr.bf16.mxu0 0
  %6885 = vmatmul.mubr.bf16.gmra.mxu0 %v6704
  %v6886 = vpop.f32.mrf.mxu0
  %v6887 = vadd.f32 0.0, %v6886
  %v6888 = vpop.f32.mrf.mxu0
  %v6889 = vpop.f32.mrf.mxu0
  %v6890 = vadd.f32 0.0, %v6889
  %v6891 = vpop.f32.mrf.mxu0
  %6892 = vmatprep.mubr.bf16.mxu0 0
  %6893 = vmatmul.mubr.bf16.gmra.mxu0 %v6707
  %v6894 = vpop.f32.mrf.mxu0
  %v6895 = vadd.f32 0.0, %v6894
  %v6896 = vpop.f32.mrf.mxu0
  %v6897 = vpop.f32.mrf.mxu0
  %v6898 = vadd.f32 0.0, %v6897
  %v6899 = vpop.f32.mrf.mxu0
  %6900 = vmatprep.mubr.bf16.mxu0 0
  %6901 = vmatmul.mubr.bf16.gmra.mxu0 %v6710
  %v6902 = vpop.f32.mrf.mxu0
  %v6903 = vadd.f32 0.0, %v6902
  %v6904 = vpop.f32.mrf.mxu0
  %v6905 = vpop.f32.mrf.mxu0
  %v6906 = vadd.f32 0.0, %v6905
  %v6907 = vpop.f32.mrf.mxu0
  %6908 = vmatprep.mubr.bf16.mxu0 0
  %6909 = vmatmul.mubr.bf16.gmra.mxu0 %v6713
  %v6910 = vpop.f32.mrf.mxu0
  %v6911 = vadd.f32 0.0, %v6910
  %v6912 = vpop.f32.mrf.mxu0
  %v6913 = vpop.f32.mrf.mxu0
  %v6914 = vadd.f32 0.0, %v6913
  %v6915 = vpop.f32.mrf.mxu0
  %6916 = vmatprep.mubr.bf16.mxu0 0
  %6917 = vmatmul.mubr.bf16.gmra.mxu0 %v6716
  %v6918 = vpop.f32.mrf.mxu0
  %v6919 = vadd.f32 0.0, %v6918
  %v6920 = vpop.f32.mrf.mxu0
  %v6921 = vpop.f32.mrf.mxu0
  %v6922 = vadd.f32 0.0, %v6921
  %v6923 = vpop.f32.mrf.mxu0
  %6924 = vmatprep.mubr.bf16.mxu0 0
  %6925 = vmatmul.mubr.bf16.gmra.mxu0 %v6719
  %v6926 = vpop.f32.mrf.mxu0
  %v6927 = vadd.f32 0.0, %v6926
  %v6928 = vpop.f32.mrf.mxu0
  %v6929 = vpop.f32.mrf.mxu0
  %v6930 = vadd.f32 0.0, %v6929
  %v6931 = vpop.f32.mrf.mxu0
  %6932 = vmatprep.mubr.bf16.mxu0 0
  %6933 = vmatmul.mubr.bf16.gmra.mxu0 %v6722
  %v6934 = vpop.f32.mrf.mxu0
  %v6935 = vadd.f32 0.0, %v6934
  %v6936 = vpop.f32.mrf.mxu0
  %v6937 = vpop.f32.mrf.mxu0
  %v6938 = vadd.f32 0.0, %v6937
  %v6939 = vpop.f32.mrf.mxu0
  %6940 = vmatprep.mubr.bf16.mxu0 0
  %6941 = vmatmul.mubr.bf16.gmra.mxu0 %v6725
  %v6942 = vpop.f32.mrf.mxu0
  %v6943 = vadd.f32 0.0, %v6942
  %v6944 = vpop.f32.mrf.mxu0
  %v6945 = vpop.f32.mrf.mxu0
  %v6946 = vadd.f32 0.0, %v6945
  %v6947 = vpop.f32.mrf.mxu0
  %6948 = vmatprep.mubr.bf16.mxu0 0
  %6949 = vmatmul.mubr.bf16.gmra.mxu0 %v6728
  %v6950 = vpop.f32.mrf.mxu0
  %v6951 = vadd.f32 0.0, %v6950
  %v6952 = vpop.f32.mrf.mxu0
  %v6953 = vpop.f32.mrf.mxu0
  %v6954 = vadd.f32 0.0, %v6953
  %v6955 = vpop.f32.mrf.mxu0
  %6956 = vmatprep.mubr.bf16.mxu0 0
  %6957 = vmatmul.mubr.bf16.gmra.mxu0 %v6731
  %v6958 = vpop.f32.mrf.mxu0
  %v6959 = vadd.f32 0.0, %v6958
  %v6960 = vpop.f32.mrf.mxu0
  %v6961 = vpop.f32.mrf.mxu0
  %v6962 = vadd.f32 0.0, %v6961
  %v6963 = vpop.f32.mrf.mxu0
  %6964 = vmatprep.mubr.bf16.mxu0 0
  %6965 = vmatmul.mubr.bf16.gmra.mxu0 %v6734
  %v6966 = vpop.f32.mrf.mxu0
  %v6967 = vadd.f32 0.0, %v6966
  %v6968 = vpop.f32.mrf.mxu0
  %v6969 = vpop.f32.mrf.mxu0
  %v6970 = vadd.f32 0.0, %v6969
  %v6971 = vpop.f32.mrf.mxu0
  %6972 = vmatprep.mubr.bf16.mxu0 0
  %6973 = vmatmul.mubr.bf16.gmra.mxu0 %v6737
  %v6974 = vpop.f32.mrf.mxu0
  %v6975 = vadd.f32 0.0, %v6974
  %v6976 = vpop.f32.mrf.mxu0
  %v6977 = vpop.f32.mrf.mxu0
  %v6978 = vadd.f32 0.0, %v6977
  %v6979 = vpop.f32.mrf.mxu0
  %6980 = vmatprep.mubr.bf16.mxu0 0
  %6981 = vmatmul.mubr.bf16.gmra.mxu0 %v6740
  %v6982 = vpop.f32.mrf.mxu0
  %v6983 = vadd.f32 0.0, %v6982
  %v6984 = vpop.f32.mrf.mxu0
  %v6985 = vpop.f32.mrf.mxu0
  %v6986 = vadd.f32 0.0, %v6985
  %v6987 = vpop.f32.mrf.mxu0
  %6988 = vmatprep.mubr.bf16.mxu0 0
  %6989 = vmatmul.mubr.bf16.gmra.mxu0 %v6743
  %v6990 = vpop.f32.mrf.mxu0
  %v6991 = vadd.f32 0.0, %v6990
  %v6992 = vpop.f32.mrf.mxu0
  %v6993 = vpop.f32.mrf.mxu0
  %v6994 = vadd.f32 0.0, %v6993
  %v6995 = vpop.f32.mrf.mxu0
  %6996 = vmatprep.mubr.bf16.mxu0 0
  %6997 = vmatmul.mubr.bf16.gmra.mxu0 %v6746
  %v6998 = vpop.f32.mrf.mxu0
  %v6999 = vadd.f32 0.0, %v6998
  %v7000 = vpop.f32.mrf.mxu0
  %v7001 = vpop.f32.mrf.mxu0
  %v7002 = vadd.f32 0.0, %v7001
  %v7003 = vpop.f32.mrf.mxu0
  %7004 = vmatprep.mubr.bf16.mxu0 0
  %7005 = vmatmul.mubr.bf16.gmra.mxu0 %v6749
  %v7006 = vpop.f32.mrf.mxu0
  %v7007 = vadd.f32 0.0, %v7006
  %v7008 = vpop.f32.mrf.mxu0
  %v7009 = vpop.f32.mrf.mxu0
  %v7010 = vadd.f32 0.0, %v7009
  %v7011 = vpop.f32.mrf.mxu0
  %7012 = vmatprep.mubr.bf16.mxu0 0
  %7013 = vmatmul.mubr.bf16.gmra.mxu0 %v6752
  %v7014 = vpop.f32.mrf.mxu0
  %v7015 = vadd.f32 0.0, %v7014
  %v7016 = vpop.f32.mrf.mxu0
  %v7017 = vpop.f32.mrf.mxu0
  %v7018 = vadd.f32 0.0, %v7017
  %v7019 = vpop.f32.mrf.mxu0
  %7020 = vmatprep.mubr.bf16.mxu0 0
  %7021 = vmatmul.mubr.bf16.gmra.mxu0 %v6755
  %v7022 = vpop.f32.mrf.mxu0
  %v7023 = vadd.f32 0.0, %v7022
  %v7024 = vpop.f32.mrf.mxu0
  %v7025 = vpop.f32.mrf.mxu0
  %v7026 = vadd.f32 0.0, %v7025
  %v7027 = vpop.f32.mrf.mxu0
  %7028 = vmatprep.mubr.bf16.mxu0 0
  %7029 = vmatmul.mubr.bf16.gmra.mxu0 %v6758
  %v7030 = vpop.f32.mrf.mxu0
  %v7031 = vadd.f32 0.0, %v7030
  %v7032 = vpop.f32.mrf.mxu0
  %v7033 = vpop.f32.mrf.mxu0
  %v7034 = vadd.f32 0.0, %v7033
  %v7035 = vpop.f32.mrf.mxu0
  %7036 = vmatprep.mubr.bf16.mxu0 0
  %7037 = vmatmul.mubr.bf16.gmra.mxu0 %v6761
  %v7038 = vpop.f32.mrf.mxu0
  %v7039 = vadd.f32 0.0, %v7038
  %v7040 = vpop.f32.mrf.mxu0
  %v7041 = vpop.f32.mrf.mxu0
  %v7042 = vadd.f32 0.0, %v7041
  %v7043 = vpop.f32.mrf.mxu0
  %7044 = vmatprep.mubr.bf16.mxu0 0
  %7045 = vmatmul.mubr.bf16.gmra.mxu0 %v6764
  %v7046 = vpop.f32.mrf.mxu0
  %v7047 = vadd.f32 0.0, %v7046
  %v7048 = vpop.f32.mrf.mxu0
  %v7049 = vpop.f32.mrf.mxu0
  %v7050 = vadd.f32 0.0, %v7049
  %v7051 = vpop.f32.mrf.mxu0
  %7052 = vmatprep.mubr.bf16.mxu0 0
  %7053 = vmatmul.mubr.bf16.gmra.mxu0 %v6767
  %v7054 = vpop.f32.mrf.mxu0
  %v7055 = vadd.f32 0.0, %v7054
  %v7056 = vpop.f32.mrf.mxu0
  %v7057 = vpop.f32.mrf.mxu0
  %v7058 = vadd.f32 0.0, %v7057
  %v7059 = vpop.f32.mrf.mxu0
  %7060 = vdwg.mxu0
  %v7061 = vsel %vm1731, %v6807, 0.0
  %v7062 = vsel %vm1731, %v6810, 0.0
  %v7063 = vadd.f32 %v7061, %v7062
  %v7064 = vsel %vm1731, %v6815, 0.0
  %v7065 = vadd.f32 %v7063, %v7064
  %v7066 = vsel %vm1731, %v6818, 0.0
  %v7067 = vadd.f32 %v7065, %v7066
  %v7068 = vsel %vm1731, %v6823, 0.0
  %v7069 = vadd.f32 %v7067, %v7068
  %v7070 = vsel %vm1731, %v6826, 0.0
  %v7071 = vadd.f32 %v7069, %v7070
  %v7072 = vsel %vm1731, %v6831, 0.0
  %v7073 = vadd.f32 %v7071, %v7072
  %v7074 = vsel %vm1731, %v6834, 0.0
  %v7075 = vadd.f32 %v7073, %v7074
  %v7076 = vsel %vm1731, %v6839, 0.0
  %v7077 = vadd.f32 %v7075, %v7076
  %v7078 = vsel %vm1731, %v6842, 0.0
  %v7079 = vadd.f32 %v7077, %v7078
  %v7080 = vsel %vm1731, %v6847, 0.0
  %v7081 = vadd.f32 %v7079, %v7080
  %v7082 = vsel %vm1731, %v6850, 0.0
  %v7083 = vadd.f32 %v7081, %v7082
  %v7084 = vsel %vm1731, %v6855, 0.0
  %v7085 = vadd.f32 %v7083, %v7084
  %v7086 = vsel %vm1731, %v6858, 0.0
  %v7087 = vadd.f32 %v7085, %v7086
  %v7088 = vsel %vm1731, %v6863, 0.0
  %v7089 = vadd.f32 %v7087, %v7088
  %v7090 = vsel %vm1731, %v6866, 0.0
  %v7091 = vadd.f32 %v7089, %v7090
  %v7092 = vsel %vm1731, %v6871, 0.0
  %v7093 = vadd.f32 %v7091, %v7092
  %v7094 = vsel %vm1731, %v6874, 0.0
  %v7095 = vadd.f32 %v7093, %v7094
  %v7096 = vsel %vm1731, %v6879, 0.0
  %v7097 = vadd.f32 %v7095, %v7096
  %v7098 = vsel %vm1731, %v6882, 0.0
  %v7099 = vadd.f32 %v7097, %v7098
  %v7100 = vsel %vm1731, %v6887, 0.0
  %v7101 = vadd.f32 %v7099, %v7100
  %v7102 = vsel %vm1731, %v6890, 0.0
  %v7103 = vadd.f32 %v7101, %v7102
  %v7104 = vsel %vm1731, %v6895, 0.0
  %v7105 = vadd.f32 %v7103, %v7104
  %v7106 = vsel %vm1731, %v6898, 0.0
  %v7107 = vadd.f32 %v7105, %v7106
  %v7108 = vsel %vm1731, %v6903, 0.0
  %v7109 = vadd.f32 %v7107, %v7108
  %v7110 = vsel %vm1731, %v6906, 0.0
  %v7111 = vadd.f32 %v7109, %v7110
  %v7112 = vsel %vm1731, %v6911, 0.0
  %v7113 = vadd.f32 %v7111, %v7112
  %v7114 = vsel %vm1731, %v6914, 0.0
  %v7115 = vadd.f32 %v7113, %v7114
  %v7116 = vsel %vm1731, %v6919, 0.0
  %v7117 = vadd.f32 %v7115, %v7116
  %v7118 = vsel %vm1731, %v6922, 0.0
  %v7119 = vadd.f32 %v7117, %v7118
  %v7120 = vsel %vm1731, %v6927, 0.0
  %v7121 = vadd.f32 %v7119, %v7120
  %v7122 = vsel %vm1731, %v6930, 0.0
  %v7123 = vadd.f32 %v7121, %v7122
  %v7124 = vsel %vm1731, %v6935, 0.0
  %v7125 = vadd.f32 %v7123, %v7124
  %v7126 = vsel %vm1731, %v6938, 0.0
  %v7127 = vadd.f32 %v7125, %v7126
  %v7128 = vsel %vm1731, %v6943, 0.0
  %v7129 = vadd.f32 %v7127, %v7128
  %v7130 = vsel %vm1731, %v6946, 0.0
  %v7131 = vadd.f32 %v7129, %v7130
  %v7132 = vsel %vm1731, %v6951, 0.0
  %v7133 = vadd.f32 %v7131, %v7132
  %v7134 = vsel %vm1731, %v6954, 0.0
  %v7135 = vadd.f32 %v7133, %v7134
  %v7136 = vsel %vm1731, %v6959, 0.0
  %v7137 = vadd.f32 %v7135, %v7136
  %v7138 = vsel %vm1731, %v6962, 0.0
  %v7139 = vadd.f32 %v7137, %v7138
  %v7140 = vsel %vm1731, %v6967, 0.0
  %v7141 = vadd.f32 %v7139, %v7140
  %v7142 = vsel %vm1731, %v6970, 0.0
  %v7143 = vadd.f32 %v7141, %v7142
  %v7144 = vsel %vm1731, %v6975, 0.0
  %v7145 = vadd.f32 %v7143, %v7144
  %v7146 = vsel %vm1731, %v6978, 0.0
  %v7147 = vadd.f32 %v7145, %v7146
  %v7148 = vsel %vm1731, %v6983, 0.0
  %v7149 = vadd.f32 %v7147, %v7148
  %v7150 = vsel %vm1731, %v6986, 0.0
  %v7151 = vadd.f32 %v7149, %v7150
  %v7152 = vsel %vm1731, %v6991, 0.0
  %v7153 = vadd.f32 %v7151, %v7152
  %v7154 = vsel %vm1731, %v6994, 0.0
  %v7155 = vadd.f32 %v7153, %v7154
  %v7156 = vsel %vm1731, %v6999, 0.0
  %v7157 = vadd.f32 %v7155, %v7156
  %v7158 = vsel %vm1731, %v7002, 0.0
  %v7159 = vadd.f32 %v7157, %v7158
  %v7160 = vsel %vm1731, %v7007, 0.0
  %v7161 = vadd.f32 %v7159, %v7160
  %v7162 = vsel %vm1731, %v7010, 0.0
  %v7163 = vadd.f32 %v7161, %v7162
  %v7164 = vsel %vm1731, %v7015, 0.0
  %v7165 = vadd.f32 %v7163, %v7164
  %v7166 = vsel %vm1731, %v7018, 0.0
  %v7167 = vadd.f32 %v7165, %v7166
  %v7168 = vsel %vm1731, %v7023, 0.0
  %v7169 = vadd.f32 %v7167, %v7168
  %v7170 = vsel %vm1731, %v7026, 0.0
  %v7171 = vadd.f32 %v7169, %v7170
  %v7172 = vsel %vm1731, %v7031, 0.0
  %v7173 = vadd.f32 %v7171, %v7172
  %v7174 = vsel %vm1731, %v7034, 0.0
  %v7175 = vadd.f32 %v7173, %v7174
  %v7176 = vsel %vm1731, %v7039, 0.0
  %v7177 = vadd.f32 %v7175, %v7176
  %v7178 = vsel %vm1731, %v7042, 0.0
  %v7179 = vadd.f32 %v7177, %v7178
  %v7180 = vsel %vm1731, %v7047, 0.0
  %v7181 = vadd.f32 %v7179, %v7180
  %v7182 = vsel %vm1731, %v7050, 0.0
  %v7183 = vadd.f32 %v7181, %v7182
  %v7184 = vsel %vm1731, %v7055, 0.0
  %v7185 = vadd.f32 %v7183, %v7184
  %v7186 = vsel %vm1731, %v7058, 0.0
  %v7187 = vadd.f32 %v7185, %v7186
  %v7188 = vrot.slane %v7187, 4
  %v7189 = vadd.f32 %v7187, %v7188
  %v7190 = vrot.slane %v7189, 2
  %v7191 = vadd.f32 %v7189, %v7190
  %v7192 = vrot.slane %v7191, 1
  %v7193 = vadd.f32 %v7191, %v7192
  %v7194 = vmul.f32 %v6807, %v6807
  %v7195 = vmul.f32 %v6810, %v6810
  %v7196 = vmul.f32 %v6815, %v6815
  %v7197 = vmul.f32 %v6818, %v6818
  %v7198 = vmul.f32 %v6823, %v6823
  %v7199 = vmul.f32 %v6826, %v6826
  %v7200 = vmul.f32 %v6831, %v6831
  %v7201 = vmul.f32 %v6834, %v6834
  %v7202 = vmul.f32 %v6839, %v6839
  %v7203 = vmul.f32 %v6842, %v6842
  %v7204 = vmul.f32 %v6847, %v6847
  %v7205 = vmul.f32 %v6850, %v6850
  %v7206 = vmul.f32 %v6855, %v6855
  %v7207 = vmul.f32 %v6858, %v6858
  %v7208 = vmul.f32 %v6863, %v6863
  %v7209 = vmul.f32 %v6866, %v6866
  %v7210 = vmul.f32 %v6871, %v6871
  %v7211 = vmul.f32 %v6874, %v6874
  %v7212 = vmul.f32 %v6879, %v6879
  %v7213 = vmul.f32 %v6882, %v6882
  %v7214 = vmul.f32 %v6887, %v6887
  %v7215 = vmul.f32 %v6890, %v6890
  %v7216 = vmul.f32 %v6895, %v6895
  %v7217 = vmul.f32 %v6898, %v6898
  %v7218 = vmul.f32 %v6903, %v6903
  %v7219 = vmul.f32 %v6906, %v6906
  %v7220 = vmul.f32 %v6911, %v6911
  %v7221 = vmul.f32 %v6914, %v6914
  %v7222 = vmul.f32 %v6919, %v6919
  %v7223 = vmul.f32 %v6922, %v6922
  %v7224 = vmul.f32 %v6927, %v6927
  %v7225 = vmul.f32 %v6930, %v6930
  %v7226 = vmul.f32 %v6935, %v6935
  %v7227 = vmul.f32 %v6938, %v6938
  %v7228 = vmul.f32 %v6943, %v6943
  %v7229 = vmul.f32 %v6946, %v6946
  %v7230 = vmul.f32 %v6951, %v6951
  %v7231 = vmul.f32 %v6954, %v6954
  %v7232 = vmul.f32 %v6959, %v6959
  %v7233 = vmul.f32 %v6962, %v6962
  %v7234 = vmul.f32 %v6967, %v6967
  %v7235 = vmul.f32 %v6970, %v6970
  %v7236 = vmul.f32 %v6975, %v6975
  %v7237 = vmul.f32 %v6978, %v6978
  %v7238 = vmul.f32 %v6983, %v6983
  %v7239 = vmul.f32 %v6986, %v6986
  %v7240 = vmul.f32 %v6991, %v6991
  %v7241 = vmul.f32 %v6994, %v6994
  %v7242 = vmul.f32 %v6999, %v6999
  %v7243 = vmul.f32 %v7002, %v7002
  %v7244 = vmul.f32 %v7007, %v7007
  %v7245 = vmul.f32 %v7010, %v7010
  %v7246 = vmul.f32 %v7015, %v7015
  %v7247 = vmul.f32 %v7018, %v7018
  %v7248 = vmul.f32 %v7023, %v7023
  %v7249 = vmul.f32 %v7026, %v7026
  %v7250 = vmul.f32 %v7031, %v7031
  %v7251 = vmul.f32 %v7034, %v7034
  %v7252 = vmul.f32 %v7039, %v7039
  %v7253 = vmul.f32 %v7042, %v7042
  %v7254 = vmul.f32 %v7047, %v7047
  %v7255 = vmul.f32 %v7050, %v7050
  %v7256 = vmul.f32 %v7055, %v7055
  %v7257 = vmul.f32 %v7058, %v7058
  %v7258 = vsel %vm1731, %v7194, 0.0
  %v7259 = vsel %vm1731, %v7195, 0.0
  %v7260 = vadd.f32 %v7258, %v7259
  %v7261 = vsel %vm1731, %v7196, 0.0
  %v7262 = vadd.f32 %v7260, %v7261
  %v7263 = vsel %vm1731, %v7197, 0.0
  %v7264 = vadd.f32 %v7262, %v7263
  %v7265 = vsel %vm1731, %v7198, 0.0
  %v7266 = vadd.f32 %v7264, %v7265
  %v7267 = vsel %vm1731, %v7199, 0.0
  %v7268 = vadd.f32 %v7266, %v7267
  %v7269 = vsel %vm1731, %v7200, 0.0
  %v7270 = vadd.f32 %v7268, %v7269
  %v7271 = vsel %vm1731, %v7201, 0.0
  %v7272 = vadd.f32 %v7270, %v7271
  %v7273 = vsel %vm1731, %v7202, 0.0
  %v7274 = vadd.f32 %v7272, %v7273
  %v7275 = vsel %vm1731, %v7203, 0.0
  %v7276 = vadd.f32 %v7274, %v7275
  %v7277 = vsel %vm1731, %v7204, 0.0
  %v7278 = vadd.f32 %v7276, %v7277
  %v7279 = vsel %vm1731, %v7205, 0.0
  %v7280 = vadd.f32 %v7278, %v7279
  %v7281 = vsel %vm1731, %v7206, 0.0
  %v7282 = vadd.f32 %v7280, %v7281
  %v7283 = vsel %vm1731, %v7207, 0.0
  %v7284 = vadd.f32 %v7282, %v7283
  %v7285 = vsel %vm1731, %v7208, 0.0
  %v7286 = vadd.f32 %v7284, %v7285
  %v7287 = vsel %vm1731, %v7209, 0.0
  %v7288 = vadd.f32 %v7286, %v7287
  %v7289 = vsel %vm1731, %v7210, 0.0
  %v7290 = vadd.f32 %v7288, %v7289
  %v7291 = vsel %vm1731, %v7211, 0.0
  %v7292 = vadd.f32 %v7290, %v7291
  %v7293 = vsel %vm1731, %v7212, 0.0
  %v7294 = vadd.f32 %v7292, %v7293
  %v7295 = vsel %vm1731, %v7213, 0.0
  %v7296 = vadd.f32 %v7294, %v7295
  %v7297 = vsel %vm1731, %v7214, 0.0
  %v7298 = vadd.f32 %v7296, %v7297
  %v7299 = vsel %vm1731, %v7215, 0.0
  %v7300 = vadd.f32 %v7298, %v7299
  %v7301 = vsel %vm1731, %v7216, 0.0
  %v7302 = vadd.f32 %v7300, %v7301
  %v7303 = vsel %vm1731, %v7217, 0.0
  %v7304 = vadd.f32 %v7302, %v7303
  %v7305 = vsel %vm1731, %v7218, 0.0
  %v7306 = vadd.f32 %v7304, %v7305
  %v7307 = vsel %vm1731, %v7219, 0.0
  %v7308 = vadd.f32 %v7306, %v7307
  %v7309 = vsel %vm1731, %v7220, 0.0
  %v7310 = vadd.f32 %v7308, %v7309
  %v7311 = vsel %vm1731, %v7221, 0.0
  %v7312 = vadd.f32 %v7310, %v7311
  %v7313 = vsel %vm1731, %v7222, 0.0
  %v7314 = vadd.f32 %v7312, %v7313
  %v7315 = vsel %vm1731, %v7223, 0.0
  %v7316 = vadd.f32 %v7314, %v7315
  %v7317 = vsel %vm1731, %v7224, 0.0
  %v7318 = vadd.f32 %v7316, %v7317
  %v7319 = vsel %vm1731, %v7225, 0.0
  %v7320 = vadd.f32 %v7318, %v7319
  %v7321 = vsel %vm1731, %v7226, 0.0
  %v7322 = vadd.f32 %v7320, %v7321
  %v7323 = vsel %vm1731, %v7227, 0.0
  %v7324 = vadd.f32 %v7322, %v7323
  %v7325 = vsel %vm1731, %v7228, 0.0
  %v7326 = vadd.f32 %v7324, %v7325
  %v7327 = vsel %vm1731, %v7229, 0.0
  %v7328 = vadd.f32 %v7326, %v7327
  %v7329 = vsel %vm1731, %v7230, 0.0
  %v7330 = vadd.f32 %v7328, %v7329
  %v7331 = vsel %vm1731, %v7231, 0.0
  %v7332 = vadd.f32 %v7330, %v7331
  %v7333 = vsel %vm1731, %v7232, 0.0
  %v7334 = vadd.f32 %v7332, %v7333
  %v7335 = vsel %vm1731, %v7233, 0.0
  %v7336 = vadd.f32 %v7334, %v7335
  %v7337 = vsel %vm1731, %v7234, 0.0
  %v7338 = vadd.f32 %v7336, %v7337
  %v7339 = vsel %vm1731, %v7235, 0.0
  %v7340 = vadd.f32 %v7338, %v7339
  %v7341 = vsel %vm1731, %v7236, 0.0
  %v7342 = vadd.f32 %v7340, %v7341
  %v7343 = vsel %vm1731, %v7237, 0.0
  %v7344 = vadd.f32 %v7342, %v7343
  %v7345 = vsel %vm1731, %v7238, 0.0
  %v7346 = vadd.f32 %v7344, %v7345
  %v7347 = vsel %vm1731, %v7239, 0.0
  %v7348 = vadd.f32 %v7346, %v7347
  %v7349 = vsel %vm1731, %v7240, 0.0
  %v7350 = vadd.f32 %v7348, %v7349
  %v7351 = vsel %vm1731, %v7241, 0.0
  %v7352 = vadd.f32 %v7350, %v7351
  %v7353 = vsel %vm1731, %v7242, 0.0
  %v7354 = vadd.f32 %v7352, %v7353
  %v7355 = vsel %vm1731, %v7243, 0.0
  %v7356 = vadd.f32 %v7354, %v7355
  %v7357 = vsel %vm1731, %v7244, 0.0
  %v7358 = vadd.f32 %v7356, %v7357
  %v7359 = vsel %vm1731, %v7245, 0.0
  %v7360 = vadd.f32 %v7358, %v7359
  %v7361 = vsel %vm1731, %v7246, 0.0
  %v7362 = vadd.f32 %v7360, %v7361
  %v7363 = vsel %vm1731, %v7247, 0.0
  %v7364 = vadd.f32 %v7362, %v7363
  %v7365 = vsel %vm1731, %v7248, 0.0
  %v7366 = vadd.f32 %v7364, %v7365
  %v7367 = vsel %vm1731, %v7249, 0.0
  %v7368 = vadd.f32 %v7366, %v7367
  %v7369 = vsel %vm1731, %v7250, 0.0
  %v7370 = vadd.f32 %v7368, %v7369
  %v7371 = vsel %vm1731, %v7251, 0.0
  %v7372 = vadd.f32 %v7370, %v7371
  %v7373 = vsel %vm1731, %v7252, 0.0
  %v7374 = vadd.f32 %v7372, %v7373
  %v7375 = vsel %vm1731, %v7253, 0.0
  %v7376 = vadd.f32 %v7374, %v7375
  %v7377 = vsel %vm1731, %v7254, 0.0
  %v7378 = vadd.f32 %v7376, %v7377
  %v7379 = vsel %vm1731, %v7255, 0.0
  %v7380 = vadd.f32 %v7378, %v7379
  %v7381 = vsel %vm1731, %v7256, 0.0
  %v7382 = vadd.f32 %v7380, %v7381
  %v7383 = vsel %vm1731, %v7257, 0.0
  %v7384 = vadd.f32 %v7382, %v7383
  %v7385 = vrot.slane %v7384, 4
  %v7386 = vadd.f32 %v7384, %v7385
  %v7387 = vrot.slane %v7386, 2
  %v7388 = vadd.f32 %v7386, %v7387
  %v7389 = vrot.slane %v7388, 1
  %v7390 = vadd.f32 %v7388, %v7389
  %v7391 = vmul.f32 %v7193, 0.001953125
  %v7392 = vmul.f32 %v7390, 0.001953125
  %v7393 = vmul.f32 %v7391, %v7391
  %v7394 = vsub.f32 %v7392, %v7393
  %v7395 = vld [vmem:[%s11] sm:$0x1]
  %v7396 = vadd.f32 %v7394, 1e-05
  %v7397 = vrsqrt.pop %v7396
  %v7398 = vmul.f32 %v7395, %v7397
  %v7399 = vld [vmem:[%s12] sm:$0x1]
  %v7400 = vmul.f32 %v7391, %v7398
  %v7401 = vsub.f32 %v7399, %v7400
  %v7403 = vlaneseq
  %v7404 = vshrl.u32 %v7403, 7
  %v7405 = vsub.s32 0, %v7404
  %v7406 = vrot.slane %v7398, %v7405
  %v7408 = vmul.f32 %v6807, %v7406
  %v7409 = vmul.f32 %v6810, %v7406
  %v7410 = vmul.f32 %v6815, %v7406
  %v7411 = vmul.f32 %v6818, %v7406
  %v7412 = vmul.f32 %v6823, %v7406
  %v7413 = vmul.f32 %v6826, %v7406
  %v7414 = vmul.f32 %v6831, %v7406
  %v7415 = vmul.f32 %v6834, %v7406
  %v7416 = vmul.f32 %v6839, %v7406
  %v7417 = vmul.f32 %v6842, %v7406
  %v7418 = vmul.f32 %v6847, %v7406
  %v7419 = vmul.f32 %v6850, %v7406
  %v7420 = vmul.f32 %v6855, %v7406
  %v7421 = vmul.f32 %v6858, %v7406
  %v7422 = vmul.f32 %v6863, %v7406
  %v7423 = vmul.f32 %v6866, %v7406
  %v7424 = vmul.f32 %v6871, %v7406
  %v7425 = vmul.f32 %v6874, %v7406
  %v7426 = vmul.f32 %v6879, %v7406
  %v7427 = vmul.f32 %v6882, %v7406
  %v7428 = vmul.f32 %v6887, %v7406
  %v7429 = vmul.f32 %v6890, %v7406
  %v7430 = vmul.f32 %v6895, %v7406
  %v7431 = vmul.f32 %v6898, %v7406
  %v7432 = vmul.f32 %v6903, %v7406
  %v7433 = vmul.f32 %v6906, %v7406
  %v7434 = vmul.f32 %v6911, %v7406
  %v7435 = vmul.f32 %v6914, %v7406
  %v7436 = vmul.f32 %v6919, %v7406
  %v7437 = vmul.f32 %v6922, %v7406
  %v7438 = vmul.f32 %v6927, %v7406
  %v7439 = vmul.f32 %v6930, %v7406
  %v7440 = vmul.f32 %v6935, %v7406
  %v7441 = vmul.f32 %v6938, %v7406
  %v7442 = vmul.f32 %v6943, %v7406
  %v7443 = vmul.f32 %v6946, %v7406
  %v7444 = vmul.f32 %v6951, %v7406
  %v7445 = vmul.f32 %v6954, %v7406
  %v7446 = vmul.f32 %v6959, %v7406
  %v7447 = vmul.f32 %v6962, %v7406
  %v7448 = vmul.f32 %v6967, %v7406
  %v7449 = vmul.f32 %v6970, %v7406
  %v7450 = vmul.f32 %v6975, %v7406
  %v7451 = vmul.f32 %v6978, %v7406
  %v7452 = vmul.f32 %v6983, %v7406
  %v7453 = vmul.f32 %v6986, %v7406
  %v7454 = vmul.f32 %v6991, %v7406
  %v7455 = vmul.f32 %v6994, %v7406
  %v7456 = vmul.f32 %v6999, %v7406
  %v7457 = vmul.f32 %v7002, %v7406
  %v7458 = vmul.f32 %v7007, %v7406
  %v7459 = vmul.f32 %v7010, %v7406
  %v7460 = vmul.f32 %v7015, %v7406
  %v7461 = vmul.f32 %v7018, %v7406
  %v7462 = vmul.f32 %v7023, %v7406
  %v7463 = vmul.f32 %v7026, %v7406
  %v7464 = vmul.f32 %v7031, %v7406
  %v7465 = vmul.f32 %v7034, %v7406
  %v7466 = vmul.f32 %v7039, %v7406
  %v7467 = vmul.f32 %v7042, %v7406
  %v7468 = vmul.f32 %v7047, %v7406
  %v7469 = vmul.f32 %v7050, %v7406
  %v7470 = vmul.f32 %v7055, %v7406
  %v7471 = vmul.f32 %v7058, %v7406
  %v7473 = vlaneseq
  %v7474 = vshrl.u32 %v7473, 7
  %v7475 = vsub.s32 0, %v7474
  %v7476 = vrot.slane %v7401, %v7475
  %v7478 = vadd.f32 %v7408, %v7476
  %v7479 = vadd.f32 %v7409, %v7476
  %v7480 = vadd.f32 %v7410, %v7476
  %v7481 = vadd.f32 %v7411, %v7476
  %v7482 = vadd.f32 %v7412, %v7476
  %v7483 = vadd.f32 %v7413, %v7476
  %v7484 = vadd.f32 %v7414, %v7476
  %v7485 = vadd.f32 %v7415, %v7476
  %v7486 = vadd.f32 %v7416, %v7476
  %v7487 = vadd.f32 %v7417, %v7476
  %v7488 = vadd.f32 %v7418, %v7476
  %v7489 = vadd.f32 %v7419, %v7476
  %v7490 = vadd.f32 %v7420, %v7476
  %v7491 = vadd.f32 %v7421, %v7476
  %v7492 = vadd.f32 %v7422, %v7476
  %v7493 = vadd.f32 %v7423, %v7476
  %v7494 = vadd.f32 %v7424, %v7476
  %v7495 = vadd.f32 %v7425, %v7476
  %v7496 = vadd.f32 %v7426, %v7476
  %v7497 = vadd.f32 %v7427, %v7476
  %v7498 = vadd.f32 %v7428, %v7476
  %v7499 = vadd.f32 %v7429, %v7476
  %v7500 = vadd.f32 %v7430, %v7476
  %v7501 = vadd.f32 %v7431, %v7476
  %v7502 = vadd.f32 %v7432, %v7476
  %v7503 = vadd.f32 %v7433, %v7476
  %v7504 = vadd.f32 %v7434, %v7476
  %v7505 = vadd.f32 %v7435, %v7476
  %v7506 = vadd.f32 %v7436, %v7476
  %v7507 = vadd.f32 %v7437, %v7476
  %v7508 = vadd.f32 %v7438, %v7476
  %v7509 = vadd.f32 %v7439, %v7476
  %v7510 = vadd.f32 %v7440, %v7476
  %v7511 = vadd.f32 %v7441, %v7476
  %v7512 = vadd.f32 %v7442, %v7476
  %v7513 = vadd.f32 %v7443, %v7476
  %v7514 = vadd.f32 %v7444, %v7476
  %v7515 = vadd.f32 %v7445, %v7476
  %v7516 = vadd.f32 %v7446, %v7476
  %v7517 = vadd.f32 %v7447, %v7476
  %v7518 = vadd.f32 %v7448, %v7476
  %v7519 = vadd.f32 %v7449, %v7476
  %v7520 = vadd.f32 %v7450, %v7476
  %v7521 = vadd.f32 %v7451, %v7476
  %v7522 = vadd.f32 %v7452, %v7476
  %v7523 = vadd.f32 %v7453, %v7476
  %v7524 = vadd.f32 %v7454, %v7476
  %v7525 = vadd.f32 %v7455, %v7476
  %v7526 = vadd.f32 %v7456, %v7476
  %v7527 = vadd.f32 %v7457, %v7476
  %v7528 = vadd.f32 %v7458, %v7476
  %v7529 = vadd.f32 %v7459, %v7476
  %v7530 = vadd.f32 %v7460, %v7476
  %v7531 = vadd.f32 %v7461, %v7476
  %v7532 = vadd.f32 %v7462, %v7476
  %v7533 = vadd.f32 %v7463, %v7476
  %v7534 = vadd.f32 %v7464, %v7476
  %v7535 = vadd.f32 %v7465, %v7476
  %v7536 = vadd.f32 %v7466, %v7476
  %v7537 = vadd.f32 %v7467, %v7476
  %v7538 = vadd.f32 %v7468, %v7476
  %v7539 = vadd.f32 %v7469, %v7476
  %v7540 = vadd.f32 %v7470, %v7476
  %v7541 = vadd.f32 %v7471, %v7476
  %v7542 = vadd.f32 %v7478, %v52
  %v7543 = vadd.f32 %v7479, %v53
  %v7544 = vadd.f32 %v7480, %v54
  %v7545 = vadd.f32 %v7481, %v55
  %v7546 = vadd.f32 %v7482, %v56
  %v7547 = vadd.f32 %v7483, %v57
  %v7548 = vadd.f32 %v7484, %v58
  %v7549 = vadd.f32 %v7485, %v59
  %v7550 = vadd.f32 %v7486, %v60
  %v7551 = vadd.f32 %v7487, %v61
  %v7552 = vadd.f32 %v7488, %v62
  %v7553 = vadd.f32 %v7489, %v63
  %v7554 = vadd.f32 %v7490, %v64
  %v7555 = vadd.f32 %v7491, %v65
  %v7556 = vadd.f32 %v7492, %v66
  %v7557 = vadd.f32 %v7493, %v67
  %v7558 = vadd.f32 %v7494, %v68
  %v7559 = vadd.f32 %v7495, %v69
  %v7560 = vadd.f32 %v7496, %v70
  %v7561 = vadd.f32 %v7497, %v71
  %v7562 = vadd.f32 %v7498, %v72
  %v7563 = vadd.f32 %v7499, %v73
  %v7564 = vadd.f32 %v7500, %v74
  %v7565 = vadd.f32 %v7501, %v75
  %v7566 = vadd.f32 %v7502, %v76
  %v7567 = vadd.f32 %v7503, %v77
  %v7568 = vadd.f32 %v7504, %v78
  %v7569 = vadd.f32 %v7505, %v79
  %v7570 = vadd.f32 %v7506, %v80
  %v7571 = vadd.f32 %v7507, %v81
  %v7572 = vadd.f32 %v7508, %v82
  %v7573 = vadd.f32 %v7509, %v83
  %v7574 = vadd.f32 %v7510, %v84
  %v7575 = vadd.f32 %v7511, %v85
  %v7576 = vadd.f32 %v7512, %v86
  %v7577 = vadd.f32 %v7513, %v87
  %v7578 = vadd.f32 %v7514, %v88
  %v7579 = vadd.f32 %v7515, %v89
  %v7580 = vadd.f32 %v7516, %v90
  %v7581 = vadd.f32 %v7517, %v91
  %v7582 = vadd.f32 %v7518, %v92
  %v7583 = vadd.f32 %v7519, %v93
  %v7584 = vadd.f32 %v7520, %v94
  %v7585 = vadd.f32 %v7521, %v95
  %v7586 = vadd.f32 %v7522, %v96
  %v7587 = vadd.f32 %v7523, %v97
  %v7588 = vadd.f32 %v7524, %v98
  %v7589 = vadd.f32 %v7525, %v99
  %v7590 = vadd.f32 %v7526, %v100
  %v7591 = vadd.f32 %v7527, %v101
  %v7592 = vadd.f32 %v7528, %v102
  %v7593 = vadd.f32 %v7529, %v103
  %v7594 = vadd.f32 %v7530, %v104
  %v7595 = vadd.f32 %v7531, %v105
  %v7596 = vadd.f32 %v7532, %v106
  %v7597 = vadd.f32 %v7533, %v107
  %v7598 = vadd.f32 %v7534, %v108
  %v7599 = vadd.f32 %v7535, %v109
  %v7600 = vadd.f32 %v7536, %v110
  %v7601 = vadd.f32 %v7537, %v111
  %v7602 = vadd.f32 %v7538, %v112
  %v7603 = vadd.f32 %v7539, %v113
  %v7604 = vadd.f32 %v7540, %v114
  %v7605 = vadd.f32 %v7541, %v115
  %7606 = vst.msk [vmem:[%s13] sm:$0xff] %vm1731, %v7542
  %7607 = vst.msk [vmem:[%s13 + $0x8] sm:$0xff] %vm1731, %v7543
  %7608 = vst.msk [vmem:[%s13 + $0x10] sm:$0xff] %vm1731, %v7544
  %7609 = vst.msk [vmem:[%s13 + $0x18] sm:$0xff] %vm1731, %v7545
  %7610 = vst.msk [vmem:[%s13 + $0x20] sm:$0xff] %vm1731, %v7546
  %7611 = vst.msk [vmem:[%s13 + $0x28] sm:$0xff] %vm1731, %v7547
  %7612 = vst.msk [vmem:[%s13 + $0x30] sm:$0xff] %vm1731, %v7548
  %7613 = vst.msk [vmem:[%s13 + $0x38] sm:$0xff] %vm1731, %v7549
  %7614 = vst.msk [vmem:[%s13 + $0x40] sm:$0xff] %vm1731, %v7550
  %7615 = vst.msk [vmem:[%s13 + $0x48] sm:$0xff] %vm1731, %v7551
  %7616 = vst.msk [vmem:[%s13 + $0x50] sm:$0xff] %vm1731, %v7552
  %7617 = vst.msk [vmem:[%s13 + $0x58] sm:$0xff] %vm1731, %v7553
  %7618 = vst.msk [vmem:[%s13 + $0x60] sm:$0xff] %vm1731, %v7554
  %7619 = vst.msk [vmem:[%s13 + $0x68] sm:$0xff] %vm1731, %v7555
  %7620 = vst.msk [vmem:[%s13 + $0x70] sm:$0xff] %vm1731, %v7556
  %7621 = vst.msk [vmem:[%s13 + $0x78] sm:$0xff] %vm1731, %v7557
  %7622 = vst.msk [vmem:[%s13 + $0x80] sm:$0xff] %vm1731, %v7558
  %7623 = vst.msk [vmem:[%s13 + $0x88] sm:$0xff] %vm1731, %v7559
  %7624 = vst.msk [vmem:[%s13 + $0x90] sm:$0xff] %vm1731, %v7560
  %7625 = vst.msk [vmem:[%s13 + $0x98] sm:$0xff] %vm1731, %v7561
  %7626 = vst.msk [vmem:[%s13 + $0xa0] sm:$0xff] %vm1731, %v7562
  %7627 = vst.msk [vmem:[%s13 + $0xa8] sm:$0xff] %vm1731, %v7563
  %7628 = vst.msk [vmem:[%s13 + $0xb0] sm:$0xff] %vm1731, %v7564
  %7629 = vst.msk [vmem:[%s13 + $0xb8] sm:$0xff] %vm1731, %v7565
  %7630 = vst.msk [vmem:[%s13 + $0xc0] sm:$0xff] %vm1731, %v7566
  %7631 = vst.msk [vmem:[%s13 + $0xc8] sm:$0xff] %vm1731, %v7567
  %7632 = vst.msk [vmem:[%s13 + $0xd0] sm:$0xff] %vm1731, %v7568
  %7633 = vst.msk [vmem:[%s13 + $0xd8] sm:$0xff] %vm1731, %v7569
  %7634 = vst.msk [vmem:[%s13 + $0xe0] sm:$0xff] %vm1731, %v7570
  %7635 = vst.msk [vmem:[%s13 + $0xe8] sm:$0xff] %vm1731, %v7571
  %7636 = vst.msk [vmem:[%s13 + $0xf0] sm:$0xff] %vm1731, %v7572
  %7637 = vst.msk [vmem:[%s13 + $0xf8] sm:$0xff] %vm1731, %v7573
  %7638 = vst.msk [vmem:[%s13 + $0x100] sm:$0xff] %vm1731, %v7574
  %7639 = vst.msk [vmem:[%s13 + $0x108] sm:$0xff] %vm1731, %v7575
  %7640 = vst.msk [vmem:[%s13 + $0x110] sm:$0xff] %vm1731, %v7576
  %7641 = vst.msk [vmem:[%s13 + $0x118] sm:$0xff] %vm1731, %v7577
  %7642 = vst.msk [vmem:[%s13 + $0x120] sm:$0xff] %vm1731, %v7578
  %7643 = vst.msk [vmem:[%s13 + $0x128] sm:$0xff] %vm1731, %v7579
  %7644 = vst.msk [vmem:[%s13 + $0x130] sm:$0xff] %vm1731, %v7580
  %7645 = vst.msk [vmem:[%s13 + $0x138] sm:$0xff] %vm1731, %v7581
  %7646 = vst.msk [vmem:[%s13 + $0x140] sm:$0xff] %vm1731, %v7582
  %7647 = vst.msk [vmem:[%s13 + $0x148] sm:$0xff] %vm1731, %v7583
  %7648 = vst.msk [vmem:[%s13 + $0x150] sm:$0xff] %vm1731, %v7584
  %7649 = vst.msk [vmem:[%s13 + $0x158] sm:$0xff] %vm1731, %v7585
  %7650 = vst.msk [vmem:[%s13 + $0x160] sm:$0xff] %vm1731, %v7586
  %7651 = vst.msk [vmem:[%s13 + $0x168] sm:$0xff] %vm1731, %v7587
  %7652 = vst.msk [vmem:[%s13 + $0x170] sm:$0xff] %vm1731, %v7588
  %7653 = vst.msk [vmem:[%s13 + $0x178] sm:$0xff] %vm1731, %v7589
  %7654 = vst.msk [vmem:[%s13 + $0x180] sm:$0xff] %vm1731, %v7590
  %7655 = vst.msk [vmem:[%s13 + $0x188] sm:$0xff] %vm1731, %v7591
  %7656 = vst.msk [vmem:[%s13 + $0x190] sm:$0xff] %vm1731, %v7592
  %7657 = vst.msk [vmem:[%s13 + $0x198] sm:$0xff] %vm1731, %v7593
  %7658 = vst.msk [vmem:[%s13 + $0x1a0] sm:$0xff] %vm1731, %v7594
  %7659 = vst.msk [vmem:[%s13 + $0x1a8] sm:$0xff] %vm1731, %v7595
  %7660 = vst.msk [vmem:[%s13 + $0x1b0] sm:$0xff] %vm1731, %v7596
  %7661 = vst.msk [vmem:[%s13 + $0x1b8] sm:$0xff] %vm1731, %v7597
  %7662 = vst.msk [vmem:[%s13 + $0x1c0] sm:$0xff] %vm1731, %v7598
  %7663 = vst.msk [vmem:[%s13 + $0x1c8] sm:$0xff] %vm1731, %v7599
  %7664 = vst.msk [vmem:[%s13 + $0x1d0] sm:$0xff] %vm1731, %v7600
  %7665 = vst.msk [vmem:[%s13 + $0x1d8] sm:$0xff] %vm1731, %v7601
  %7666 = vst.msk [vmem:[%s13 + $0x1e0] sm:$0xff] %vm1731, %v7602
  %7667 = vst.msk [vmem:[%s13 + $0x1e8] sm:$0xff] %vm1731, %v7603
  %7668 = vst.msk [vmem:[%s13 + $0x1f0] sm:$0xff] %vm1731, %v7604
  %7669 = vst.msk [vmem:[%s13 + $0x1f8] sm:$0xff] %vm1731, %v7605
  // Predicated region
  $region54: #{tpu_custom_call.1} parent=0 // pred_check
    _
  $region55: #{tpu_custom_call.1} parent=0 // pred_check_branch
    %7671 = sbr.rel (0) target = $region57
  $region56: #{tpu_custom_call.1} parent=0 // pred_region
    _
  $region57: #{tpu_custom_call.1} parent=0 // pred_fallthru
    _
  // Predicated region
  $region58: #{tpu_custom_call.1} parent=0 // pred_check
    _
  $region59: #{tpu_custom_call.1} parent=0 // pred_check_branch
    %7673 = sbr.rel (0) target = $region61
  $region60: #{tpu_custom_call.1} parent=0 // pred_region
    _
  $region61: #{tpu_custom_call.1} parent=0 // pred_fallthru
    _

</llo_original>
